<compile_context>
chip_gen: v7x
topology: tpu7x:2x2x1
jax: 0.10.0
libtpu: 0.0.40
codegen_flags: <defaults>
</compile_context>

<pallas_src>
import functools

import jax
import jax.numpy as jnp
import numpy as np
from jax.experimental import pallas as pl
from jax.experimental.pallas import tpu as pltpu

H = W = 224
K = H * W * 2            # 100352  (concatenated feature dim)
D1 = 1000                # hidden 1 (logical)
D1P = 1024               # hidden 1 padded to a multiple of 128 lanes
D1H = D1P // 2           # 512-column half (one half per TensorCore on v7x)
D2 = 32                  # hidden 2
D3 = 4                   # output
TK = 7168                # K tile: 100352 / 7168 = 14 K-steps per column half


def _layer1_kernel(x_ref, w1_ref, b1_ref, h1_ref, acc_ref):
    """ReLU(x @ W1_half + b1_half) for one 512-column half, K-tiled reduction."""
    k = pl.program_id(1)

    @pl.when(k == 0)
    def _():
        acc_ref[...] = jnp.zeros_like(acc_ref)

    # bf16 x bf16 -> f32 accumulate on the MXU for this K-slab.
    acc_ref[...] += jnp.dot(x_ref[...], w1_ref[...],
                            preferred_element_type=jnp.float32)

    @pl.when(k == pl.num_programs(1) - 1)
    def _():
        h1_ref[...] = jnp.maximum(acc_ref[...] + b1_ref[...], 0.0)


def prepare_params(params):
    """One-time weight preprocessing (do NOT run per forward call).

    - W1: (K, 1000) f32 -> (2, K, 512) bf16, zero-padded columns, pre-split so
          each column half is contiguous in HBM (one half per TensorCore).
    - b1: (1000,)   f32 -> (2, 1, 512) f32, zero-padded, split to match.
    - W2: (1000,32) f32 -> (1024, 32) f32, zero-padded rows (padded h1 lanes are
          ReLU(0)=0 and hit zero rows, so padding is inert).
    - b2, W3, b3: reshaped to 2-D rows / kept f32 for the XLA epilogue.
    """
    w1, b1, w2, b2, w3, b3 = params
    w1p = jnp.pad(w1, ((0, 0), (0, D1P - D1))).astype(jnp.bfloat16)   # (K, 1024)
    w1s = w1p.reshape(K, 2, D1H).transpose(1, 0, 2)                   # (2, K, 512)
    b1s = jnp.pad(b1, (0, D1P - D1)).astype(jnp.float32).reshape(2, 1, D1H)
    w2p = jnp.pad(w2, ((0, D1P - D1), (0, 0))).astype(jnp.float32)    # (1024, 32)
    b2r = b2.reshape(1, D2).astype(jnp.float32)
    w3f = w3.astype(jnp.float32)
    b3r = b3.reshape(1, D3).astype(jnp.float32)
    return w1s, b1s, w2p, b2r, w3f, b3r


def inverse_net_forward(x1, x2, prepared_params):
    """Pallas implementation of InverseNet.forward. Returns (x1, x2, out)."""
    w1s, b1s, w2p, b2r, w3f, b3r = prepared_params
    B = x1.shape[0]

    # Glue: flatten + concat (matches torch.cat of the two .view(-1, 224*224)),
    # cast to bf16 to match the bf16 W1 stream (f32 accumulation in the kernel).
    x_cat = jnp.concatenate(
        [x1.reshape(B, H * W), x2.reshape(B, H * W)], axis=1
    ).astype(jnp.bfloat16)                                           # (B, K)

    grid = (2, K // TK)   # (column half [parallel], K reduction [arbitrary])

    cost = pl.CostEstimate(
        flops=2 * B * K * D1P,
        transcendentals=0,
        bytes_accessed=K * D1P * 2 + 2 * B * K * 2 + B * D1P * 4,
    )

    h1 = pl.pallas_call(
        _layer1_kernel,
        out_shape=jax.ShapeDtypeStruct((B, D1P), jnp.float32),
        grid_spec=pltpu.PrefetchScalarGridSpec(
            num_scalar_prefetch=0,
            grid=grid,
            in_specs=[
                # x K-slab (bf16), shared by both column halves.
                pl.BlockSpec((B, TK), lambda c, k: (0, k)),
                # W1 contiguous (K-slab, 512-col half) block (bf16).
                pl.BlockSpec((None, TK, D1H), lambda c, k: (c, k, 0)),
                # b1 half (resident).
                pl.BlockSpec((None, 1, D1H), lambda c, k: (c, 0, 0)),
            ],
            # Lane-dense h1 output; each column half writes its own 512 lanes.
            out_specs=pl.BlockSpec((B, D1H), lambda c, k: (0, c)),
            scratch_shapes=[pltpu.VMEM((B, D1H), jnp.float32)],
        ),
        compiler_params=pltpu.CompilerParams(
            dimension_semantics=("parallel", "arbitrary"),
            vmem_limit_bytes=32 * 1024 * 1024,
        ),
        cost_estimate=cost,
    )(x_cat, w1s, b1s)

    # Tiny layer-2/3 epilogue (~65 KFLOP) in plain XLA.
    h2 = jnp.maximum(h1 @ w2p + b2r, 0.0)
    out = h2 @ w3f + b3r
    return x1, x2, out


def _init_params(key):
    """Deterministic synthetic parameters with the shapes from __init__."""
    k1, k2, k3, k4, k5, k6 = jax.random.split(key, 6)
    w1 = 0.01 * jax.random.normal(k1, (K, D1), dtype=jnp.float32)
    b1 = 0.01 * jax.random.normal(k2, (D1,), dtype=jnp.float32)
    w2 = 0.05 * jax.random.normal(k3, (D1, D2), dtype=jnp.float32)
    b2 = 0.05 * jax.random.normal(k4, (D2,), dtype=jnp.float32)
    w3 = 0.1 * jax.random.normal(k5, (D2, D3), dtype=jnp.float32)
    b3 = 0.1 * jax.random.normal(k6, (D3,), dtype=jnp.float32)
    return w1, b1, w2, b2, w3, b3


def _reference(x1, x2, params):
    """Plain-JAX f32 reference of the PyTorch forward (unpadded weights)."""
    w1, b1, w2, b2, w3, b3 = params
    B = x1.shape[0]
    x = jnp.concatenate([x1.reshape(B, H * W), x2.reshape(B, H * W)], axis=1)
    h1 = jnp.maximum(x @ w1 + b1, 0.0)
    h2 = jnp.maximum(h1 @ w2 + b2, 0.0)
    return h2 @ w3 + b3


if __name__ == "__main__":
    key = jax.random.PRNGKey(0)
    kp, kx1, kx2 = jax.random.split(key, 3)

    params = _init_params(kp)
    prepared = jax.tree.map(jax.block_until_ready, prepare_params(params))

    B = 2  # batch size; x1/x2 are (B, 224, 224) per the forward's view(-1, 224*224)
    x1 = 0.05 * jax.random.normal(kx1, (B, H, W), dtype=jnp.float32)
    x2 = 0.05 * jax.random.normal(kx2, (B, H, W), dtype=jnp.float32)

    fwd = jax.jit(functools.partial(inverse_net_forward,
                                    prepared_params=prepared))
    r1, r2, out = fwd(x1, x2)
    jax.block_until_ready(out)

    # Sanity check against a plain-JAX f32 reference (loose tol: bf16 W1/x stream
    # with f32 MXU accumulation).
    ref = jax.block_until_ready(_reference(x1, x2, params))
    np.testing.assert_allclose(np.asarray(out), np.asarray(ref),
                               rtol=5e-2, atol=5e-2)
    assert r1.shape == (B, H, W) and r2.shape == (B, H, W) and out.shape == (B, 4)

    print("KERNEL_OK")
</pallas_src>

<mosaic_0001>
module attributes {stable_mosaic.version = 11 : i64} {
  func.func @_layer1_kernel(%arg0: i32, %arg1: i32, %arg2: memref<2x7168xbf16, #tpu.memory_space<vmem>>, %arg3: memref<1x7168x512xbf16, #tpu.memory_space<vmem>>, %arg4: memref<1x1x512xf32, #tpu.memory_space<vmem>>, %arg5: memref<2x512xf32, #tpu.memory_space<vmem>>, %arg6: memref<2x512xf32, #tpu.memory_space<vmem>>) attributes {dimension_semantics = [#tpu.dimension_semantics<parallel>, #tpu.dimension_semantics<arbitrary>], iteration_bounds = array<i64: 2, 14>, scalar_prefetch = 0 : i64, scratch_operands = 1 : i64, tpu.core_type = #tpu.core_type<tc>, window_params = [{transform_indices = @transform_0, window_bounds = array<i64: 2, 7168>}, {transform_indices = @transform_1, window_bounds = array<i64: 1, 7168, 512>}, {transform_indices = @transform_2, window_bounds = array<i64: 1, 1, 512>}, {transform_indices = @transform_3, window_bounds = array<i64: 2, 512>}]} {
    %c0_i32 = arith.constant 0 : i32
    %0 = arith.cmpi eq, %arg1, %c0_i32 : i32
    %1 = arith.extui %0 : i1 to i32
    %c0_i32_0 = arith.constant 0 : i32
    %2 = arith.cmpi ne, %1, %c0_i32_0 : i32
    scf.if %2 {
      %cst_10 = arith.constant 0.000000e+00 : f32
      %13 = vector.broadcast %cst_10 : f32 to vector<2x512xf32>
      %c0_11 = arith.constant 0 : index
      %c0_12 = arith.constant 0 : index
      %14 = vector.load %arg6[%c0_11, %c0_12] : memref<2x512xf32, #tpu.memory_space<vmem>>, vector<2x512xf32>
      tpu.vector_store %arg6[%c0_11, %c0_12], %13 {strides = array<i32>} : memref<2x512xf32, #tpu.memory_space<vmem>>, vector<2x512xf32>,
    } else {
    }
    %c0 = arith.constant 0 : index
    %c0_1 = arith.constant 0 : index
    %3 = vector.load %arg6[%c0, %c0_1] : memref<2x512xf32, #tpu.memory_space<vmem>>, vector<2x512xf32>
    %c0_2 = arith.constant 0 : index
    %c0_3 = arith.constant 0 : index
    %4 = vector.load %arg2[%c0_2, %c0_3] : memref<2x7168xbf16, #tpu.memory_space<vmem>>, vector<2x7168xbf16>
    %c0_4 = arith.constant 0 : index
    %c0_5 = arith.constant 0 : index
    %c0_6 = arith.constant 0 : index
    %5 = vector.load %arg3[%c0_4, %c0_5, %c0_6] : memref<1x7168x512xbf16, #tpu.memory_space<vmem>>, vector<1x7168x512xbf16>
    %6 = vector.shape_cast %5 : vector<1x7168x512xbf16> to vector<7168x512xbf16>
    %cst = arith.constant dense<0.000000e+00> : vector<2x512xf32>
    %7 = tpu.matmul %4, %6, %cst {dimension_numbers = #tpu.dot_dimension_numbers<[1], [0], [0], [1], [0, 0, 1, 1], [], []>} : vector<2x7168xbf16>, vector<7168x512xbf16>, vector<2x512xf32> -> vector<2x512xf32>
    %8 = arith.addf %3, %7 : vector<2x512xf32>
    %c0_7 = arith.constant 0 : index
    %c0_8 = arith.constant 0 : index
    %9 = vector.load %arg6[%c0_7, %c0_8] : memref<2x512xf32, #tpu.memory_space<vmem>>, vector<2x512xf32>
    tpu.vector_store %arg6[%c0_7, %c0_8], %8 {strides = array<i32>} : memref<2x512xf32, #tpu.memory_space<vmem>>, vector<2x512xf32>,
    %c13_i32 = arith.constant 13 : i32
    %10 = arith.cmpi eq, %arg1, %c13_i32 : i32
    %11 = arith.extui %10 : i1 to i32
    %c0_i32_9 = arith.constant 0 : i32
    %12 = arith.cmpi ne, %11, %c0_i32_9 : i32
    scf.if %12 {
      %c0_10 = arith.constant 0 : index
      %c0_11 = arith.constant 0 : index
      %13 = vector.load %arg6[%c0_10, %c0_11] : memref<2x512xf32, #tpu.memory_space<vmem>>, vector<2x512xf32>
      %c0_12 = arith.constant 0 : index
      %c0_13 = arith.constant 0 : index
      %c0_14 = arith.constant 0 : index
      %14 = vector.load %arg4[%c0_12, %c0_13, %c0_14] : memref<1x1x512xf32, #tpu.memory_space<vmem>>, vector<1x1x512xf32>
      %15 = vector.shape_cast %14 : vector<1x1x512xf32> to vector<1x512xf32>
      %16 = vector.broadcast %15 : vector<1x512xf32> to vector<2x512xf32>
      %17 = arith.addf %13, %16 : vector<2x512xf32>
      %cst_15 = arith.constant 0.000000e+00 : f32
      %18 = vector.broadcast %cst_15 : f32 to vector<2x512xf32>
      %19 = arith.maximumf %17, %18 : vector<2x512xf32>
      %c0_16 = arith.constant 0 : index
      %c0_17 = arith.constant 0 : index
      %20 = vector.load %arg5[%c0_16, %c0_17] : memref<2x512xf32, #tpu.memory_space<vmem>>, vector<2x512xf32>
      tpu.vector_store %arg5[%c0_16, %c0_17], %19 {strides = array<i32>} : memref<2x512xf32, #tpu.memory_space<vmem>>, vector<2x512xf32>,
    } else {
    }
    return
  }
  func.func @transform_0(%arg0: i32, %arg1: i32) -> (i32, i32) {
    %c0_i32 = arith.constant 0 : i32
    %c0_i32_0 = arith.constant 0 : i32
    return %c0_i32, %arg1 : i32, i32
  }
  func.func @transform_1(%arg0: i32, %arg1: i32) -> (i32, i32, i32) {
    %c0_i32 = arith.constant 0 : i32
    %c0_i32_0 = arith.constant 0 : i32
    return %arg0, %arg1, %c0_i32 : i32, i32, i32
  }
  func.func @transform_2(%arg0: i32, %arg1: i32) -> (i32, i32, i32) {
    %c0_i32 = arith.constant 0 : i32
    %c0_i32_0 = arith.constant 0 : i32
    %c0_i32_1 = arith.constant 0 : i32
    return %arg0, %c0_i32, %c0_i32_0 : i32, i32, i32
  }
  func.func @transform_3(%arg0: i32, %arg1: i32) -> (i32, i32) {
    %c0_i32 = arith.constant 0 : i32
    %c0_i32_0 = arith.constant 0 : i32
    return %c0_i32, %arg0 : i32, i32
  }
}

</mosaic_0001>

<llo_original>
// kernel: inverse_net_forward.1
$region0: #{inverse_net_forward.1}
  #allocation0 [shape = 'u32[]', space=smem, size = 0x4, offset = 0x4, fixed_abs, tag = 'smem constant byte address 0x4 - core index']
  #allocation1 [shape = 'u32[144,128]{1,0:T(1,128)}', space=vmem, size = 0x12000, scoped, tag = 'internal scratch']
  #allocation2 [shape = 'f32[2,512]{1,0:T(2,128)}', space=vmem, size = 0x1000, scoped, tag = 'scratch operand']
  %s0 = inlined_call_operand.vmem [shape: bf16[2,100352], index: 0, kind: input, shape index: {}]
  %s1 = inlined_call_operand.hbm [shape: bf16[2,100352,512], index: 1, kind: input, shape index: {}]
  %s2 = inlined_call_operand.vmem [shape: f32[2,1,512], index: 2, kind: input, shape index: {}]
  %s3 = inlined_call_operand.vmem [shape: f32[2,1024], index: 3, kind: output, shape index: {}]
  %s4 = sld [smem:[#allocation0]]
  $region57: #{inverse_net_forward.1} parent=0
    _
  %s6 = ssub.s32 1, %s4
  %s7 = scalar_select 0, %s6, %s4
  $region1: #{inverse_net_forward.1} parent=0
    #allocation3 [shape = 'u8[14680064]{0}', space=vmem, size = 0xe00000, scoped, tag = 'input window, operand 1']
    #allocation4 [shape = 's32[2]{0}', space=sflag, size = 0x8, scoped, tag = 'scoped memory for inverse_net_forward.1']
    %8 = vsyncpa [#allocation4], 0
    %s9 = scalar_lea.sflag [#allocation4], 1
    %10 = vsyncpa %s9, 0
    loop: start=0, step=1, limit=30
    $region2: #{inverse_net_forward.1} parent=1 // loop_pre_header
      _
    $region3: #{inverse_net_forward.1} parent=1 // loop_header
      %s12 = sphi 0, %s16
      %p13 = scmp.ge.s32.totalorder %s12, 30
      %s19 = sphi 0, %s31
      %s20 = sphi 0, %s27
      %s21 = sphi 0, %s19
      %s22 = sphi 0, %s20
      %s23 = sphi 0, %s21
      %s24 = sphi 0, %s22
      %s34 = sphi 0, %s36
      %s37 = sphi 0, %s34
      %s38 = sphi 0, %s37
      %s54 = sphi 0, %s38
      %s62 = sphi 0, %s64
      %s65 = sphi 0, %s62
      %s66 = sphi 0, %s65
      %s82 = sphi 0, %s66
      %s88 = sphi 0, %s90
      %s91 = sphi 0, %s88
      %s92 = sphi 0, %s91
      %s108 = sphi 0, %s92
      %s114 = sphi 0, %s116
      %s117 = sphi 0, %s114
      %s118 = sphi 0, %s117
      %s134 = sphi 0, %s118
    $region4: #{inverse_net_forward.1} parent=1 // loop_header_branch
      %15 = sbr.rel (%p13) target = $region8
    $region5: #{inverse_net_forward.1} parent=1 // loop_body
      %s17 = ssub.s32 %s12, 1
      %s18 = ssub.s32 %s12, 2
      %s25 = sadd.s32 1, %s20
      %p26 = scmp.ge.s32.totalorder %s25, 14
      %s27 = scalar_select %p26, 0, %s25
      %s28 = sadd.s32 1, %s19
      %s29 = scalar_select %p26, %s28, %s19
      %p30 = scmp.ge.s32.totalorder %s29, 2
      %s31 = scalar_select %p30, 0, %s29
      %s32 = ssub.s32 %s20, %s27
      %p33 = scmp.eq.s32.totalorder %s32, 0
      %s35 = sadd.s32 %s34, 1
      %s36 = scalar_select %p33, %s34, %s35
      %p39 = pneg %p33
      %p40 = scmp.eq.s32.totalorder %s12, 27
      %p41 = por %p39, %p40
      %p42 = scmp.ne.s32.totalorder %s34, %s37
      %p43 = scmp.eq.s32.totalorder %s12, 0
      %p44 = por %p42, %p43
      %p45 = scmp.ne.s32.totalorder %s34, %s37
      %p46 = scmp.eq.s32.totalorder %s17, 27
      %p47 = por %p45, %p46
      %p48 = scmp.ne.s32.totalorder %s37, %s38
      %p49 = scmp.eq.s32.totalorder %s17, 0
      %p50 = por %p48, %p49
      %p51 = scmp.ne.s32.totalorder %s37, %s38
      %p52 = scmp.eq.s32.totalorder %s18, 27
      %p53 = por %p51, %p52
      %p55 = scmp.ne.s32.totalorder %s38, %s54
      %p56 = scmp.eq.s32.totalorder %s18, 0
      %p57 = por %p55, %p56
      %s58 = ssub.s32 %s19, %s31
      %s59 = ssub.s32 %s20, %s27
      %s60 = sor.u32 %s58, %s59
      %p61 = scmp.eq.s32.totalorder %s60, 0
      %s63 = sadd.s32 %s62, 1
      %s64 = scalar_select %p61, %s62, %s63
      %p67 = pneg %p61
      %p68 = scmp.eq.s32.totalorder %s12, 27
      %p69 = por %p67, %p68
      %p70 = scmp.ne.s32.totalorder %s62, %s65
      %p71 = scmp.eq.s32.totalorder %s12, 0
      %p72 = por %p70, %p71
      %p73 = scmp.ne.s32.totalorder %s62, %s65
      %p74 = scmp.eq.s32.totalorder %s17, 27
      %p75 = por %p73, %p74
      %p76 = scmp.ne.s32.totalorder %s65, %s66
      %p77 = scmp.eq.s32.totalorder %s17, 0
      %p78 = por %p76, %p77
      %p79 = scmp.ne.s32.totalorder %s65, %s66
      %p80 = scmp.eq.s32.totalorder %s18, 27
      %p81 = por %p79, %p80
      %p83 = scmp.ne.s32.totalorder %s66, %s82
      %p84 = scmp.eq.s32.totalorder %s18, 0
      %p85 = por %p83, %p84
      %s86 = ssub.s32 %s19, %s31
      %p87 = scmp.eq.s32.totalorder %s86, 0
      %s89 = sadd.s32 %s88, 1
      %s90 = scalar_select %p87, %s88, %s89
      %p93 = pneg %p87
      %p94 = scmp.eq.s32.totalorder %s12, 27
      %p95 = por %p93, %p94
      %p96 = scmp.ne.s32.totalorder %s88, %s91
      %p97 = scmp.eq.s32.totalorder %s12, 0
      %p98 = por %p96, %p97
      %p99 = scmp.ne.s32.totalorder %s88, %s91
      %p100 = scmp.eq.s32.totalorder %s17, 27
      %p101 = por %p99, %p100
      %p102 = scmp.ne.s32.totalorder %s91, %s92
      %p103 = scmp.eq.s32.totalorder %s17, 0
      %p104 = por %p102, %p103
      %p105 = scmp.ne.s32.totalorder %s91, %s92
      %p106 = scmp.eq.s32.totalorder %s18, 27
      %p107 = por %p105, %p106
      %p109 = scmp.ne.s32.totalorder %s92, %s108
      %p110 = scmp.eq.s32.totalorder %s18, 0
      %p111 = por %p109, %p110
      %s112 = ssub.s32 %s19, %s31
      %p113 = scmp.eq.s32.totalorder %s112, 0
      %s115 = sadd.s32 %s114, 1
      %s116 = scalar_select %p113, %s114, %s115
      %p119 = pneg %p113
      %p120 = scmp.eq.s32.totalorder %s12, 27
      %p121 = por %p119, %p120
      %p122 = scmp.ne.s32.totalorder %s114, %s117
      %p123 = scmp.eq.s32.totalorder %s12, 0
      %p124 = por %p122, %p123
      %p125 = scmp.ne.s32.totalorder %s114, %s117
      %p126 = scmp.eq.s32.totalorder %s17, 27
      %p127 = por %p125, %p126
      %p128 = scmp.ne.s32.totalorder %s117, %s118
      %p129 = scmp.eq.s32.totalorder %s17, 0
      %p130 = por %p128, %p129
      %p131 = scmp.ne.s32.totalorder %s117, %s118
      %p132 = scmp.eq.s32.totalorder %s18, 27
      %p133 = por %p131, %p132
      %p135 = scmp.ne.s32.totalorder %s118, %s134
      %p136 = scmp.eq.s32.totalorder %s18, 0
      %p137 = por %p135, %p136
      %p138 = scmp.le.s32.totalorder 1, %s12
      %p139 = scmp.lt.s32.totalorder %s12, 29
      %p140 = pnand %p138, %p139
      %p141 = pneg %p140
      // Predicated region
      $region9: #{inverse_net_forward.1} parent=5 // pred_check
        _
      $region10: #{inverse_net_forward.1} parent=5 // pred_check_branch
        %143 = sbr.rel (%p140) target = $region12
      $region11: #{inverse_net_forward.1} parent=5 // pred_region
        %s144 = ssub.s32 %s12, 1
      $region12: #{inverse_net_forward.1} parent=5 // pred_fallthru
        _
      %p145 = scmp.lt.s32.totalorder %s12, 28
      // Predicated region
      $region13: #{inverse_net_forward.1} parent=5 // pred_check
        %p146 = pneg %p145
      $region14: #{inverse_net_forward.1} parent=5 // pred_check_branch
        %148 = sbr.rel (%p146) target = $region16
      $region15: #{inverse_net_forward.1} parent=5 // pred_region
        // Predicated region
        $region17: #{inverse_net_forward.1} parent=15 // pred_check
          %p149 = pneg %p44
        $region18: #{inverse_net_forward.1} parent=15 // pred_check_branch
          %151 = sbr.rel (%p149) target = $region20
        $region19: #{inverse_net_forward.1} parent=15 // pred_region
          %s152 = smul.u32 56, %s20
          %p153 = scmp.lt.s32.totalorder %s152, 783
          %s154 = scalar_select %p153, %s152, 783
          %s155 = scalar_lea.vmem %s0, %s154
          %s156 = smul.u32 56, %s20
        $region20: #{inverse_net_forward.1} parent=15 // pred_fallthru
          _
        // Predicated region
        $region21: #{inverse_net_forward.1} parent=15 // pred_check
          %p157 = pneg %p72
        $region22: #{inverse_net_forward.1} parent=15 // pred_check_branch
          %159 = sbr.rel (%p157) target = $region24
        $region23: #{inverse_net_forward.1} parent=15 // pred_region
          %s160 = sand.u32 %s62, 1
          %s161 = scalar_lea.sflag [#allocation4], %s160
          %s162 = sand.u32 %s62, 1
          %s163 = smul.addr %s162, 14336
          %s164 = scalar_lea.vmem [#allocation3], %s163
          %s165 = smul.u32 896, %s20
          %s167 = ssub.s32 229376, 229376
          %168 = vsyncadd %s161, %s167
          %s169 = smul.addr %s165, 4
          %s170 = smul.addr %s19, 50176
          %s171 = sadd.s32 %s169, %s170
          %s172 = smul.addr %s171, 64
          %s173 = scalar_lea.hbm %s1, %s172
          %s174 = sshll.u32 %s164, 4
          %s175 = int_to_ptr.vmem [resolvable:$true] %s174
          %180 = dma.hbm_to_vmem [thread:$0]  %s173, 229376, %s175, %s161, 256, 256, 16
        $region24: #{inverse_net_forward.1} parent=15 // pred_fallthru
          _
        // Predicated region
        $region25: #{inverse_net_forward.1} parent=15 // pred_check
          %p181 = pneg %p98
        $region26: #{inverse_net_forward.1} parent=15 // pred_check_branch
          %183 = sbr.rel (%p181) target = $region28
        $region27: #{inverse_net_forward.1} parent=15 // pred_region
          %p184 = scmp.lt.s32.totalorder %s19, 1
          %s185 = scalar_select %p184, %s19, 1
          %s186 = smul.addr %s185, 4
          %s187 = scalar_lea.vmem %s2, %s186
        $region28: #{inverse_net_forward.1} parent=15 // pred_fallthru
          _
      $region16: #{inverse_net_forward.1} parent=5 // pred_fallthru
        _
      %p188 = scmp.le.s32.totalorder 1, %s12
      %p189 = scmp.lt.s32.totalorder %s12, 29
      %p190 = pnand %p188, %p189
      %p191 = pneg %p190
      // Predicated region
      $region29: #{inverse_net_forward.1} parent=5 // pred_check
        _
      $region30: #{inverse_net_forward.1} parent=5 // pred_check_branch
        %193 = sbr.rel (%p190) target = $region32
      $region31: #{inverse_net_forward.1} parent=5 // pred_region
        %s194 = ssub.s32 %s12, 1
        %s195 = sand.u32 %s65, 1
        %s196 = scalar_lea.sflag [#allocation4], %s195
        %s197 = sand.u32 %s65, 1
        %s198 = smul.addr %s197, 14336
        %s199 = scalar_lea.vmem [#allocation3], %s198
        // Predicated region
        $region33: #{inverse_net_forward.1} parent=31 // pred_check
          %p200 = pneg %p78
        $region34: #{inverse_net_forward.1} parent=31 // pred_check_branch
          %202 = sbr.rel (%p200) target = $region36
        $region35: #{inverse_net_forward.1} parent=31 // pred_region
          %203 = dma.done %s196, 229376
        $region36: #{inverse_net_forward.1} parent=31 // pred_fallthru
          _
        %s204 = smul.u32 56, %s22
        %p205 = scmp.lt.s32.totalorder %s204, 783
        %s206 = scalar_select %p205, %s204, 783
        %s207 = scalar_lea.vmem %s0, %s206
        %p208 = pneg %p50
        %p209 = pneg %p47
        %s210 = sand.u32 %s65, 1
        %s211 = scalar_lea.sflag [#allocation4], %s210
        %s212 = sand.u32 %s65, 1
        %s213 = smul.addr %s212, 14336
        %s214 = scalar_lea.vmem [#allocation3], %s213
        %p215 = pneg %p78
        %p216 = pneg %p75
        %p217 = scmp.lt.s32.totalorder %s21, 1
        %s218 = scalar_select %p217, %s21, 1
        %s219 = smul.addr %s218, 4
        %s220 = scalar_lea.vmem %s2, %s219
        %p221 = pneg %p104
        %p222 = pneg %p101
        %p223 = pneg %p130
        %p224 = pneg %p127
        %s225 = smul.u32 4, %s21
        %p226 = scmp.lt.s32.totalorder %s225, 7
        %s227 = scalar_select %p226, %s225, 7
        %s228 = smul.addr %s227, 2
        %s229 = scalar_lea.vmem %s3, %s228
        %s230 = smul.u32 56, %s22
        %p231 = scmp.lt.s32.totalorder %s230, 783
        %s232 = scalar_select %p231, %s230, 783
        %s233 = scalar_lea.vmem %s0, %s232
        %s234 = smul.u32 56, %s22
        %s235 = smul.u32 896, %s22
        %p236 = scmp.lt.s32.totalorder %s21, 1
        %s237 = scalar_select %p236, %s21, 1
        %s238 = smul.addr %s237, 4
        %s239 = scalar_lea.vmem %s2, %s238
        %s240 = smul.u32 4, %s21
        %p241 = scmp.lt.s32.totalorder %s240, 7
        %s242 = scalar_select %p241, %s240, 7
        %s243 = smul.addr %s242, 2
        %s244 = scalar_lea.vmem %s3, %s243
        %s245 = smul.u32 4, %s21
        %p246 = scmp.eq.s32.totalorder %s22, 0
        // Predicated region
        $region37: #{inverse_net_forward.1} parent=31 // pred_check
          %p247 = pneg %p246
        $region38: #{inverse_net_forward.1} parent=31 // pred_check_branch
          %249 = sbr.rel (%p247) target = $region40
        $region39: #{inverse_net_forward.1} parent=31 // pred_region
          %250 = vst [vmem:[#allocation2] sm:$0xff] 0.0
        $region40: #{inverse_net_forward.1} parent=31 // pred_fallthru
          _
        %v251 = vld [vmem:[#allocation2] sm:$0xff]
        %v252 = vld [vmem:[%s233] sm:$0xff]
        %v253 = vld [vmem:[%s233 + $0x8] sm:$0xff]
        %v254 = vld [vmem:[%s233 + $0x10] sm:$0xff]
        %v255 = vld [vmem:[%s233 + $0x18] sm:$0xff]
        %v256 = vld [vmem:[%s233 + $0x20] sm:$0xff]
        %v257 = vld [vmem:[%s233 + $0x28] sm:$0xff]
        %v258 = vld [vmem:[%s233 + $0x30] sm:$0xff]
        %v259 = vld [vmem:[%s199] sm:$0xff]
        %v260 = vld [vmem:[%s199 + $0x8] sm:$0xff]
        %v261 = vld [vmem:[%s199 + $0x10] sm:$0xff]
        %v262 = vld [vmem:[%s199 + $0x18] sm:$0xff]
        %v263 = vld [vmem:[%s199 + $0x20] sm:$0xff]
        %v264 = vld [vmem:[%s199 + $0x28] sm:$0xff]
        %v265 = vld [vmem:[%s199 + $0x30] sm:$0xff]
        %v266 = vld [vmem:[%s199 + $0x38] sm:$0xff]
        %v267 = vld [vmem:[%s199 + $0x40] sm:$0xff]
        %v268 = vld [vmem:[%s199 + $0x48] sm:$0xff]
        %v269 = vld [vmem:[%s199 + $0x50] sm:$0xff]
        %v270 = vld [vmem:[%s199 + $0x58] sm:$0xff]
        %v271 = vld [vmem:[%s199 + $0x60] sm:$0xff]
        %v272 = vld [vmem:[%s199 + $0x68] sm:$0xff]
        %v273 = vld [vmem:[%s199 + $0x70] sm:$0xff]
        %v274 = vld [vmem:[%s199 + $0x78] sm:$0xff]
        %v275 = vld [vmem:[%s199 + $0x80] sm:$0xff]
        %v276 = vld [vmem:[%s199 + $0x88] sm:$0xff]
        %v277 = vld [vmem:[%s199 + $0x90] sm:$0xff]
        %v278 = vld [vmem:[%s199 + $0x98] sm:$0xff]
        %v279 = vld [vmem:[%s199 + $0xa0] sm:$0xff]
        %v280 = vld [vmem:[%s199 + $0xa8] sm:$0xff]
        %v281 = vld [vmem:[%s199 + $0xb0] sm:$0xff]
        %v282 = vld [vmem:[%s199 + $0xb8] sm:$0xff]
        %v283 = vld [vmem:[%s199 + $0xc0] sm:$0xff]
        %v284 = vld [vmem:[%s199 + $0xc8] sm:$0xff]
        %v285 = vld [vmem:[%s199 + $0xd0] sm:$0xff]
        %v286 = vld [vmem:[%s199 + $0xd8] sm:$0xff]
        %v287 = vld [vmem:[%s199 + $0xe0] sm:$0xff]
        %v288 = vld [vmem:[%s199 + $0xe8] sm:$0xff]
        %v289 = vld [vmem:[%s199 + $0xf0] sm:$0xff]
        %v290 = vld [vmem:[%s199 + $0xf8] sm:$0xff]
        %v291 = vld [vmem:[%s199 + $0x100] sm:$0xff]
        %v292 = vld [vmem:[%s199 + $0x108] sm:$0xff]
        %v293 = vld [vmem:[%s199 + $0x110] sm:$0xff]
        %v294 = vld [vmem:[%s199 + $0x118] sm:$0xff]
        %v295 = vld [vmem:[%s199 + $0x120] sm:$0xff]
        %v296 = vld [vmem:[%s199 + $0x128] sm:$0xff]
        %v297 = vld [vmem:[%s199 + $0x130] sm:$0xff]
        %v298 = vld [vmem:[%s199 + $0x138] sm:$0xff]
        %v299 = vld [vmem:[%s199 + $0x140] sm:$0xff]
        %v300 = vld [vmem:[%s199 + $0x148] sm:$0xff]
        %v301 = vld [vmem:[%s199 + $0x150] sm:$0xff]
        %v302 = vld [vmem:[%s199 + $0x158] sm:$0xff]
        %v303 = vld [vmem:[%s199 + $0x160] sm:$0xff]
        %v304 = vld [vmem:[%s199 + $0x168] sm:$0xff]
        %v305 = vld [vmem:[%s199 + $0x170] sm:$0xff]
        %v306 = vld [vmem:[%s199 + $0x178] sm:$0xff]
        %v307 = vld [vmem:[%s199 + $0x180] sm:$0xff]
        %v308 = vld [vmem:[%s199 + $0x188] sm:$0xff]
        %v309 = vld [vmem:[%s199 + $0x190] sm:$0xff]
        %v310 = vld [vmem:[%s199 + $0x198] sm:$0xff]
        %v311 = vld [vmem:[%s199 + $0x1a0] sm:$0xff]
        %v312 = vld [vmem:[%s199 + $0x1a8] sm:$0xff]
        %v313 = vld [vmem:[%s199 + $0x1b0] sm:$0xff]
        %v314 = vld [vmem:[%s199 + $0x1b8] sm:$0xff]
        %v315 = vld [vmem:[%s199 + $0x1c0] sm:$0xff]
        %v316 = vld [vmem:[%s199 + $0x1c8] sm:$0xff]
        %v317 = vld [vmem:[%s199 + $0x1d0] sm:$0xff]
        %v318 = vld [vmem:[%s199 + $0x1d8] sm:$0xff]
        %v319 = vld [vmem:[%s199 + $0x1e0] sm:$0xff]
        %v320 = vld [vmem:[%s199 + $0x1e8] sm:$0xff]
        %v321 = vld [vmem:[%s199 + $0x1f0] sm:$0xff]
        %v322 = vld [vmem:[%s199 + $0x1f8] sm:$0xff]
        %v323 = vld [vmem:[%s199 + $0x200] sm:$0xff]
        %v324 = vld [vmem:[%s199 + $0x208] sm:$0xff]
        %v325 = vld [vmem:[%s199 + $0x210] sm:$0xff]
        %v326 = vld [vmem:[%s199 + $0x218] sm:$0xff]
        %v327 = vld [vmem:[%s199 + $0x220] sm:$0xff]
        %v328 = vld [vmem:[%s199 + $0x228] sm:$0xff]
        %v329 = vld [vmem:[%s199 + $0x230] sm:$0xff]
        %v330 = vld [vmem:[%s199 + $0x238] sm:$0xff]
        %v331 = vld [vmem:[%s199 + $0x240] sm:$0xff]
        %v332 = vld [vmem:[%s199 + $0x248] sm:$0xff]
        %v333 = vld [vmem:[%s199 + $0x250] sm:$0xff]
        %v334 = vld [vmem:[%s199 + $0x258] sm:$0xff]
        %v335 = vld [vmem:[%s199 + $0x260] sm:$0xff]
        %v336 = vld [vmem:[%s199 + $0x268] sm:$0xff]
        %v337 = vld [vmem:[%s199 + $0x270] sm:$0xff]
        %v338 = vld [vmem:[%s199 + $0x278] sm:$0xff]
        %v339 = vld [vmem:[%s199 + $0x280] sm:$0xff]
        %v340 = vld [vmem:[%s199 + $0x288] sm:$0xff]
        %v341 = vld [vmem:[%s199 + $0x290] sm:$0xff]
        %v342 = vld [vmem:[%s199 + $0x298] sm:$0xff]
        %v343 = vld [vmem:[%s199 + $0x2a0] sm:$0xff]
        %v344 = vld [vmem:[%s199 + $0x2a8] sm:$0xff]
        %v345 = vld [vmem:[%s199 + $0x2b0] sm:$0xff]
        %v346 = vld [vmem:[%s199 + $0x2b8] sm:$0xff]
        %v347 = vld [vmem:[%s199 + $0x2c0] sm:$0xff]
        %v348 = vld [vmem:[%s199 + $0x2c8] sm:$0xff]
        %v349 = vld [vmem:[%s199 + $0x2d0] sm:$0xff]
        %v350 = vld [vmem:[%s199 + $0x2d8] sm:$0xff]
        %v351 = vld [vmem:[%s199 + $0x2e0] sm:$0xff]
        %v352 = vld [vmem:[%s199 + $0x2e8] sm:$0xff]
        %v353 = vld [vmem:[%s199 + $0x2f0] sm:$0xff]
        %v354 = vld [vmem:[%s199 + $0x2f8] sm:$0xff]
        %v355 = vld [vmem:[%s199 + $0x300] sm:$0xff]
        %v356 = vld [vmem:[%s199 + $0x308] sm:$0xff]
        %v357 = vld [vmem:[%s199 + $0x310] sm:$0xff]
        %v358 = vld [vmem:[%s199 + $0x318] sm:$0xff]
        %v359 = vld [vmem:[%s199 + $0x320] sm:$0xff]
        %v360 = vld [vmem:[%s199 + $0x328] sm:$0xff]
        %v361 = vld [vmem:[%s199 + $0x330] sm:$0xff]
        %v362 = vld [vmem:[%s199 + $0x338] sm:$0xff]
        %v363 = vld [vmem:[%s199 + $0x340] sm:$0xff]
        %v364 = vld [vmem:[%s199 + $0x348] sm:$0xff]
        %v365 = vld [vmem:[%s199 + $0x350] sm:$0xff]
        %v366 = vld [vmem:[%s199 + $0x358] sm:$0xff]
        %v367 = vld [vmem:[%s199 + $0x360] sm:$0xff]
        %v368 = vld [vmem:[%s199 + $0x368] sm:$0xff]
        %v369 = vld [vmem:[%s199 + $0x370] sm:$0xff]
        %v370 = vld [vmem:[%s199 + $0x378] sm:$0xff]
        %v371 = vld [vmem:[%s199 + $0x380] sm:$0xff]
        %v372 = vld [vmem:[%s199 + $0x388] sm:$0xff]
        %v373 = vld [vmem:[%s199 + $0x390] sm:$0xff]
        %v374 = vld [vmem:[%s199 + $0x398] sm:$0xff]
        %v375 = vld [vmem:[%s199 + $0x3a0] sm:$0xff]
        %v376 = vld [vmem:[%s199 + $0x3a8] sm:$0xff]
        %v377 = vld [vmem:[%s199 + $0x3b0] sm:$0xff]
        %v378 = vld [vmem:[%s199 + $0x3b8] sm:$0xff]
        %v379 = vld [vmem:[%s199 + $0x3c0] sm:$0xff]
        %v380 = vld [vmem:[%s199 + $0x3c8] sm:$0xff]
        %v381 = vld [vmem:[%s199 + $0x3d0] sm:$0xff]
        %v382 = vld [vmem:[%s199 + $0x3d8] sm:$0xff]
        %v383 = vld [vmem:[%s199 + $0x3e0] sm:$0xff]
        %v384 = vld [vmem:[%s199 + $0x3e8] sm:$0xff]
        %v385 = vld [vmem:[%s199 + $0x3f0] sm:$0xff]
        %v386 = vld [vmem:[%s199 + $0x3f8] sm:$0xff]
        %v387 = vld [vmem:[%s199 + $0x400] sm:$0xff]
        %v388 = vld [vmem:[%s199 + $0x408] sm:$0xff]
        %v389 = vld [vmem:[%s199 + $0x410] sm:$0xff]
        %v390 = vld [vmem:[%s199 + $0x418] sm:$0xff]
        %v391 = vld [vmem:[%s199 + $0x420] sm:$0xff]
        %v392 = vld [vmem:[%s199 + $0x428] sm:$0xff]
        %v393 = vld [vmem:[%s199 + $0x430] sm:$0xff]
        %v394 = vld [vmem:[%s199 + $0x438] sm:$0xff]
        %v395 = vld [vmem:[%s199 + $0x440] sm:$0xff]
        %v396 = vld [vmem:[%s199 + $0x448] sm:$0xff]
        %v397 = vld [vmem:[%s199 + $0x450] sm:$0xff]
        %v398 = vld [vmem:[%s199 + $0x458] sm:$0xff]
        %v399 = vld [vmem:[%s199 + $0x460] sm:$0xff]
        %v400 = vld [vmem:[%s199 + $0x468] sm:$0xff]
        %v401 = vld [vmem:[%s199 + $0x470] sm:$0xff]
        %v402 = vld [vmem:[%s199 + $0x478] sm:$0xff]
        %v403 = vld [vmem:[%s199 + $0x480] sm:$0xff]
        %v404 = vld [vmem:[%s199 + $0x488] sm:$0xff]
        %v405 = vld [vmem:[%s199 + $0x490] sm:$0xff]
        %v406 = vld [vmem:[%s199 + $0x498] sm:$0xff]
        %v407 = vld [vmem:[%s199 + $0x4a0] sm:$0xff]
        %v408 = vld [vmem:[%s199 + $0x4a8] sm:$0xff]
        %v409 = vld [vmem:[%s199 + $0x4b0] sm:$0xff]
        %v410 = vld [vmem:[%s199 + $0x4b8] sm:$0xff]
        %v411 = vld [vmem:[%s199 + $0x4c0] sm:$0xff]
        %v412 = vld [vmem:[%s199 + $0x4c8] sm:$0xff]
        %v413 = vld [vmem:[%s199 + $0x4d0] sm:$0xff]
        %v414 = vld [vmem:[%s199 + $0x4d8] sm:$0xff]
        %v415 = vld [vmem:[%s199 + $0x4e0] sm:$0xff]
        %v416 = vld [vmem:[%s199 + $0x4e8] sm:$0xff]
        %v417 = vld [vmem:[%s199 + $0x4f0] sm:$0xff]
        %v418 = vld [vmem:[%s199 + $0x4f8] sm:$0xff]
        %v419 = vld [vmem:[%s199 + $0x500] sm:$0xff]
        %v420 = vld [vmem:[%s199 + $0x508] sm:$0xff]
        %v421 = vld [vmem:[%s199 + $0x510] sm:$0xff]
        %v422 = vld [vmem:[%s199 + $0x518] sm:$0xff]
        %v423 = vld [vmem:[%s199 + $0x520] sm:$0xff]
        %v424 = vld [vmem:[%s199 + $0x528] sm:$0xff]
        %v425 = vld [vmem:[%s199 + $0x530] sm:$0xff]
        %v426 = vld [vmem:[%s199 + $0x538] sm:$0xff]
        %v427 = vld [vmem:[%s199 + $0x540] sm:$0xff]
        %v428 = vld [vmem:[%s199 + $0x548] sm:$0xff]
        %v429 = vld [vmem:[%s199 + $0x550] sm:$0xff]
        %v430 = vld [vmem:[%s199 + $0x558] sm:$0xff]
        %v431 = vld [vmem:[%s199 + $0x560] sm:$0xff]
        %v432 = vld [vmem:[%s199 + $0x568] sm:$0xff]
        %v433 = vld [vmem:[%s199 + $0x570] sm:$0xff]
        %v434 = vld [vmem:[%s199 + $0x578] sm:$0xff]
        %v435 = vld [vmem:[%s199 + $0x580] sm:$0xff]
        %v436 = vld [vmem:[%s199 + $0x588] sm:$0xff]
        %v437 = vld [vmem:[%s199 + $0x590] sm:$0xff]
        %v438 = vld [vmem:[%s199 + $0x598] sm:$0xff]
        %v439 = vld [vmem:[%s199 + $0x5a0] sm:$0xff]
        %v440 = vld [vmem:[%s199 + $0x5a8] sm:$0xff]
        %v441 = vld [vmem:[%s199 + $0x5b0] sm:$0xff]
        %v442 = vld [vmem:[%s199 + $0x5b8] sm:$0xff]
        %v443 = vld [vmem:[%s199 + $0x5c0] sm:$0xff]
        %v444 = vld [vmem:[%s199 + $0x5c8] sm:$0xff]
        %v445 = vld [vmem:[%s199 + $0x5d0] sm:$0xff]
        %v446 = vld [vmem:[%s199 + $0x5d8] sm:$0xff]
        %v447 = vld [vmem:[%s199 + $0x5e0] sm:$0xff]
        %v448 = vld [vmem:[%s199 + $0x5e8] sm:$0xff]
        %v449 = vld [vmem:[%s199 + $0x5f0] sm:$0xff]
        %v450 = vld [vmem:[%s199 + $0x5f8] sm:$0xff]
        %v451 = vld [vmem:[%s199 + $0x600] sm:$0xff]
        %v452 = vld [vmem:[%s199 + $0x608] sm:$0xff]
        %v453 = vld [vmem:[%s199 + $0x610] sm:$0xff]
        %v454 = vld [vmem:[%s199 + $0x618] sm:$0xff]
        %v455 = vld [vmem:[%s199 + $0x620] sm:$0xff]
        %v456 = vld [vmem:[%s199 + $0x628] sm:$0xff]
        %v457 = vld [vmem:[%s199 + $0x630] sm:$0xff]
        %v458 = vld [vmem:[%s199 + $0x638] sm:$0xff]
        %v459 = vld [vmem:[%s199 + $0x640] sm:$0xff]
        %v460 = vld [vmem:[%s199 + $0x648] sm:$0xff]
        %v461 = vld [vmem:[%s199 + $0x650] sm:$0xff]
        %v462 = vld [vmem:[%s199 + $0x658] sm:$0xff]
        %v463 = vld [vmem:[%s199 + $0x660] sm:$0xff]
        %v464 = vld [vmem:[%s199 + $0x668] sm:$0xff]
        %v465 = vld [vmem:[%s199 + $0x670] sm:$0xff]
        %v466 = vld [vmem:[%s199 + $0x678] sm:$0xff]
        %v467 = vld [vmem:[%s199 + $0x680] sm:$0xff]
        %v468 = vld [vmem:[%s199 + $0x688] sm:$0xff]
        %v469 = vld [vmem:[%s199 + $0x690] sm:$0xff]
        %v470 = vld [vmem:[%s199 + $0x698] sm:$0xff]
        %v471 = vld [vmem:[%s199 + $0x6a0] sm:$0xff]
        %v472 = vld [vmem:[%s199 + $0x6a8] sm:$0xff]
        %v473 = vld [vmem:[%s199 + $0x6b0] sm:$0xff]
        %v474 = vld [vmem:[%s199 + $0x6b8] sm:$0xff]
        %v475 = vld [vmem:[%s199 + $0x6c0] sm:$0xff]
        %v476 = vld [vmem:[%s199 + $0x6c8] sm:$0xff]
        %v477 = vld [vmem:[%s199 + $0x6d0] sm:$0xff]
        %v478 = vld [vmem:[%s199 + $0x6d8] sm:$0xff]
        %v479 = vld [vmem:[%s199 + $0x6e0] sm:$0xff]
        %v480 = vld [vmem:[%s199 + $0x6e8] sm:$0xff]
        %v481 = vld [vmem:[%s199 + $0x6f0] sm:$0xff]
        %v482 = vld [vmem:[%s199 + $0x6f8] sm:$0xff]
        %v483 = vld [vmem:[%s199 + $0x700] sm:$0xff]
        %v484 = vld [vmem:[%s199 + $0x708] sm:$0xff]
        %v485 = vld [vmem:[%s199 + $0x710] sm:$0xff]
        %v486 = vld [vmem:[%s199 + $0x718] sm:$0xff]
        %v487 = vld [vmem:[%s199 + $0x720] sm:$0xff]
        %v488 = vld [vmem:[%s199 + $0x728] sm:$0xff]
        %v489 = vld [vmem:[%s199 + $0x730] sm:$0xff]
        %v490 = vld [vmem:[%s199 + $0x738] sm:$0xff]
        %v491 = vld [vmem:[%s199 + $0x740] sm:$0xff]
        %v492 = vld [vmem:[%s199 + $0x748] sm:$0xff]
        %v493 = vld [vmem:[%s199 + $0x750] sm:$0xff]
        %v494 = vld [vmem:[%s199 + $0x758] sm:$0xff]
        %v495 = vld [vmem:[%s199 + $0x760] sm:$0xff]
        %v496 = vld [vmem:[%s199 + $0x768] sm:$0xff]
        %v497 = vld [vmem:[%s199 + $0x770] sm:$0xff]
        %v498 = vld [vmem:[%s199 + $0x778] sm:$0xff]
        %v499 = vld [vmem:[%s199 + $0x780] sm:$0xff]
        %v500 = vld [vmem:[%s199 + $0x788] sm:$0xff]
        %v501 = vld [vmem:[%s199 + $0x790] sm:$0xff]
        %v502 = vld [vmem:[%s199 + $0x798] sm:$0xff]
        %v503 = vld [vmem:[%s199 + $0x7a0] sm:$0xff]
        %v504 = vld [vmem:[%s199 + $0x7a8] sm:$0xff]
        %v505 = vld [vmem:[%s199 + $0x7b0] sm:$0xff]
        %v506 = vld [vmem:[%s199 + $0x7b8] sm:$0xff]
        %v507 = vld [vmem:[%s199 + $0x7c0] sm:$0xff]
        %v508 = vld [vmem:[%s199 + $0x7c8] sm:$0xff]
        %v509 = vld [vmem:[%s199 + $0x7d0] sm:$0xff]
        %v510 = vld [vmem:[%s199 + $0x7d8] sm:$0xff]
        %v511 = vld [vmem:[%s199 + $0x7e0] sm:$0xff]
        %v512 = vld [vmem:[%s199 + $0x7e8] sm:$0xff]
        %v513 = vld [vmem:[%s199 + $0x7f0] sm:$0xff]
        %v514 = vld [vmem:[%s199 + $0x7f8] sm:$0xff]
        %v515 = vld [vmem:[%s199 + $0x800] sm:$0xff]
        %v516 = vld [vmem:[%s199 + $0x808] sm:$0xff]
        %v517 = vld [vmem:[%s199 + $0x810] sm:$0xff]
        %v518 = vld [vmem:[%s199 + $0x818] sm:$0xff]
        %v519 = vld [vmem:[%s199 + $0x820] sm:$0xff]
        %v520 = vld [vmem:[%s199 + $0x828] sm:$0xff]
        %v521 = vld [vmem:[%s199 + $0x830] sm:$0xff]
        %v522 = vld [vmem:[%s199 + $0x838] sm:$0xff]
        %v523 = vld [vmem:[%s199 + $0x840] sm:$0xff]
        %v524 = vld [vmem:[%s199 + $0x848] sm:$0xff]
        %v525 = vld [vmem:[%s199 + $0x850] sm:$0xff]
        %v526 = vld [vmem:[%s199 + $0x858] sm:$0xff]
        %v527 = vld [vmem:[%s199 + $0x860] sm:$0xff]
        %v528 = vld [vmem:[%s199 + $0x868] sm:$0xff]
        %v529 = vld [vmem:[%s199 + $0x870] sm:$0xff]
        %v530 = vld [vmem:[%s199 + $0x878] sm:$0xff]
        %v531 = vld [vmem:[%s199 + $0x880] sm:$0xff]
        %v532 = vld [vmem:[%s199 + $0x888] sm:$0xff]
        %v533 = vld [vmem:[%s199 + $0x890] sm:$0xff]
        %v534 = vld [vmem:[%s199 + $0x898] sm:$0xff]
        %v535 = vld [vmem:[%s199 + $0x8a0] sm:$0xff]
        %v536 = vld [vmem:[%s199 + $0x8a8] sm:$0xff]
        %v537 = vld [vmem:[%s199 + $0x8b0] sm:$0xff]
        %v538 = vld [vmem:[%s199 + $0x8b8] sm:$0xff]
        %v539 = vld [vmem:[%s199 + $0x8c0] sm:$0xff]
        %v540 = vld [vmem:[%s199 + $0x8c8] sm:$0xff]
        %v541 = vld [vmem:[%s199 + $0x8d0] sm:$0xff]
        %v542 = vld [vmem:[%s199 + $0x8d8] sm:$0xff]
        %v543 = vld [vmem:[%s199 + $0x8e0] sm:$0xff]
        %v544 = vld [vmem:[%s199 + $0x8e8] sm:$0xff]
        %v545 = vld [vmem:[%s199 + $0x8f0] sm:$0xff]
        %v546 = vld [vmem:[%s199 + $0x8f8] sm:$0xff]
        %v547 = vld [vmem:[%s199 + $0x900] sm:$0xff]
        %v548 = vld [vmem:[%s199 + $0x908] sm:$0xff]
        %v549 = vld [vmem:[%s199 + $0x910] sm:$0xff]
        %v550 = vld [vmem:[%s199 + $0x918] sm:$0xff]
        %v551 = vld [vmem:[%s199 + $0x920] sm:$0xff]
        %v552 = vld [vmem:[%s199 + $0x928] sm:$0xff]
        %v553 = vld [vmem:[%s199 + $0x930] sm:$0xff]
        %v554 = vld [vmem:[%s199 + $0x938] sm:$0xff]
        %v555 = vld [vmem:[%s199 + $0x940] sm:$0xff]
        %v556 = vld [vmem:[%s199 + $0x948] sm:$0xff]
        %v557 = vld [vmem:[%s199 + $0x950] sm:$0xff]
        %v558 = vld [vmem:[%s199 + $0x958] sm:$0xff]
        %v559 = vld [vmem:[%s199 + $0x960] sm:$0xff]
        %v560 = vld [vmem:[%s199 + $0x968] sm:$0xff]
        %v561 = vld [vmem:[%s199 + $0x970] sm:$0xff]
        %v562 = vld [vmem:[%s199 + $0x978] sm:$0xff]
        %v563 = vld [vmem:[%s199 + $0x980] sm:$0xff]
        %v564 = vld [vmem:[%s199 + $0x988] sm:$0xff]
        %v565 = vld [vmem:[%s199 + $0x990] sm:$0xff]
        %v566 = vld [vmem:[%s199 + $0x998] sm:$0xff]
        %v567 = vld [vmem:[%s199 + $0x9a0] sm:$0xff]
        %v568 = vld [vmem:[%s199 + $0x9a8] sm:$0xff]
        %v569 = vld [vmem:[%s199 + $0x9b0] sm:$0xff]
        %v570 = vld [vmem:[%s199 + $0x9b8] sm:$0xff]
        %v571 = vld [vmem:[%s199 + $0x9c0] sm:$0xff]
        %v572 = vld [vmem:[%s199 + $0x9c8] sm:$0xff]
        %v573 = vld [vmem:[%s199 + $0x9d0] sm:$0xff]
        %v574 = vld [vmem:[%s199 + $0x9d8] sm:$0xff]
        %v575 = vld [vmem:[%s199 + $0x9e0] sm:$0xff]
        %v576 = vld [vmem:[%s199 + $0x9e8] sm:$0xff]
        %v577 = vld [vmem:[%s199 + $0x9f0] sm:$0xff]
        %v578 = vld [vmem:[%s199 + $0x9f8] sm:$0xff]
        %v579 = vld [vmem:[%s199 + $0xa00] sm:$0xff]
        %v580 = vld [vmem:[%s199 + $0xa08] sm:$0xff]
        %v581 = vld [vmem:[%s199 + $0xa10] sm:$0xff]
        %v582 = vld [vmem:[%s199 + $0xa18] sm:$0xff]
        %v583 = vld [vmem:[%s199 + $0xa20] sm:$0xff]
        %v584 = vld [vmem:[%s199 + $0xa28] sm:$0xff]
        %v585 = vld [vmem:[%s199 + $0xa30] sm:$0xff]
        %v586 = vld [vmem:[%s199 + $0xa38] sm:$0xff]
        %v587 = vld [vmem:[%s199 + $0xa40] sm:$0xff]
        %v588 = vld [vmem:[%s199 + $0xa48] sm:$0xff]
        %v589 = vld [vmem:[%s199 + $0xa50] sm:$0xff]
        %v590 = vld [vmem:[%s199 + $0xa58] sm:$0xff]
        %v591 = vld [vmem:[%s199 + $0xa60] sm:$0xff]
        %v592 = vld [vmem:[%s199 + $0xa68] sm:$0xff]
        %v593 = vld [vmem:[%s199 + $0xa70] sm:$0xff]
        %v594 = vld [vmem:[%s199 + $0xa78] sm:$0xff]
        %v595 = vld [vmem:[%s199 + $0xa80] sm:$0xff]
        %v596 = vld [vmem:[%s199 + $0xa88] sm:$0xff]
        %v597 = vld [vmem:[%s199 + $0xa90] sm:$0xff]
        %v598 = vld [vmem:[%s199 + $0xa98] sm:$0xff]
        %v599 = vld [vmem:[%s199 + $0xaa0] sm:$0xff]
        %v600 = vld [vmem:[%s199 + $0xaa8] sm:$0xff]
        %v601 = vld [vmem:[%s199 + $0xab0] sm:$0xff]
        %v602 = vld [vmem:[%s199 + $0xab8] sm:$0xff]
        %v603 = vld [vmem:[%s199 + $0xac0] sm:$0xff]
        %v604 = vld [vmem:[%s199 + $0xac8] sm:$0xff]
        %v605 = vld [vmem:[%s199 + $0xad0] sm:$0xff]
        %v606 = vld [vmem:[%s199 + $0xad8] sm:$0xff]
        %v607 = vld [vmem:[%s199 + $0xae0] sm:$0xff]
        %v608 = vld [vmem:[%s199 + $0xae8] sm:$0xff]
        %v609 = vld [vmem:[%s199 + $0xaf0] sm:$0xff]
        %v610 = vld [vmem:[%s199 + $0xaf8] sm:$0xff]
        %v611 = vld [vmem:[%s199 + $0xb00] sm:$0xff]
        %v612 = vld [vmem:[%s199 + $0xb08] sm:$0xff]
        %v613 = vld [vmem:[%s199 + $0xb10] sm:$0xff]
        %v614 = vld [vmem:[%s199 + $0xb18] sm:$0xff]
        %v615 = vld [vmem:[%s199 + $0xb20] sm:$0xff]
        %v616 = vld [vmem:[%s199 + $0xb28] sm:$0xff]
        %v617 = vld [vmem:[%s199 + $0xb30] sm:$0xff]
        %v618 = vld [vmem:[%s199 + $0xb38] sm:$0xff]
        %v619 = vld [vmem:[%s199 + $0xb40] sm:$0xff]
        %v620 = vld [vmem:[%s199 + $0xb48] sm:$0xff]
        %v621 = vld [vmem:[%s199 + $0xb50] sm:$0xff]
        %v622 = vld [vmem:[%s199 + $0xb58] sm:$0xff]
        %v623 = vld [vmem:[%s199 + $0xb60] sm:$0xff]
        %v624 = vld [vmem:[%s199 + $0xb68] sm:$0xff]
        %v625 = vld [vmem:[%s199 + $0xb70] sm:$0xff]
        %v626 = vld [vmem:[%s199 + $0xb78] sm:$0xff]
        %v627 = vld [vmem:[%s199 + $0xb80] sm:$0xff]
        %v628 = vld [vmem:[%s199 + $0xb88] sm:$0xff]
        %v629 = vld [vmem:[%s199 + $0xb90] sm:$0xff]
        %v630 = vld [vmem:[%s199 + $0xb98] sm:$0xff]
        %v631 = vld [vmem:[%s199 + $0xba0] sm:$0xff]
        %v632 = vld [vmem:[%s199 + $0xba8] sm:$0xff]
        %v633 = vld [vmem:[%s199 + $0xbb0] sm:$0xff]
        %v634 = vld [vmem:[%s199 + $0xbb8] sm:$0xff]
        %v635 = vld [vmem:[%s199 + $0xbc0] sm:$0xff]
        %v636 = vld [vmem:[%s199 + $0xbc8] sm:$0xff]
        %v637 = vld [vmem:[%s199 + $0xbd0] sm:$0xff]
        %v638 = vld [vmem:[%s199 + $0xbd8] sm:$0xff]
        %v639 = vld [vmem:[%s199 + $0xbe0] sm:$0xff]
        %v640 = vld [vmem:[%s199 + $0xbe8] sm:$0xff]
        %v641 = vld [vmem:[%s199 + $0xbf0] sm:$0xff]
        %v642 = vld [vmem:[%s199 + $0xbf8] sm:$0xff]
        %v643 = vld [vmem:[%s199 + $0xc00] sm:$0xff]
        %v644 = vld [vmem:[%s199 + $0xc08] sm:$0xff]
        %v645 = vld [vmem:[%s199 + $0xc10] sm:$0xff]
        %v646 = vld [vmem:[%s199 + $0xc18] sm:$0xff]
        %v647 = vld [vmem:[%s199 + $0xc20] sm:$0xff]
        %v648 = vld [vmem:[%s199 + $0xc28] sm:$0xff]
        %v649 = vld [vmem:[%s199 + $0xc30] sm:$0xff]
        %v650 = vld [vmem:[%s199 + $0xc38] sm:$0xff]
        %v651 = vld [vmem:[%s199 + $0xc40] sm:$0xff]
        %v652 = vld [vmem:[%s199 + $0xc48] sm:$0xff]
        %v653 = vld [vmem:[%s199 + $0xc50] sm:$0xff]
        %v654 = vld [vmem:[%s199 + $0xc58] sm:$0xff]
        %v655 = vld [vmem:[%s199 + $0xc60] sm:$0xff]
        %v656 = vld [vmem:[%s199 + $0xc68] sm:$0xff]
        %v657 = vld [vmem:[%s199 + $0xc70] sm:$0xff]
        %v658 = vld [vmem:[%s199 + $0xc78] sm:$0xff]
        %v659 = vld [vmem:[%s199 + $0xc80] sm:$0xff]
        %v660 = vld [vmem:[%s199 + $0xc88] sm:$0xff]
        %v661 = vld [vmem:[%s199 + $0xc90] sm:$0xff]
        %v662 = vld [vmem:[%s199 + $0xc98] sm:$0xff]
        %v663 = vld [vmem:[%s199 + $0xca0] sm:$0xff]
        %v664 = vld [vmem:[%s199 + $0xca8] sm:$0xff]
        %v665 = vld [vmem:[%s199 + $0xcb0] sm:$0xff]
        %v666 = vld [vmem:[%s199 + $0xcb8] sm:$0xff]
        %v667 = vld [vmem:[%s199 + $0xcc0] sm:$0xff]
        %v668 = vld [vmem:[%s199 + $0xcc8] sm:$0xff]
        %v669 = vld [vmem:[%s199 + $0xcd0] sm:$0xff]
        %v670 = vld [vmem:[%s199 + $0xcd8] sm:$0xff]
        %v671 = vld [vmem:[%s199 + $0xce0] sm:$0xff]
        %v672 = vld [vmem:[%s199 + $0xce8] sm:$0xff]
        %v673 = vld [vmem:[%s199 + $0xcf0] sm:$0xff]
        %v674 = vld [vmem:[%s199 + $0xcf8] sm:$0xff]
        %v675 = vld [vmem:[%s199 + $0xd00] sm:$0xff]
        %v676 = vld [vmem:[%s199 + $0xd08] sm:$0xff]
        %v677 = vld [vmem:[%s199 + $0xd10] sm:$0xff]
        %v678 = vld [vmem:[%s199 + $0xd18] sm:$0xff]
        %v679 = vld [vmem:[%s199 + $0xd20] sm:$0xff]
        %v680 = vld [vmem:[%s199 + $0xd28] sm:$0xff]
        %v681 = vld [vmem:[%s199 + $0xd30] sm:$0xff]
        %v682 = vld [vmem:[%s199 + $0xd38] sm:$0xff]
        %v683 = vld [vmem:[%s199 + $0xd40] sm:$0xff]
        %v684 = vld [vmem:[%s199 + $0xd48] sm:$0xff]
        %v685 = vld [vmem:[%s199 + $0xd50] sm:$0xff]
        %v686 = vld [vmem:[%s199 + $0xd58] sm:$0xff]
        %v687 = vld [vmem:[%s199 + $0xd60] sm:$0xff]
        %v688 = vld [vmem:[%s199 + $0xd68] sm:$0xff]
        %v689 = vld [vmem:[%s199 + $0xd70] sm:$0xff]
        %v690 = vld [vmem:[%s199 + $0xd78] sm:$0xff]
        %v691 = vld [vmem:[%s199 + $0xd80] sm:$0xff]
        %v692 = vld [vmem:[%s199 + $0xd88] sm:$0xff]
        %v693 = vld [vmem:[%s199 + $0xd90] sm:$0xff]
        %v694 = vld [vmem:[%s199 + $0xd98] sm:$0xff]
        %v695 = vld [vmem:[%s199 + $0xda0] sm:$0xff]
        %v696 = vld [vmem:[%s199 + $0xda8] sm:$0xff]
        %v697 = vld [vmem:[%s199 + $0xdb0] sm:$0xff]
        %v698 = vld [vmem:[%s199 + $0xdb8] sm:$0xff]
        %v699 = vld [vmem:[%s199 + $0xdc0] sm:$0xff]
        %v700 = vld [vmem:[%s199 + $0xdc8] sm:$0xff]
        %v701 = vld [vmem:[%s199 + $0xdd0] sm:$0xff]
        %v702 = vld [vmem:[%s199 + $0xdd8] sm:$0xff]
        %v703 = vld [vmem:[%s199 + $0xde0] sm:$0xff]
        %v704 = vld [vmem:[%s199 + $0xde8] sm:$0xff]
        %v705 = vld [vmem:[%s199 + $0xdf0] sm:$0xff]
        %v706 = vld [vmem:[%s199 + $0xdf8] sm:$0xff]
        %v707 = vld [vmem:[%s199 + $0xe00] sm:$0xff]
        %v708 = vld [vmem:[%s199 + $0xe08] sm:$0xff]
        %v709 = vld [vmem:[%s199 + $0xe10] sm:$0xff]
        %v710 = vld [vmem:[%s199 + $0xe18] sm:$0xff]
        %v711 = vld [vmem:[%s199 + $0xe20] sm:$0xff]
        %v712 = vld [vmem:[%s199 + $0xe28] sm:$0xff]
        %v713 = vld [vmem:[%s199 + $0xe30] sm:$0xff]
        %v714 = vld [vmem:[%s199 + $0xe38] sm:$0xff]
        %v715 = vld [vmem:[%s199 + $0xe40] sm:$0xff]
        %v716 = vld [vmem:[%s199 + $0xe48] sm:$0xff]
        %v717 = vld [vmem:[%s199 + $0xe50] sm:$0xff]
        %v718 = vld [vmem:[%s199 + $0xe58] sm:$0xff]
        %v719 = vld [vmem:[%s199 + $0xe60] sm:$0xff]
        %v720 = vld [vmem:[%s199 + $0xe68] sm:$0xff]
        %v721 = vld [vmem:[%s199 + $0xe70] sm:$0xff]
        %v722 = vld [vmem:[%s199 + $0xe78] sm:$0xff]
        %v723 = vld [vmem:[%s199 + $0xe80] sm:$0xff]
        %v724 = vld [vmem:[%s199 + $0xe88] sm:$0xff]
        %v725 = vld [vmem:[%s199 + $0xe90] sm:$0xff]
        %v726 = vld [vmem:[%s199 + $0xe98] sm:$0xff]
        %v727 = vld [vmem:[%s199 + $0xea0] sm:$0xff]
        %v728 = vld [vmem:[%s199 + $0xea8] sm:$0xff]
        %v729 = vld [vmem:[%s199 + $0xeb0] sm:$0xff]
        %v730 = vld [vmem:[%s199 + $0xeb8] sm:$0xff]
        %v731 = vld [vmem:[%s199 + $0xec0] sm:$0xff]
        %v732 = vld [vmem:[%s199 + $0xec8] sm:$0xff]
        %v733 = vld [vmem:[%s199 + $0xed0] sm:$0xff]
        %v734 = vld [vmem:[%s199 + $0xed8] sm:$0xff]
        %v735 = vld [vmem:[%s199 + $0xee0] sm:$0xff]
        %v736 = vld [vmem:[%s199 + $0xee8] sm:$0xff]
        %v737 = vld [vmem:[%s199 + $0xef0] sm:$0xff]
        %v738 = vld [vmem:[%s199 + $0xef8] sm:$0xff]
        %v739 = vld [vmem:[%s199 + $0xf00] sm:$0xff]
        %v740 = vld [vmem:[%s199 + $0xf08] sm:$0xff]
        %v741 = vld [vmem:[%s199 + $0xf10] sm:$0xff]
        %v742 = vld [vmem:[%s199 + $0xf18] sm:$0xff]
        %v743 = vld [vmem:[%s199 + $0xf20] sm:$0xff]
        %v744 = vld [vmem:[%s199 + $0xf28] sm:$0xff]
        %v745 = vld [vmem:[%s199 + $0xf30] sm:$0xff]
        %v746 = vld [vmem:[%s199 + $0xf38] sm:$0xff]
        %v747 = vld [vmem:[%s199 + $0xf40] sm:$0xff]
        %v748 = vld [vmem:[%s199 + $0xf48] sm:$0xff]
        %v749 = vld [vmem:[%s199 + $0xf50] sm:$0xff]
        %v750 = vld [vmem:[%s199 + $0xf58] sm:$0xff]
        %v751 = vld [vmem:[%s199 + $0xf60] sm:$0xff]
        %v752 = vld [vmem:[%s199 + $0xf68] sm:$0xff]
        %v753 = vld [vmem:[%s199 + $0xf70] sm:$0xff]
        %v754 = vld [vmem:[%s199 + $0xf78] sm:$0xff]
        %v755 = vld [vmem:[%s199 + $0xf80] sm:$0xff]
        %v756 = vld [vmem:[%s199 + $0xf88] sm:$0xff]
        %v757 = vld [vmem:[%s199 + $0xf90] sm:$0xff]
        %v758 = vld [vmem:[%s199 + $0xf98] sm:$0xff]
        %v759 = vld [vmem:[%s199 + $0xfa0] sm:$0xff]
        %v760 = vld [vmem:[%s199 + $0xfa8] sm:$0xff]
        %v761 = vld [vmem:[%s199 + $0xfb0] sm:$0xff]
        %v762 = vld [vmem:[%s199 + $0xfb8] sm:$0xff]
        %v763 = vld [vmem:[%s199 + $0xfc0] sm:$0xff]
        %v764 = vld [vmem:[%s199 + $0xfc8] sm:$0xff]
        %v765 = vld [vmem:[%s199 + $0xfd0] sm:$0xff]
        %v766 = vld [vmem:[%s199 + $0xfd8] sm:$0xff]
        %v767 = vld [vmem:[%s199 + $0xfe0] sm:$0xff]
        %v768 = vld [vmem:[%s199 + $0xfe8] sm:$0xff]
        %v769 = vld [vmem:[%s199 + $0xff0] sm:$0xff]
        %v770 = vld [vmem:[%s199 + $0xff8] sm:$0xff]
        %v771 = vld [vmem:[%s199 + $0x1000] sm:$0xff]
        %v772 = vld [vmem:[%s199 + $0x1008] sm:$0xff]
        %v773 = vld [vmem:[%s199 + $0x1010] sm:$0xff]
        %v774 = vld [vmem:[%s199 + $0x1018] sm:$0xff]
        %v775 = vld [vmem:[%s199 + $0x1020] sm:$0xff]
        %v776 = vld [vmem:[%s199 + $0x1028] sm:$0xff]
        %v777 = vld [vmem:[%s199 + $0x1030] sm:$0xff]
        %v778 = vld [vmem:[%s199 + $0x1038] sm:$0xff]
        %v779 = vld [vmem:[%s199 + $0x1040] sm:$0xff]
        %v780 = vld [vmem:[%s199 + $0x1048] sm:$0xff]
        %v781 = vld [vmem:[%s199 + $0x1050] sm:$0xff]
        %v782 = vld [vmem:[%s199 + $0x1058] sm:$0xff]
        %v783 = vld [vmem:[%s199 + $0x1060] sm:$0xff]
        %v784 = vld [vmem:[%s199 + $0x1068] sm:$0xff]
        %v785 = vld [vmem:[%s199 + $0x1070] sm:$0xff]
        %v786 = vld [vmem:[%s199 + $0x1078] sm:$0xff]
        %v787 = vld [vmem:[%s199 + $0x1080] sm:$0xff]
        %v788 = vld [vmem:[%s199 + $0x1088] sm:$0xff]
        %v789 = vld [vmem:[%s199 + $0x1090] sm:$0xff]
        %v790 = vld [vmem:[%s199 + $0x1098] sm:$0xff]
        %v791 = vld [vmem:[%s199 + $0x10a0] sm:$0xff]
        %v792 = vld [vmem:[%s199 + $0x10a8] sm:$0xff]
        %v793 = vld [vmem:[%s199 + $0x10b0] sm:$0xff]
        %v794 = vld [vmem:[%s199 + $0x10b8] sm:$0xff]
        %v795 = vld [vmem:[%s199 + $0x10c0] sm:$0xff]
        %v796 = vld [vmem:[%s199 + $0x10c8] sm:$0xff]
        %v797 = vld [vmem:[%s199 + $0x10d0] sm:$0xff]
        %v798 = vld [vmem:[%s199 + $0x10d8] sm:$0xff]
        %v799 = vld [vmem:[%s199 + $0x10e0] sm:$0xff]
        %v800 = vld [vmem:[%s199 + $0x10e8] sm:$0xff]
        %v801 = vld [vmem:[%s199 + $0x10f0] sm:$0xff]
        %v802 = vld [vmem:[%s199 + $0x10f8] sm:$0xff]
        %v803 = vld [vmem:[%s199 + $0x1100] sm:$0xff]
        %v804 = vld [vmem:[%s199 + $0x1108] sm:$0xff]
        %v805 = vld [vmem:[%s199 + $0x1110] sm:$0xff]
        %v806 = vld [vmem:[%s199 + $0x1118] sm:$0xff]
        %v807 = vld [vmem:[%s199 + $0x1120] sm:$0xff]
        %v808 = vld [vmem:[%s199 + $0x1128] sm:$0xff]
        %v809 = vld [vmem:[%s199 + $0x1130] sm:$0xff]
        %v810 = vld [vmem:[%s199 + $0x1138] sm:$0xff]
        %v811 = vld [vmem:[%s199 + $0x1140] sm:$0xff]
        %v812 = vld [vmem:[%s199 + $0x1148] sm:$0xff]
        %v813 = vld [vmem:[%s199 + $0x1150] sm:$0xff]
        %v814 = vld [vmem:[%s199 + $0x1158] sm:$0xff]
        %v815 = vld [vmem:[%s199 + $0x1160] sm:$0xff]
        %v816 = vld [vmem:[%s199 + $0x1168] sm:$0xff]
        %v817 = vld [vmem:[%s199 + $0x1170] sm:$0xff]
        %v818 = vld [vmem:[%s199 + $0x1178] sm:$0xff]
        %v819 = vld [vmem:[%s199 + $0x1180] sm:$0xff]
        %v820 = vld [vmem:[%s199 + $0x1188] sm:$0xff]
        %v821 = vld [vmem:[%s199 + $0x1190] sm:$0xff]
        %v822 = vld [vmem:[%s199 + $0x1198] sm:$0xff]
        %v823 = vld [vmem:[%s199 + $0x11a0] sm:$0xff]
        %v824 = vld [vmem:[%s199 + $0x11a8] sm:$0xff]
        %v825 = vld [vmem:[%s199 + $0x11b0] sm:$0xff]
        %v826 = vld [vmem:[%s199 + $0x11b8] sm:$0xff]
        %v827 = vld [vmem:[%s199 + $0x11c0] sm:$0xff]
        %v828 = vld [vmem:[%s199 + $0x11c8] sm:$0xff]
        %v829 = vld [vmem:[%s199 + $0x11d0] sm:$0xff]
        %v830 = vld [vmem:[%s199 + $0x11d8] sm:$0xff]
        %v831 = vld [vmem:[%s199 + $0x11e0] sm:$0xff]
        %v832 = vld [vmem:[%s199 + $0x11e8] sm:$0xff]
        %v833 = vld [vmem:[%s199 + $0x11f0] sm:$0xff]
        %v834 = vld [vmem:[%s199 + $0x11f8] sm:$0xff]
        %v835 = vld [vmem:[%s199 + $0x1200] sm:$0xff]
        %v836 = vld [vmem:[%s199 + $0x1208] sm:$0xff]
        %v837 = vld [vmem:[%s199 + $0x1210] sm:$0xff]
        %v838 = vld [vmem:[%s199 + $0x1218] sm:$0xff]
        %v839 = vld [vmem:[%s199 + $0x1220] sm:$0xff]
        %v840 = vld [vmem:[%s199 + $0x1228] sm:$0xff]
        %v841 = vld [vmem:[%s199 + $0x1230] sm:$0xff]
        %v842 = vld [vmem:[%s199 + $0x1238] sm:$0xff]
        %v843 = vld [vmem:[%s199 + $0x1240] sm:$0xff]
        %v844 = vld [vmem:[%s199 + $0x1248] sm:$0xff]
        %v845 = vld [vmem:[%s199 + $0x1250] sm:$0xff]
        %v846 = vld [vmem:[%s199 + $0x1258] sm:$0xff]
        %v847 = vld [vmem:[%s199 + $0x1260] sm:$0xff]
        %v848 = vld [vmem:[%s199 + $0x1268] sm:$0xff]
        %v849 = vld [vmem:[%s199 + $0x1270] sm:$0xff]
        %v850 = vld [vmem:[%s199 + $0x1278] sm:$0xff]
        %v851 = vld [vmem:[%s199 + $0x1280] sm:$0xff]
        %v852 = vld [vmem:[%s199 + $0x1288] sm:$0xff]
        %v853 = vld [vmem:[%s199 + $0x1290] sm:$0xff]
        %v854 = vld [vmem:[%s199 + $0x1298] sm:$0xff]
        %v855 = vld [vmem:[%s199 + $0x12a0] sm:$0xff]
        %v856 = vld [vmem:[%s199 + $0x12a8] sm:$0xff]
        %v857 = vld [vmem:[%s199 + $0x12b0] sm:$0xff]
        %v858 = vld [vmem:[%s199 + $0x12b8] sm:$0xff]
        %v859 = vld [vmem:[%s199 + $0x12c0] sm:$0xff]
        %v860 = vld [vmem:[%s199 + $0x12c8] sm:$0xff]
        %v861 = vld [vmem:[%s199 + $0x12d0] sm:$0xff]
        %v862 = vld [vmem:[%s199 + $0x12d8] sm:$0xff]
        %v863 = vld [vmem:[%s199 + $0x12e0] sm:$0xff]
        %v864 = vld [vmem:[%s199 + $0x12e8] sm:$0xff]
        %v865 = vld [vmem:[%s199 + $0x12f0] sm:$0xff]
        %v866 = vld [vmem:[%s199 + $0x12f8] sm:$0xff]
        %v867 = vld [vmem:[%s199 + $0x1300] sm:$0xff]
        %v868 = vld [vmem:[%s199 + $0x1308] sm:$0xff]
        %v869 = vld [vmem:[%s199 + $0x1310] sm:$0xff]
        %v870 = vld [vmem:[%s199 + $0x1318] sm:$0xff]
        %v871 = vld [vmem:[%s199 + $0x1320] sm:$0xff]
        %v872 = vld [vmem:[%s199 + $0x1328] sm:$0xff]
        %v873 = vld [vmem:[%s199 + $0x1330] sm:$0xff]
        %v874 = vld [vmem:[%s199 + $0x1338] sm:$0xff]
        %v875 = vld [vmem:[%s199 + $0x1340] sm:$0xff]
        %v876 = vld [vmem:[%s199 + $0x1348] sm:$0xff]
        %v877 = vld [vmem:[%s199 + $0x1350] sm:$0xff]
        %v878 = vld [vmem:[%s199 + $0x1358] sm:$0xff]
        %v879 = vld [vmem:[%s199 + $0x1360] sm:$0xff]
        %v880 = vld [vmem:[%s199 + $0x1368] sm:$0xff]
        %v881 = vld [vmem:[%s199 + $0x1370] sm:$0xff]
        %v882 = vld [vmem:[%s199 + $0x1378] sm:$0xff]
        %v883 = vld [vmem:[%s199 + $0x1380] sm:$0xff]
        %v884 = vld [vmem:[%s199 + $0x1388] sm:$0xff]
        %v885 = vld [vmem:[%s199 + $0x1390] sm:$0xff]
        %v886 = vld [vmem:[%s199 + $0x1398] sm:$0xff]
        %v887 = vld [vmem:[%s199 + $0x13a0] sm:$0xff]
        %v888 = vld [vmem:[%s199 + $0x13a8] sm:$0xff]
        %v889 = vld [vmem:[%s199 + $0x13b0] sm:$0xff]
        %v890 = vld [vmem:[%s199 + $0x13b8] sm:$0xff]
        %v891 = vld [vmem:[%s199 + $0x13c0] sm:$0xff]
        %v892 = vld [vmem:[%s199 + $0x13c8] sm:$0xff]
        %v893 = vld [vmem:[%s199 + $0x13d0] sm:$0xff]
        %v894 = vld [vmem:[%s199 + $0x13d8] sm:$0xff]
        %v895 = vld [vmem:[%s199 + $0x13e0] sm:$0xff]
        %v896 = vld [vmem:[%s199 + $0x13e8] sm:$0xff]
        %v897 = vld [vmem:[%s199 + $0x13f0] sm:$0xff]
        %v898 = vld [vmem:[%s199 + $0x13f8] sm:$0xff]
        %v899 = vld [vmem:[%s199 + $0x1400] sm:$0xff]
        %v900 = vld [vmem:[%s199 + $0x1408] sm:$0xff]
        %v901 = vld [vmem:[%s199 + $0x1410] sm:$0xff]
        %v902 = vld [vmem:[%s199 + $0x1418] sm:$0xff]
        %v903 = vld [vmem:[%s199 + $0x1420] sm:$0xff]
        %v904 = vld [vmem:[%s199 + $0x1428] sm:$0xff]
        %v905 = vld [vmem:[%s199 + $0x1430] sm:$0xff]
        %v906 = vld [vmem:[%s199 + $0x1438] sm:$0xff]
        %v907 = vld [vmem:[%s199 + $0x1440] sm:$0xff]
        %v908 = vld [vmem:[%s199 + $0x1448] sm:$0xff]
        %v909 = vld [vmem:[%s199 + $0x1450] sm:$0xff]
        %v910 = vld [vmem:[%s199 + $0x1458] sm:$0xff]
        %v911 = vld [vmem:[%s199 + $0x1460] sm:$0xff]
        %v912 = vld [vmem:[%s199 + $0x1468] sm:$0xff]
        %v913 = vld [vmem:[%s199 + $0x1470] sm:$0xff]
        %v914 = vld [vmem:[%s199 + $0x1478] sm:$0xff]
        %v915 = vld [vmem:[%s199 + $0x1480] sm:$0xff]
        %v916 = vld [vmem:[%s199 + $0x1488] sm:$0xff]
        %v917 = vld [vmem:[%s199 + $0x1490] sm:$0xff]
        %v918 = vld [vmem:[%s199 + $0x1498] sm:$0xff]
        %v919 = vld [vmem:[%s199 + $0x14a0] sm:$0xff]
        %v920 = vld [vmem:[%s199 + $0x14a8] sm:$0xff]
        %v921 = vld [vmem:[%s199 + $0x14b0] sm:$0xff]
        %v922 = vld [vmem:[%s199 + $0x14b8] sm:$0xff]
        %v923 = vld [vmem:[%s199 + $0x14c0] sm:$0xff]
        %v924 = vld [vmem:[%s199 + $0x14c8] sm:$0xff]
        %v925 = vld [vmem:[%s199 + $0x14d0] sm:$0xff]
        %v926 = vld [vmem:[%s199 + $0x14d8] sm:$0xff]
        %v927 = vld [vmem:[%s199 + $0x14e0] sm:$0xff]
        %v928 = vld [vmem:[%s199 + $0x14e8] sm:$0xff]
        %v929 = vld [vmem:[%s199 + $0x14f0] sm:$0xff]
        %v930 = vld [vmem:[%s199 + $0x14f8] sm:$0xff]
        %v931 = vld [vmem:[%s199 + $0x1500] sm:$0xff]
        %v932 = vld [vmem:[%s199 + $0x1508] sm:$0xff]
        %v933 = vld [vmem:[%s199 + $0x1510] sm:$0xff]
        %v934 = vld [vmem:[%s199 + $0x1518] sm:$0xff]
        %v935 = vld [vmem:[%s199 + $0x1520] sm:$0xff]
        %v936 = vld [vmem:[%s199 + $0x1528] sm:$0xff]
        %v937 = vld [vmem:[%s199 + $0x1530] sm:$0xff]
        %v938 = vld [vmem:[%s199 + $0x1538] sm:$0xff]
        %v939 = vld [vmem:[%s199 + $0x1540] sm:$0xff]
        %v940 = vld [vmem:[%s199 + $0x1548] sm:$0xff]
        %v941 = vld [vmem:[%s199 + $0x1550] sm:$0xff]
        %v942 = vld [vmem:[%s199 + $0x1558] sm:$0xff]
        %v943 = vld [vmem:[%s199 + $0x1560] sm:$0xff]
        %v944 = vld [vmem:[%s199 + $0x1568] sm:$0xff]
        %v945 = vld [vmem:[%s199 + $0x1570] sm:$0xff]
        %v946 = vld [vmem:[%s199 + $0x1578] sm:$0xff]
        %v947 = vld [vmem:[%s199 + $0x1580] sm:$0xff]
        %v948 = vld [vmem:[%s199 + $0x1588] sm:$0xff]
        %v949 = vld [vmem:[%s199 + $0x1590] sm:$0xff]
        %v950 = vld [vmem:[%s199 + $0x1598] sm:$0xff]
        %v951 = vld [vmem:[%s199 + $0x15a0] sm:$0xff]
        %v952 = vld [vmem:[%s199 + $0x15a8] sm:$0xff]
        %v953 = vld [vmem:[%s199 + $0x15b0] sm:$0xff]
        %v954 = vld [vmem:[%s199 + $0x15b8] sm:$0xff]
        %v955 = vld [vmem:[%s199 + $0x15c0] sm:$0xff]
        %v956 = vld [vmem:[%s199 + $0x15c8] sm:$0xff]
        %v957 = vld [vmem:[%s199 + $0x15d0] sm:$0xff]
        %v958 = vld [vmem:[%s199 + $0x15d8] sm:$0xff]
        %v959 = vld [vmem:[%s199 + $0x15e0] sm:$0xff]
        %v960 = vld [vmem:[%s199 + $0x15e8] sm:$0xff]
        %v961 = vld [vmem:[%s199 + $0x15f0] sm:$0xff]
        %v962 = vld [vmem:[%s199 + $0x15f8] sm:$0xff]
        %v963 = vld [vmem:[%s199 + $0x1600] sm:$0xff]
        %v964 = vld [vmem:[%s199 + $0x1608] sm:$0xff]
        %v965 = vld [vmem:[%s199 + $0x1610] sm:$0xff]
        %v966 = vld [vmem:[%s199 + $0x1618] sm:$0xff]
        %v967 = vld [vmem:[%s199 + $0x1620] sm:$0xff]
        %v968 = vld [vmem:[%s199 + $0x1628] sm:$0xff]
        %v969 = vld [vmem:[%s199 + $0x1630] sm:$0xff]
        %v970 = vld [vmem:[%s199 + $0x1638] sm:$0xff]
        %v971 = vld [vmem:[%s199 + $0x1640] sm:$0xff]
        %v972 = vld [vmem:[%s199 + $0x1648] sm:$0xff]
        %v973 = vld [vmem:[%s199 + $0x1650] sm:$0xff]
        %v974 = vld [vmem:[%s199 + $0x1658] sm:$0xff]
        %v975 = vld [vmem:[%s199 + $0x1660] sm:$0xff]
        %v976 = vld [vmem:[%s199 + $0x1668] sm:$0xff]
        %v977 = vld [vmem:[%s199 + $0x1670] sm:$0xff]
        %v978 = vld [vmem:[%s199 + $0x1678] sm:$0xff]
        %v979 = vld [vmem:[%s199 + $0x1680] sm:$0xff]
        %v980 = vld [vmem:[%s199 + $0x1688] sm:$0xff]
        %v981 = vld [vmem:[%s199 + $0x1690] sm:$0xff]
        %v982 = vld [vmem:[%s199 + $0x1698] sm:$0xff]
        %v983 = vld [vmem:[%s199 + $0x16a0] sm:$0xff]
        %v984 = vld [vmem:[%s199 + $0x16a8] sm:$0xff]
        %v985 = vld [vmem:[%s199 + $0x16b0] sm:$0xff]
        %v986 = vld [vmem:[%s199 + $0x16b8] sm:$0xff]
        %v987 = vld [vmem:[%s199 + $0x16c0] sm:$0xff]
        %v988 = vld [vmem:[%s199 + $0x16c8] sm:$0xff]
        %v989 = vld [vmem:[%s199 + $0x16d0] sm:$0xff]
        %v990 = vld [vmem:[%s199 + $0x16d8] sm:$0xff]
        %v991 = vld [vmem:[%s199 + $0x16e0] sm:$0xff]
        %v992 = vld [vmem:[%s199 + $0x16e8] sm:$0xff]
        %v993 = vld [vmem:[%s199 + $0x16f0] sm:$0xff]
        %v994 = vld [vmem:[%s199 + $0x16f8] sm:$0xff]
        %v995 = vld [vmem:[%s199 + $0x1700] sm:$0xff]
        %v996 = vld [vmem:[%s199 + $0x1708] sm:$0xff]
        %v997 = vld [vmem:[%s199 + $0x1710] sm:$0xff]
        %v998 = vld [vmem:[%s199 + $0x1718] sm:$0xff]
        %v999 = vld [vmem:[%s199 + $0x1720] sm:$0xff]
        %v1000 = vld [vmem:[%s199 + $0x1728] sm:$0xff]
        %v1001 = vld [vmem:[%s199 + $0x1730] sm:$0xff]
        %v1002 = vld [vmem:[%s199 + $0x1738] sm:$0xff]
        %v1003 = vld [vmem:[%s199 + $0x1740] sm:$0xff]
        %v1004 = vld [vmem:[%s199 + $0x1748] sm:$0xff]
        %v1005 = vld [vmem:[%s199 + $0x1750] sm:$0xff]
        %v1006 = vld [vmem:[%s199 + $0x1758] sm:$0xff]
        %v1007 = vld [vmem:[%s199 + $0x1760] sm:$0xff]
        %v1008 = vld [vmem:[%s199 + $0x1768] sm:$0xff]
        %v1009 = vld [vmem:[%s199 + $0x1770] sm:$0xff]
        %v1010 = vld [vmem:[%s199 + $0x1778] sm:$0xff]
        %v1011 = vld [vmem:[%s199 + $0x1780] sm:$0xff]
        %v1012 = vld [vmem:[%s199 + $0x1788] sm:$0xff]
        %v1013 = vld [vmem:[%s199 + $0x1790] sm:$0xff]
        %v1014 = vld [vmem:[%s199 + $0x1798] sm:$0xff]
        %v1015 = vld [vmem:[%s199 + $0x17a0] sm:$0xff]
        %v1016 = vld [vmem:[%s199 + $0x17a8] sm:$0xff]
        %v1017 = vld [vmem:[%s199 + $0x17b0] sm:$0xff]
        %v1018 = vld [vmem:[%s199 + $0x17b8] sm:$0xff]
        %v1019 = vld [vmem:[%s199 + $0x17c0] sm:$0xff]
        %v1020 = vld [vmem:[%s199 + $0x17c8] sm:$0xff]
        %v1021 = vld [vmem:[%s199 + $0x17d0] sm:$0xff]
        %v1022 = vld [vmem:[%s199 + $0x17d8] sm:$0xff]
        %v1023 = vld [vmem:[%s199 + $0x17e0] sm:$0xff]
        %v1024 = vld [vmem:[%s199 + $0x17e8] sm:$0xff]
        %v1025 = vld [vmem:[%s199 + $0x17f0] sm:$0xff]
        %v1026 = vld [vmem:[%s199 + $0x17f8] sm:$0xff]
        %v1027 = vld [vmem:[%s199 + $0x1800] sm:$0xff]
        %v1028 = vld [vmem:[%s199 + $0x1808] sm:$0xff]
        %v1029 = vld [vmem:[%s199 + $0x1810] sm:$0xff]
        %v1030 = vld [vmem:[%s199 + $0x1818] sm:$0xff]
        %v1031 = vld [vmem:[%s199 + $0x1820] sm:$0xff]
        %v1032 = vld [vmem:[%s199 + $0x1828] sm:$0xff]
        %v1033 = vld [vmem:[%s199 + $0x1830] sm:$0xff]
        %v1034 = vld [vmem:[%s199 + $0x1838] sm:$0xff]
        %v1035 = vld [vmem:[%s199 + $0x1840] sm:$0xff]
        %v1036 = vld [vmem:[%s199 + $0x1848] sm:$0xff]
        %v1037 = vld [vmem:[%s199 + $0x1850] sm:$0xff]
        %v1038 = vld [vmem:[%s199 + $0x1858] sm:$0xff]
        %v1039 = vld [vmem:[%s199 + $0x1860] sm:$0xff]
        %v1040 = vld [vmem:[%s199 + $0x1868] sm:$0xff]
        %v1041 = vld [vmem:[%s199 + $0x1870] sm:$0xff]
        %v1042 = vld [vmem:[%s199 + $0x1878] sm:$0xff]
        %v1043 = vld [vmem:[%s199 + $0x1880] sm:$0xff]
        %v1044 = vld [vmem:[%s199 + $0x1888] sm:$0xff]
        %v1045 = vld [vmem:[%s199 + $0x1890] sm:$0xff]
        %v1046 = vld [vmem:[%s199 + $0x1898] sm:$0xff]
        %v1047 = vld [vmem:[%s199 + $0x18a0] sm:$0xff]
        %v1048 = vld [vmem:[%s199 + $0x18a8] sm:$0xff]
        %v1049 = vld [vmem:[%s199 + $0x18b0] sm:$0xff]
        %v1050 = vld [vmem:[%s199 + $0x18b8] sm:$0xff]
        %v1051 = vld [vmem:[%s199 + $0x18c0] sm:$0xff]
        %v1052 = vld [vmem:[%s199 + $0x18c8] sm:$0xff]
        %v1053 = vld [vmem:[%s199 + $0x18d0] sm:$0xff]
        %v1054 = vld [vmem:[%s199 + $0x18d8] sm:$0xff]
        %v1055 = vld [vmem:[%s199 + $0x18e0] sm:$0xff]
        %v1056 = vld [vmem:[%s199 + $0x18e8] sm:$0xff]
        %v1057 = vld [vmem:[%s199 + $0x18f0] sm:$0xff]
        %v1058 = vld [vmem:[%s199 + $0x18f8] sm:$0xff]
        %v1059 = vld [vmem:[%s199 + $0x1900] sm:$0xff]
        %v1060 = vld [vmem:[%s199 + $0x1908] sm:$0xff]
        %v1061 = vld [vmem:[%s199 + $0x1910] sm:$0xff]
        %v1062 = vld [vmem:[%s199 + $0x1918] sm:$0xff]
        %v1063 = vld [vmem:[%s199 + $0x1920] sm:$0xff]
        %v1064 = vld [vmem:[%s199 + $0x1928] sm:$0xff]
        %v1065 = vld [vmem:[%s199 + $0x1930] sm:$0xff]
        %v1066 = vld [vmem:[%s199 + $0x1938] sm:$0xff]
        %v1067 = vld [vmem:[%s199 + $0x1940] sm:$0xff]
        %v1068 = vld [vmem:[%s199 + $0x1948] sm:$0xff]
        %v1069 = vld [vmem:[%s199 + $0x1950] sm:$0xff]
        %v1070 = vld [vmem:[%s199 + $0x1958] sm:$0xff]
        %v1071 = vld [vmem:[%s199 + $0x1960] sm:$0xff]
        %v1072 = vld [vmem:[%s199 + $0x1968] sm:$0xff]
        %v1073 = vld [vmem:[%s199 + $0x1970] sm:$0xff]
        %v1074 = vld [vmem:[%s199 + $0x1978] sm:$0xff]
        %v1075 = vld [vmem:[%s199 + $0x1980] sm:$0xff]
        %v1076 = vld [vmem:[%s199 + $0x1988] sm:$0xff]
        %v1077 = vld [vmem:[%s199 + $0x1990] sm:$0xff]
        %v1078 = vld [vmem:[%s199 + $0x1998] sm:$0xff]
        %v1079 = vld [vmem:[%s199 + $0x19a0] sm:$0xff]
        %v1080 = vld [vmem:[%s199 + $0x19a8] sm:$0xff]
        %v1081 = vld [vmem:[%s199 + $0x19b0] sm:$0xff]
        %v1082 = vld [vmem:[%s199 + $0x19b8] sm:$0xff]
        %v1083 = vld [vmem:[%s199 + $0x19c0] sm:$0xff]
        %v1084 = vld [vmem:[%s199 + $0x19c8] sm:$0xff]
        %v1085 = vld [vmem:[%s199 + $0x19d0] sm:$0xff]
        %v1086 = vld [vmem:[%s199 + $0x19d8] sm:$0xff]
        %v1087 = vld [vmem:[%s199 + $0x19e0] sm:$0xff]
        %v1088 = vld [vmem:[%s199 + $0x19e8] sm:$0xff]
        %v1089 = vld [vmem:[%s199 + $0x19f0] sm:$0xff]
        %v1090 = vld [vmem:[%s199 + $0x19f8] sm:$0xff]
        %v1091 = vld [vmem:[%s199 + $0x1a00] sm:$0xff]
        %v1092 = vld [vmem:[%s199 + $0x1a08] sm:$0xff]
        %v1093 = vld [vmem:[%s199 + $0x1a10] sm:$0xff]
        %v1094 = vld [vmem:[%s199 + $0x1a18] sm:$0xff]
        %v1095 = vld [vmem:[%s199 + $0x1a20] sm:$0xff]
        %v1096 = vld [vmem:[%s199 + $0x1a28] sm:$0xff]
        %v1097 = vld [vmem:[%s199 + $0x1a30] sm:$0xff]
        %v1098 = vld [vmem:[%s199 + $0x1a38] sm:$0xff]
        %v1099 = vld [vmem:[%s199 + $0x1a40] sm:$0xff]
        %v1100 = vld [vmem:[%s199 + $0x1a48] sm:$0xff]
        %v1101 = vld [vmem:[%s199 + $0x1a50] sm:$0xff]
        %v1102 = vld [vmem:[%s199 + $0x1a58] sm:$0xff]
        %v1103 = vld [vmem:[%s199 + $0x1a60] sm:$0xff]
        %v1104 = vld [vmem:[%s199 + $0x1a68] sm:$0xff]
        %v1105 = vld [vmem:[%s199 + $0x1a70] sm:$0xff]
        %v1106 = vld [vmem:[%s199 + $0x1a78] sm:$0xff]
        %v1107 = vld [vmem:[%s199 + $0x1a80] sm:$0xff]
        %v1108 = vld [vmem:[%s199 + $0x1a88] sm:$0xff]
        %v1109 = vld [vmem:[%s199 + $0x1a90] sm:$0xff]
        %v1110 = vld [vmem:[%s199 + $0x1a98] sm:$0xff]
        %v1111 = vld [vmem:[%s199 + $0x1aa0] sm:$0xff]
        %v1112 = vld [vmem:[%s199 + $0x1aa8] sm:$0xff]
        %v1113 = vld [vmem:[%s199 + $0x1ab0] sm:$0xff]
        %v1114 = vld [vmem:[%s199 + $0x1ab8] sm:$0xff]
        %v1115 = vld [vmem:[%s199 + $0x1ac0] sm:$0xff]
        %v1116 = vld [vmem:[%s199 + $0x1ac8] sm:$0xff]
        %v1117 = vld [vmem:[%s199 + $0x1ad0] sm:$0xff]
        %v1118 = vld [vmem:[%s199 + $0x1ad8] sm:$0xff]
        %v1119 = vld [vmem:[%s199 + $0x1ae0] sm:$0xff]
        %v1120 = vld [vmem:[%s199 + $0x1ae8] sm:$0xff]
        %v1121 = vld [vmem:[%s199 + $0x1af0] sm:$0xff]
        %v1122 = vld [vmem:[%s199 + $0x1af8] sm:$0xff]
        %v1123 = vld [vmem:[%s199 + $0x1b00] sm:$0xff]
        %v1124 = vld [vmem:[%s199 + $0x1b08] sm:$0xff]
        %v1125 = vld [vmem:[%s199 + $0x1b10] sm:$0xff]
        %v1126 = vld [vmem:[%s199 + $0x1b18] sm:$0xff]
        %v1127 = vld [vmem:[%s199 + $0x1b20] sm:$0xff]
        %v1128 = vld [vmem:[%s199 + $0x1b28] sm:$0xff]
        %v1129 = vld [vmem:[%s199 + $0x1b30] sm:$0xff]
        %v1130 = vld [vmem:[%s199 + $0x1b38] sm:$0xff]
        %v1131 = vld [vmem:[%s199 + $0x1b40] sm:$0xff]
        %v1132 = vld [vmem:[%s199 + $0x1b48] sm:$0xff]
        %v1133 = vld [vmem:[%s199 + $0x1b50] sm:$0xff]
        %v1134 = vld [vmem:[%s199 + $0x1b58] sm:$0xff]
        %v1135 = vld [vmem:[%s199 + $0x1b60] sm:$0xff]
        %v1136 = vld [vmem:[%s199 + $0x1b68] sm:$0xff]
        %v1137 = vld [vmem:[%s199 + $0x1b70] sm:$0xff]
        %v1138 = vld [vmem:[%s199 + $0x1b78] sm:$0xff]
        %v1139 = vld [vmem:[%s199 + $0x1b80] sm:$0xff]
        %v1140 = vld [vmem:[%s199 + $0x1b88] sm:$0xff]
        %v1141 = vld [vmem:[%s199 + $0x1b90] sm:$0xff]
        %v1142 = vld [vmem:[%s199 + $0x1b98] sm:$0xff]
        %v1143 = vld [vmem:[%s199 + $0x1ba0] sm:$0xff]
        %v1144 = vld [vmem:[%s199 + $0x1ba8] sm:$0xff]
        %v1145 = vld [vmem:[%s199 + $0x1bb0] sm:$0xff]
        %v1146 = vld [vmem:[%s199 + $0x1bb8] sm:$0xff]
        %v1147 = vld [vmem:[%s199 + $0x1bc0] sm:$0xff]
        %v1148 = vld [vmem:[%s199 + $0x1bc8] sm:$0xff]
        %v1149 = vld [vmem:[%s199 + $0x1bd0] sm:$0xff]
        %v1150 = vld [vmem:[%s199 + $0x1bd8] sm:$0xff]
        %v1151 = vld [vmem:[%s199 + $0x1be0] sm:$0xff]
        %v1152 = vld [vmem:[%s199 + $0x1be8] sm:$0xff]
        %v1153 = vld [vmem:[%s199 + $0x1bf0] sm:$0xff]
        %v1154 = vld [vmem:[%s199 + $0x1bf8] sm:$0xff]
        %v1155 = vld [vmem:[%s199 + $0x1c00] sm:$0xff]
        %v1156 = vld [vmem:[%s199 + $0x1c08] sm:$0xff]
        %v1157 = vld [vmem:[%s199 + $0x1c10] sm:$0xff]
        %v1158 = vld [vmem:[%s199 + $0x1c18] sm:$0xff]
        %v1159 = vld [vmem:[%s199 + $0x1c20] sm:$0xff]
        %v1160 = vld [vmem:[%s199 + $0x1c28] sm:$0xff]
        %v1161 = vld [vmem:[%s199 + $0x1c30] sm:$0xff]
        %v1162 = vld [vmem:[%s199 + $0x1c38] sm:$0xff]
        %v1163 = vld [vmem:[%s199 + $0x1c40] sm:$0xff]
        %v1164 = vld [vmem:[%s199 + $0x1c48] sm:$0xff]
        %v1165 = vld [vmem:[%s199 + $0x1c50] sm:$0xff]
        %v1166 = vld [vmem:[%s199 + $0x1c58] sm:$0xff]
        %v1167 = vld [vmem:[%s199 + $0x1c60] sm:$0xff]
        %v1168 = vld [vmem:[%s199 + $0x1c68] sm:$0xff]
        %v1169 = vld [vmem:[%s199 + $0x1c70] sm:$0xff]
        %v1170 = vld [vmem:[%s199 + $0x1c78] sm:$0xff]
        %v1171 = vld [vmem:[%s199 + $0x1c80] sm:$0xff]
        %v1172 = vld [vmem:[%s199 + $0x1c88] sm:$0xff]
        %v1173 = vld [vmem:[%s199 + $0x1c90] sm:$0xff]
        %v1174 = vld [vmem:[%s199 + $0x1c98] sm:$0xff]
        %v1175 = vld [vmem:[%s199 + $0x1ca0] sm:$0xff]
        %v1176 = vld [vmem:[%s199 + $0x1ca8] sm:$0xff]
        %v1177 = vld [vmem:[%s199 + $0x1cb0] sm:$0xff]
        %v1178 = vld [vmem:[%s199 + $0x1cb8] sm:$0xff]
        %v1179 = vld [vmem:[%s199 + $0x1cc0] sm:$0xff]
        %v1180 = vld [vmem:[%s199 + $0x1cc8] sm:$0xff]
        %v1181 = vld [vmem:[%s199 + $0x1cd0] sm:$0xff]
        %v1182 = vld [vmem:[%s199 + $0x1cd8] sm:$0xff]
        %v1183 = vld [vmem:[%s199 + $0x1ce0] sm:$0xff]
        %v1184 = vld [vmem:[%s199 + $0x1ce8] sm:$0xff]
        %v1185 = vld [vmem:[%s199 + $0x1cf0] sm:$0xff]
        %v1186 = vld [vmem:[%s199 + $0x1cf8] sm:$0xff]
        %v1187 = vld [vmem:[%s199 + $0x1d00] sm:$0xff]
        %v1188 = vld [vmem:[%s199 + $0x1d08] sm:$0xff]
        %v1189 = vld [vmem:[%s199 + $0x1d10] sm:$0xff]
        %v1190 = vld [vmem:[%s199 + $0x1d18] sm:$0xff]
        %v1191 = vld [vmem:[%s199 + $0x1d20] sm:$0xff]
        %v1192 = vld [vmem:[%s199 + $0x1d28] sm:$0xff]
        %v1193 = vld [vmem:[%s199 + $0x1d30] sm:$0xff]
        %v1194 = vld [vmem:[%s199 + $0x1d38] sm:$0xff]
        %v1195 = vld [vmem:[%s199 + $0x1d40] sm:$0xff]
        %v1196 = vld [vmem:[%s199 + $0x1d48] sm:$0xff]
        %v1197 = vld [vmem:[%s199 + $0x1d50] sm:$0xff]
        %v1198 = vld [vmem:[%s199 + $0x1d58] sm:$0xff]
        %v1199 = vld [vmem:[%s199 + $0x1d60] sm:$0xff]
        %v1200 = vld [vmem:[%s199 + $0x1d68] sm:$0xff]
        %v1201 = vld [vmem:[%s199 + $0x1d70] sm:$0xff]
        %v1202 = vld [vmem:[%s199 + $0x1d78] sm:$0xff]
        %v1203 = vld [vmem:[%s199 + $0x1d80] sm:$0xff]
        %v1204 = vld [vmem:[%s199 + $0x1d88] sm:$0xff]
        %v1205 = vld [vmem:[%s199 + $0x1d90] sm:$0xff]
        %v1206 = vld [vmem:[%s199 + $0x1d98] sm:$0xff]
        %v1207 = vld [vmem:[%s199 + $0x1da0] sm:$0xff]
        %v1208 = vld [vmem:[%s199 + $0x1da8] sm:$0xff]
        %v1209 = vld [vmem:[%s199 + $0x1db0] sm:$0xff]
        %v1210 = vld [vmem:[%s199 + $0x1db8] sm:$0xff]
        %v1211 = vld [vmem:[%s199 + $0x1dc0] sm:$0xff]
        %v1212 = vld [vmem:[%s199 + $0x1dc8] sm:$0xff]
        %v1213 = vld [vmem:[%s199 + $0x1dd0] sm:$0xff]
        %v1214 = vld [vmem:[%s199 + $0x1dd8] sm:$0xff]
        %v1215 = vld [vmem:[%s199 + $0x1de0] sm:$0xff]
        %v1216 = vld [vmem:[%s199 + $0x1de8] sm:$0xff]
        %v1217 = vld [vmem:[%s199 + $0x1df0] sm:$0xff]
        %v1218 = vld [vmem:[%s199 + $0x1df8] sm:$0xff]
        %v1219 = vld [vmem:[%s199 + $0x1e00] sm:$0xff]
        %v1220 = vld [vmem:[%s199 + $0x1e08] sm:$0xff]
        %v1221 = vld [vmem:[%s199 + $0x1e10] sm:$0xff]
        %v1222 = vld [vmem:[%s199 + $0x1e18] sm:$0xff]
        %v1223 = vld [vmem:[%s199 + $0x1e20] sm:$0xff]
        %v1224 = vld [vmem:[%s199 + $0x1e28] sm:$0xff]
        %v1225 = vld [vmem:[%s199 + $0x1e30] sm:$0xff]
        %v1226 = vld [vmem:[%s199 + $0x1e38] sm:$0xff]
        %v1227 = vld [vmem:[%s199 + $0x1e40] sm:$0xff]
        %v1228 = vld [vmem:[%s199 + $0x1e48] sm:$0xff]
        %v1229 = vld [vmem:[%s199 + $0x1e50] sm:$0xff]
        %v1230 = vld [vmem:[%s199 + $0x1e58] sm:$0xff]
        %v1231 = vld [vmem:[%s199 + $0x1e60] sm:$0xff]
        %v1232 = vld [vmem:[%s199 + $0x1e68] sm:$0xff]
        %v1233 = vld [vmem:[%s199 + $0x1e70] sm:$0xff]
        %v1234 = vld [vmem:[%s199 + $0x1e78] sm:$0xff]
        %v1235 = vld [vmem:[%s199 + $0x1e80] sm:$0xff]
        %v1236 = vld [vmem:[%s199 + $0x1e88] sm:$0xff]
        %v1237 = vld [vmem:[%s199 + $0x1e90] sm:$0xff]
        %v1238 = vld [vmem:[%s199 + $0x1e98] sm:$0xff]
        %v1239 = vld [vmem:[%s199 + $0x1ea0] sm:$0xff]
        %v1240 = vld [vmem:[%s199 + $0x1ea8] sm:$0xff]
        %v1241 = vld [vmem:[%s199 + $0x1eb0] sm:$0xff]
        %v1242 = vld [vmem:[%s199 + $0x1eb8] sm:$0xff]
        %v1243 = vld [vmem:[%s199 + $0x1ec0] sm:$0xff]
        %v1244 = vld [vmem:[%s199 + $0x1ec8] sm:$0xff]
        %v1245 = vld [vmem:[%s199 + $0x1ed0] sm:$0xff]
        %v1246 = vld [vmem:[%s199 + $0x1ed8] sm:$0xff]
        %v1247 = vld [vmem:[%s199 + $0x1ee0] sm:$0xff]
        %v1248 = vld [vmem:[%s199 + $0x1ee8] sm:$0xff]
        %v1249 = vld [vmem:[%s199 + $0x1ef0] sm:$0xff]
        %v1250 = vld [vmem:[%s199 + $0x1ef8] sm:$0xff]
        %v1251 = vld [vmem:[%s199 + $0x1f00] sm:$0xff]
        %v1252 = vld [vmem:[%s199 + $0x1f08] sm:$0xff]
        %v1253 = vld [vmem:[%s199 + $0x1f10] sm:$0xff]
        %v1254 = vld [vmem:[%s199 + $0x1f18] sm:$0xff]
        %v1255 = vld [vmem:[%s199 + $0x1f20] sm:$0xff]
        %v1256 = vld [vmem:[%s199 + $0x1f28] sm:$0xff]
        %v1257 = vld [vmem:[%s199 + $0x1f30] sm:$0xff]
        %v1258 = vld [vmem:[%s199 + $0x1f38] sm:$0xff]
        %v1259 = vld [vmem:[%s199 + $0x1f40] sm:$0xff]
        %v1260 = vld [vmem:[%s199 + $0x1f48] sm:$0xff]
        %v1261 = vld [vmem:[%s199 + $0x1f50] sm:$0xff]
        %v1262 = vld [vmem:[%s199 + $0x1f58] sm:$0xff]
        %v1263 = vld [vmem:[%s199 + $0x1f60] sm:$0xff]
        %v1264 = vld [vmem:[%s199 + $0x1f68] sm:$0xff]
        %v1265 = vld [vmem:[%s199 + $0x1f70] sm:$0xff]
        %v1266 = vld [vmem:[%s199 + $0x1f78] sm:$0xff]
        %v1267 = vld [vmem:[%s199 + $0x1f80] sm:$0xff]
        %v1268 = vld [vmem:[%s199 + $0x1f88] sm:$0xff]
        %v1269 = vld [vmem:[%s199 + $0x1f90] sm:$0xff]
        %v1270 = vld [vmem:[%s199 + $0x1f98] sm:$0xff]
        %v1271 = vld [vmem:[%s199 + $0x1fa0] sm:$0xff]
        %v1272 = vld [vmem:[%s199 + $0x1fa8] sm:$0xff]
        %v1273 = vld [vmem:[%s199 + $0x1fb0] sm:$0xff]
        %v1274 = vld [vmem:[%s199 + $0x1fb8] sm:$0xff]
        %v1275 = vld [vmem:[%s199 + $0x1fc0] sm:$0xff]
        %v1276 = vld [vmem:[%s199 + $0x1fc8] sm:$0xff]
        %v1277 = vld [vmem:[%s199 + $0x1fd0] sm:$0xff]
        %v1278 = vld [vmem:[%s199 + $0x1fd8] sm:$0xff]
        %v1279 = vld [vmem:[%s199 + $0x1fe0] sm:$0xff]
        %v1280 = vld [vmem:[%s199 + $0x1fe8] sm:$0xff]
        %v1281 = vld [vmem:[%s199 + $0x1ff0] sm:$0xff]
        %v1282 = vld [vmem:[%s199 + $0x1ff8] sm:$0xff]
        %v1283 = vld [vmem:[%s199 + $0x2000] sm:$0xff]
        %v1284 = vld [vmem:[%s199 + $0x2008] sm:$0xff]
        %v1285 = vld [vmem:[%s199 + $0x2010] sm:$0xff]
        %v1286 = vld [vmem:[%s199 + $0x2018] sm:$0xff]
        %v1287 = vld [vmem:[%s199 + $0x2020] sm:$0xff]
        %v1288 = vld [vmem:[%s199 + $0x2028] sm:$0xff]
        %v1289 = vld [vmem:[%s199 + $0x2030] sm:$0xff]
        %v1290 = vld [vmem:[%s199 + $0x2038] sm:$0xff]
        %v1291 = vld [vmem:[%s199 + $0x2040] sm:$0xff]
        %v1292 = vld [vmem:[%s199 + $0x2048] sm:$0xff]
        %v1293 = vld [vmem:[%s199 + $0x2050] sm:$0xff]
        %v1294 = vld [vmem:[%s199 + $0x2058] sm:$0xff]
        %v1295 = vld [vmem:[%s199 + $0x2060] sm:$0xff]
        %v1296 = vld [vmem:[%s199 + $0x2068] sm:$0xff]
        %v1297 = vld [vmem:[%s199 + $0x2070] sm:$0xff]
        %v1298 = vld [vmem:[%s199 + $0x2078] sm:$0xff]
        %v1299 = vld [vmem:[%s199 + $0x2080] sm:$0xff]
        %v1300 = vld [vmem:[%s199 + $0x2088] sm:$0xff]
        %v1301 = vld [vmem:[%s199 + $0x2090] sm:$0xff]
        %v1302 = vld [vmem:[%s199 + $0x2098] sm:$0xff]
        %v1303 = vld [vmem:[%s199 + $0x20a0] sm:$0xff]
        %v1304 = vld [vmem:[%s199 + $0x20a8] sm:$0xff]
        %v1305 = vld [vmem:[%s199 + $0x20b0] sm:$0xff]
        %v1306 = vld [vmem:[%s199 + $0x20b8] sm:$0xff]
        %v1307 = vld [vmem:[%s199 + $0x20c0] sm:$0xff]
        %v1308 = vld [vmem:[%s199 + $0x20c8] sm:$0xff]
        %v1309 = vld [vmem:[%s199 + $0x20d0] sm:$0xff]
        %v1310 = vld [vmem:[%s199 + $0x20d8] sm:$0xff]
        %v1311 = vld [vmem:[%s199 + $0x20e0] sm:$0xff]
        %v1312 = vld [vmem:[%s199 + $0x20e8] sm:$0xff]
        %v1313 = vld [vmem:[%s199 + $0x20f0] sm:$0xff]
        %v1314 = vld [vmem:[%s199 + $0x20f8] sm:$0xff]
        %v1315 = vld [vmem:[%s199 + $0x2100] sm:$0xff]
        %v1316 = vld [vmem:[%s199 + $0x2108] sm:$0xff]
        %v1317 = vld [vmem:[%s199 + $0x2110] sm:$0xff]
        %v1318 = vld [vmem:[%s199 + $0x2118] sm:$0xff]
        %v1319 = vld [vmem:[%s199 + $0x2120] sm:$0xff]
        %v1320 = vld [vmem:[%s199 + $0x2128] sm:$0xff]
        %v1321 = vld [vmem:[%s199 + $0x2130] sm:$0xff]
        %v1322 = vld [vmem:[%s199 + $0x2138] sm:$0xff]
        %v1323 = vld [vmem:[%s199 + $0x2140] sm:$0xff]
        %v1324 = vld [vmem:[%s199 + $0x2148] sm:$0xff]
        %v1325 = vld [vmem:[%s199 + $0x2150] sm:$0xff]
        %v1326 = vld [vmem:[%s199 + $0x2158] sm:$0xff]
        %v1327 = vld [vmem:[%s199 + $0x2160] sm:$0xff]
        %v1328 = vld [vmem:[%s199 + $0x2168] sm:$0xff]
        %v1329 = vld [vmem:[%s199 + $0x2170] sm:$0xff]
        %v1330 = vld [vmem:[%s199 + $0x2178] sm:$0xff]
        %v1331 = vld [vmem:[%s199 + $0x2180] sm:$0xff]
        %v1332 = vld [vmem:[%s199 + $0x2188] sm:$0xff]
        %v1333 = vld [vmem:[%s199 + $0x2190] sm:$0xff]
        %v1334 = vld [vmem:[%s199 + $0x2198] sm:$0xff]
        %v1335 = vld [vmem:[%s199 + $0x21a0] sm:$0xff]
        %v1336 = vld [vmem:[%s199 + $0x21a8] sm:$0xff]
        %v1337 = vld [vmem:[%s199 + $0x21b0] sm:$0xff]
        %v1338 = vld [vmem:[%s199 + $0x21b8] sm:$0xff]
        %v1339 = vld [vmem:[%s199 + $0x21c0] sm:$0xff]
        %v1340 = vld [vmem:[%s199 + $0x21c8] sm:$0xff]
        %v1341 = vld [vmem:[%s199 + $0x21d0] sm:$0xff]
        %v1342 = vld [vmem:[%s199 + $0x21d8] sm:$0xff]
        %v1343 = vld [vmem:[%s199 + $0x21e0] sm:$0xff]
        %v1344 = vld [vmem:[%s199 + $0x21e8] sm:$0xff]
        %v1345 = vld [vmem:[%s199 + $0x21f0] sm:$0xff]
        %v1346 = vld [vmem:[%s199 + $0x21f8] sm:$0xff]
        %v1347 = vld [vmem:[%s199 + $0x2200] sm:$0xff]
        %v1348 = vld [vmem:[%s199 + $0x2208] sm:$0xff]
        %v1349 = vld [vmem:[%s199 + $0x2210] sm:$0xff]
        %v1350 = vld [vmem:[%s199 + $0x2218] sm:$0xff]
        %v1351 = vld [vmem:[%s199 + $0x2220] sm:$0xff]
        %v1352 = vld [vmem:[%s199 + $0x2228] sm:$0xff]
        %v1353 = vld [vmem:[%s199 + $0x2230] sm:$0xff]
        %v1354 = vld [vmem:[%s199 + $0x2238] sm:$0xff]
        %v1355 = vld [vmem:[%s199 + $0x2240] sm:$0xff]
        %v1356 = vld [vmem:[%s199 + $0x2248] sm:$0xff]
        %v1357 = vld [vmem:[%s199 + $0x2250] sm:$0xff]
        %v1358 = vld [vmem:[%s199 + $0x2258] sm:$0xff]
        %v1359 = vld [vmem:[%s199 + $0x2260] sm:$0xff]
        %v1360 = vld [vmem:[%s199 + $0x2268] sm:$0xff]
        %v1361 = vld [vmem:[%s199 + $0x2270] sm:$0xff]
        %v1362 = vld [vmem:[%s199 + $0x2278] sm:$0xff]
        %v1363 = vld [vmem:[%s199 + $0x2280] sm:$0xff]
        %v1364 = vld [vmem:[%s199 + $0x2288] sm:$0xff]
        %v1365 = vld [vmem:[%s199 + $0x2290] sm:$0xff]
        %v1366 = vld [vmem:[%s199 + $0x2298] sm:$0xff]
        %v1367 = vld [vmem:[%s199 + $0x22a0] sm:$0xff]
        %v1368 = vld [vmem:[%s199 + $0x22a8] sm:$0xff]
        %v1369 = vld [vmem:[%s199 + $0x22b0] sm:$0xff]
        %v1370 = vld [vmem:[%s199 + $0x22b8] sm:$0xff]
        %v1371 = vld [vmem:[%s199 + $0x22c0] sm:$0xff]
        %v1372 = vld [vmem:[%s199 + $0x22c8] sm:$0xff]
        %v1373 = vld [vmem:[%s199 + $0x22d0] sm:$0xff]
        %v1374 = vld [vmem:[%s199 + $0x22d8] sm:$0xff]
        %v1375 = vld [vmem:[%s199 + $0x22e0] sm:$0xff]
        %v1376 = vld [vmem:[%s199 + $0x22e8] sm:$0xff]
        %v1377 = vld [vmem:[%s199 + $0x22f0] sm:$0xff]
        %v1378 = vld [vmem:[%s199 + $0x22f8] sm:$0xff]
        %v1379 = vld [vmem:[%s199 + $0x2300] sm:$0xff]
        %v1380 = vld [vmem:[%s199 + $0x2308] sm:$0xff]
        %v1381 = vld [vmem:[%s199 + $0x2310] sm:$0xff]
        %v1382 = vld [vmem:[%s199 + $0x2318] sm:$0xff]
        %v1383 = vld [vmem:[%s199 + $0x2320] sm:$0xff]
        %v1384 = vld [vmem:[%s199 + $0x2328] sm:$0xff]
        %v1385 = vld [vmem:[%s199 + $0x2330] sm:$0xff]
        %v1386 = vld [vmem:[%s199 + $0x2338] sm:$0xff]
        %v1387 = vld [vmem:[%s199 + $0x2340] sm:$0xff]
        %v1388 = vld [vmem:[%s199 + $0x2348] sm:$0xff]
        %v1389 = vld [vmem:[%s199 + $0x2350] sm:$0xff]
        %v1390 = vld [vmem:[%s199 + $0x2358] sm:$0xff]
        %v1391 = vld [vmem:[%s199 + $0x2360] sm:$0xff]
        %v1392 = vld [vmem:[%s199 + $0x2368] sm:$0xff]
        %v1393 = vld [vmem:[%s199 + $0x2370] sm:$0xff]
        %v1394 = vld [vmem:[%s199 + $0x2378] sm:$0xff]
        %v1395 = vld [vmem:[%s199 + $0x2380] sm:$0xff]
        %v1396 = vld [vmem:[%s199 + $0x2388] sm:$0xff]
        %v1397 = vld [vmem:[%s199 + $0x2390] sm:$0xff]
        %v1398 = vld [vmem:[%s199 + $0x2398] sm:$0xff]
        %v1399 = vld [vmem:[%s199 + $0x23a0] sm:$0xff]
        %v1400 = vld [vmem:[%s199 + $0x23a8] sm:$0xff]
        %v1401 = vld [vmem:[%s199 + $0x23b0] sm:$0xff]
        %v1402 = vld [vmem:[%s199 + $0x23b8] sm:$0xff]
        %v1403 = vld [vmem:[%s199 + $0x23c0] sm:$0xff]
        %v1404 = vld [vmem:[%s199 + $0x23c8] sm:$0xff]
        %v1405 = vld [vmem:[%s199 + $0x23d0] sm:$0xff]
        %v1406 = vld [vmem:[%s199 + $0x23d8] sm:$0xff]
        %v1407 = vld [vmem:[%s199 + $0x23e0] sm:$0xff]
        %v1408 = vld [vmem:[%s199 + $0x23e8] sm:$0xff]
        %v1409 = vld [vmem:[%s199 + $0x23f0] sm:$0xff]
        %v1410 = vld [vmem:[%s199 + $0x23f8] sm:$0xff]
        %v1411 = vld [vmem:[%s199 + $0x2400] sm:$0xff]
        %v1412 = vld [vmem:[%s199 + $0x2408] sm:$0xff]
        %v1413 = vld [vmem:[%s199 + $0x2410] sm:$0xff]
        %v1414 = vld [vmem:[%s199 + $0x2418] sm:$0xff]
        %v1415 = vld [vmem:[%s199 + $0x2420] sm:$0xff]
        %v1416 = vld [vmem:[%s199 + $0x2428] sm:$0xff]
        %v1417 = vld [vmem:[%s199 + $0x2430] sm:$0xff]
        %v1418 = vld [vmem:[%s199 + $0x2438] sm:$0xff]
        %v1419 = vld [vmem:[%s199 + $0x2440] sm:$0xff]
        %v1420 = vld [vmem:[%s199 + $0x2448] sm:$0xff]
        %v1421 = vld [vmem:[%s199 + $0x2450] sm:$0xff]
        %v1422 = vld [vmem:[%s199 + $0x2458] sm:$0xff]
        %v1423 = vld [vmem:[%s199 + $0x2460] sm:$0xff]
        %v1424 = vld [vmem:[%s199 + $0x2468] sm:$0xff]
        %v1425 = vld [vmem:[%s199 + $0x2470] sm:$0xff]
        %v1426 = vld [vmem:[%s199 + $0x2478] sm:$0xff]
        %v1427 = vld [vmem:[%s199 + $0x2480] sm:$0xff]
        %v1428 = vld [vmem:[%s199 + $0x2488] sm:$0xff]
        %v1429 = vld [vmem:[%s199 + $0x2490] sm:$0xff]
        %v1430 = vld [vmem:[%s199 + $0x2498] sm:$0xff]
        %v1431 = vld [vmem:[%s199 + $0x24a0] sm:$0xff]
        %v1432 = vld [vmem:[%s199 + $0x24a8] sm:$0xff]
        %v1433 = vld [vmem:[%s199 + $0x24b0] sm:$0xff]
        %v1434 = vld [vmem:[%s199 + $0x24b8] sm:$0xff]
        %v1435 = vld [vmem:[%s199 + $0x24c0] sm:$0xff]
        %v1436 = vld [vmem:[%s199 + $0x24c8] sm:$0xff]
        %v1437 = vld [vmem:[%s199 + $0x24d0] sm:$0xff]
        %v1438 = vld [vmem:[%s199 + $0x24d8] sm:$0xff]
        %v1439 = vld [vmem:[%s199 + $0x24e0] sm:$0xff]
        %v1440 = vld [vmem:[%s199 + $0x24e8] sm:$0xff]
        %v1441 = vld [vmem:[%s199 + $0x24f0] sm:$0xff]
        %v1442 = vld [vmem:[%s199 + $0x24f8] sm:$0xff]
        %v1443 = vld [vmem:[%s199 + $0x2500] sm:$0xff]
        %v1444 = vld [vmem:[%s199 + $0x2508] sm:$0xff]
        %v1445 = vld [vmem:[%s199 + $0x2510] sm:$0xff]
        %v1446 = vld [vmem:[%s199 + $0x2518] sm:$0xff]
        %v1447 = vld [vmem:[%s199 + $0x2520] sm:$0xff]
        %v1448 = vld [vmem:[%s199 + $0x2528] sm:$0xff]
        %v1449 = vld [vmem:[%s199 + $0x2530] sm:$0xff]
        %v1450 = vld [vmem:[%s199 + $0x2538] sm:$0xff]
        %v1451 = vld [vmem:[%s199 + $0x2540] sm:$0xff]
        %v1452 = vld [vmem:[%s199 + $0x2548] sm:$0xff]
        %v1453 = vld [vmem:[%s199 + $0x2550] sm:$0xff]
        %v1454 = vld [vmem:[%s199 + $0x2558] sm:$0xff]
        %v1455 = vld [vmem:[%s199 + $0x2560] sm:$0xff]
        %v1456 = vld [vmem:[%s199 + $0x2568] sm:$0xff]
        %v1457 = vld [vmem:[%s199 + $0x2570] sm:$0xff]
        %v1458 = vld [vmem:[%s199 + $0x2578] sm:$0xff]
        %v1459 = vld [vmem:[%s199 + $0x2580] sm:$0xff]
        %v1460 = vld [vmem:[%s199 + $0x2588] sm:$0xff]
        %v1461 = vld [vmem:[%s199 + $0x2590] sm:$0xff]
        %v1462 = vld [vmem:[%s199 + $0x2598] sm:$0xff]
        %v1463 = vld [vmem:[%s199 + $0x25a0] sm:$0xff]
        %v1464 = vld [vmem:[%s199 + $0x25a8] sm:$0xff]
        %v1465 = vld [vmem:[%s199 + $0x25b0] sm:$0xff]
        %v1466 = vld [vmem:[%s199 + $0x25b8] sm:$0xff]
        %v1467 = vld [vmem:[%s199 + $0x25c0] sm:$0xff]
        %v1468 = vld [vmem:[%s199 + $0x25c8] sm:$0xff]
        %v1469 = vld [vmem:[%s199 + $0x25d0] sm:$0xff]
        %v1470 = vld [vmem:[%s199 + $0x25d8] sm:$0xff]
        %v1471 = vld [vmem:[%s199 + $0x25e0] sm:$0xff]
        %v1472 = vld [vmem:[%s199 + $0x25e8] sm:$0xff]
        %v1473 = vld [vmem:[%s199 + $0x25f0] sm:$0xff]
        %v1474 = vld [vmem:[%s199 + $0x25f8] sm:$0xff]
        %v1475 = vld [vmem:[%s199 + $0x2600] sm:$0xff]
        %v1476 = vld [vmem:[%s199 + $0x2608] sm:$0xff]
        %v1477 = vld [vmem:[%s199 + $0x2610] sm:$0xff]
        %v1478 = vld [vmem:[%s199 + $0x2618] sm:$0xff]
        %v1479 = vld [vmem:[%s199 + $0x2620] sm:$0xff]
        %v1480 = vld [vmem:[%s199 + $0x2628] sm:$0xff]
        %v1481 = vld [vmem:[%s199 + $0x2630] sm:$0xff]
        %v1482 = vld [vmem:[%s199 + $0x2638] sm:$0xff]
        %v1483 = vld [vmem:[%s199 + $0x2640] sm:$0xff]
        %v1484 = vld [vmem:[%s199 + $0x2648] sm:$0xff]
        %v1485 = vld [vmem:[%s199 + $0x2650] sm:$0xff]
        %v1486 = vld [vmem:[%s199 + $0x2658] sm:$0xff]
        %v1487 = vld [vmem:[%s199 + $0x2660] sm:$0xff]
        %v1488 = vld [vmem:[%s199 + $0x2668] sm:$0xff]
        %v1489 = vld [vmem:[%s199 + $0x2670] sm:$0xff]
        %v1490 = vld [vmem:[%s199 + $0x2678] sm:$0xff]
        %v1491 = vld [vmem:[%s199 + $0x2680] sm:$0xff]
        %v1492 = vld [vmem:[%s199 + $0x2688] sm:$0xff]
        %v1493 = vld [vmem:[%s199 + $0x2690] sm:$0xff]
        %v1494 = vld [vmem:[%s199 + $0x2698] sm:$0xff]
        %v1495 = vld [vmem:[%s199 + $0x26a0] sm:$0xff]
        %v1496 = vld [vmem:[%s199 + $0x26a8] sm:$0xff]
        %v1497 = vld [vmem:[%s199 + $0x26b0] sm:$0xff]
        %v1498 = vld [vmem:[%s199 + $0x26b8] sm:$0xff]
        %v1499 = vld [vmem:[%s199 + $0x26c0] sm:$0xff]
        %v1500 = vld [vmem:[%s199 + $0x26c8] sm:$0xff]
        %v1501 = vld [vmem:[%s199 + $0x26d0] sm:$0xff]
        %v1502 = vld [vmem:[%s199 + $0x26d8] sm:$0xff]
        %v1503 = vld [vmem:[%s199 + $0x26e0] sm:$0xff]
        %v1504 = vld [vmem:[%s199 + $0x26e8] sm:$0xff]
        %v1505 = vld [vmem:[%s199 + $0x26f0] sm:$0xff]
        %v1506 = vld [vmem:[%s199 + $0x26f8] sm:$0xff]
        %v1507 = vld [vmem:[%s199 + $0x2700] sm:$0xff]
        %v1508 = vld [vmem:[%s199 + $0x2708] sm:$0xff]
        %v1509 = vld [vmem:[%s199 + $0x2710] sm:$0xff]
        %v1510 = vld [vmem:[%s199 + $0x2718] sm:$0xff]
        %v1511 = vld [vmem:[%s199 + $0x2720] sm:$0xff]
        %v1512 = vld [vmem:[%s199 + $0x2728] sm:$0xff]
        %v1513 = vld [vmem:[%s199 + $0x2730] sm:$0xff]
        %v1514 = vld [vmem:[%s199 + $0x2738] sm:$0xff]
        %v1515 = vld [vmem:[%s199 + $0x2740] sm:$0xff]
        %v1516 = vld [vmem:[%s199 + $0x2748] sm:$0xff]
        %v1517 = vld [vmem:[%s199 + $0x2750] sm:$0xff]
        %v1518 = vld [vmem:[%s199 + $0x2758] sm:$0xff]
        %v1519 = vld [vmem:[%s199 + $0x2760] sm:$0xff]
        %v1520 = vld [vmem:[%s199 + $0x2768] sm:$0xff]
        %v1521 = vld [vmem:[%s199 + $0x2770] sm:$0xff]
        %v1522 = vld [vmem:[%s199 + $0x2778] sm:$0xff]
        %v1523 = vld [vmem:[%s199 + $0x2780] sm:$0xff]
        %v1524 = vld [vmem:[%s199 + $0x2788] sm:$0xff]
        %v1525 = vld [vmem:[%s199 + $0x2790] sm:$0xff]
        %v1526 = vld [vmem:[%s199 + $0x2798] sm:$0xff]
        %v1527 = vld [vmem:[%s199 + $0x27a0] sm:$0xff]
        %v1528 = vld [vmem:[%s199 + $0x27a8] sm:$0xff]
        %v1529 = vld [vmem:[%s199 + $0x27b0] sm:$0xff]
        %v1530 = vld [vmem:[%s199 + $0x27b8] sm:$0xff]
        %v1531 = vld [vmem:[%s199 + $0x27c0] sm:$0xff]
        %v1532 = vld [vmem:[%s199 + $0x27c8] sm:$0xff]
        %v1533 = vld [vmem:[%s199 + $0x27d0] sm:$0xff]
        %v1534 = vld [vmem:[%s199 + $0x27d8] sm:$0xff]
        %v1535 = vld [vmem:[%s199 + $0x27e0] sm:$0xff]
        %v1536 = vld [vmem:[%s199 + $0x27e8] sm:$0xff]
        %v1537 = vld [vmem:[%s199 + $0x27f0] sm:$0xff]
        %v1538 = vld [vmem:[%s199 + $0x27f8] sm:$0xff]
        %v1539 = vld [vmem:[%s199 + $0x2800] sm:$0xff]
        %v1540 = vld [vmem:[%s199 + $0x2808] sm:$0xff]
        %v1541 = vld [vmem:[%s199 + $0x2810] sm:$0xff]
        %v1542 = vld [vmem:[%s199 + $0x2818] sm:$0xff]
        %v1543 = vld [vmem:[%s199 + $0x2820] sm:$0xff]
        %v1544 = vld [vmem:[%s199 + $0x2828] sm:$0xff]
        %v1545 = vld [vmem:[%s199 + $0x2830] sm:$0xff]
        %v1546 = vld [vmem:[%s199 + $0x2838] sm:$0xff]
        %v1547 = vld [vmem:[%s199 + $0x2840] sm:$0xff]
        %v1548 = vld [vmem:[%s199 + $0x2848] sm:$0xff]
        %v1549 = vld [vmem:[%s199 + $0x2850] sm:$0xff]
        %v1550 = vld [vmem:[%s199 + $0x2858] sm:$0xff]
        %v1551 = vld [vmem:[%s199 + $0x2860] sm:$0xff]
        %v1552 = vld [vmem:[%s199 + $0x2868] sm:$0xff]
        %v1553 = vld [vmem:[%s199 + $0x2870] sm:$0xff]
        %v1554 = vld [vmem:[%s199 + $0x2878] sm:$0xff]
        %v1555 = vld [vmem:[%s199 + $0x2880] sm:$0xff]
        %v1556 = vld [vmem:[%s199 + $0x2888] sm:$0xff]
        %v1557 = vld [vmem:[%s199 + $0x2890] sm:$0xff]
        %v1558 = vld [vmem:[%s199 + $0x2898] sm:$0xff]
        %v1559 = vld [vmem:[%s199 + $0x28a0] sm:$0xff]
        %v1560 = vld [vmem:[%s199 + $0x28a8] sm:$0xff]
        %v1561 = vld [vmem:[%s199 + $0x28b0] sm:$0xff]
        %v1562 = vld [vmem:[%s199 + $0x28b8] sm:$0xff]
        %v1563 = vld [vmem:[%s199 + $0x28c0] sm:$0xff]
        %v1564 = vld [vmem:[%s199 + $0x28c8] sm:$0xff]
        %v1565 = vld [vmem:[%s199 + $0x28d0] sm:$0xff]
        %v1566 = vld [vmem:[%s199 + $0x28d8] sm:$0xff]
        %v1567 = vld [vmem:[%s199 + $0x28e0] sm:$0xff]
        %v1568 = vld [vmem:[%s199 + $0x28e8] sm:$0xff]
        %v1569 = vld [vmem:[%s199 + $0x28f0] sm:$0xff]
        %v1570 = vld [vmem:[%s199 + $0x28f8] sm:$0xff]
        %v1571 = vld [vmem:[%s199 + $0x2900] sm:$0xff]
        %v1572 = vld [vmem:[%s199 + $0x2908] sm:$0xff]
        %v1573 = vld [vmem:[%s199 + $0x2910] sm:$0xff]
        %v1574 = vld [vmem:[%s199 + $0x2918] sm:$0xff]
        %v1575 = vld [vmem:[%s199 + $0x2920] sm:$0xff]
        %v1576 = vld [vmem:[%s199 + $0x2928] sm:$0xff]
        %v1577 = vld [vmem:[%s199 + $0x2930] sm:$0xff]
        %v1578 = vld [vmem:[%s199 + $0x2938] sm:$0xff]
        %v1579 = vld [vmem:[%s199 + $0x2940] sm:$0xff]
        %v1580 = vld [vmem:[%s199 + $0x2948] sm:$0xff]
        %v1581 = vld [vmem:[%s199 + $0x2950] sm:$0xff]
        %v1582 = vld [vmem:[%s199 + $0x2958] sm:$0xff]
        %v1583 = vld [vmem:[%s199 + $0x2960] sm:$0xff]
        %v1584 = vld [vmem:[%s199 + $0x2968] sm:$0xff]
        %v1585 = vld [vmem:[%s199 + $0x2970] sm:$0xff]
        %v1586 = vld [vmem:[%s199 + $0x2978] sm:$0xff]
        %v1587 = vld [vmem:[%s199 + $0x2980] sm:$0xff]
        %v1588 = vld [vmem:[%s199 + $0x2988] sm:$0xff]
        %v1589 = vld [vmem:[%s199 + $0x2990] sm:$0xff]
        %v1590 = vld [vmem:[%s199 + $0x2998] sm:$0xff]
        %v1591 = vld [vmem:[%s199 + $0x29a0] sm:$0xff]
        %v1592 = vld [vmem:[%s199 + $0x29a8] sm:$0xff]
        %v1593 = vld [vmem:[%s199 + $0x29b0] sm:$0xff]
        %v1594 = vld [vmem:[%s199 + $0x29b8] sm:$0xff]
        %v1595 = vld [vmem:[%s199 + $0x29c0] sm:$0xff]
        %v1596 = vld [vmem:[%s199 + $0x29c8] sm:$0xff]
        %v1597 = vld [vmem:[%s199 + $0x29d0] sm:$0xff]
        %v1598 = vld [vmem:[%s199 + $0x29d8] sm:$0xff]
        %v1599 = vld [vmem:[%s199 + $0x29e0] sm:$0xff]
        %v1600 = vld [vmem:[%s199 + $0x29e8] sm:$0xff]
        %v1601 = vld [vmem:[%s199 + $0x29f0] sm:$0xff]
        %v1602 = vld [vmem:[%s199 + $0x29f8] sm:$0xff]
        %v1603 = vld [vmem:[%s199 + $0x2a00] sm:$0xff]
        %v1604 = vld [vmem:[%s199 + $0x2a08] sm:$0xff]
        %v1605 = vld [vmem:[%s199 + $0x2a10] sm:$0xff]
        %v1606 = vld [vmem:[%s199 + $0x2a18] sm:$0xff]
        %v1607 = vld [vmem:[%s199 + $0x2a20] sm:$0xff]
        %v1608 = vld [vmem:[%s199 + $0x2a28] sm:$0xff]
        %v1609 = vld [vmem:[%s199 + $0x2a30] sm:$0xff]
        %v1610 = vld [vmem:[%s199 + $0x2a38] sm:$0xff]
        %v1611 = vld [vmem:[%s199 + $0x2a40] sm:$0xff]
        %v1612 = vld [vmem:[%s199 + $0x2a48] sm:$0xff]
        %v1613 = vld [vmem:[%s199 + $0x2a50] sm:$0xff]
        %v1614 = vld [vmem:[%s199 + $0x2a58] sm:$0xff]
        %v1615 = vld [vmem:[%s199 + $0x2a60] sm:$0xff]
        %v1616 = vld [vmem:[%s199 + $0x2a68] sm:$0xff]
        %v1617 = vld [vmem:[%s199 + $0x2a70] sm:$0xff]
        %v1618 = vld [vmem:[%s199 + $0x2a78] sm:$0xff]
        %v1619 = vld [vmem:[%s199 + $0x2a80] sm:$0xff]
        %v1620 = vld [vmem:[%s199 + $0x2a88] sm:$0xff]
        %v1621 = vld [vmem:[%s199 + $0x2a90] sm:$0xff]
        %v1622 = vld [vmem:[%s199 + $0x2a98] sm:$0xff]
        %v1623 = vld [vmem:[%s199 + $0x2aa0] sm:$0xff]
        %v1624 = vld [vmem:[%s199 + $0x2aa8] sm:$0xff]
        %v1625 = vld [vmem:[%s199 + $0x2ab0] sm:$0xff]
        %v1626 = vld [vmem:[%s199 + $0x2ab8] sm:$0xff]
        %v1627 = vld [vmem:[%s199 + $0x2ac0] sm:$0xff]
        %v1628 = vld [vmem:[%s199 + $0x2ac8] sm:$0xff]
        %v1629 = vld [vmem:[%s199 + $0x2ad0] sm:$0xff]
        %v1630 = vld [vmem:[%s199 + $0x2ad8] sm:$0xff]
        %v1631 = vld [vmem:[%s199 + $0x2ae0] sm:$0xff]
        %v1632 = vld [vmem:[%s199 + $0x2ae8] sm:$0xff]
        %v1633 = vld [vmem:[%s199 + $0x2af0] sm:$0xff]
        %v1634 = vld [vmem:[%s199 + $0x2af8] sm:$0xff]
        %v1635 = vld [vmem:[%s199 + $0x2b00] sm:$0xff]
        %v1636 = vld [vmem:[%s199 + $0x2b08] sm:$0xff]
        %v1637 = vld [vmem:[%s199 + $0x2b10] sm:$0xff]
        %v1638 = vld [vmem:[%s199 + $0x2b18] sm:$0xff]
        %v1639 = vld [vmem:[%s199 + $0x2b20] sm:$0xff]
        %v1640 = vld [vmem:[%s199 + $0x2b28] sm:$0xff]
        %v1641 = vld [vmem:[%s199 + $0x2b30] sm:$0xff]
        %v1642 = vld [vmem:[%s199 + $0x2b38] sm:$0xff]
        %v1643 = vld [vmem:[%s199 + $0x2b40] sm:$0xff]
        %v1644 = vld [vmem:[%s199 + $0x2b48] sm:$0xff]
        %v1645 = vld [vmem:[%s199 + $0x2b50] sm:$0xff]
        %v1646 = vld [vmem:[%s199 + $0x2b58] sm:$0xff]
        %v1647 = vld [vmem:[%s199 + $0x2b60] sm:$0xff]
        %v1648 = vld [vmem:[%s199 + $0x2b68] sm:$0xff]
        %v1649 = vld [vmem:[%s199 + $0x2b70] sm:$0xff]
        %v1650 = vld [vmem:[%s199 + $0x2b78] sm:$0xff]
        %v1651 = vld [vmem:[%s199 + $0x2b80] sm:$0xff]
        %v1652 = vld [vmem:[%s199 + $0x2b88] sm:$0xff]
        %v1653 = vld [vmem:[%s199 + $0x2b90] sm:$0xff]
        %v1654 = vld [vmem:[%s199 + $0x2b98] sm:$0xff]
        %v1655 = vld [vmem:[%s199 + $0x2ba0] sm:$0xff]
        %v1656 = vld [vmem:[%s199 + $0x2ba8] sm:$0xff]
        %v1657 = vld [vmem:[%s199 + $0x2bb0] sm:$0xff]
        %v1658 = vld [vmem:[%s199 + $0x2bb8] sm:$0xff]
        %v1659 = vld [vmem:[%s199 + $0x2bc0] sm:$0xff]
        %v1660 = vld [vmem:[%s199 + $0x2bc8] sm:$0xff]
        %v1661 = vld [vmem:[%s199 + $0x2bd0] sm:$0xff]
        %v1662 = vld [vmem:[%s199 + $0x2bd8] sm:$0xff]
        %v1663 = vld [vmem:[%s199 + $0x2be0] sm:$0xff]
        %v1664 = vld [vmem:[%s199 + $0x2be8] sm:$0xff]
        %v1665 = vld [vmem:[%s199 + $0x2bf0] sm:$0xff]
        %v1666 = vld [vmem:[%s199 + $0x2bf8] sm:$0xff]
        %v1667 = vld [vmem:[%s199 + $0x2c00] sm:$0xff]
        %v1668 = vld [vmem:[%s199 + $0x2c08] sm:$0xff]
        %v1669 = vld [vmem:[%s199 + $0x2c10] sm:$0xff]
        %v1670 = vld [vmem:[%s199 + $0x2c18] sm:$0xff]
        %v1671 = vld [vmem:[%s199 + $0x2c20] sm:$0xff]
        %v1672 = vld [vmem:[%s199 + $0x2c28] sm:$0xff]
        %v1673 = vld [vmem:[%s199 + $0x2c30] sm:$0xff]
        %v1674 = vld [vmem:[%s199 + $0x2c38] sm:$0xff]
        %v1675 = vld [vmem:[%s199 + $0x2c40] sm:$0xff]
        %v1676 = vld [vmem:[%s199 + $0x2c48] sm:$0xff]
        %v1677 = vld [vmem:[%s199 + $0x2c50] sm:$0xff]
        %v1678 = vld [vmem:[%s199 + $0x2c58] sm:$0xff]
        %v1679 = vld [vmem:[%s199 + $0x2c60] sm:$0xff]
        %v1680 = vld [vmem:[%s199 + $0x2c68] sm:$0xff]
        %v1681 = vld [vmem:[%s199 + $0x2c70] sm:$0xff]
        %v1682 = vld [vmem:[%s199 + $0x2c78] sm:$0xff]
        %v1683 = vld [vmem:[%s199 + $0x2c80] sm:$0xff]
        %v1684 = vld [vmem:[%s199 + $0x2c88] sm:$0xff]
        %v1685 = vld [vmem:[%s199 + $0x2c90] sm:$0xff]
        %v1686 = vld [vmem:[%s199 + $0x2c98] sm:$0xff]
        %v1687 = vld [vmem:[%s199 + $0x2ca0] sm:$0xff]
        %v1688 = vld [vmem:[%s199 + $0x2ca8] sm:$0xff]
        %v1689 = vld [vmem:[%s199 + $0x2cb0] sm:$0xff]
        %v1690 = vld [vmem:[%s199 + $0x2cb8] sm:$0xff]
        %v1691 = vld [vmem:[%s199 + $0x2cc0] sm:$0xff]
        %v1692 = vld [vmem:[%s199 + $0x2cc8] sm:$0xff]
        %v1693 = vld [vmem:[%s199 + $0x2cd0] sm:$0xff]
        %v1694 = vld [vmem:[%s199 + $0x2cd8] sm:$0xff]
        %v1695 = vld [vmem:[%s199 + $0x2ce0] sm:$0xff]
        %v1696 = vld [vmem:[%s199 + $0x2ce8] sm:$0xff]
        %v1697 = vld [vmem:[%s199 + $0x2cf0] sm:$0xff]
        %v1698 = vld [vmem:[%s199 + $0x2cf8] sm:$0xff]
        %v1699 = vld [vmem:[%s199 + $0x2d00] sm:$0xff]
        %v1700 = vld [vmem:[%s199 + $0x2d08] sm:$0xff]
        %v1701 = vld [vmem:[%s199 + $0x2d10] sm:$0xff]
        %v1702 = vld [vmem:[%s199 + $0x2d18] sm:$0xff]
        %v1703 = vld [vmem:[%s199 + $0x2d20] sm:$0xff]
        %v1704 = vld [vmem:[%s199 + $0x2d28] sm:$0xff]
        %v1705 = vld [vmem:[%s199 + $0x2d30] sm:$0xff]
        %v1706 = vld [vmem:[%s199 + $0x2d38] sm:$0xff]
        %v1707 = vld [vmem:[%s199 + $0x2d40] sm:$0xff]
        %v1708 = vld [vmem:[%s199 + $0x2d48] sm:$0xff]
        %v1709 = vld [vmem:[%s199 + $0x2d50] sm:$0xff]
        %v1710 = vld [vmem:[%s199 + $0x2d58] sm:$0xff]
        %v1711 = vld [vmem:[%s199 + $0x2d60] sm:$0xff]
        %v1712 = vld [vmem:[%s199 + $0x2d68] sm:$0xff]
        %v1713 = vld [vmem:[%s199 + $0x2d70] sm:$0xff]
        %v1714 = vld [vmem:[%s199 + $0x2d78] sm:$0xff]
        %v1715 = vld [vmem:[%s199 + $0x2d80] sm:$0xff]
        %v1716 = vld [vmem:[%s199 + $0x2d88] sm:$0xff]
        %v1717 = vld [vmem:[%s199 + $0x2d90] sm:$0xff]
        %v1718 = vld [vmem:[%s199 + $0x2d98] sm:$0xff]
        %v1719 = vld [vmem:[%s199 + $0x2da0] sm:$0xff]
        %v1720 = vld [vmem:[%s199 + $0x2da8] sm:$0xff]
        %v1721 = vld [vmem:[%s199 + $0x2db0] sm:$0xff]
        %v1722 = vld [vmem:[%s199 + $0x2db8] sm:$0xff]
        %v1723 = vld [vmem:[%s199 + $0x2dc0] sm:$0xff]
        %v1724 = vld [vmem:[%s199 + $0x2dc8] sm:$0xff]
        %v1725 = vld [vmem:[%s199 + $0x2dd0] sm:$0xff]
        %v1726 = vld [vmem:[%s199 + $0x2dd8] sm:$0xff]
        %v1727 = vld [vmem:[%s199 + $0x2de0] sm:$0xff]
        %v1728 = vld [vmem:[%s199 + $0x2de8] sm:$0xff]
        %v1729 = vld [vmem:[%s199 + $0x2df0] sm:$0xff]
        %v1730 = vld [vmem:[%s199 + $0x2df8] sm:$0xff]
        %v1731 = vld [vmem:[%s199 + $0x2e00] sm:$0xff]
        %v1732 = vld [vmem:[%s199 + $0x2e08] sm:$0xff]
        %v1733 = vld [vmem:[%s199 + $0x2e10] sm:$0xff]
        %v1734 = vld [vmem:[%s199 + $0x2e18] sm:$0xff]
        %v1735 = vld [vmem:[%s199 + $0x2e20] sm:$0xff]
        %v1736 = vld [vmem:[%s199 + $0x2e28] sm:$0xff]
        %v1737 = vld [vmem:[%s199 + $0x2e30] sm:$0xff]
        %v1738 = vld [vmem:[%s199 + $0x2e38] sm:$0xff]
        %v1739 = vld [vmem:[%s199 + $0x2e40] sm:$0xff]
        %v1740 = vld [vmem:[%s199 + $0x2e48] sm:$0xff]
        %v1741 = vld [vmem:[%s199 + $0x2e50] sm:$0xff]
        %v1742 = vld [vmem:[%s199 + $0x2e58] sm:$0xff]
        %v1743 = vld [vmem:[%s199 + $0x2e60] sm:$0xff]
        %v1744 = vld [vmem:[%s199 + $0x2e68] sm:$0xff]
        %v1745 = vld [vmem:[%s199 + $0x2e70] sm:$0xff]
        %v1746 = vld [vmem:[%s199 + $0x2e78] sm:$0xff]
        %v1747 = vld [vmem:[%s199 + $0x2e80] sm:$0xff]
        %v1748 = vld [vmem:[%s199 + $0x2e88] sm:$0xff]
        %v1749 = vld [vmem:[%s199 + $0x2e90] sm:$0xff]
        %v1750 = vld [vmem:[%s199 + $0x2e98] sm:$0xff]
        %v1751 = vld [vmem:[%s199 + $0x2ea0] sm:$0xff]
        %v1752 = vld [vmem:[%s199 + $0x2ea8] sm:$0xff]
        %v1753 = vld [vmem:[%s199 + $0x2eb0] sm:$0xff]
        %v1754 = vld [vmem:[%s199 + $0x2eb8] sm:$0xff]
        %v1755 = vld [vmem:[%s199 + $0x2ec0] sm:$0xff]
        %v1756 = vld [vmem:[%s199 + $0x2ec8] sm:$0xff]
        %v1757 = vld [vmem:[%s199 + $0x2ed0] sm:$0xff]
        %v1758 = vld [vmem:[%s199 + $0x2ed8] sm:$0xff]
        %v1759 = vld [vmem:[%s199 + $0x2ee0] sm:$0xff]
        %v1760 = vld [vmem:[%s199 + $0x2ee8] sm:$0xff]
        %v1761 = vld [vmem:[%s199 + $0x2ef0] sm:$0xff]
        %v1762 = vld [vmem:[%s199 + $0x2ef8] sm:$0xff]
        %v1763 = vld [vmem:[%s199 + $0x2f00] sm:$0xff]
        %v1764 = vld [vmem:[%s199 + $0x2f08] sm:$0xff]
        %v1765 = vld [vmem:[%s199 + $0x2f10] sm:$0xff]
        %v1766 = vld [vmem:[%s199 + $0x2f18] sm:$0xff]
        %v1767 = vld [vmem:[%s199 + $0x2f20] sm:$0xff]
        %v1768 = vld [vmem:[%s199 + $0x2f28] sm:$0xff]
        %v1769 = vld [vmem:[%s199 + $0x2f30] sm:$0xff]
        %v1770 = vld [vmem:[%s199 + $0x2f38] sm:$0xff]
        %v1771 = vld [vmem:[%s199 + $0x2f40] sm:$0xff]
        %v1772 = vld [vmem:[%s199 + $0x2f48] sm:$0xff]
        %v1773 = vld [vmem:[%s199 + $0x2f50] sm:$0xff]
        %v1774 = vld [vmem:[%s199 + $0x2f58] sm:$0xff]
        %v1775 = vld [vmem:[%s199 + $0x2f60] sm:$0xff]
        %v1776 = vld [vmem:[%s199 + $0x2f68] sm:$0xff]
        %v1777 = vld [vmem:[%s199 + $0x2f70] sm:$0xff]
        %v1778 = vld [vmem:[%s199 + $0x2f78] sm:$0xff]
        %v1779 = vld [vmem:[%s199 + $0x2f80] sm:$0xff]
        %v1780 = vld [vmem:[%s199 + $0x2f88] sm:$0xff]
        %v1781 = vld [vmem:[%s199 + $0x2f90] sm:$0xff]
        %v1782 = vld [vmem:[%s199 + $0x2f98] sm:$0xff]
        %v1783 = vld [vmem:[%s199 + $0x2fa0] sm:$0xff]
        %v1784 = vld [vmem:[%s199 + $0x2fa8] sm:$0xff]
        %v1785 = vld [vmem:[%s199 + $0x2fb0] sm:$0xff]
        %v1786 = vld [vmem:[%s199 + $0x2fb8] sm:$0xff]
        %v1787 = vld [vmem:[%s199 + $0x2fc0] sm:$0xff]
        %v1788 = vld [vmem:[%s199 + $0x2fc8] sm:$0xff]
        %v1789 = vld [vmem:[%s199 + $0x2fd0] sm:$0xff]
        %v1790 = vld [vmem:[%s199 + $0x2fd8] sm:$0xff]
        %v1791 = vld [vmem:[%s199 + $0x2fe0] sm:$0xff]
        %v1792 = vld [vmem:[%s199 + $0x2fe8] sm:$0xff]
        %v1793 = vld [vmem:[%s199 + $0x2ff0] sm:$0xff]
        %v1794 = vld [vmem:[%s199 + $0x2ff8] sm:$0xff]
        %v1795 = vld [vmem:[%s199 + $0x3000] sm:$0xff]
        %v1796 = vld [vmem:[%s199 + $0x3008] sm:$0xff]
        %v1797 = vld [vmem:[%s199 + $0x3010] sm:$0xff]
        %v1798 = vld [vmem:[%s199 + $0x3018] sm:$0xff]
        %v1799 = vld [vmem:[%s199 + $0x3020] sm:$0xff]
        %v1800 = vld [vmem:[%s199 + $0x3028] sm:$0xff]
        %v1801 = vld [vmem:[%s199 + $0x3030] sm:$0xff]
        %v1802 = vld [vmem:[%s199 + $0x3038] sm:$0xff]
        %v1803 = vld [vmem:[%s199 + $0x3040] sm:$0xff]
        %v1804 = vld [vmem:[%s199 + $0x3048] sm:$0xff]
        %v1805 = vld [vmem:[%s199 + $0x3050] sm:$0xff]
        %v1806 = vld [vmem:[%s199 + $0x3058] sm:$0xff]
        %v1807 = vld [vmem:[%s199 + $0x3060] sm:$0xff]
        %v1808 = vld [vmem:[%s199 + $0x3068] sm:$0xff]
        %v1809 = vld [vmem:[%s199 + $0x3070] sm:$0xff]
        %v1810 = vld [vmem:[%s199 + $0x3078] sm:$0xff]
        %v1811 = vld [vmem:[%s199 + $0x3080] sm:$0xff]
        %v1812 = vld [vmem:[%s199 + $0x3088] sm:$0xff]
        %v1813 = vld [vmem:[%s199 + $0x3090] sm:$0xff]
        %v1814 = vld [vmem:[%s199 + $0x3098] sm:$0xff]
        %v1815 = vld [vmem:[%s199 + $0x30a0] sm:$0xff]
        %v1816 = vld [vmem:[%s199 + $0x30a8] sm:$0xff]
        %v1817 = vld [vmem:[%s199 + $0x30b0] sm:$0xff]
        %v1818 = vld [vmem:[%s199 + $0x30b8] sm:$0xff]
        %v1819 = vld [vmem:[%s199 + $0x30c0] sm:$0xff]
        %v1820 = vld [vmem:[%s199 + $0x30c8] sm:$0xff]
        %v1821 = vld [vmem:[%s199 + $0x30d0] sm:$0xff]
        %v1822 = vld [vmem:[%s199 + $0x30d8] sm:$0xff]
        %v1823 = vld [vmem:[%s199 + $0x30e0] sm:$0xff]
        %v1824 = vld [vmem:[%s199 + $0x30e8] sm:$0xff]
        %v1825 = vld [vmem:[%s199 + $0x30f0] sm:$0xff]
        %v1826 = vld [vmem:[%s199 + $0x30f8] sm:$0xff]
        %v1827 = vld [vmem:[%s199 + $0x3100] sm:$0xff]
        %v1828 = vld [vmem:[%s199 + $0x3108] sm:$0xff]
        %v1829 = vld [vmem:[%s199 + $0x3110] sm:$0xff]
        %v1830 = vld [vmem:[%s199 + $0x3118] sm:$0xff]
        %v1831 = vld [vmem:[%s199 + $0x3120] sm:$0xff]
        %v1832 = vld [vmem:[%s199 + $0x3128] sm:$0xff]
        %v1833 = vld [vmem:[%s199 + $0x3130] sm:$0xff]
        %v1834 = vld [vmem:[%s199 + $0x3138] sm:$0xff]
        %v1835 = vld [vmem:[%s199 + $0x3140] sm:$0xff]
        %v1836 = vld [vmem:[%s199 + $0x3148] sm:$0xff]
        %v1837 = vld [vmem:[%s199 + $0x3150] sm:$0xff]
        %v1838 = vld [vmem:[%s199 + $0x3158] sm:$0xff]
        %v1839 = vld [vmem:[%s199 + $0x3160] sm:$0xff]
        %v1840 = vld [vmem:[%s199 + $0x3168] sm:$0xff]
        %v1841 = vld [vmem:[%s199 + $0x3170] sm:$0xff]
        %v1842 = vld [vmem:[%s199 + $0x3178] sm:$0xff]
        %v1843 = vld [vmem:[%s199 + $0x3180] sm:$0xff]
        %v1844 = vld [vmem:[%s199 + $0x3188] sm:$0xff]
        %v1845 = vld [vmem:[%s199 + $0x3190] sm:$0xff]
        %v1846 = vld [vmem:[%s199 + $0x3198] sm:$0xff]
        %v1847 = vld [vmem:[%s199 + $0x31a0] sm:$0xff]
        %v1848 = vld [vmem:[%s199 + $0x31a8] sm:$0xff]
        %v1849 = vld [vmem:[%s199 + $0x31b0] sm:$0xff]
        %v1850 = vld [vmem:[%s199 + $0x31b8] sm:$0xff]
        %v1851 = vld [vmem:[%s199 + $0x31c0] sm:$0xff]
        %v1852 = vld [vmem:[%s199 + $0x31c8] sm:$0xff]
        %v1853 = vld [vmem:[%s199 + $0x31d0] sm:$0xff]
        %v1854 = vld [vmem:[%s199 + $0x31d8] sm:$0xff]
        %v1855 = vld [vmem:[%s199 + $0x31e0] sm:$0xff]
        %v1856 = vld [vmem:[%s199 + $0x31e8] sm:$0xff]
        %v1857 = vld [vmem:[%s199 + $0x31f0] sm:$0xff]
        %v1858 = vld [vmem:[%s199 + $0x31f8] sm:$0xff]
        %v1859 = vld [vmem:[%s199 + $0x3200] sm:$0xff]
        %v1860 = vld [vmem:[%s199 + $0x3208] sm:$0xff]
        %v1861 = vld [vmem:[%s199 + $0x3210] sm:$0xff]
        %v1862 = vld [vmem:[%s199 + $0x3218] sm:$0xff]
        %v1863 = vld [vmem:[%s199 + $0x3220] sm:$0xff]
        %v1864 = vld [vmem:[%s199 + $0x3228] sm:$0xff]
        %v1865 = vld [vmem:[%s199 + $0x3230] sm:$0xff]
        %v1866 = vld [vmem:[%s199 + $0x3238] sm:$0xff]
        %v1867 = vld [vmem:[%s199 + $0x3240] sm:$0xff]
        %v1868 = vld [vmem:[%s199 + $0x3248] sm:$0xff]
        %v1869 = vld [vmem:[%s199 + $0x3250] sm:$0xff]
        %v1870 = vld [vmem:[%s199 + $0x3258] sm:$0xff]
        %v1871 = vld [vmem:[%s199 + $0x3260] sm:$0xff]
        %v1872 = vld [vmem:[%s199 + $0x3268] sm:$0xff]
        %v1873 = vld [vmem:[%s199 + $0x3270] sm:$0xff]
        %v1874 = vld [vmem:[%s199 + $0x3278] sm:$0xff]
        %v1875 = vld [vmem:[%s199 + $0x3280] sm:$0xff]
        %v1876 = vld [vmem:[%s199 + $0x3288] sm:$0xff]
        %v1877 = vld [vmem:[%s199 + $0x3290] sm:$0xff]
        %v1878 = vld [vmem:[%s199 + $0x3298] sm:$0xff]
        %v1879 = vld [vmem:[%s199 + $0x32a0] sm:$0xff]
        %v1880 = vld [vmem:[%s199 + $0x32a8] sm:$0xff]
        %v1881 = vld [vmem:[%s199 + $0x32b0] sm:$0xff]
        %v1882 = vld [vmem:[%s199 + $0x32b8] sm:$0xff]
        %v1883 = vld [vmem:[%s199 + $0x32c0] sm:$0xff]
        %v1884 = vld [vmem:[%s199 + $0x32c8] sm:$0xff]
        %v1885 = vld [vmem:[%s199 + $0x32d0] sm:$0xff]
        %v1886 = vld [vmem:[%s199 + $0x32d8] sm:$0xff]
        %v1887 = vld [vmem:[%s199 + $0x32e0] sm:$0xff]
        %v1888 = vld [vmem:[%s199 + $0x32e8] sm:$0xff]
        %v1889 = vld [vmem:[%s199 + $0x32f0] sm:$0xff]
        %v1890 = vld [vmem:[%s199 + $0x32f8] sm:$0xff]
        %v1891 = vld [vmem:[%s199 + $0x3300] sm:$0xff]
        %v1892 = vld [vmem:[%s199 + $0x3308] sm:$0xff]
        %v1893 = vld [vmem:[%s199 + $0x3310] sm:$0xff]
        %v1894 = vld [vmem:[%s199 + $0x3318] sm:$0xff]
        %v1895 = vld [vmem:[%s199 + $0x3320] sm:$0xff]
        %v1896 = vld [vmem:[%s199 + $0x3328] sm:$0xff]
        %v1897 = vld [vmem:[%s199 + $0x3330] sm:$0xff]
        %v1898 = vld [vmem:[%s199 + $0x3338] sm:$0xff]
        %v1899 = vld [vmem:[%s199 + $0x3340] sm:$0xff]
        %v1900 = vld [vmem:[%s199 + $0x3348] sm:$0xff]
        %v1901 = vld [vmem:[%s199 + $0x3350] sm:$0xff]
        %v1902 = vld [vmem:[%s199 + $0x3358] sm:$0xff]
        %v1903 = vld [vmem:[%s199 + $0x3360] sm:$0xff]
        %v1904 = vld [vmem:[%s199 + $0x3368] sm:$0xff]
        %v1905 = vld [vmem:[%s199 + $0x3370] sm:$0xff]
        %v1906 = vld [vmem:[%s199 + $0x3378] sm:$0xff]
        %v1907 = vld [vmem:[%s199 + $0x3380] sm:$0xff]
        %v1908 = vld [vmem:[%s199 + $0x3388] sm:$0xff]
        %v1909 = vld [vmem:[%s199 + $0x3390] sm:$0xff]
        %v1910 = vld [vmem:[%s199 + $0x3398] sm:$0xff]
        %v1911 = vld [vmem:[%s199 + $0x33a0] sm:$0xff]
        %v1912 = vld [vmem:[%s199 + $0x33a8] sm:$0xff]
        %v1913 = vld [vmem:[%s199 + $0x33b0] sm:$0xff]
        %v1914 = vld [vmem:[%s199 + $0x33b8] sm:$0xff]
        %v1915 = vld [vmem:[%s199 + $0x33c0] sm:$0xff]
        %v1916 = vld [vmem:[%s199 + $0x33c8] sm:$0xff]
        %v1917 = vld [vmem:[%s199 + $0x33d0] sm:$0xff]
        %v1918 = vld [vmem:[%s199 + $0x33d8] sm:$0xff]
        %v1919 = vld [vmem:[%s199 + $0x33e0] sm:$0xff]
        %v1920 = vld [vmem:[%s199 + $0x33e8] sm:$0xff]
        %v1921 = vld [vmem:[%s199 + $0x33f0] sm:$0xff]
        %v1922 = vld [vmem:[%s199 + $0x33f8] sm:$0xff]
        %v1923 = vld [vmem:[%s199 + $0x3400] sm:$0xff]
        %v1924 = vld [vmem:[%s199 + $0x3408] sm:$0xff]
        %v1925 = vld [vmem:[%s199 + $0x3410] sm:$0xff]
        %v1926 = vld [vmem:[%s199 + $0x3418] sm:$0xff]
        %v1927 = vld [vmem:[%s199 + $0x3420] sm:$0xff]
        %v1928 = vld [vmem:[%s199 + $0x3428] sm:$0xff]
        %v1929 = vld [vmem:[%s199 + $0x3430] sm:$0xff]
        %v1930 = vld [vmem:[%s199 + $0x3438] sm:$0xff]
        %v1931 = vld [vmem:[%s199 + $0x3440] sm:$0xff]
        %v1932 = vld [vmem:[%s199 + $0x3448] sm:$0xff]
        %v1933 = vld [vmem:[%s199 + $0x3450] sm:$0xff]
        %v1934 = vld [vmem:[%s199 + $0x3458] sm:$0xff]
        %v1935 = vld [vmem:[%s199 + $0x3460] sm:$0xff]
        %v1936 = vld [vmem:[%s199 + $0x3468] sm:$0xff]
        %v1937 = vld [vmem:[%s199 + $0x3470] sm:$0xff]
        %v1938 = vld [vmem:[%s199 + $0x3478] sm:$0xff]
        %v1939 = vld [vmem:[%s199 + $0x3480] sm:$0xff]
        %v1940 = vld [vmem:[%s199 + $0x3488] sm:$0xff]
        %v1941 = vld [vmem:[%s199 + $0x3490] sm:$0xff]
        %v1942 = vld [vmem:[%s199 + $0x3498] sm:$0xff]
        %v1943 = vld [vmem:[%s199 + $0x34a0] sm:$0xff]
        %v1944 = vld [vmem:[%s199 + $0x34a8] sm:$0xff]
        %v1945 = vld [vmem:[%s199 + $0x34b0] sm:$0xff]
        %v1946 = vld [vmem:[%s199 + $0x34b8] sm:$0xff]
        %v1947 = vld [vmem:[%s199 + $0x34c0] sm:$0xff]
        %v1948 = vld [vmem:[%s199 + $0x34c8] sm:$0xff]
        %v1949 = vld [vmem:[%s199 + $0x34d0] sm:$0xff]
        %v1950 = vld [vmem:[%s199 + $0x34d8] sm:$0xff]
        %v1951 = vld [vmem:[%s199 + $0x34e0] sm:$0xff]
        %v1952 = vld [vmem:[%s199 + $0x34e8] sm:$0xff]
        %v1953 = vld [vmem:[%s199 + $0x34f0] sm:$0xff]
        %v1954 = vld [vmem:[%s199 + $0x34f8] sm:$0xff]
        %v1955 = vld [vmem:[%s199 + $0x3500] sm:$0xff]
        %v1956 = vld [vmem:[%s199 + $0x3508] sm:$0xff]
        %v1957 = vld [vmem:[%s199 + $0x3510] sm:$0xff]
        %v1958 = vld [vmem:[%s199 + $0x3518] sm:$0xff]
        %v1959 = vld [vmem:[%s199 + $0x3520] sm:$0xff]
        %v1960 = vld [vmem:[%s199 + $0x3528] sm:$0xff]
        %v1961 = vld [vmem:[%s199 + $0x3530] sm:$0xff]
        %v1962 = vld [vmem:[%s199 + $0x3538] sm:$0xff]
        %v1963 = vld [vmem:[%s199 + $0x3540] sm:$0xff]
        %v1964 = vld [vmem:[%s199 + $0x3548] sm:$0xff]
        %v1965 = vld [vmem:[%s199 + $0x3550] sm:$0xff]
        %v1966 = vld [vmem:[%s199 + $0x3558] sm:$0xff]
        %v1967 = vld [vmem:[%s199 + $0x3560] sm:$0xff]
        %v1968 = vld [vmem:[%s199 + $0x3568] sm:$0xff]
        %v1969 = vld [vmem:[%s199 + $0x3570] sm:$0xff]
        %v1970 = vld [vmem:[%s199 + $0x3578] sm:$0xff]
        %v1971 = vld [vmem:[%s199 + $0x3580] sm:$0xff]
        %v1972 = vld [vmem:[%s199 + $0x3588] sm:$0xff]
        %v1973 = vld [vmem:[%s199 + $0x3590] sm:$0xff]
        %v1974 = vld [vmem:[%s199 + $0x3598] sm:$0xff]
        %v1975 = vld [vmem:[%s199 + $0x35a0] sm:$0xff]
        %v1976 = vld [vmem:[%s199 + $0x35a8] sm:$0xff]
        %v1977 = vld [vmem:[%s199 + $0x35b0] sm:$0xff]
        %v1978 = vld [vmem:[%s199 + $0x35b8] sm:$0xff]
        %v1979 = vld [vmem:[%s199 + $0x35c0] sm:$0xff]
        %v1980 = vld [vmem:[%s199 + $0x35c8] sm:$0xff]
        %v1981 = vld [vmem:[%s199 + $0x35d0] sm:$0xff]
        %v1982 = vld [vmem:[%s199 + $0x35d8] sm:$0xff]
        %v1983 = vld [vmem:[%s199 + $0x35e0] sm:$0xff]
        %v1984 = vld [vmem:[%s199 + $0x35e8] sm:$0xff]
        %v1985 = vld [vmem:[%s199 + $0x35f0] sm:$0xff]
        %v1986 = vld [vmem:[%s199 + $0x35f8] sm:$0xff]
        %v1987 = vld [vmem:[%s199 + $0x3600] sm:$0xff]
        %v1988 = vld [vmem:[%s199 + $0x3608] sm:$0xff]
        %v1989 = vld [vmem:[%s199 + $0x3610] sm:$0xff]
        %v1990 = vld [vmem:[%s199 + $0x3618] sm:$0xff]
        %v1991 = vld [vmem:[%s199 + $0x3620] sm:$0xff]
        %v1992 = vld [vmem:[%s199 + $0x3628] sm:$0xff]
        %v1993 = vld [vmem:[%s199 + $0x3630] sm:$0xff]
        %v1994 = vld [vmem:[%s199 + $0x3638] sm:$0xff]
        %v1995 = vld [vmem:[%s199 + $0x3640] sm:$0xff]
        %v1996 = vld [vmem:[%s199 + $0x3648] sm:$0xff]
        %v1997 = vld [vmem:[%s199 + $0x3650] sm:$0xff]
        %v1998 = vld [vmem:[%s199 + $0x3658] sm:$0xff]
        %v1999 = vld [vmem:[%s199 + $0x3660] sm:$0xff]
        %v2000 = vld [vmem:[%s199 + $0x3668] sm:$0xff]
        %v2001 = vld [vmem:[%s199 + $0x3670] sm:$0xff]
        %v2002 = vld [vmem:[%s199 + $0x3678] sm:$0xff]
        %v2003 = vld [vmem:[%s199 + $0x3680] sm:$0xff]
        %v2004 = vld [vmem:[%s199 + $0x3688] sm:$0xff]
        %v2005 = vld [vmem:[%s199 + $0x3690] sm:$0xff]
        %v2006 = vld [vmem:[%s199 + $0x3698] sm:$0xff]
        %v2007 = vld [vmem:[%s199 + $0x36a0] sm:$0xff]
        %v2008 = vld [vmem:[%s199 + $0x36a8] sm:$0xff]
        %v2009 = vld [vmem:[%s199 + $0x36b0] sm:$0xff]
        %v2010 = vld [vmem:[%s199 + $0x36b8] sm:$0xff]
        %v2011 = vld [vmem:[%s199 + $0x36c0] sm:$0xff]
        %v2012 = vld [vmem:[%s199 + $0x36c8] sm:$0xff]
        %v2013 = vld [vmem:[%s199 + $0x36d0] sm:$0xff]
        %v2014 = vld [vmem:[%s199 + $0x36d8] sm:$0xff]
        %v2015 = vld [vmem:[%s199 + $0x36e0] sm:$0xff]
        %v2016 = vld [vmem:[%s199 + $0x36e8] sm:$0xff]
        %v2017 = vld [vmem:[%s199 + $0x36f0] sm:$0xff]
        %v2018 = vld [vmem:[%s199 + $0x36f8] sm:$0xff]
        %v2019 = vld [vmem:[%s199 + $0x3700] sm:$0xff]
        %v2020 = vld [vmem:[%s199 + $0x3708] sm:$0xff]
        %v2021 = vld [vmem:[%s199 + $0x3710] sm:$0xff]
        %v2022 = vld [vmem:[%s199 + $0x3718] sm:$0xff]
        %v2023 = vld [vmem:[%s199 + $0x3720] sm:$0xff]
        %v2024 = vld [vmem:[%s199 + $0x3728] sm:$0xff]
        %v2025 = vld [vmem:[%s199 + $0x3730] sm:$0xff]
        %v2026 = vld [vmem:[%s199 + $0x3738] sm:$0xff]
        %v2027 = vld [vmem:[%s199 + $0x3740] sm:$0xff]
        %v2028 = vld [vmem:[%s199 + $0x3748] sm:$0xff]
        %v2029 = vld [vmem:[%s199 + $0x3750] sm:$0xff]
        %v2030 = vld [vmem:[%s199 + $0x3758] sm:$0xff]
        %v2031 = vld [vmem:[%s199 + $0x3760] sm:$0xff]
        %v2032 = vld [vmem:[%s199 + $0x3768] sm:$0xff]
        %v2033 = vld [vmem:[%s199 + $0x3770] sm:$0xff]
        %v2034 = vld [vmem:[%s199 + $0x3778] sm:$0xff]
        %v2035 = vld [vmem:[%s199 + $0x3780] sm:$0xff]
        %v2036 = vld [vmem:[%s199 + $0x3788] sm:$0xff]
        %v2037 = vld [vmem:[%s199 + $0x3790] sm:$0xff]
        %v2038 = vld [vmem:[%s199 + $0x3798] sm:$0xff]
        %v2039 = vld [vmem:[%s199 + $0x37a0] sm:$0xff]
        %v2040 = vld [vmem:[%s199 + $0x37a8] sm:$0xff]
        %v2041 = vld [vmem:[%s199 + $0x37b0] sm:$0xff]
        %v2042 = vld [vmem:[%s199 + $0x37b8] sm:$0xff]
        %v2043 = vld [vmem:[%s199 + $0x37c0] sm:$0xff]
        %v2044 = vld [vmem:[%s199 + $0x37c8] sm:$0xff]
        %v2045 = vld [vmem:[%s199 + $0x37d0] sm:$0xff]
        %v2046 = vld [vmem:[%s199 + $0x37d8] sm:$0xff]
        %v2047 = vld [vmem:[%s199 + $0x37e0] sm:$0xff]
        %v2048 = vld [vmem:[%s199 + $0x37e8] sm:$0xff]
        %v2049 = vld [vmem:[%s199 + $0x37f0] sm:$0xff]
        %v2050 = vld [vmem:[%s199 + $0x37f8] sm:$0xff]
        %v2058 = vcombine.high %v252, %v252
        %v2060 = vunpack.c.l.s4 1966171168
        %v2061 = vunpack.c.0.s8 %v2060
        %v2062 = vlaneseq
        %v2063 = vshrl.u32 %v2062, 7
        %v2064 = vsub.s32 %v2061, %v2063
        %v2065 = vrot.slane %v252, %v2064
        %v2067 = vunpack.c.l.s4 1966171168
        %v2068 = vunpack.c.0.s8 %v2067
        %v2069 = vlaneseq
        %v2070 = vshrl.u32 %v2069, 7
        %v2071 = vsub.s32 %v2068, %v2070
        %v2072 = vrot.slane %v2058, %v2071
        %v2073 = vcombine.high %v2065, %v2065
        %v2074 = vcombine.high %v2072, %v2072
        %v2076 = vunpack.c.l.s4 1966171168
        %v2077 = vunpack.c.0.s8 %v2076
        %v2078 = vlaneseq
        %v2079 = vshrl.u32 %v2078, 7
        %v2080 = vsub.s32 %v2077, %v2079
        %v2081 = vrot.slane %v2065, %v2080
        %v2083 = vunpack.c.l.s4 1966171168
        %v2084 = vunpack.c.0.s8 %v2083
        %v2085 = vlaneseq
        %v2086 = vshrl.u32 %v2085, 7
        %v2087 = vsub.s32 %v2084, %v2086
        %v2088 = vrot.slane %v2072, %v2087
        %v2090 = vunpack.c.l.s4 1966171168
        %v2091 = vunpack.c.0.s8 %v2090
        %v2092 = vlaneseq
        %v2093 = vshrl.u32 %v2092, 7
        %v2094 = vsub.s32 %v2091, %v2093
        %v2095 = vrot.slane %v2073, %v2094
        %v2097 = vunpack.c.l.s4 1966171168
        %v2098 = vunpack.c.0.s8 %v2097
        %v2099 = vlaneseq
        %v2100 = vshrl.u32 %v2099, 7
        %v2101 = vsub.s32 %v2098, %v2100
        %v2102 = vrot.slane %v2074, %v2101
        %v2103 = vcombine.high %v2081, %v2081
        %v2104 = vcombine.high %v2088, %v2088
        %v2105 = vcombine.high %v2095, %v2095
        %v2106 = vcombine.high %v2102, %v2102
        %v2107 = vcombine.high %v253, %v253
        %v2109 = vunpack.c.l.s4 1966171168
        %v2110 = vunpack.c.0.s8 %v2109
        %v2111 = vlaneseq
        %v2112 = vshrl.u32 %v2111, 7
        %v2113 = vsub.s32 %v2110, %v2112
        %v2114 = vrot.slane %v253, %v2113
        %v2116 = vunpack.c.l.s4 1966171168
        %v2117 = vunpack.c.0.s8 %v2116
        %v2118 = vlaneseq
        %v2119 = vshrl.u32 %v2118, 7
        %v2120 = vsub.s32 %v2117, %v2119
        %v2121 = vrot.slane %v2107, %v2120
        %v2122 = vcombine.high %v2114, %v2114
        %v2123 = vcombine.high %v2121, %v2121
        %v2125 = vunpack.c.l.s4 1966171168
        %v2126 = vunpack.c.0.s8 %v2125
        %v2127 = vlaneseq
        %v2128 = vshrl.u32 %v2127, 7
        %v2129 = vsub.s32 %v2126, %v2128
        %v2130 = vrot.slane %v2114, %v2129
        %v2132 = vunpack.c.l.s4 1966171168
        %v2133 = vunpack.c.0.s8 %v2132
        %v2134 = vlaneseq
        %v2135 = vshrl.u32 %v2134, 7
        %v2136 = vsub.s32 %v2133, %v2135
        %v2137 = vrot.slane %v2121, %v2136
        %v2139 = vunpack.c.l.s4 1966171168
        %v2140 = vunpack.c.0.s8 %v2139
        %v2141 = vlaneseq
        %v2142 = vshrl.u32 %v2141, 7
        %v2143 = vsub.s32 %v2140, %v2142
        %v2144 = vrot.slane %v2122, %v2143
        %v2146 = vunpack.c.l.s4 1966171168
        %v2147 = vunpack.c.0.s8 %v2146
        %v2148 = vlaneseq
        %v2149 = vshrl.u32 %v2148, 7
        %v2150 = vsub.s32 %v2147, %v2149
        %v2151 = vrot.slane %v2123, %v2150
        %v2152 = vcombine.high %v2130, %v2130
        %v2153 = vcombine.high %v2137, %v2137
        %v2154 = vcombine.high %v2144, %v2144
        %v2155 = vcombine.high %v2151, %v2151
        %v2156 = vcombine.high %v254, %v254
        %v2158 = vunpack.c.l.s4 1966171168
        %v2159 = vunpack.c.0.s8 %v2158
        %v2160 = vlaneseq
        %v2161 = vshrl.u32 %v2160, 7
        %v2162 = vsub.s32 %v2159, %v2161
        %v2163 = vrot.slane %v254, %v2162
        %v2165 = vunpack.c.l.s4 1966171168
        %v2166 = vunpack.c.0.s8 %v2165
        %v2167 = vlaneseq
        %v2168 = vshrl.u32 %v2167, 7
        %v2169 = vsub.s32 %v2166, %v2168
        %v2170 = vrot.slane %v2156, %v2169
        %v2171 = vcombine.high %v2163, %v2163
        %v2172 = vcombine.high %v2170, %v2170
        %v2174 = vunpack.c.l.s4 1966171168
        %v2175 = vunpack.c.0.s8 %v2174
        %v2176 = vlaneseq
        %v2177 = vshrl.u32 %v2176, 7
        %v2178 = vsub.s32 %v2175, %v2177
        %v2179 = vrot.slane %v2163, %v2178
        %v2181 = vunpack.c.l.s4 1966171168
        %v2182 = vunpack.c.0.s8 %v2181
        %v2183 = vlaneseq
        %v2184 = vshrl.u32 %v2183, 7
        %v2185 = vsub.s32 %v2182, %v2184
        %v2186 = vrot.slane %v2170, %v2185
        %v2188 = vunpack.c.l.s4 1966171168
        %v2189 = vunpack.c.0.s8 %v2188
        %v2190 = vlaneseq
        %v2191 = vshrl.u32 %v2190, 7
        %v2192 = vsub.s32 %v2189, %v2191
        %v2193 = vrot.slane %v2171, %v2192
        %v2195 = vunpack.c.l.s4 1966171168
        %v2196 = vunpack.c.0.s8 %v2195
        %v2197 = vlaneseq
        %v2198 = vshrl.u32 %v2197, 7
        %v2199 = vsub.s32 %v2196, %v2198
        %v2200 = vrot.slane %v2172, %v2199
        %v2201 = vcombine.high %v2179, %v2179
        %v2202 = vcombine.high %v2186, %v2186
        %v2203 = vcombine.high %v2193, %v2193
        %v2204 = vcombine.high %v2200, %v2200
        %v2205 = vcombine.high %v255, %v255
        %v2207 = vunpack.c.l.s4 1966171168
        %v2208 = vunpack.c.0.s8 %v2207
        %v2209 = vlaneseq
        %v2210 = vshrl.u32 %v2209, 7
        %v2211 = vsub.s32 %v2208, %v2210
        %v2212 = vrot.slane %v255, %v2211
        %v2214 = vunpack.c.l.s4 1966171168
        %v2215 = vunpack.c.0.s8 %v2214
        %v2216 = vlaneseq
        %v2217 = vshrl.u32 %v2216, 7
        %v2218 = vsub.s32 %v2215, %v2217
        %v2219 = vrot.slane %v2205, %v2218
        %v2220 = vcombine.high %v2212, %v2212
        %v2221 = vcombine.high %v2219, %v2219
        %v2223 = vunpack.c.l.s4 1966171168
        %v2224 = vunpack.c.0.s8 %v2223
        %v2225 = vlaneseq
        %v2226 = vshrl.u32 %v2225, 7
        %v2227 = vsub.s32 %v2224, %v2226
        %v2228 = vrot.slane %v2212, %v2227
        %v2230 = vunpack.c.l.s4 1966171168
        %v2231 = vunpack.c.0.s8 %v2230
        %v2232 = vlaneseq
        %v2233 = vshrl.u32 %v2232, 7
        %v2234 = vsub.s32 %v2231, %v2233
        %v2235 = vrot.slane %v2219, %v2234
        %v2237 = vunpack.c.l.s4 1966171168
        %v2238 = vunpack.c.0.s8 %v2237
        %v2239 = vlaneseq
        %v2240 = vshrl.u32 %v2239, 7
        %v2241 = vsub.s32 %v2238, %v2240
        %v2242 = vrot.slane %v2220, %v2241
        %v2244 = vunpack.c.l.s4 1966171168
        %v2245 = vunpack.c.0.s8 %v2244
        %v2246 = vlaneseq
        %v2247 = vshrl.u32 %v2246, 7
        %v2248 = vsub.s32 %v2245, %v2247
        %v2249 = vrot.slane %v2221, %v2248
        %v2250 = vcombine.high %v2228, %v2228
        %v2251 = vcombine.high %v2235, %v2235
        %v2252 = vcombine.high %v2242, %v2242
        %v2253 = vcombine.high %v2249, %v2249
        %v2254 = vcombine.high %v256, %v256
        %v2256 = vunpack.c.l.s4 1966171168
        %v2257 = vunpack.c.0.s8 %v2256
        %v2258 = vlaneseq
        %v2259 = vshrl.u32 %v2258, 7
        %v2260 = vsub.s32 %v2257, %v2259
        %v2261 = vrot.slane %v256, %v2260
        %v2263 = vunpack.c.l.s4 1966171168
        %v2264 = vunpack.c.0.s8 %v2263
        %v2265 = vlaneseq
        %v2266 = vshrl.u32 %v2265, 7
        %v2267 = vsub.s32 %v2264, %v2266
        %v2268 = vrot.slane %v2254, %v2267
        %v2269 = vcombine.high %v2261, %v2261
        %v2270 = vcombine.high %v2268, %v2268
        %v2272 = vunpack.c.l.s4 1966171168
        %v2273 = vunpack.c.0.s8 %v2272
        %v2274 = vlaneseq
        %v2275 = vshrl.u32 %v2274, 7
        %v2276 = vsub.s32 %v2273, %v2275
        %v2277 = vrot.slane %v2261, %v2276
        %v2279 = vunpack.c.l.s4 1966171168
        %v2280 = vunpack.c.0.s8 %v2279
        %v2281 = vlaneseq
        %v2282 = vshrl.u32 %v2281, 7
        %v2283 = vsub.s32 %v2280, %v2282
        %v2284 = vrot.slane %v2268, %v2283
        %v2286 = vunpack.c.l.s4 1966171168
        %v2287 = vunpack.c.0.s8 %v2286
        %v2288 = vlaneseq
        %v2289 = vshrl.u32 %v2288, 7
        %v2290 = vsub.s32 %v2287, %v2289
        %v2291 = vrot.slane %v2269, %v2290
        %v2293 = vunpack.c.l.s4 1966171168
        %v2294 = vunpack.c.0.s8 %v2293
        %v2295 = vlaneseq
        %v2296 = vshrl.u32 %v2295, 7
        %v2297 = vsub.s32 %v2294, %v2296
        %v2298 = vrot.slane %v2270, %v2297
        %v2299 = vcombine.high %v2277, %v2277
        %v2300 = vcombine.high %v2284, %v2284
        %v2301 = vcombine.high %v2291, %v2291
        %v2302 = vcombine.high %v2298, %v2298
        %v2303 = vcombine.high %v257, %v257
        %v2305 = vunpack.c.l.s4 1966171168
        %v2306 = vunpack.c.0.s8 %v2305
        %v2307 = vlaneseq
        %v2308 = vshrl.u32 %v2307, 7
        %v2309 = vsub.s32 %v2306, %v2308
        %v2310 = vrot.slane %v257, %v2309
        %v2312 = vunpack.c.l.s4 1966171168
        %v2313 = vunpack.c.0.s8 %v2312
        %v2314 = vlaneseq
        %v2315 = vshrl.u32 %v2314, 7
        %v2316 = vsub.s32 %v2313, %v2315
        %v2317 = vrot.slane %v2303, %v2316
        %v2318 = vcombine.high %v2310, %v2310
        %v2319 = vcombine.high %v2317, %v2317
        %v2321 = vunpack.c.l.s4 1966171168
        %v2322 = vunpack.c.0.s8 %v2321
        %v2323 = vlaneseq
        %v2324 = vshrl.u32 %v2323, 7
        %v2325 = vsub.s32 %v2322, %v2324
        %v2326 = vrot.slane %v2310, %v2325
        %v2328 = vunpack.c.l.s4 1966171168
        %v2329 = vunpack.c.0.s8 %v2328
        %v2330 = vlaneseq
        %v2331 = vshrl.u32 %v2330, 7
        %v2332 = vsub.s32 %v2329, %v2331
        %v2333 = vrot.slane %v2317, %v2332
        %v2335 = vunpack.c.l.s4 1966171168
        %v2336 = vunpack.c.0.s8 %v2335
        %v2337 = vlaneseq
        %v2338 = vshrl.u32 %v2337, 7
        %v2339 = vsub.s32 %v2336, %v2338
        %v2340 = vrot.slane %v2318, %v2339
        %v2342 = vunpack.c.l.s4 1966171168
        %v2343 = vunpack.c.0.s8 %v2342
        %v2344 = vlaneseq
        %v2345 = vshrl.u32 %v2344, 7
        %v2346 = vsub.s32 %v2343, %v2345
        %v2347 = vrot.slane %v2319, %v2346
        %v2348 = vcombine.high %v2326, %v2326
        %v2349 = vcombine.high %v2333, %v2333
        %v2350 = vcombine.high %v2340, %v2340
        %v2351 = vcombine.high %v2347, %v2347
        %v2352 = vcombine.high %v258, %v258
        %v2354 = vunpack.c.l.s4 1966171168
        %v2355 = vunpack.c.0.s8 %v2354
        %v2356 = vlaneseq
        %v2357 = vshrl.u32 %v2356, 7
        %v2358 = vsub.s32 %v2355, %v2357
        %v2359 = vrot.slane %v258, %v2358
        %v2361 = vunpack.c.l.s4 1966171168
        %v2362 = vunpack.c.0.s8 %v2361
        %v2363 = vlaneseq
        %v2364 = vshrl.u32 %v2363, 7
        %v2365 = vsub.s32 %v2362, %v2364
        %v2366 = vrot.slane %v2352, %v2365
        %v2367 = vcombine.high %v2359, %v2359
        %v2368 = vcombine.high %v2366, %v2366
        %v2370 = vunpack.c.l.s4 1966171168
        %v2371 = vunpack.c.0.s8 %v2370
        %v2372 = vlaneseq
        %v2373 = vshrl.u32 %v2372, 7
        %v2374 = vsub.s32 %v2371, %v2373
        %v2375 = vrot.slane %v2359, %v2374
        %v2377 = vunpack.c.l.s4 1966171168
        %v2378 = vunpack.c.0.s8 %v2377
        %v2379 = vlaneseq
        %v2380 = vshrl.u32 %v2379, 7
        %v2381 = vsub.s32 %v2378, %v2380
        %v2382 = vrot.slane %v2366, %v2381
        %v2384 = vunpack.c.l.s4 1966171168
        %v2385 = vunpack.c.0.s8 %v2384
        %v2386 = vlaneseq
        %v2387 = vshrl.u32 %v2386, 7
        %v2388 = vsub.s32 %v2385, %v2387
        %v2389 = vrot.slane %v2367, %v2388
        %v2391 = vunpack.c.l.s4 1966171168
        %v2392 = vunpack.c.0.s8 %v2391
        %v2393 = vlaneseq
        %v2394 = vshrl.u32 %v2393, 7
        %v2395 = vsub.s32 %v2392, %v2394
        %v2396 = vrot.slane %v2368, %v2395
        %v2397 = vcombine.high %v2375, %v2375
        %v2398 = vcombine.high %v2382, %v2382
        %v2399 = vcombine.high %v2389, %v2389
        %v2400 = vcombine.high %v2396, %v2396
        %v4249 = vunpack.c.l.b16 %v259
        %v4250 = vunpack.c.h.b16 %v259
        %v4251 = vunpack.c.l.b16 %v260
        %v4252 = vunpack.c.h.b16 %v260
        %v4253 = vunpack.c.l.b16 %v261
        %v4254 = vunpack.c.h.b16 %v261
        %v4255 = vunpack.c.l.b16 %v262
        %v4256 = vunpack.c.h.b16 %v262
        %v4257 = vunpack.c.l.b16 %v263
        %v4258 = vunpack.c.h.b16 %v263
        %v4259 = vunpack.c.l.b16 %v264
        %v4260 = vunpack.c.h.b16 %v264
        %v4261 = vunpack.c.l.b16 %v265
        %v4262 = vunpack.c.h.b16 %v265
        %v4263 = vunpack.c.l.b16 %v266
        %v4264 = vunpack.c.h.b16 %v266
        %v4265 = vunpack.c.l.b16 %v267
        %v4266 = vunpack.c.h.b16 %v267
        %v4267 = vunpack.c.l.b16 %v268
        %v4268 = vunpack.c.h.b16 %v268
        %v4269 = vunpack.c.l.b16 %v269
        %v4270 = vunpack.c.h.b16 %v269
        %v4271 = vunpack.c.l.b16 %v270
        %v4272 = vunpack.c.h.b16 %v270
        %v4273 = vunpack.c.l.b16 %v271
        %v4274 = vunpack.c.h.b16 %v271
        %v4275 = vunpack.c.l.b16 %v272
        %v4276 = vunpack.c.h.b16 %v272
        %v4277 = vunpack.c.l.b16 %v273
        %v4278 = vunpack.c.h.b16 %v273
        %v4279 = vunpack.c.l.b16 %v274
        %v4280 = vunpack.c.h.b16 %v274
        %v4281 = vunpack.c.l.b16 %v275
        %v4282 = vunpack.c.h.b16 %v275
        %v4283 = vunpack.c.l.b16 %v276
        %v4284 = vunpack.c.h.b16 %v276
        %v4285 = vunpack.c.l.b16 %v277
        %v4286 = vunpack.c.h.b16 %v277
        %v4287 = vunpack.c.l.b16 %v278
        %v4288 = vunpack.c.h.b16 %v278
        %v4289 = vunpack.c.l.b16 %v279
        %v4290 = vunpack.c.h.b16 %v279
        %v4291 = vunpack.c.l.b16 %v280
        %v4292 = vunpack.c.h.b16 %v280
        %v4293 = vunpack.c.l.b16 %v281
        %v4294 = vunpack.c.h.b16 %v281
        %v4295 = vunpack.c.l.b16 %v282
        %v4296 = vunpack.c.h.b16 %v282
        %v4297 = vunpack.c.l.b16 %v283
        %v4298 = vunpack.c.h.b16 %v283
        %v4299 = vunpack.c.l.b16 %v284
        %v4300 = vunpack.c.h.b16 %v284
        %v4301 = vunpack.c.l.b16 %v285
        %v4302 = vunpack.c.h.b16 %v285
        %v4303 = vunpack.c.l.b16 %v286
        %v4304 = vunpack.c.h.b16 %v286
        %v4305 = vunpack.c.l.b16 %v287
        %v4306 = vunpack.c.h.b16 %v287
        %v4307 = vunpack.c.l.b16 %v288
        %v4308 = vunpack.c.h.b16 %v288
        %v4309 = vunpack.c.l.b16 %v289
        %v4310 = vunpack.c.h.b16 %v289
        %v4311 = vunpack.c.l.b16 %v290
        %v4312 = vunpack.c.h.b16 %v290
        %v4313 = vunpack.c.l.b16 %v291
        %v4314 = vunpack.c.h.b16 %v291
        %v4315 = vunpack.c.l.b16 %v292
        %v4316 = vunpack.c.h.b16 %v292
        %v4317 = vunpack.c.l.b16 %v293
        %v4318 = vunpack.c.h.b16 %v293
        %v4319 = vunpack.c.l.b16 %v294
        %v4320 = vunpack.c.h.b16 %v294
        %v4321 = vunpack.c.l.b16 %v295
        %v4322 = vunpack.c.h.b16 %v295
        %v4323 = vunpack.c.l.b16 %v296
        %v4324 = vunpack.c.h.b16 %v296
        %v4325 = vunpack.c.l.b16 %v297
        %v4326 = vunpack.c.h.b16 %v297
        %v4327 = vunpack.c.l.b16 %v298
        %v4328 = vunpack.c.h.b16 %v298
        %v4329 = vunpack.c.l.b16 %v299
        %v4330 = vunpack.c.h.b16 %v299
        %v4331 = vunpack.c.l.b16 %v300
        %v4332 = vunpack.c.h.b16 %v300
        %v4333 = vunpack.c.l.b16 %v301
        %v4334 = vunpack.c.h.b16 %v301
        %v4335 = vunpack.c.l.b16 %v302
        %v4336 = vunpack.c.h.b16 %v302
        %v4337 = vunpack.c.l.b16 %v303
        %v4338 = vunpack.c.h.b16 %v303
        %v4339 = vunpack.c.l.b16 %v304
        %v4340 = vunpack.c.h.b16 %v304
        %v4341 = vunpack.c.l.b16 %v305
        %v4342 = vunpack.c.h.b16 %v305
        %v4343 = vunpack.c.l.b16 %v306
        %v4344 = vunpack.c.h.b16 %v306
        %v4345 = vunpack.c.l.b16 %v307
        %v4346 = vunpack.c.h.b16 %v307
        %v4347 = vunpack.c.l.b16 %v308
        %v4348 = vunpack.c.h.b16 %v308
        %v4349 = vunpack.c.l.b16 %v309
        %v4350 = vunpack.c.h.b16 %v309
        %v4351 = vunpack.c.l.b16 %v310
        %v4352 = vunpack.c.h.b16 %v310
        %v4353 = vunpack.c.l.b16 %v311
        %v4354 = vunpack.c.h.b16 %v311
        %v4355 = vunpack.c.l.b16 %v312
        %v4356 = vunpack.c.h.b16 %v312
        %v4357 = vunpack.c.l.b16 %v313
        %v4358 = vunpack.c.h.b16 %v313
        %v4359 = vunpack.c.l.b16 %v314
        %v4360 = vunpack.c.h.b16 %v314
        %v4361 = vunpack.c.l.b16 %v315
        %v4362 = vunpack.c.h.b16 %v315
        %v4363 = vunpack.c.l.b16 %v316
        %v4364 = vunpack.c.h.b16 %v316
        %v4365 = vunpack.c.l.b16 %v317
        %v4366 = vunpack.c.h.b16 %v317
        %v4367 = vunpack.c.l.b16 %v318
        %v4368 = vunpack.c.h.b16 %v318
        %v4369 = vunpack.c.l.b16 %v319
        %v4370 = vunpack.c.h.b16 %v319
        %v4371 = vunpack.c.l.b16 %v320
        %v4372 = vunpack.c.h.b16 %v320
        %v4373 = vunpack.c.l.b16 %v321
        %v4374 = vunpack.c.h.b16 %v321
        %v4375 = vunpack.c.l.b16 %v322
        %v4376 = vunpack.c.h.b16 %v322
        %v4377 = vunpack.c.l.b16 %v323
        %v4378 = vunpack.c.h.b16 %v323
        %v4379 = vunpack.c.l.b16 %v324
        %v4380 = vunpack.c.h.b16 %v324
        %v4381 = vunpack.c.l.b16 %v325
        %v4382 = vunpack.c.h.b16 %v325
        %v4383 = vunpack.c.l.b16 %v326
        %v4384 = vunpack.c.h.b16 %v326
        %v4385 = vunpack.c.l.b16 %v327
        %v4386 = vunpack.c.h.b16 %v327
        %v4387 = vunpack.c.l.b16 %v328
        %v4388 = vunpack.c.h.b16 %v328
        %v4389 = vunpack.c.l.b16 %v329
        %v4390 = vunpack.c.h.b16 %v329
        %v4391 = vunpack.c.l.b16 %v330
        %v4392 = vunpack.c.h.b16 %v330
        %v4393 = vunpack.c.l.b16 %v331
        %v4394 = vunpack.c.h.b16 %v331
        %v4395 = vunpack.c.l.b16 %v332
        %v4396 = vunpack.c.h.b16 %v332
        %v4397 = vunpack.c.l.b16 %v333
        %v4398 = vunpack.c.h.b16 %v333
        %v4399 = vunpack.c.l.b16 %v334
        %v4400 = vunpack.c.h.b16 %v334
        %v4401 = vunpack.c.l.b16 %v335
        %v4402 = vunpack.c.h.b16 %v335
        %v4403 = vunpack.c.l.b16 %v336
        %v4404 = vunpack.c.h.b16 %v336
        %v4405 = vunpack.c.l.b16 %v337
        %v4406 = vunpack.c.h.b16 %v337
        %v4407 = vunpack.c.l.b16 %v338
        %v4408 = vunpack.c.h.b16 %v338
        %v4409 = vunpack.c.l.b16 %v339
        %v4410 = vunpack.c.h.b16 %v339
        %v4411 = vunpack.c.l.b16 %v340
        %v4412 = vunpack.c.h.b16 %v340
        %v4413 = vunpack.c.l.b16 %v341
        %v4414 = vunpack.c.h.b16 %v341
        %v4415 = vunpack.c.l.b16 %v342
        %v4416 = vunpack.c.h.b16 %v342
        %v4417 = vunpack.c.l.b16 %v343
        %v4418 = vunpack.c.h.b16 %v343
        %v4419 = vunpack.c.l.b16 %v344
        %v4420 = vunpack.c.h.b16 %v344
        %v4421 = vunpack.c.l.b16 %v345
        %v4422 = vunpack.c.h.b16 %v345
        %v4423 = vunpack.c.l.b16 %v346
        %v4424 = vunpack.c.h.b16 %v346
        %v4425 = vunpack.c.l.b16 %v347
        %v4426 = vunpack.c.h.b16 %v347
        %v4427 = vunpack.c.l.b16 %v348
        %v4428 = vunpack.c.h.b16 %v348
        %v4429 = vunpack.c.l.b16 %v349
        %v4430 = vunpack.c.h.b16 %v349
        %v4431 = vunpack.c.l.b16 %v350
        %v4432 = vunpack.c.h.b16 %v350
        %v4433 = vunpack.c.l.b16 %v351
        %v4434 = vunpack.c.h.b16 %v351
        %v4435 = vunpack.c.l.b16 %v352
        %v4436 = vunpack.c.h.b16 %v352
        %v4437 = vunpack.c.l.b16 %v353
        %v4438 = vunpack.c.h.b16 %v353
        %v4439 = vunpack.c.l.b16 %v354
        %v4440 = vunpack.c.h.b16 %v354
        %v4441 = vunpack.c.l.b16 %v355
        %v4442 = vunpack.c.h.b16 %v355
        %v4443 = vunpack.c.l.b16 %v356
        %v4444 = vunpack.c.h.b16 %v356
        %v4445 = vunpack.c.l.b16 %v357
        %v4446 = vunpack.c.h.b16 %v357
        %v4447 = vunpack.c.l.b16 %v358
        %v4448 = vunpack.c.h.b16 %v358
        %v4449 = vunpack.c.l.b16 %v359
        %v4450 = vunpack.c.h.b16 %v359
        %v4451 = vunpack.c.l.b16 %v360
        %v4452 = vunpack.c.h.b16 %v360
        %v4453 = vunpack.c.l.b16 %v361
        %v4454 = vunpack.c.h.b16 %v361
        %v4455 = vunpack.c.l.b16 %v362
        %v4456 = vunpack.c.h.b16 %v362
        %v4457 = vunpack.c.l.b16 %v363
        %v4458 = vunpack.c.h.b16 %v363
        %v4459 = vunpack.c.l.b16 %v364
        %v4460 = vunpack.c.h.b16 %v364
        %v4461 = vunpack.c.l.b16 %v365
        %v4462 = vunpack.c.h.b16 %v365
        %v4463 = vunpack.c.l.b16 %v366
        %v4464 = vunpack.c.h.b16 %v366
        %v4465 = vunpack.c.l.b16 %v367
        %v4466 = vunpack.c.h.b16 %v367
        %v4467 = vunpack.c.l.b16 %v368
        %v4468 = vunpack.c.h.b16 %v368
        %v4469 = vunpack.c.l.b16 %v369
        %v4470 = vunpack.c.h.b16 %v369
        %v4471 = vunpack.c.l.b16 %v370
        %v4472 = vunpack.c.h.b16 %v370
        %v4473 = vunpack.c.l.b16 %v371
        %v4474 = vunpack.c.h.b16 %v371
        %v4475 = vunpack.c.l.b16 %v372
        %v4476 = vunpack.c.h.b16 %v372
        %v4477 = vunpack.c.l.b16 %v373
        %v4478 = vunpack.c.h.b16 %v373
        %v4479 = vunpack.c.l.b16 %v374
        %v4480 = vunpack.c.h.b16 %v374
        %v4481 = vunpack.c.l.b16 %v375
        %v4482 = vunpack.c.h.b16 %v375
        %v4483 = vunpack.c.l.b16 %v376
        %v4484 = vunpack.c.h.b16 %v376
        %v4485 = vunpack.c.l.b16 %v377
        %v4486 = vunpack.c.h.b16 %v377
        %v4487 = vunpack.c.l.b16 %v378
        %v4488 = vunpack.c.h.b16 %v378
        %v4489 = vunpack.c.l.b16 %v379
        %v4490 = vunpack.c.h.b16 %v379
        %v4491 = vunpack.c.l.b16 %v380
        %v4492 = vunpack.c.h.b16 %v380
        %v4493 = vunpack.c.l.b16 %v381
        %v4494 = vunpack.c.h.b16 %v381
        %v4495 = vunpack.c.l.b16 %v382
        %v4496 = vunpack.c.h.b16 %v382
        %v4497 = vunpack.c.l.b16 %v383
        %v4498 = vunpack.c.h.b16 %v383
        %v4499 = vunpack.c.l.b16 %v384
        %v4500 = vunpack.c.h.b16 %v384
        %v4501 = vunpack.c.l.b16 %v385
        %v4502 = vunpack.c.h.b16 %v385
        %v4503 = vunpack.c.l.b16 %v386
        %v4504 = vunpack.c.h.b16 %v386
        %v4505 = vunpack.c.l.b16 %v387
        %v4506 = vunpack.c.h.b16 %v387
        %v4507 = vunpack.c.l.b16 %v388
        %v4508 = vunpack.c.h.b16 %v388
        %v4509 = vunpack.c.l.b16 %v389
        %v4510 = vunpack.c.h.b16 %v389
        %v4511 = vunpack.c.l.b16 %v390
        %v4512 = vunpack.c.h.b16 %v390
        %v4513 = vunpack.c.l.b16 %v391
        %v4514 = vunpack.c.h.b16 %v391
        %v4515 = vunpack.c.l.b16 %v392
        %v4516 = vunpack.c.h.b16 %v392
        %v4517 = vunpack.c.l.b16 %v393
        %v4518 = vunpack.c.h.b16 %v393
        %v4519 = vunpack.c.l.b16 %v394
        %v4520 = vunpack.c.h.b16 %v394
        %v4521 = vunpack.c.l.b16 %v395
        %v4522 = vunpack.c.h.b16 %v395
        %v4523 = vunpack.c.l.b16 %v396
        %v4524 = vunpack.c.h.b16 %v396
        %v4525 = vunpack.c.l.b16 %v397
        %v4526 = vunpack.c.h.b16 %v397
        %v4527 = vunpack.c.l.b16 %v398
        %v4528 = vunpack.c.h.b16 %v398
        %v4529 = vunpack.c.l.b16 %v399
        %v4530 = vunpack.c.h.b16 %v399
        %v4531 = vunpack.c.l.b16 %v400
        %v4532 = vunpack.c.h.b16 %v400
        %v4533 = vunpack.c.l.b16 %v401
        %v4534 = vunpack.c.h.b16 %v401
        %v4535 = vunpack.c.l.b16 %v402
        %v4536 = vunpack.c.h.b16 %v402
        %v4537 = vunpack.c.l.b16 %v403
        %v4538 = vunpack.c.h.b16 %v403
        %v4539 = vunpack.c.l.b16 %v404
        %v4540 = vunpack.c.h.b16 %v404
        %v4541 = vunpack.c.l.b16 %v405
        %v4542 = vunpack.c.h.b16 %v405
        %v4543 = vunpack.c.l.b16 %v406
        %v4544 = vunpack.c.h.b16 %v406
        %v4545 = vunpack.c.l.b16 %v407
        %v4546 = vunpack.c.h.b16 %v407
        %v4547 = vunpack.c.l.b16 %v408
        %v4548 = vunpack.c.h.b16 %v408
        %v4549 = vunpack.c.l.b16 %v409
        %v4550 = vunpack.c.h.b16 %v409
        %v4551 = vunpack.c.l.b16 %v410
        %v4552 = vunpack.c.h.b16 %v410
        %v4553 = vunpack.c.l.b16 %v411
        %v4554 = vunpack.c.h.b16 %v411
        %v4555 = vunpack.c.l.b16 %v412
        %v4556 = vunpack.c.h.b16 %v412
        %v4557 = vunpack.c.l.b16 %v413
        %v4558 = vunpack.c.h.b16 %v413
        %v4559 = vunpack.c.l.b16 %v414
        %v4560 = vunpack.c.h.b16 %v414
        %v4561 = vunpack.c.l.b16 %v415
        %v4562 = vunpack.c.h.b16 %v415
        %v4563 = vunpack.c.l.b16 %v416
        %v4564 = vunpack.c.h.b16 %v416
        %v4565 = vunpack.c.l.b16 %v417
        %v4566 = vunpack.c.h.b16 %v417
        %v4567 = vunpack.c.l.b16 %v418
        %v4568 = vunpack.c.h.b16 %v418
        %v4569 = vunpack.c.l.b16 %v419
        %v4570 = vunpack.c.h.b16 %v419
        %v4571 = vunpack.c.l.b16 %v420
        %v4572 = vunpack.c.h.b16 %v420
        %v4573 = vunpack.c.l.b16 %v421
        %v4574 = vunpack.c.h.b16 %v421
        %v4575 = vunpack.c.l.b16 %v422
        %v4576 = vunpack.c.h.b16 %v422
        %v4577 = vunpack.c.l.b16 %v423
        %v4578 = vunpack.c.h.b16 %v423
        %v4579 = vunpack.c.l.b16 %v424
        %v4580 = vunpack.c.h.b16 %v424
        %v4581 = vunpack.c.l.b16 %v425
        %v4582 = vunpack.c.h.b16 %v425
        %v4583 = vunpack.c.l.b16 %v426
        %v4584 = vunpack.c.h.b16 %v426
        %v4585 = vunpack.c.l.b16 %v427
        %v4586 = vunpack.c.h.b16 %v427
        %v4587 = vunpack.c.l.b16 %v428
        %v4588 = vunpack.c.h.b16 %v428
        %v4589 = vunpack.c.l.b16 %v429
        %v4590 = vunpack.c.h.b16 %v429
        %v4591 = vunpack.c.l.b16 %v430
        %v4592 = vunpack.c.h.b16 %v430
        %v4593 = vunpack.c.l.b16 %v431
        %v4594 = vunpack.c.h.b16 %v431
        %v4595 = vunpack.c.l.b16 %v432
        %v4596 = vunpack.c.h.b16 %v432
        %v4597 = vunpack.c.l.b16 %v433
        %v4598 = vunpack.c.h.b16 %v433
        %v4599 = vunpack.c.l.b16 %v434
        %v4600 = vunpack.c.h.b16 %v434
        %v4601 = vunpack.c.l.b16 %v435
        %v4602 = vunpack.c.h.b16 %v435
        %v4603 = vunpack.c.l.b16 %v436
        %v4604 = vunpack.c.h.b16 %v436
        %v4605 = vunpack.c.l.b16 %v437
        %v4606 = vunpack.c.h.b16 %v437
        %v4607 = vunpack.c.l.b16 %v438
        %v4608 = vunpack.c.h.b16 %v438
        %v4609 = vunpack.c.l.b16 %v439
        %v4610 = vunpack.c.h.b16 %v439
        %v4611 = vunpack.c.l.b16 %v440
        %v4612 = vunpack.c.h.b16 %v440
        %v4613 = vunpack.c.l.b16 %v441
        %v4614 = vunpack.c.h.b16 %v441
        %v4615 = vunpack.c.l.b16 %v442
        %v4616 = vunpack.c.h.b16 %v442
        %v4617 = vunpack.c.l.b16 %v443
        %v4618 = vunpack.c.h.b16 %v443
        %v4619 = vunpack.c.l.b16 %v444
        %v4620 = vunpack.c.h.b16 %v444
        %v4621 = vunpack.c.l.b16 %v445
        %v4622 = vunpack.c.h.b16 %v445
        %v4623 = vunpack.c.l.b16 %v446
        %v4624 = vunpack.c.h.b16 %v446
        %v4625 = vunpack.c.l.b16 %v447
        %v4626 = vunpack.c.h.b16 %v447
        %v4627 = vunpack.c.l.b16 %v448
        %v4628 = vunpack.c.h.b16 %v448
        %v4629 = vunpack.c.l.b16 %v449
        %v4630 = vunpack.c.h.b16 %v449
        %v4631 = vunpack.c.l.b16 %v450
        %v4632 = vunpack.c.h.b16 %v450
        %v4633 = vunpack.c.l.b16 %v451
        %v4634 = vunpack.c.h.b16 %v451
        %v4635 = vunpack.c.l.b16 %v452
        %v4636 = vunpack.c.h.b16 %v452
        %v4637 = vunpack.c.l.b16 %v453
        %v4638 = vunpack.c.h.b16 %v453
        %v4639 = vunpack.c.l.b16 %v454
        %v4640 = vunpack.c.h.b16 %v454
        %v4641 = vunpack.c.l.b16 %v455
        %v4642 = vunpack.c.h.b16 %v455
        %v4643 = vunpack.c.l.b16 %v456
        %v4644 = vunpack.c.h.b16 %v456
        %v4645 = vunpack.c.l.b16 %v457
        %v4646 = vunpack.c.h.b16 %v457
        %v4647 = vunpack.c.l.b16 %v458
        %v4648 = vunpack.c.h.b16 %v458
        %v4649 = vunpack.c.l.b16 %v459
        %v4650 = vunpack.c.h.b16 %v459
        %v4651 = vunpack.c.l.b16 %v460
        %v4652 = vunpack.c.h.b16 %v460
        %v4653 = vunpack.c.l.b16 %v461
        %v4654 = vunpack.c.h.b16 %v461
        %v4655 = vunpack.c.l.b16 %v462
        %v4656 = vunpack.c.h.b16 %v462
        %v4657 = vunpack.c.l.b16 %v463
        %v4658 = vunpack.c.h.b16 %v463
        %v4659 = vunpack.c.l.b16 %v464
        %v4660 = vunpack.c.h.b16 %v464
        %v4661 = vunpack.c.l.b16 %v465
        %v4662 = vunpack.c.h.b16 %v465
        %v4663 = vunpack.c.l.b16 %v466
        %v4664 = vunpack.c.h.b16 %v466
        %v4665 = vunpack.c.l.b16 %v467
        %v4666 = vunpack.c.h.b16 %v467
        %v4667 = vunpack.c.l.b16 %v468
        %v4668 = vunpack.c.h.b16 %v468
        %v4669 = vunpack.c.l.b16 %v469
        %v4670 = vunpack.c.h.b16 %v469
        %v4671 = vunpack.c.l.b16 %v470
        %v4672 = vunpack.c.h.b16 %v470
        %v4673 = vunpack.c.l.b16 %v471
        %v4674 = vunpack.c.h.b16 %v471
        %v4675 = vunpack.c.l.b16 %v472
        %v4676 = vunpack.c.h.b16 %v472
        %v4677 = vunpack.c.l.b16 %v473
        %v4678 = vunpack.c.h.b16 %v473
        %v4679 = vunpack.c.l.b16 %v474
        %v4680 = vunpack.c.h.b16 %v474
        %v4681 = vunpack.c.l.b16 %v475
        %v4682 = vunpack.c.h.b16 %v475
        %v4683 = vunpack.c.l.b16 %v476
        %v4684 = vunpack.c.h.b16 %v476
        %v4685 = vunpack.c.l.b16 %v477
        %v4686 = vunpack.c.h.b16 %v477
        %v4687 = vunpack.c.l.b16 %v478
        %v4688 = vunpack.c.h.b16 %v478
        %v4689 = vunpack.c.l.b16 %v479
        %v4690 = vunpack.c.h.b16 %v479
        %v4691 = vunpack.c.l.b16 %v480
        %v4692 = vunpack.c.h.b16 %v480
        %v4693 = vunpack.c.l.b16 %v481
        %v4694 = vunpack.c.h.b16 %v481
        %v4695 = vunpack.c.l.b16 %v482
        %v4696 = vunpack.c.h.b16 %v482
        %v4697 = vunpack.c.l.b16 %v483
        %v4698 = vunpack.c.h.b16 %v483
        %v4699 = vunpack.c.l.b16 %v484
        %v4700 = vunpack.c.h.b16 %v484
        %v4701 = vunpack.c.l.b16 %v485
        %v4702 = vunpack.c.h.b16 %v485
        %v4703 = vunpack.c.l.b16 %v486
        %v4704 = vunpack.c.h.b16 %v486
        %v4705 = vunpack.c.l.b16 %v487
        %v4706 = vunpack.c.h.b16 %v487
        %v4707 = vunpack.c.l.b16 %v488
        %v4708 = vunpack.c.h.b16 %v488
        %v4709 = vunpack.c.l.b16 %v489
        %v4710 = vunpack.c.h.b16 %v489
        %v4711 = vunpack.c.l.b16 %v490
        %v4712 = vunpack.c.h.b16 %v490
        %v4713 = vunpack.c.l.b16 %v491
        %v4714 = vunpack.c.h.b16 %v491
        %v4715 = vunpack.c.l.b16 %v492
        %v4716 = vunpack.c.h.b16 %v492
        %v4717 = vunpack.c.l.b16 %v493
        %v4718 = vunpack.c.h.b16 %v493
        %v4719 = vunpack.c.l.b16 %v494
        %v4720 = vunpack.c.h.b16 %v494
        %v4721 = vunpack.c.l.b16 %v495
        %v4722 = vunpack.c.h.b16 %v495
        %v4723 = vunpack.c.l.b16 %v496
        %v4724 = vunpack.c.h.b16 %v496
        %v4725 = vunpack.c.l.b16 %v497
        %v4726 = vunpack.c.h.b16 %v497
        %v4727 = vunpack.c.l.b16 %v498
        %v4728 = vunpack.c.h.b16 %v498
        %v4729 = vunpack.c.l.b16 %v499
        %v4730 = vunpack.c.h.b16 %v499
        %v4731 = vunpack.c.l.b16 %v500
        %v4732 = vunpack.c.h.b16 %v500
        %v4733 = vunpack.c.l.b16 %v501
        %v4734 = vunpack.c.h.b16 %v501
        %v4735 = vunpack.c.l.b16 %v502
        %v4736 = vunpack.c.h.b16 %v502
        %v4737 = vunpack.c.l.b16 %v503
        %v4738 = vunpack.c.h.b16 %v503
        %v4739 = vunpack.c.l.b16 %v504
        %v4740 = vunpack.c.h.b16 %v504
        %v4741 = vunpack.c.l.b16 %v505
        %v4742 = vunpack.c.h.b16 %v505
        %v4743 = vunpack.c.l.b16 %v506
        %v4744 = vunpack.c.h.b16 %v506
        %v4745 = vunpack.c.l.b16 %v507
        %v4746 = vunpack.c.h.b16 %v507
        %v4747 = vunpack.c.l.b16 %v508
        %v4748 = vunpack.c.h.b16 %v508
        %v4749 = vunpack.c.l.b16 %v509
        %v4750 = vunpack.c.h.b16 %v509
        %v4751 = vunpack.c.l.b16 %v510
        %v4752 = vunpack.c.h.b16 %v510
        %v4753 = vunpack.c.l.b16 %v511
        %v4754 = vunpack.c.h.b16 %v511
        %v4755 = vunpack.c.l.b16 %v512
        %v4756 = vunpack.c.h.b16 %v512
        %v4757 = vunpack.c.l.b16 %v513
        %v4758 = vunpack.c.h.b16 %v513
        %v4759 = vunpack.c.l.b16 %v514
        %v4760 = vunpack.c.h.b16 %v514
        %v4761 = vunpack.c.l.b16 %v515
        %v4762 = vunpack.c.h.b16 %v515
        %v4763 = vunpack.c.l.b16 %v516
        %v4764 = vunpack.c.h.b16 %v516
        %v4765 = vunpack.c.l.b16 %v517
        %v4766 = vunpack.c.h.b16 %v517
        %v4767 = vunpack.c.l.b16 %v518
        %v4768 = vunpack.c.h.b16 %v518
        %v4769 = vunpack.c.l.b16 %v519
        %v4770 = vunpack.c.h.b16 %v519
        %v4771 = vunpack.c.l.b16 %v520
        %v4772 = vunpack.c.h.b16 %v520
        %v4773 = vunpack.c.l.b16 %v521
        %v4774 = vunpack.c.h.b16 %v521
        %v4775 = vunpack.c.l.b16 %v522
        %v4776 = vunpack.c.h.b16 %v522
        %v4777 = vunpack.c.l.b16 %v523
        %v4778 = vunpack.c.h.b16 %v523
        %v4779 = vunpack.c.l.b16 %v524
        %v4780 = vunpack.c.h.b16 %v524
        %v4781 = vunpack.c.l.b16 %v525
        %v4782 = vunpack.c.h.b16 %v525
        %v4783 = vunpack.c.l.b16 %v526
        %v4784 = vunpack.c.h.b16 %v526
        %v4785 = vunpack.c.l.b16 %v527
        %v4786 = vunpack.c.h.b16 %v527
        %v4787 = vunpack.c.l.b16 %v528
        %v4788 = vunpack.c.h.b16 %v528
        %v4789 = vunpack.c.l.b16 %v529
        %v4790 = vunpack.c.h.b16 %v529
        %v4791 = vunpack.c.l.b16 %v530
        %v4792 = vunpack.c.h.b16 %v530
        %v4793 = vunpack.c.l.b16 %v531
        %v4794 = vunpack.c.h.b16 %v531
        %v4795 = vunpack.c.l.b16 %v532
        %v4796 = vunpack.c.h.b16 %v532
        %v4797 = vunpack.c.l.b16 %v533
        %v4798 = vunpack.c.h.b16 %v533
        %v4799 = vunpack.c.l.b16 %v534
        %v4800 = vunpack.c.h.b16 %v534
        %v4801 = vunpack.c.l.b16 %v535
        %v4802 = vunpack.c.h.b16 %v535
        %v4803 = vunpack.c.l.b16 %v536
        %v4804 = vunpack.c.h.b16 %v536
        %v4805 = vunpack.c.l.b16 %v537
        %v4806 = vunpack.c.h.b16 %v537
        %v4807 = vunpack.c.l.b16 %v538
        %v4808 = vunpack.c.h.b16 %v538
        %v4809 = vunpack.c.l.b16 %v539
        %v4810 = vunpack.c.h.b16 %v539
        %v4811 = vunpack.c.l.b16 %v540
        %v4812 = vunpack.c.h.b16 %v540
        %v4813 = vunpack.c.l.b16 %v541
        %v4814 = vunpack.c.h.b16 %v541
        %v4815 = vunpack.c.l.b16 %v542
        %v4816 = vunpack.c.h.b16 %v542
        %v4817 = vunpack.c.l.b16 %v543
        %v4818 = vunpack.c.h.b16 %v543
        %v4819 = vunpack.c.l.b16 %v544
        %v4820 = vunpack.c.h.b16 %v544
        %v4821 = vunpack.c.l.b16 %v545
        %v4822 = vunpack.c.h.b16 %v545
        %v4823 = vunpack.c.l.b16 %v546
        %v4824 = vunpack.c.h.b16 %v546
        %v4825 = vunpack.c.l.b16 %v547
        %v4826 = vunpack.c.h.b16 %v547
        %v4827 = vunpack.c.l.b16 %v548
        %v4828 = vunpack.c.h.b16 %v548
        %v4829 = vunpack.c.l.b16 %v549
        %v4830 = vunpack.c.h.b16 %v549
        %v4831 = vunpack.c.l.b16 %v550
        %v4832 = vunpack.c.h.b16 %v550
        %v4833 = vunpack.c.l.b16 %v551
        %v4834 = vunpack.c.h.b16 %v551
        %v4835 = vunpack.c.l.b16 %v552
        %v4836 = vunpack.c.h.b16 %v552
        %v4837 = vunpack.c.l.b16 %v553
        %v4838 = vunpack.c.h.b16 %v553
        %v4839 = vunpack.c.l.b16 %v554
        %v4840 = vunpack.c.h.b16 %v554
        %v4841 = vunpack.c.l.b16 %v555
        %v4842 = vunpack.c.h.b16 %v555
        %v4843 = vunpack.c.l.b16 %v556
        %v4844 = vunpack.c.h.b16 %v556
        %v4845 = vunpack.c.l.b16 %v557
        %v4846 = vunpack.c.h.b16 %v557
        %v4847 = vunpack.c.l.b16 %v558
        %v4848 = vunpack.c.h.b16 %v558
        %v4849 = vunpack.c.l.b16 %v559
        %v4850 = vunpack.c.h.b16 %v559
        %v4851 = vunpack.c.l.b16 %v560
        %v4852 = vunpack.c.h.b16 %v560
        %v4853 = vunpack.c.l.b16 %v561
        %v4854 = vunpack.c.h.b16 %v561
        %v4855 = vunpack.c.l.b16 %v562
        %v4856 = vunpack.c.h.b16 %v562
        %v4857 = vunpack.c.l.b16 %v563
        %v4858 = vunpack.c.h.b16 %v563
        %v4859 = vunpack.c.l.b16 %v564
        %v4860 = vunpack.c.h.b16 %v564
        %v4861 = vunpack.c.l.b16 %v565
        %v4862 = vunpack.c.h.b16 %v565
        %v4863 = vunpack.c.l.b16 %v566
        %v4864 = vunpack.c.h.b16 %v566
        %v4865 = vunpack.c.l.b16 %v567
        %v4866 = vunpack.c.h.b16 %v567
        %v4867 = vunpack.c.l.b16 %v568
        %v4868 = vunpack.c.h.b16 %v568
        %v4869 = vunpack.c.l.b16 %v569
        %v4870 = vunpack.c.h.b16 %v569
        %v4871 = vunpack.c.l.b16 %v570
        %v4872 = vunpack.c.h.b16 %v570
        %v4873 = vunpack.c.l.b16 %v571
        %v4874 = vunpack.c.h.b16 %v571
        %v4875 = vunpack.c.l.b16 %v572
        %v4876 = vunpack.c.h.b16 %v572
        %v4877 = vunpack.c.l.b16 %v573
        %v4878 = vunpack.c.h.b16 %v573
        %v4879 = vunpack.c.l.b16 %v574
        %v4880 = vunpack.c.h.b16 %v574
        %v4881 = vunpack.c.l.b16 %v575
        %v4882 = vunpack.c.h.b16 %v575
        %v4883 = vunpack.c.l.b16 %v576
        %v4884 = vunpack.c.h.b16 %v576
        %v4885 = vunpack.c.l.b16 %v577
        %v4886 = vunpack.c.h.b16 %v577
        %v4887 = vunpack.c.l.b16 %v578
        %v4888 = vunpack.c.h.b16 %v578
        %v4889 = vunpack.c.l.b16 %v579
        %v4890 = vunpack.c.h.b16 %v579
        %v4891 = vunpack.c.l.b16 %v580
        %v4892 = vunpack.c.h.b16 %v580
        %v4893 = vunpack.c.l.b16 %v581
        %v4894 = vunpack.c.h.b16 %v581
        %v4895 = vunpack.c.l.b16 %v582
        %v4896 = vunpack.c.h.b16 %v582
        %v4897 = vunpack.c.l.b16 %v583
        %v4898 = vunpack.c.h.b16 %v583
        %v4899 = vunpack.c.l.b16 %v584
        %v4900 = vunpack.c.h.b16 %v584
        %v4901 = vunpack.c.l.b16 %v585
        %v4902 = vunpack.c.h.b16 %v585
        %v4903 = vunpack.c.l.b16 %v586
        %v4904 = vunpack.c.h.b16 %v586
        %v4905 = vunpack.c.l.b16 %v587
        %v4906 = vunpack.c.h.b16 %v587
        %v4907 = vunpack.c.l.b16 %v588
        %v4908 = vunpack.c.h.b16 %v588
        %v4909 = vunpack.c.l.b16 %v589
        %v4910 = vunpack.c.h.b16 %v589
        %v4911 = vunpack.c.l.b16 %v590
        %v4912 = vunpack.c.h.b16 %v590
        %v4913 = vunpack.c.l.b16 %v591
        %v4914 = vunpack.c.h.b16 %v591
        %v4915 = vunpack.c.l.b16 %v592
        %v4916 = vunpack.c.h.b16 %v592
        %v4917 = vunpack.c.l.b16 %v593
        %v4918 = vunpack.c.h.b16 %v593
        %v4919 = vunpack.c.l.b16 %v594
        %v4920 = vunpack.c.h.b16 %v594
        %v4921 = vunpack.c.l.b16 %v595
        %v4922 = vunpack.c.h.b16 %v595
        %v4923 = vunpack.c.l.b16 %v596
        %v4924 = vunpack.c.h.b16 %v596
        %v4925 = vunpack.c.l.b16 %v597
        %v4926 = vunpack.c.h.b16 %v597
        %v4927 = vunpack.c.l.b16 %v598
        %v4928 = vunpack.c.h.b16 %v598
        %v4929 = vunpack.c.l.b16 %v599
        %v4930 = vunpack.c.h.b16 %v599
        %v4931 = vunpack.c.l.b16 %v600
        %v4932 = vunpack.c.h.b16 %v600
        %v4933 = vunpack.c.l.b16 %v601
        %v4934 = vunpack.c.h.b16 %v601
        %v4935 = vunpack.c.l.b16 %v602
        %v4936 = vunpack.c.h.b16 %v602
        %v4937 = vunpack.c.l.b16 %v603
        %v4938 = vunpack.c.h.b16 %v603
        %v4939 = vunpack.c.l.b16 %v604
        %v4940 = vunpack.c.h.b16 %v604
        %v4941 = vunpack.c.l.b16 %v605
        %v4942 = vunpack.c.h.b16 %v605
        %v4943 = vunpack.c.l.b16 %v606
        %v4944 = vunpack.c.h.b16 %v606
        %v4945 = vunpack.c.l.b16 %v607
        %v4946 = vunpack.c.h.b16 %v607
        %v4947 = vunpack.c.l.b16 %v608
        %v4948 = vunpack.c.h.b16 %v608
        %v4949 = vunpack.c.l.b16 %v609
        %v4950 = vunpack.c.h.b16 %v609
        %v4951 = vunpack.c.l.b16 %v610
        %v4952 = vunpack.c.h.b16 %v610
        %v4953 = vunpack.c.l.b16 %v611
        %v4954 = vunpack.c.h.b16 %v611
        %v4955 = vunpack.c.l.b16 %v612
        %v4956 = vunpack.c.h.b16 %v612
        %v4957 = vunpack.c.l.b16 %v613
        %v4958 = vunpack.c.h.b16 %v613
        %v4959 = vunpack.c.l.b16 %v614
        %v4960 = vunpack.c.h.b16 %v614
        %v4961 = vunpack.c.l.b16 %v615
        %v4962 = vunpack.c.h.b16 %v615
        %v4963 = vunpack.c.l.b16 %v616
        %v4964 = vunpack.c.h.b16 %v616
        %v4965 = vunpack.c.l.b16 %v617
        %v4966 = vunpack.c.h.b16 %v617
        %v4967 = vunpack.c.l.b16 %v618
        %v4968 = vunpack.c.h.b16 %v618
        %v4969 = vunpack.c.l.b16 %v619
        %v4970 = vunpack.c.h.b16 %v619
        %v4971 = vunpack.c.l.b16 %v620
        %v4972 = vunpack.c.h.b16 %v620
        %v4973 = vunpack.c.l.b16 %v621
        %v4974 = vunpack.c.h.b16 %v621
        %v4975 = vunpack.c.l.b16 %v622
        %v4976 = vunpack.c.h.b16 %v622
        %v4977 = vunpack.c.l.b16 %v623
        %v4978 = vunpack.c.h.b16 %v623
        %v4979 = vunpack.c.l.b16 %v624
        %v4980 = vunpack.c.h.b16 %v624
        %v4981 = vunpack.c.l.b16 %v625
        %v4982 = vunpack.c.h.b16 %v625
        %v4983 = vunpack.c.l.b16 %v626
        %v4984 = vunpack.c.h.b16 %v626
        %v4985 = vunpack.c.l.b16 %v627
        %v4986 = vunpack.c.h.b16 %v627
        %v4987 = vunpack.c.l.b16 %v628
        %v4988 = vunpack.c.h.b16 %v628
        %v4989 = vunpack.c.l.b16 %v629
        %v4990 = vunpack.c.h.b16 %v629
        %v4991 = vunpack.c.l.b16 %v630
        %v4992 = vunpack.c.h.b16 %v630
        %v4993 = vunpack.c.l.b16 %v631
        %v4994 = vunpack.c.h.b16 %v631
        %v4995 = vunpack.c.l.b16 %v632
        %v4996 = vunpack.c.h.b16 %v632
        %v4997 = vunpack.c.l.b16 %v633
        %v4998 = vunpack.c.h.b16 %v633
        %v4999 = vunpack.c.l.b16 %v634
        %v5000 = vunpack.c.h.b16 %v634
        %v5001 = vunpack.c.l.b16 %v635
        %v5002 = vunpack.c.h.b16 %v635
        %v5003 = vunpack.c.l.b16 %v636
        %v5004 = vunpack.c.h.b16 %v636
        %v5005 = vunpack.c.l.b16 %v637
        %v5006 = vunpack.c.h.b16 %v637
        %v5007 = vunpack.c.l.b16 %v638
        %v5008 = vunpack.c.h.b16 %v638
        %v5009 = vunpack.c.l.b16 %v639
        %v5010 = vunpack.c.h.b16 %v639
        %v5011 = vunpack.c.l.b16 %v640
        %v5012 = vunpack.c.h.b16 %v640
        %v5013 = vunpack.c.l.b16 %v641
        %v5014 = vunpack.c.h.b16 %v641
        %v5015 = vunpack.c.l.b16 %v642
        %v5016 = vunpack.c.h.b16 %v642
        %v5017 = vunpack.c.l.b16 %v643
        %v5018 = vunpack.c.h.b16 %v643
        %v5019 = vunpack.c.l.b16 %v644
        %v5020 = vunpack.c.h.b16 %v644
        %v5021 = vunpack.c.l.b16 %v645
        %v5022 = vunpack.c.h.b16 %v645
        %v5023 = vunpack.c.l.b16 %v646
        %v5024 = vunpack.c.h.b16 %v646
        %v5025 = vunpack.c.l.b16 %v647
        %v5026 = vunpack.c.h.b16 %v647
        %v5027 = vunpack.c.l.b16 %v648
        %v5028 = vunpack.c.h.b16 %v648
        %v5029 = vunpack.c.l.b16 %v649
        %v5030 = vunpack.c.h.b16 %v649
        %v5031 = vunpack.c.l.b16 %v650
        %v5032 = vunpack.c.h.b16 %v650
        %v5033 = vunpack.c.l.b16 %v651
        %v5034 = vunpack.c.h.b16 %v651
        %v5035 = vunpack.c.l.b16 %v652
        %v5036 = vunpack.c.h.b16 %v652
        %v5037 = vunpack.c.l.b16 %v653
        %v5038 = vunpack.c.h.b16 %v653
        %v5039 = vunpack.c.l.b16 %v654
        %v5040 = vunpack.c.h.b16 %v654
        %v5041 = vunpack.c.l.b16 %v655
        %v5042 = vunpack.c.h.b16 %v655
        %v5043 = vunpack.c.l.b16 %v656
        %v5044 = vunpack.c.h.b16 %v656
        %v5045 = vunpack.c.l.b16 %v657
        %v5046 = vunpack.c.h.b16 %v657
        %v5047 = vunpack.c.l.b16 %v658
        %v5048 = vunpack.c.h.b16 %v658
        %v5049 = vunpack.c.l.b16 %v659
        %v5050 = vunpack.c.h.b16 %v659
        %v5051 = vunpack.c.l.b16 %v660
        %v5052 = vunpack.c.h.b16 %v660
        %v5053 = vunpack.c.l.b16 %v661
        %v5054 = vunpack.c.h.b16 %v661
        %v5055 = vunpack.c.l.b16 %v662
        %v5056 = vunpack.c.h.b16 %v662
        %v5057 = vunpack.c.l.b16 %v663
        %v5058 = vunpack.c.h.b16 %v663
        %v5059 = vunpack.c.l.b16 %v664
        %v5060 = vunpack.c.h.b16 %v664
        %v5061 = vunpack.c.l.b16 %v665
        %v5062 = vunpack.c.h.b16 %v665
        %v5063 = vunpack.c.l.b16 %v666
        %v5064 = vunpack.c.h.b16 %v666
        %v5065 = vunpack.c.l.b16 %v667
        %v5066 = vunpack.c.h.b16 %v667
        %v5067 = vunpack.c.l.b16 %v668
        %v5068 = vunpack.c.h.b16 %v668
        %v5069 = vunpack.c.l.b16 %v669
        %v5070 = vunpack.c.h.b16 %v669
        %v5071 = vunpack.c.l.b16 %v670
        %v5072 = vunpack.c.h.b16 %v670
        %v5073 = vunpack.c.l.b16 %v671
        %v5074 = vunpack.c.h.b16 %v671
        %v5075 = vunpack.c.l.b16 %v672
        %v5076 = vunpack.c.h.b16 %v672
        %v5077 = vunpack.c.l.b16 %v673
        %v5078 = vunpack.c.h.b16 %v673
        %v5079 = vunpack.c.l.b16 %v674
        %v5080 = vunpack.c.h.b16 %v674
        %v5081 = vunpack.c.l.b16 %v675
        %v5082 = vunpack.c.h.b16 %v675
        %v5083 = vunpack.c.l.b16 %v676
        %v5084 = vunpack.c.h.b16 %v676
        %v5085 = vunpack.c.l.b16 %v677
        %v5086 = vunpack.c.h.b16 %v677
        %v5087 = vunpack.c.l.b16 %v678
        %v5088 = vunpack.c.h.b16 %v678
        %v5089 = vunpack.c.l.b16 %v679
        %v5090 = vunpack.c.h.b16 %v679
        %v5091 = vunpack.c.l.b16 %v680
        %v5092 = vunpack.c.h.b16 %v680
        %v5093 = vunpack.c.l.b16 %v681
        %v5094 = vunpack.c.h.b16 %v681
        %v5095 = vunpack.c.l.b16 %v682
        %v5096 = vunpack.c.h.b16 %v682
        %v5097 = vunpack.c.l.b16 %v683
        %v5098 = vunpack.c.h.b16 %v683
        %v5099 = vunpack.c.l.b16 %v684
        %v5100 = vunpack.c.h.b16 %v684
        %v5101 = vunpack.c.l.b16 %v685
        %v5102 = vunpack.c.h.b16 %v685
        %v5103 = vunpack.c.l.b16 %v686
        %v5104 = vunpack.c.h.b16 %v686
        %v5105 = vunpack.c.l.b16 %v687
        %v5106 = vunpack.c.h.b16 %v687
        %v5107 = vunpack.c.l.b16 %v688
        %v5108 = vunpack.c.h.b16 %v688
        %v5109 = vunpack.c.l.b16 %v689
        %v5110 = vunpack.c.h.b16 %v689
        %v5111 = vunpack.c.l.b16 %v690
        %v5112 = vunpack.c.h.b16 %v690
        %v5113 = vunpack.c.l.b16 %v691
        %v5114 = vunpack.c.h.b16 %v691
        %v5115 = vunpack.c.l.b16 %v692
        %v5116 = vunpack.c.h.b16 %v692
        %v5117 = vunpack.c.l.b16 %v693
        %v5118 = vunpack.c.h.b16 %v693
        %v5119 = vunpack.c.l.b16 %v694
        %v5120 = vunpack.c.h.b16 %v694
        %v5121 = vunpack.c.l.b16 %v695
        %v5122 = vunpack.c.h.b16 %v695
        %v5123 = vunpack.c.l.b16 %v696
        %v5124 = vunpack.c.h.b16 %v696
        %v5125 = vunpack.c.l.b16 %v697
        %v5126 = vunpack.c.h.b16 %v697
        %v5127 = vunpack.c.l.b16 %v698
        %v5128 = vunpack.c.h.b16 %v698
        %v5129 = vunpack.c.l.b16 %v699
        %v5130 = vunpack.c.h.b16 %v699
        %v5131 = vunpack.c.l.b16 %v700
        %v5132 = vunpack.c.h.b16 %v700
        %v5133 = vunpack.c.l.b16 %v701
        %v5134 = vunpack.c.h.b16 %v701
        %v5135 = vunpack.c.l.b16 %v702
        %v5136 = vunpack.c.h.b16 %v702
        %v5137 = vunpack.c.l.b16 %v703
        %v5138 = vunpack.c.h.b16 %v703
        %v5139 = vunpack.c.l.b16 %v704
        %v5140 = vunpack.c.h.b16 %v704
        %v5141 = vunpack.c.l.b16 %v705
        %v5142 = vunpack.c.h.b16 %v705
        %v5143 = vunpack.c.l.b16 %v706
        %v5144 = vunpack.c.h.b16 %v706
        %v5145 = vunpack.c.l.b16 %v707
        %v5146 = vunpack.c.h.b16 %v707
        %v5147 = vunpack.c.l.b16 %v708
        %v5148 = vunpack.c.h.b16 %v708
        %v5149 = vunpack.c.l.b16 %v709
        %v5150 = vunpack.c.h.b16 %v709
        %v5151 = vunpack.c.l.b16 %v710
        %v5152 = vunpack.c.h.b16 %v710
        %v5153 = vunpack.c.l.b16 %v711
        %v5154 = vunpack.c.h.b16 %v711
        %v5155 = vunpack.c.l.b16 %v712
        %v5156 = vunpack.c.h.b16 %v712
        %v5157 = vunpack.c.l.b16 %v713
        %v5158 = vunpack.c.h.b16 %v713
        %v5159 = vunpack.c.l.b16 %v714
        %v5160 = vunpack.c.h.b16 %v714
        %v5161 = vunpack.c.l.b16 %v715
        %v5162 = vunpack.c.h.b16 %v715
        %v5163 = vunpack.c.l.b16 %v716
        %v5164 = vunpack.c.h.b16 %v716
        %v5165 = vunpack.c.l.b16 %v717
        %v5166 = vunpack.c.h.b16 %v717
        %v5167 = vunpack.c.l.b16 %v718
        %v5168 = vunpack.c.h.b16 %v718
        %v5169 = vunpack.c.l.b16 %v719
        %v5170 = vunpack.c.h.b16 %v719
        %v5171 = vunpack.c.l.b16 %v720
        %v5172 = vunpack.c.h.b16 %v720
        %v5173 = vunpack.c.l.b16 %v721
        %v5174 = vunpack.c.h.b16 %v721
        %v5175 = vunpack.c.l.b16 %v722
        %v5176 = vunpack.c.h.b16 %v722
        %v5177 = vunpack.c.l.b16 %v723
        %v5178 = vunpack.c.h.b16 %v723
        %v5179 = vunpack.c.l.b16 %v724
        %v5180 = vunpack.c.h.b16 %v724
        %v5181 = vunpack.c.l.b16 %v725
        %v5182 = vunpack.c.h.b16 %v725
        %v5183 = vunpack.c.l.b16 %v726
        %v5184 = vunpack.c.h.b16 %v726
        %v5185 = vunpack.c.l.b16 %v727
        %v5186 = vunpack.c.h.b16 %v727
        %v5187 = vunpack.c.l.b16 %v728
        %v5188 = vunpack.c.h.b16 %v728
        %v5189 = vunpack.c.l.b16 %v729
        %v5190 = vunpack.c.h.b16 %v729
        %v5191 = vunpack.c.l.b16 %v730
        %v5192 = vunpack.c.h.b16 %v730
        %v5193 = vunpack.c.l.b16 %v731
        %v5194 = vunpack.c.h.b16 %v731
        %v5195 = vunpack.c.l.b16 %v732
        %v5196 = vunpack.c.h.b16 %v732
        %v5197 = vunpack.c.l.b16 %v733
        %v5198 = vunpack.c.h.b16 %v733
        %v5199 = vunpack.c.l.b16 %v734
        %v5200 = vunpack.c.h.b16 %v734
        %v5201 = vunpack.c.l.b16 %v735
        %v5202 = vunpack.c.h.b16 %v735
        %v5203 = vunpack.c.l.b16 %v736
        %v5204 = vunpack.c.h.b16 %v736
        %v5205 = vunpack.c.l.b16 %v737
        %v5206 = vunpack.c.h.b16 %v737
        %v5207 = vunpack.c.l.b16 %v738
        %v5208 = vunpack.c.h.b16 %v738
        %v5209 = vunpack.c.l.b16 %v739
        %v5210 = vunpack.c.h.b16 %v739
        %v5211 = vunpack.c.l.b16 %v740
        %v5212 = vunpack.c.h.b16 %v740
        %v5213 = vunpack.c.l.b16 %v741
        %v5214 = vunpack.c.h.b16 %v741
        %v5215 = vunpack.c.l.b16 %v742
        %v5216 = vunpack.c.h.b16 %v742
        %v5217 = vunpack.c.l.b16 %v743
        %v5218 = vunpack.c.h.b16 %v743
        %v5219 = vunpack.c.l.b16 %v744
        %v5220 = vunpack.c.h.b16 %v744
        %v5221 = vunpack.c.l.b16 %v745
        %v5222 = vunpack.c.h.b16 %v745
        %v5223 = vunpack.c.l.b16 %v746
        %v5224 = vunpack.c.h.b16 %v746
        %v5225 = vunpack.c.l.b16 %v747
        %v5226 = vunpack.c.h.b16 %v747
        %v5227 = vunpack.c.l.b16 %v748
        %v5228 = vunpack.c.h.b16 %v748
        %v5229 = vunpack.c.l.b16 %v749
        %v5230 = vunpack.c.h.b16 %v749
        %v5231 = vunpack.c.l.b16 %v750
        %v5232 = vunpack.c.h.b16 %v750
        %v5233 = vunpack.c.l.b16 %v751
        %v5234 = vunpack.c.h.b16 %v751
        %v5235 = vunpack.c.l.b16 %v752
        %v5236 = vunpack.c.h.b16 %v752
        %v5237 = vunpack.c.l.b16 %v753
        %v5238 = vunpack.c.h.b16 %v753
        %v5239 = vunpack.c.l.b16 %v754
        %v5240 = vunpack.c.h.b16 %v754
        %v5241 = vunpack.c.l.b16 %v755
        %v5242 = vunpack.c.h.b16 %v755
        %v5243 = vunpack.c.l.b16 %v756
        %v5244 = vunpack.c.h.b16 %v756
        %v5245 = vunpack.c.l.b16 %v757
        %v5246 = vunpack.c.h.b16 %v757
        %v5247 = vunpack.c.l.b16 %v758
        %v5248 = vunpack.c.h.b16 %v758
        %v5249 = vunpack.c.l.b16 %v759
        %v5250 = vunpack.c.h.b16 %v759
        %v5251 = vunpack.c.l.b16 %v760
        %v5252 = vunpack.c.h.b16 %v760
        %v5253 = vunpack.c.l.b16 %v761
        %v5254 = vunpack.c.h.b16 %v761
        %v5255 = vunpack.c.l.b16 %v762
        %v5256 = vunpack.c.h.b16 %v762
        %v5257 = vunpack.c.l.b16 %v763
        %v5258 = vunpack.c.h.b16 %v763
        %v5259 = vunpack.c.l.b16 %v764
        %v5260 = vunpack.c.h.b16 %v764
        %v5261 = vunpack.c.l.b16 %v765
        %v5262 = vunpack.c.h.b16 %v765
        %v5263 = vunpack.c.l.b16 %v766
        %v5264 = vunpack.c.h.b16 %v766
        %v5265 = vunpack.c.l.b16 %v767
        %v5266 = vunpack.c.h.b16 %v767
        %v5267 = vunpack.c.l.b16 %v768
        %v5268 = vunpack.c.h.b16 %v768
        %v5269 = vunpack.c.l.b16 %v769
        %v5270 = vunpack.c.h.b16 %v769
        %v5271 = vunpack.c.l.b16 %v770
        %v5272 = vunpack.c.h.b16 %v770
        %v5273 = vunpack.c.l.b16 %v771
        %v5274 = vunpack.c.h.b16 %v771
        %v5275 = vunpack.c.l.b16 %v772
        %v5276 = vunpack.c.h.b16 %v772
        %v5277 = vunpack.c.l.b16 %v773
        %v5278 = vunpack.c.h.b16 %v773
        %v5279 = vunpack.c.l.b16 %v774
        %v5280 = vunpack.c.h.b16 %v774
        %v5281 = vunpack.c.l.b16 %v775
        %v5282 = vunpack.c.h.b16 %v775
        %v5283 = vunpack.c.l.b16 %v776
        %v5284 = vunpack.c.h.b16 %v776
        %v5285 = vunpack.c.l.b16 %v777
        %v5286 = vunpack.c.h.b16 %v777
        %v5287 = vunpack.c.l.b16 %v778
        %v5288 = vunpack.c.h.b16 %v778
        %v5289 = vunpack.c.l.b16 %v779
        %v5290 = vunpack.c.h.b16 %v779
        %v5291 = vunpack.c.l.b16 %v780
        %v5292 = vunpack.c.h.b16 %v780
        %v5293 = vunpack.c.l.b16 %v781
        %v5294 = vunpack.c.h.b16 %v781
        %v5295 = vunpack.c.l.b16 %v782
        %v5296 = vunpack.c.h.b16 %v782
        %v5297 = vunpack.c.l.b16 %v783
        %v5298 = vunpack.c.h.b16 %v783
        %v5299 = vunpack.c.l.b16 %v784
        %v5300 = vunpack.c.h.b16 %v784
        %v5301 = vunpack.c.l.b16 %v785
        %v5302 = vunpack.c.h.b16 %v785
        %v5303 = vunpack.c.l.b16 %v786
        %v5304 = vunpack.c.h.b16 %v786
        %v5305 = vunpack.c.l.b16 %v787
        %v5306 = vunpack.c.h.b16 %v787
        %v5307 = vunpack.c.l.b16 %v788
        %v5308 = vunpack.c.h.b16 %v788
        %v5309 = vunpack.c.l.b16 %v789
        %v5310 = vunpack.c.h.b16 %v789
        %v5311 = vunpack.c.l.b16 %v790
        %v5312 = vunpack.c.h.b16 %v790
        %v5313 = vunpack.c.l.b16 %v791
        %v5314 = vunpack.c.h.b16 %v791
        %v5315 = vunpack.c.l.b16 %v792
        %v5316 = vunpack.c.h.b16 %v792
        %v5317 = vunpack.c.l.b16 %v793
        %v5318 = vunpack.c.h.b16 %v793
        %v5319 = vunpack.c.l.b16 %v794
        %v5320 = vunpack.c.h.b16 %v794
        %v5321 = vunpack.c.l.b16 %v795
        %v5322 = vunpack.c.h.b16 %v795
        %v5323 = vunpack.c.l.b16 %v796
        %v5324 = vunpack.c.h.b16 %v796
        %v5325 = vunpack.c.l.b16 %v797
        %v5326 = vunpack.c.h.b16 %v797
        %v5327 = vunpack.c.l.b16 %v798
        %v5328 = vunpack.c.h.b16 %v798
        %v5329 = vunpack.c.l.b16 %v799
        %v5330 = vunpack.c.h.b16 %v799
        %v5331 = vunpack.c.l.b16 %v800
        %v5332 = vunpack.c.h.b16 %v800
        %v5333 = vunpack.c.l.b16 %v801
        %v5334 = vunpack.c.h.b16 %v801
        %v5335 = vunpack.c.l.b16 %v802
        %v5336 = vunpack.c.h.b16 %v802
        %v5337 = vunpack.c.l.b16 %v803
        %v5338 = vunpack.c.h.b16 %v803
        %v5339 = vunpack.c.l.b16 %v804
        %v5340 = vunpack.c.h.b16 %v804
        %v5341 = vunpack.c.l.b16 %v805
        %v5342 = vunpack.c.h.b16 %v805
        %v5343 = vunpack.c.l.b16 %v806
        %v5344 = vunpack.c.h.b16 %v806
        %v5345 = vunpack.c.l.b16 %v807
        %v5346 = vunpack.c.h.b16 %v807
        %v5347 = vunpack.c.l.b16 %v808
        %v5348 = vunpack.c.h.b16 %v808
        %v5349 = vunpack.c.l.b16 %v809
        %v5350 = vunpack.c.h.b16 %v809
        %v5351 = vunpack.c.l.b16 %v810
        %v5352 = vunpack.c.h.b16 %v810
        %v5353 = vunpack.c.l.b16 %v811
        %v5354 = vunpack.c.h.b16 %v811
        %v5355 = vunpack.c.l.b16 %v812
        %v5356 = vunpack.c.h.b16 %v812
        %v5357 = vunpack.c.l.b16 %v813
        %v5358 = vunpack.c.h.b16 %v813
        %v5359 = vunpack.c.l.b16 %v814
        %v5360 = vunpack.c.h.b16 %v814
        %v5361 = vunpack.c.l.b16 %v815
        %v5362 = vunpack.c.h.b16 %v815
        %v5363 = vunpack.c.l.b16 %v816
        %v5364 = vunpack.c.h.b16 %v816
        %v5365 = vunpack.c.l.b16 %v817
        %v5366 = vunpack.c.h.b16 %v817
        %v5367 = vunpack.c.l.b16 %v818
        %v5368 = vunpack.c.h.b16 %v818
        %v5369 = vunpack.c.l.b16 %v819
        %v5370 = vunpack.c.h.b16 %v819
        %v5371 = vunpack.c.l.b16 %v820
        %v5372 = vunpack.c.h.b16 %v820
        %v5373 = vunpack.c.l.b16 %v821
        %v5374 = vunpack.c.h.b16 %v821
        %v5375 = vunpack.c.l.b16 %v822
        %v5376 = vunpack.c.h.b16 %v822
        %v5377 = vunpack.c.l.b16 %v823
        %v5378 = vunpack.c.h.b16 %v823
        %v5379 = vunpack.c.l.b16 %v824
        %v5380 = vunpack.c.h.b16 %v824
        %v5381 = vunpack.c.l.b16 %v825
        %v5382 = vunpack.c.h.b16 %v825
        %v5383 = vunpack.c.l.b16 %v826
        %v5384 = vunpack.c.h.b16 %v826
        %v5385 = vunpack.c.l.b16 %v827
        %v5386 = vunpack.c.h.b16 %v827
        %v5387 = vunpack.c.l.b16 %v828
        %v5388 = vunpack.c.h.b16 %v828
        %v5389 = vunpack.c.l.b16 %v829
        %v5390 = vunpack.c.h.b16 %v829
        %v5391 = vunpack.c.l.b16 %v830
        %v5392 = vunpack.c.h.b16 %v830
        %v5393 = vunpack.c.l.b16 %v831
        %v5394 = vunpack.c.h.b16 %v831
        %v5395 = vunpack.c.l.b16 %v832
        %v5396 = vunpack.c.h.b16 %v832
        %v5397 = vunpack.c.l.b16 %v833
        %v5398 = vunpack.c.h.b16 %v833
        %v5399 = vunpack.c.l.b16 %v834
        %v5400 = vunpack.c.h.b16 %v834
        %v5401 = vunpack.c.l.b16 %v835
        %v5402 = vunpack.c.h.b16 %v835
        %v5403 = vunpack.c.l.b16 %v836
        %v5404 = vunpack.c.h.b16 %v836
        %v5405 = vunpack.c.l.b16 %v837
        %v5406 = vunpack.c.h.b16 %v837
        %v5407 = vunpack.c.l.b16 %v838
        %v5408 = vunpack.c.h.b16 %v838
        %v5409 = vunpack.c.l.b16 %v839
        %v5410 = vunpack.c.h.b16 %v839
        %v5411 = vunpack.c.l.b16 %v840
        %v5412 = vunpack.c.h.b16 %v840
        %v5413 = vunpack.c.l.b16 %v841
        %v5414 = vunpack.c.h.b16 %v841
        %v5415 = vunpack.c.l.b16 %v842
        %v5416 = vunpack.c.h.b16 %v842
        %v5417 = vunpack.c.l.b16 %v843
        %v5418 = vunpack.c.h.b16 %v843
        %v5419 = vunpack.c.l.b16 %v844
        %v5420 = vunpack.c.h.b16 %v844
        %v5421 = vunpack.c.l.b16 %v845
        %v5422 = vunpack.c.h.b16 %v845
        %v5423 = vunpack.c.l.b16 %v846
        %v5424 = vunpack.c.h.b16 %v846
        %v5425 = vunpack.c.l.b16 %v847
        %v5426 = vunpack.c.h.b16 %v847
        %v5427 = vunpack.c.l.b16 %v848
        %v5428 = vunpack.c.h.b16 %v848
        %v5429 = vunpack.c.l.b16 %v849
        %v5430 = vunpack.c.h.b16 %v849
        %v5431 = vunpack.c.l.b16 %v850
        %v5432 = vunpack.c.h.b16 %v850
        %v5433 = vunpack.c.l.b16 %v851
        %v5434 = vunpack.c.h.b16 %v851
        %v5435 = vunpack.c.l.b16 %v852
        %v5436 = vunpack.c.h.b16 %v852
        %v5437 = vunpack.c.l.b16 %v853
        %v5438 = vunpack.c.h.b16 %v853
        %v5439 = vunpack.c.l.b16 %v854
        %v5440 = vunpack.c.h.b16 %v854
        %v5441 = vunpack.c.l.b16 %v855
        %v5442 = vunpack.c.h.b16 %v855
        %v5443 = vunpack.c.l.b16 %v856
        %v5444 = vunpack.c.h.b16 %v856
        %v5445 = vunpack.c.l.b16 %v857
        %v5446 = vunpack.c.h.b16 %v857
        %v5447 = vunpack.c.l.b16 %v858
        %v5448 = vunpack.c.h.b16 %v858
        %v5449 = vunpack.c.l.b16 %v859
        %v5450 = vunpack.c.h.b16 %v859
        %v5451 = vunpack.c.l.b16 %v860
        %v5452 = vunpack.c.h.b16 %v860
        %v5453 = vunpack.c.l.b16 %v861
        %v5454 = vunpack.c.h.b16 %v861
        %v5455 = vunpack.c.l.b16 %v862
        %v5456 = vunpack.c.h.b16 %v862
        %v5457 = vunpack.c.l.b16 %v863
        %v5458 = vunpack.c.h.b16 %v863
        %v5459 = vunpack.c.l.b16 %v864
        %v5460 = vunpack.c.h.b16 %v864
        %v5461 = vunpack.c.l.b16 %v865
        %v5462 = vunpack.c.h.b16 %v865
        %v5463 = vunpack.c.l.b16 %v866
        %v5464 = vunpack.c.h.b16 %v866
        %v5465 = vunpack.c.l.b16 %v867
        %v5466 = vunpack.c.h.b16 %v867
        %v5467 = vunpack.c.l.b16 %v868
        %v5468 = vunpack.c.h.b16 %v868
        %v5469 = vunpack.c.l.b16 %v869
        %v5470 = vunpack.c.h.b16 %v869
        %v5471 = vunpack.c.l.b16 %v870
        %v5472 = vunpack.c.h.b16 %v870
        %v5473 = vunpack.c.l.b16 %v871
        %v5474 = vunpack.c.h.b16 %v871
        %v5475 = vunpack.c.l.b16 %v872
        %v5476 = vunpack.c.h.b16 %v872
        %v5477 = vunpack.c.l.b16 %v873
        %v5478 = vunpack.c.h.b16 %v873
        %v5479 = vunpack.c.l.b16 %v874
        %v5480 = vunpack.c.h.b16 %v874
        %v5481 = vunpack.c.l.b16 %v875
        %v5482 = vunpack.c.h.b16 %v875
        %v5483 = vunpack.c.l.b16 %v876
        %v5484 = vunpack.c.h.b16 %v876
        %v5485 = vunpack.c.l.b16 %v877
        %v5486 = vunpack.c.h.b16 %v877
        %v5487 = vunpack.c.l.b16 %v878
        %v5488 = vunpack.c.h.b16 %v878
        %v5489 = vunpack.c.l.b16 %v879
        %v5490 = vunpack.c.h.b16 %v879
        %v5491 = vunpack.c.l.b16 %v880
        %v5492 = vunpack.c.h.b16 %v880
        %v5493 = vunpack.c.l.b16 %v881
        %v5494 = vunpack.c.h.b16 %v881
        %v5495 = vunpack.c.l.b16 %v882
        %v5496 = vunpack.c.h.b16 %v882
        %v5497 = vunpack.c.l.b16 %v883
        %v5498 = vunpack.c.h.b16 %v883
        %v5499 = vunpack.c.l.b16 %v884
        %v5500 = vunpack.c.h.b16 %v884
        %v5501 = vunpack.c.l.b16 %v885
        %v5502 = vunpack.c.h.b16 %v885
        %v5503 = vunpack.c.l.b16 %v886
        %v5504 = vunpack.c.h.b16 %v886
        %v5505 = vunpack.c.l.b16 %v887
        %v5506 = vunpack.c.h.b16 %v887
        %v5507 = vunpack.c.l.b16 %v888
        %v5508 = vunpack.c.h.b16 %v888
        %v5509 = vunpack.c.l.b16 %v889
        %v5510 = vunpack.c.h.b16 %v889
        %v5511 = vunpack.c.l.b16 %v890
        %v5512 = vunpack.c.h.b16 %v890
        %v5513 = vunpack.c.l.b16 %v891
        %v5514 = vunpack.c.h.b16 %v891
        %v5515 = vunpack.c.l.b16 %v892
        %v5516 = vunpack.c.h.b16 %v892
        %v5517 = vunpack.c.l.b16 %v893
        %v5518 = vunpack.c.h.b16 %v893
        %v5519 = vunpack.c.l.b16 %v894
        %v5520 = vunpack.c.h.b16 %v894
        %v5521 = vunpack.c.l.b16 %v895
        %v5522 = vunpack.c.h.b16 %v895
        %v5523 = vunpack.c.l.b16 %v896
        %v5524 = vunpack.c.h.b16 %v896
        %v5525 = vunpack.c.l.b16 %v897
        %v5526 = vunpack.c.h.b16 %v897
        %v5527 = vunpack.c.l.b16 %v898
        %v5528 = vunpack.c.h.b16 %v898
        %v5529 = vunpack.c.l.b16 %v899
        %v5530 = vunpack.c.h.b16 %v899
        %v5531 = vunpack.c.l.b16 %v900
        %v5532 = vunpack.c.h.b16 %v900
        %v5533 = vunpack.c.l.b16 %v901
        %v5534 = vunpack.c.h.b16 %v901
        %v5535 = vunpack.c.l.b16 %v902
        %v5536 = vunpack.c.h.b16 %v902
        %v5537 = vunpack.c.l.b16 %v903
        %v5538 = vunpack.c.h.b16 %v903
        %v5539 = vunpack.c.l.b16 %v904
        %v5540 = vunpack.c.h.b16 %v904
        %v5541 = vunpack.c.l.b16 %v905
        %v5542 = vunpack.c.h.b16 %v905
        %v5543 = vunpack.c.l.b16 %v906
        %v5544 = vunpack.c.h.b16 %v906
        %v5545 = vunpack.c.l.b16 %v907
        %v5546 = vunpack.c.h.b16 %v907
        %v5547 = vunpack.c.l.b16 %v908
        %v5548 = vunpack.c.h.b16 %v908
        %v5549 = vunpack.c.l.b16 %v909
        %v5550 = vunpack.c.h.b16 %v909
        %v5551 = vunpack.c.l.b16 %v910
        %v5552 = vunpack.c.h.b16 %v910
        %v5553 = vunpack.c.l.b16 %v911
        %v5554 = vunpack.c.h.b16 %v911
        %v5555 = vunpack.c.l.b16 %v912
        %v5556 = vunpack.c.h.b16 %v912
        %v5557 = vunpack.c.l.b16 %v913
        %v5558 = vunpack.c.h.b16 %v913
        %v5559 = vunpack.c.l.b16 %v914
        %v5560 = vunpack.c.h.b16 %v914
        %v5561 = vunpack.c.l.b16 %v915
        %v5562 = vunpack.c.h.b16 %v915
        %v5563 = vunpack.c.l.b16 %v916
        %v5564 = vunpack.c.h.b16 %v916
        %v5565 = vunpack.c.l.b16 %v917
        %v5566 = vunpack.c.h.b16 %v917
        %v5567 = vunpack.c.l.b16 %v918
        %v5568 = vunpack.c.h.b16 %v918
        %v5569 = vunpack.c.l.b16 %v919
        %v5570 = vunpack.c.h.b16 %v919
        %v5571 = vunpack.c.l.b16 %v920
        %v5572 = vunpack.c.h.b16 %v920
        %v5573 = vunpack.c.l.b16 %v921
        %v5574 = vunpack.c.h.b16 %v921
        %v5575 = vunpack.c.l.b16 %v922
        %v5576 = vunpack.c.h.b16 %v922
        %v5577 = vunpack.c.l.b16 %v923
        %v5578 = vunpack.c.h.b16 %v923
        %v5579 = vunpack.c.l.b16 %v924
        %v5580 = vunpack.c.h.b16 %v924
        %v5581 = vunpack.c.l.b16 %v925
        %v5582 = vunpack.c.h.b16 %v925
        %v5583 = vunpack.c.l.b16 %v926
        %v5584 = vunpack.c.h.b16 %v926
        %v5585 = vunpack.c.l.b16 %v927
        %v5586 = vunpack.c.h.b16 %v927
        %v5587 = vunpack.c.l.b16 %v928
        %v5588 = vunpack.c.h.b16 %v928
        %v5589 = vunpack.c.l.b16 %v929
        %v5590 = vunpack.c.h.b16 %v929
        %v5591 = vunpack.c.l.b16 %v930
        %v5592 = vunpack.c.h.b16 %v930
        %v5593 = vunpack.c.l.b16 %v931
        %v5594 = vunpack.c.h.b16 %v931
        %v5595 = vunpack.c.l.b16 %v932
        %v5596 = vunpack.c.h.b16 %v932
        %v5597 = vunpack.c.l.b16 %v933
        %v5598 = vunpack.c.h.b16 %v933
        %v5599 = vunpack.c.l.b16 %v934
        %v5600 = vunpack.c.h.b16 %v934
        %v5601 = vunpack.c.l.b16 %v935
        %v5602 = vunpack.c.h.b16 %v935
        %v5603 = vunpack.c.l.b16 %v936
        %v5604 = vunpack.c.h.b16 %v936
        %v5605 = vunpack.c.l.b16 %v937
        %v5606 = vunpack.c.h.b16 %v937
        %v5607 = vunpack.c.l.b16 %v938
        %v5608 = vunpack.c.h.b16 %v938
        %v5609 = vunpack.c.l.b16 %v939
        %v5610 = vunpack.c.h.b16 %v939
        %v5611 = vunpack.c.l.b16 %v940
        %v5612 = vunpack.c.h.b16 %v940
        %v5613 = vunpack.c.l.b16 %v941
        %v5614 = vunpack.c.h.b16 %v941
        %v5615 = vunpack.c.l.b16 %v942
        %v5616 = vunpack.c.h.b16 %v942
        %v5617 = vunpack.c.l.b16 %v943
        %v5618 = vunpack.c.h.b16 %v943
        %v5619 = vunpack.c.l.b16 %v944
        %v5620 = vunpack.c.h.b16 %v944
        %v5621 = vunpack.c.l.b16 %v945
        %v5622 = vunpack.c.h.b16 %v945
        %v5623 = vunpack.c.l.b16 %v946
        %v5624 = vunpack.c.h.b16 %v946
        %v5625 = vunpack.c.l.b16 %v947
        %v5626 = vunpack.c.h.b16 %v947
        %v5627 = vunpack.c.l.b16 %v948
        %v5628 = vunpack.c.h.b16 %v948
        %v5629 = vunpack.c.l.b16 %v949
        %v5630 = vunpack.c.h.b16 %v949
        %v5631 = vunpack.c.l.b16 %v950
        %v5632 = vunpack.c.h.b16 %v950
        %v5633 = vunpack.c.l.b16 %v951
        %v5634 = vunpack.c.h.b16 %v951
        %v5635 = vunpack.c.l.b16 %v952
        %v5636 = vunpack.c.h.b16 %v952
        %v5637 = vunpack.c.l.b16 %v953
        %v5638 = vunpack.c.h.b16 %v953
        %v5639 = vunpack.c.l.b16 %v954
        %v5640 = vunpack.c.h.b16 %v954
        %v5641 = vunpack.c.l.b16 %v955
        %v5642 = vunpack.c.h.b16 %v955
        %v5643 = vunpack.c.l.b16 %v956
        %v5644 = vunpack.c.h.b16 %v956
        %v5645 = vunpack.c.l.b16 %v957
        %v5646 = vunpack.c.h.b16 %v957
        %v5647 = vunpack.c.l.b16 %v958
        %v5648 = vunpack.c.h.b16 %v958
        %v5649 = vunpack.c.l.b16 %v959
        %v5650 = vunpack.c.h.b16 %v959
        %v5651 = vunpack.c.l.b16 %v960
        %v5652 = vunpack.c.h.b16 %v960
        %v5653 = vunpack.c.l.b16 %v961
        %v5654 = vunpack.c.h.b16 %v961
        %v5655 = vunpack.c.l.b16 %v962
        %v5656 = vunpack.c.h.b16 %v962
        %v5657 = vunpack.c.l.b16 %v963
        %v5658 = vunpack.c.h.b16 %v963
        %v5659 = vunpack.c.l.b16 %v964
        %v5660 = vunpack.c.h.b16 %v964
        %v5661 = vunpack.c.l.b16 %v965
        %v5662 = vunpack.c.h.b16 %v965
        %v5663 = vunpack.c.l.b16 %v966
        %v5664 = vunpack.c.h.b16 %v966
        %v5665 = vunpack.c.l.b16 %v967
        %v5666 = vunpack.c.h.b16 %v967
        %v5667 = vunpack.c.l.b16 %v968
        %v5668 = vunpack.c.h.b16 %v968
        %v5669 = vunpack.c.l.b16 %v969
        %v5670 = vunpack.c.h.b16 %v969
        %v5671 = vunpack.c.l.b16 %v970
        %v5672 = vunpack.c.h.b16 %v970
        %v5673 = vunpack.c.l.b16 %v971
        %v5674 = vunpack.c.h.b16 %v971
        %v5675 = vunpack.c.l.b16 %v972
        %v5676 = vunpack.c.h.b16 %v972
        %v5677 = vunpack.c.l.b16 %v973
        %v5678 = vunpack.c.h.b16 %v973
        %v5679 = vunpack.c.l.b16 %v974
        %v5680 = vunpack.c.h.b16 %v974
        %v5681 = vunpack.c.l.b16 %v975
        %v5682 = vunpack.c.h.b16 %v975
        %v5683 = vunpack.c.l.b16 %v976
        %v5684 = vunpack.c.h.b16 %v976
        %v5685 = vunpack.c.l.b16 %v977
        %v5686 = vunpack.c.h.b16 %v977
        %v5687 = vunpack.c.l.b16 %v978
        %v5688 = vunpack.c.h.b16 %v978
        %v5689 = vunpack.c.l.b16 %v979
        %v5690 = vunpack.c.h.b16 %v979
        %v5691 = vunpack.c.l.b16 %v980
        %v5692 = vunpack.c.h.b16 %v980
        %v5693 = vunpack.c.l.b16 %v981
        %v5694 = vunpack.c.h.b16 %v981
        %v5695 = vunpack.c.l.b16 %v982
        %v5696 = vunpack.c.h.b16 %v982
        %v5697 = vunpack.c.l.b16 %v983
        %v5698 = vunpack.c.h.b16 %v983
        %v5699 = vunpack.c.l.b16 %v984
        %v5700 = vunpack.c.h.b16 %v984
        %v5701 = vunpack.c.l.b16 %v985
        %v5702 = vunpack.c.h.b16 %v985
        %v5703 = vunpack.c.l.b16 %v986
        %v5704 = vunpack.c.h.b16 %v986
        %v5705 = vunpack.c.l.b16 %v987
        %v5706 = vunpack.c.h.b16 %v987
        %v5707 = vunpack.c.l.b16 %v988
        %v5708 = vunpack.c.h.b16 %v988
        %v5709 = vunpack.c.l.b16 %v989
        %v5710 = vunpack.c.h.b16 %v989
        %v5711 = vunpack.c.l.b16 %v990
        %v5712 = vunpack.c.h.b16 %v990
        %v5713 = vunpack.c.l.b16 %v991
        %v5714 = vunpack.c.h.b16 %v991
        %v5715 = vunpack.c.l.b16 %v992
        %v5716 = vunpack.c.h.b16 %v992
        %v5717 = vunpack.c.l.b16 %v993
        %v5718 = vunpack.c.h.b16 %v993
        %v5719 = vunpack.c.l.b16 %v994
        %v5720 = vunpack.c.h.b16 %v994
        %v5721 = vunpack.c.l.b16 %v995
        %v5722 = vunpack.c.h.b16 %v995
        %v5723 = vunpack.c.l.b16 %v996
        %v5724 = vunpack.c.h.b16 %v996
        %v5725 = vunpack.c.l.b16 %v997
        %v5726 = vunpack.c.h.b16 %v997
        %v5727 = vunpack.c.l.b16 %v998
        %v5728 = vunpack.c.h.b16 %v998
        %v5729 = vunpack.c.l.b16 %v999
        %v5730 = vunpack.c.h.b16 %v999
        %v5731 = vunpack.c.l.b16 %v1000
        %v5732 = vunpack.c.h.b16 %v1000
        %v5733 = vunpack.c.l.b16 %v1001
        %v5734 = vunpack.c.h.b16 %v1001
        %v5735 = vunpack.c.l.b16 %v1002
        %v5736 = vunpack.c.h.b16 %v1002
        %v5737 = vunpack.c.l.b16 %v1003
        %v5738 = vunpack.c.h.b16 %v1003
        %v5739 = vunpack.c.l.b16 %v1004
        %v5740 = vunpack.c.h.b16 %v1004
        %v5741 = vunpack.c.l.b16 %v1005
        %v5742 = vunpack.c.h.b16 %v1005
        %v5743 = vunpack.c.l.b16 %v1006
        %v5744 = vunpack.c.h.b16 %v1006
        %v5745 = vunpack.c.l.b16 %v1007
        %v5746 = vunpack.c.h.b16 %v1007
        %v5747 = vunpack.c.l.b16 %v1008
        %v5748 = vunpack.c.h.b16 %v1008
        %v5749 = vunpack.c.l.b16 %v1009
        %v5750 = vunpack.c.h.b16 %v1009
        %v5751 = vunpack.c.l.b16 %v1010
        %v5752 = vunpack.c.h.b16 %v1010
        %v5753 = vunpack.c.l.b16 %v1011
        %v5754 = vunpack.c.h.b16 %v1011
        %v5755 = vunpack.c.l.b16 %v1012
        %v5756 = vunpack.c.h.b16 %v1012
        %v5757 = vunpack.c.l.b16 %v1013
        %v5758 = vunpack.c.h.b16 %v1013
        %v5759 = vunpack.c.l.b16 %v1014
        %v5760 = vunpack.c.h.b16 %v1014
        %v5761 = vunpack.c.l.b16 %v1015
        %v5762 = vunpack.c.h.b16 %v1015
        %v5763 = vunpack.c.l.b16 %v1016
        %v5764 = vunpack.c.h.b16 %v1016
        %v5765 = vunpack.c.l.b16 %v1017
        %v5766 = vunpack.c.h.b16 %v1017
        %v5767 = vunpack.c.l.b16 %v1018
        %v5768 = vunpack.c.h.b16 %v1018
        %v5769 = vunpack.c.l.b16 %v1019
        %v5770 = vunpack.c.h.b16 %v1019
        %v5771 = vunpack.c.l.b16 %v1020
        %v5772 = vunpack.c.h.b16 %v1020
        %v5773 = vunpack.c.l.b16 %v1021
        %v5774 = vunpack.c.h.b16 %v1021
        %v5775 = vunpack.c.l.b16 %v1022
        %v5776 = vunpack.c.h.b16 %v1022
        %v5777 = vunpack.c.l.b16 %v1023
        %v5778 = vunpack.c.h.b16 %v1023
        %v5779 = vunpack.c.l.b16 %v1024
        %v5780 = vunpack.c.h.b16 %v1024
        %v5781 = vunpack.c.l.b16 %v1025
        %v5782 = vunpack.c.h.b16 %v1025
        %v5783 = vunpack.c.l.b16 %v1026
        %v5784 = vunpack.c.h.b16 %v1026
        %v5785 = vunpack.c.l.b16 %v1027
        %v5786 = vunpack.c.h.b16 %v1027
        %v5787 = vunpack.c.l.b16 %v1028
        %v5788 = vunpack.c.h.b16 %v1028
        %v5789 = vunpack.c.l.b16 %v1029
        %v5790 = vunpack.c.h.b16 %v1029
        %v5791 = vunpack.c.l.b16 %v1030
        %v5792 = vunpack.c.h.b16 %v1030
        %v5793 = vunpack.c.l.b16 %v1031
        %v5794 = vunpack.c.h.b16 %v1031
        %v5795 = vunpack.c.l.b16 %v1032
        %v5796 = vunpack.c.h.b16 %v1032
        %v5797 = vunpack.c.l.b16 %v1033
        %v5798 = vunpack.c.h.b16 %v1033
        %v5799 = vunpack.c.l.b16 %v1034
        %v5800 = vunpack.c.h.b16 %v1034
        %v5801 = vunpack.c.l.b16 %v1035
        %v5802 = vunpack.c.h.b16 %v1035
        %v5803 = vunpack.c.l.b16 %v1036
        %v5804 = vunpack.c.h.b16 %v1036
        %v5805 = vunpack.c.l.b16 %v1037
        %v5806 = vunpack.c.h.b16 %v1037
        %v5807 = vunpack.c.l.b16 %v1038
        %v5808 = vunpack.c.h.b16 %v1038
        %v5809 = vunpack.c.l.b16 %v1039
        %v5810 = vunpack.c.h.b16 %v1039
        %v5811 = vunpack.c.l.b16 %v1040
        %v5812 = vunpack.c.h.b16 %v1040
        %v5813 = vunpack.c.l.b16 %v1041
        %v5814 = vunpack.c.h.b16 %v1041
        %v5815 = vunpack.c.l.b16 %v1042
        %v5816 = vunpack.c.h.b16 %v1042
        %v5817 = vunpack.c.l.b16 %v1043
        %v5818 = vunpack.c.h.b16 %v1043
        %v5819 = vunpack.c.l.b16 %v1044
        %v5820 = vunpack.c.h.b16 %v1044
        %v5821 = vunpack.c.l.b16 %v1045
        %v5822 = vunpack.c.h.b16 %v1045
        %v5823 = vunpack.c.l.b16 %v1046
        %v5824 = vunpack.c.h.b16 %v1046
        %v5825 = vunpack.c.l.b16 %v1047
        %v5826 = vunpack.c.h.b16 %v1047
        %v5827 = vunpack.c.l.b16 %v1048
        %v5828 = vunpack.c.h.b16 %v1048
        %v5829 = vunpack.c.l.b16 %v1049
        %v5830 = vunpack.c.h.b16 %v1049
        %v5831 = vunpack.c.l.b16 %v1050
        %v5832 = vunpack.c.h.b16 %v1050
        %v5833 = vunpack.c.l.b16 %v1051
        %v5834 = vunpack.c.h.b16 %v1051
        %v5835 = vunpack.c.l.b16 %v1052
        %v5836 = vunpack.c.h.b16 %v1052
        %v5837 = vunpack.c.l.b16 %v1053
        %v5838 = vunpack.c.h.b16 %v1053
        %v5839 = vunpack.c.l.b16 %v1054
        %v5840 = vunpack.c.h.b16 %v1054
        %v5841 = vunpack.c.l.b16 %v1055
        %v5842 = vunpack.c.h.b16 %v1055
        %v5843 = vunpack.c.l.b16 %v1056
        %v5844 = vunpack.c.h.b16 %v1056
        %v5845 = vunpack.c.l.b16 %v1057
        %v5846 = vunpack.c.h.b16 %v1057
        %v5847 = vunpack.c.l.b16 %v1058
        %v5848 = vunpack.c.h.b16 %v1058
        %v5849 = vunpack.c.l.b16 %v1059
        %v5850 = vunpack.c.h.b16 %v1059
        %v5851 = vunpack.c.l.b16 %v1060
        %v5852 = vunpack.c.h.b16 %v1060
        %v5853 = vunpack.c.l.b16 %v1061
        %v5854 = vunpack.c.h.b16 %v1061
        %v5855 = vunpack.c.l.b16 %v1062
        %v5856 = vunpack.c.h.b16 %v1062
        %v5857 = vunpack.c.l.b16 %v1063
        %v5858 = vunpack.c.h.b16 %v1063
        %v5859 = vunpack.c.l.b16 %v1064
        %v5860 = vunpack.c.h.b16 %v1064
        %v5861 = vunpack.c.l.b16 %v1065
        %v5862 = vunpack.c.h.b16 %v1065
        %v5863 = vunpack.c.l.b16 %v1066
        %v5864 = vunpack.c.h.b16 %v1066
        %v5865 = vunpack.c.l.b16 %v1067
        %v5866 = vunpack.c.h.b16 %v1067
        %v5867 = vunpack.c.l.b16 %v1068
        %v5868 = vunpack.c.h.b16 %v1068
        %v5869 = vunpack.c.l.b16 %v1069
        %v5870 = vunpack.c.h.b16 %v1069
        %v5871 = vunpack.c.l.b16 %v1070
        %v5872 = vunpack.c.h.b16 %v1070
        %v5873 = vunpack.c.l.b16 %v1071
        %v5874 = vunpack.c.h.b16 %v1071
        %v5875 = vunpack.c.l.b16 %v1072
        %v5876 = vunpack.c.h.b16 %v1072
        %v5877 = vunpack.c.l.b16 %v1073
        %v5878 = vunpack.c.h.b16 %v1073
        %v5879 = vunpack.c.l.b16 %v1074
        %v5880 = vunpack.c.h.b16 %v1074
        %v5881 = vunpack.c.l.b16 %v1075
        %v5882 = vunpack.c.h.b16 %v1075
        %v5883 = vunpack.c.l.b16 %v1076
        %v5884 = vunpack.c.h.b16 %v1076
        %v5885 = vunpack.c.l.b16 %v1077
        %v5886 = vunpack.c.h.b16 %v1077
        %v5887 = vunpack.c.l.b16 %v1078
        %v5888 = vunpack.c.h.b16 %v1078
        %v5889 = vunpack.c.l.b16 %v1079
        %v5890 = vunpack.c.h.b16 %v1079
        %v5891 = vunpack.c.l.b16 %v1080
        %v5892 = vunpack.c.h.b16 %v1080
        %v5893 = vunpack.c.l.b16 %v1081
        %v5894 = vunpack.c.h.b16 %v1081
        %v5895 = vunpack.c.l.b16 %v1082
        %v5896 = vunpack.c.h.b16 %v1082
        %v5897 = vunpack.c.l.b16 %v1083
        %v5898 = vunpack.c.h.b16 %v1083
        %v5899 = vunpack.c.l.b16 %v1084
        %v5900 = vunpack.c.h.b16 %v1084
        %v5901 = vunpack.c.l.b16 %v1085
        %v5902 = vunpack.c.h.b16 %v1085
        %v5903 = vunpack.c.l.b16 %v1086
        %v5904 = vunpack.c.h.b16 %v1086
        %v5905 = vunpack.c.l.b16 %v1087
        %v5906 = vunpack.c.h.b16 %v1087
        %v5907 = vunpack.c.l.b16 %v1088
        %v5908 = vunpack.c.h.b16 %v1088
        %v5909 = vunpack.c.l.b16 %v1089
        %v5910 = vunpack.c.h.b16 %v1089
        %v5911 = vunpack.c.l.b16 %v1090
        %v5912 = vunpack.c.h.b16 %v1090
        %v5913 = vunpack.c.l.b16 %v1091
        %v5914 = vunpack.c.h.b16 %v1091
        %v5915 = vunpack.c.l.b16 %v1092
        %v5916 = vunpack.c.h.b16 %v1092
        %v5917 = vunpack.c.l.b16 %v1093
        %v5918 = vunpack.c.h.b16 %v1093
        %v5919 = vunpack.c.l.b16 %v1094
        %v5920 = vunpack.c.h.b16 %v1094
        %v5921 = vunpack.c.l.b16 %v1095
        %v5922 = vunpack.c.h.b16 %v1095
        %v5923 = vunpack.c.l.b16 %v1096
        %v5924 = vunpack.c.h.b16 %v1096
        %v5925 = vunpack.c.l.b16 %v1097
        %v5926 = vunpack.c.h.b16 %v1097
        %v5927 = vunpack.c.l.b16 %v1098
        %v5928 = vunpack.c.h.b16 %v1098
        %v5929 = vunpack.c.l.b16 %v1099
        %v5930 = vunpack.c.h.b16 %v1099
        %v5931 = vunpack.c.l.b16 %v1100
        %v5932 = vunpack.c.h.b16 %v1100
        %v5933 = vunpack.c.l.b16 %v1101
        %v5934 = vunpack.c.h.b16 %v1101
        %v5935 = vunpack.c.l.b16 %v1102
        %v5936 = vunpack.c.h.b16 %v1102
        %v5937 = vunpack.c.l.b16 %v1103
        %v5938 = vunpack.c.h.b16 %v1103
        %v5939 = vunpack.c.l.b16 %v1104
        %v5940 = vunpack.c.h.b16 %v1104
        %v5941 = vunpack.c.l.b16 %v1105
        %v5942 = vunpack.c.h.b16 %v1105
        %v5943 = vunpack.c.l.b16 %v1106
        %v5944 = vunpack.c.h.b16 %v1106
        %v5945 = vunpack.c.l.b16 %v1107
        %v5946 = vunpack.c.h.b16 %v1107
        %v5947 = vunpack.c.l.b16 %v1108
        %v5948 = vunpack.c.h.b16 %v1108
        %v5949 = vunpack.c.l.b16 %v1109
        %v5950 = vunpack.c.h.b16 %v1109
        %v5951 = vunpack.c.l.b16 %v1110
        %v5952 = vunpack.c.h.b16 %v1110
        %v5953 = vunpack.c.l.b16 %v1111
        %v5954 = vunpack.c.h.b16 %v1111
        %v5955 = vunpack.c.l.b16 %v1112
        %v5956 = vunpack.c.h.b16 %v1112
        %v5957 = vunpack.c.l.b16 %v1113
        %v5958 = vunpack.c.h.b16 %v1113
        %v5959 = vunpack.c.l.b16 %v1114
        %v5960 = vunpack.c.h.b16 %v1114
        %v5961 = vunpack.c.l.b16 %v1115
        %v5962 = vunpack.c.h.b16 %v1115
        %v5963 = vunpack.c.l.b16 %v1116
        %v5964 = vunpack.c.h.b16 %v1116
        %v5965 = vunpack.c.l.b16 %v1117
        %v5966 = vunpack.c.h.b16 %v1117
        %v5967 = vunpack.c.l.b16 %v1118
        %v5968 = vunpack.c.h.b16 %v1118
        %v5969 = vunpack.c.l.b16 %v1119
        %v5970 = vunpack.c.h.b16 %v1119
        %v5971 = vunpack.c.l.b16 %v1120
        %v5972 = vunpack.c.h.b16 %v1120
        %v5973 = vunpack.c.l.b16 %v1121
        %v5974 = vunpack.c.h.b16 %v1121
        %v5975 = vunpack.c.l.b16 %v1122
        %v5976 = vunpack.c.h.b16 %v1122
        %v5977 = vunpack.c.l.b16 %v1123
        %v5978 = vunpack.c.h.b16 %v1123
        %v5979 = vunpack.c.l.b16 %v1124
        %v5980 = vunpack.c.h.b16 %v1124
        %v5981 = vunpack.c.l.b16 %v1125
        %v5982 = vunpack.c.h.b16 %v1125
        %v5983 = vunpack.c.l.b16 %v1126
        %v5984 = vunpack.c.h.b16 %v1126
        %v5985 = vunpack.c.l.b16 %v1127
        %v5986 = vunpack.c.h.b16 %v1127
        %v5987 = vunpack.c.l.b16 %v1128
        %v5988 = vunpack.c.h.b16 %v1128
        %v5989 = vunpack.c.l.b16 %v1129
        %v5990 = vunpack.c.h.b16 %v1129
        %v5991 = vunpack.c.l.b16 %v1130
        %v5992 = vunpack.c.h.b16 %v1130
        %v5993 = vunpack.c.l.b16 %v1131
        %v5994 = vunpack.c.h.b16 %v1131
        %v5995 = vunpack.c.l.b16 %v1132
        %v5996 = vunpack.c.h.b16 %v1132
        %v5997 = vunpack.c.l.b16 %v1133
        %v5998 = vunpack.c.h.b16 %v1133
        %v5999 = vunpack.c.l.b16 %v1134
        %v6000 = vunpack.c.h.b16 %v1134
        %v6001 = vunpack.c.l.b16 %v1135
        %v6002 = vunpack.c.h.b16 %v1135
        %v6003 = vunpack.c.l.b16 %v1136
        %v6004 = vunpack.c.h.b16 %v1136
        %v6005 = vunpack.c.l.b16 %v1137
        %v6006 = vunpack.c.h.b16 %v1137
        %v6007 = vunpack.c.l.b16 %v1138
        %v6008 = vunpack.c.h.b16 %v1138
        %v6009 = vunpack.c.l.b16 %v1139
        %v6010 = vunpack.c.h.b16 %v1139
        %v6011 = vunpack.c.l.b16 %v1140
        %v6012 = vunpack.c.h.b16 %v1140
        %v6013 = vunpack.c.l.b16 %v1141
        %v6014 = vunpack.c.h.b16 %v1141
        %v6015 = vunpack.c.l.b16 %v1142
        %v6016 = vunpack.c.h.b16 %v1142
        %v6017 = vunpack.c.l.b16 %v1143
        %v6018 = vunpack.c.h.b16 %v1143
        %v6019 = vunpack.c.l.b16 %v1144
        %v6020 = vunpack.c.h.b16 %v1144
        %v6021 = vunpack.c.l.b16 %v1145
        %v6022 = vunpack.c.h.b16 %v1145
        %v6023 = vunpack.c.l.b16 %v1146
        %v6024 = vunpack.c.h.b16 %v1146
        %v6025 = vunpack.c.l.b16 %v1147
        %v6026 = vunpack.c.h.b16 %v1147
        %v6027 = vunpack.c.l.b16 %v1148
        %v6028 = vunpack.c.h.b16 %v1148
        %v6029 = vunpack.c.l.b16 %v1149
        %v6030 = vunpack.c.h.b16 %v1149
        %v6031 = vunpack.c.l.b16 %v1150
        %v6032 = vunpack.c.h.b16 %v1150
        %v6033 = vunpack.c.l.b16 %v1151
        %v6034 = vunpack.c.h.b16 %v1151
        %v6035 = vunpack.c.l.b16 %v1152
        %v6036 = vunpack.c.h.b16 %v1152
        %v6037 = vunpack.c.l.b16 %v1153
        %v6038 = vunpack.c.h.b16 %v1153
        %v6039 = vunpack.c.l.b16 %v1154
        %v6040 = vunpack.c.h.b16 %v1154
        %v6041 = vunpack.c.l.b16 %v1155
        %v6042 = vunpack.c.h.b16 %v1155
        %v6043 = vunpack.c.l.b16 %v1156
        %v6044 = vunpack.c.h.b16 %v1156
        %v6045 = vunpack.c.l.b16 %v1157
        %v6046 = vunpack.c.h.b16 %v1157
        %v6047 = vunpack.c.l.b16 %v1158
        %v6048 = vunpack.c.h.b16 %v1158
        %v6049 = vunpack.c.l.b16 %v1159
        %v6050 = vunpack.c.h.b16 %v1159
        %v6051 = vunpack.c.l.b16 %v1160
        %v6052 = vunpack.c.h.b16 %v1160
        %v6053 = vunpack.c.l.b16 %v1161
        %v6054 = vunpack.c.h.b16 %v1161
        %v6055 = vunpack.c.l.b16 %v1162
        %v6056 = vunpack.c.h.b16 %v1162
        %v6057 = vunpack.c.l.b16 %v1163
        %v6058 = vunpack.c.h.b16 %v1163
        %v6059 = vunpack.c.l.b16 %v1164
        %v6060 = vunpack.c.h.b16 %v1164
        %v6061 = vunpack.c.l.b16 %v1165
        %v6062 = vunpack.c.h.b16 %v1165
        %v6063 = vunpack.c.l.b16 %v1166
        %v6064 = vunpack.c.h.b16 %v1166
        %v6065 = vunpack.c.l.b16 %v1167
        %v6066 = vunpack.c.h.b16 %v1167
        %v6067 = vunpack.c.l.b16 %v1168
        %v6068 = vunpack.c.h.b16 %v1168
        %v6069 = vunpack.c.l.b16 %v1169
        %v6070 = vunpack.c.h.b16 %v1169
        %v6071 = vunpack.c.l.b16 %v1170
        %v6072 = vunpack.c.h.b16 %v1170
        %v6073 = vunpack.c.l.b16 %v1171
        %v6074 = vunpack.c.h.b16 %v1171
        %v6075 = vunpack.c.l.b16 %v1172
        %v6076 = vunpack.c.h.b16 %v1172
        %v6077 = vunpack.c.l.b16 %v1173
        %v6078 = vunpack.c.h.b16 %v1173
        %v6079 = vunpack.c.l.b16 %v1174
        %v6080 = vunpack.c.h.b16 %v1174
        %v6081 = vunpack.c.l.b16 %v1175
        %v6082 = vunpack.c.h.b16 %v1175
        %v6083 = vunpack.c.l.b16 %v1176
        %v6084 = vunpack.c.h.b16 %v1176
        %v6085 = vunpack.c.l.b16 %v1177
        %v6086 = vunpack.c.h.b16 %v1177
        %v6087 = vunpack.c.l.b16 %v1178
        %v6088 = vunpack.c.h.b16 %v1178
        %v6089 = vunpack.c.l.b16 %v1179
        %v6090 = vunpack.c.h.b16 %v1179
        %v6091 = vunpack.c.l.b16 %v1180
        %v6092 = vunpack.c.h.b16 %v1180
        %v6093 = vunpack.c.l.b16 %v1181
        %v6094 = vunpack.c.h.b16 %v1181
        %v6095 = vunpack.c.l.b16 %v1182
        %v6096 = vunpack.c.h.b16 %v1182
        %v6097 = vunpack.c.l.b16 %v1183
        %v6098 = vunpack.c.h.b16 %v1183
        %v6099 = vunpack.c.l.b16 %v1184
        %v6100 = vunpack.c.h.b16 %v1184
        %v6101 = vunpack.c.l.b16 %v1185
        %v6102 = vunpack.c.h.b16 %v1185
        %v6103 = vunpack.c.l.b16 %v1186
        %v6104 = vunpack.c.h.b16 %v1186
        %v6105 = vunpack.c.l.b16 %v1187
        %v6106 = vunpack.c.h.b16 %v1187
        %v6107 = vunpack.c.l.b16 %v1188
        %v6108 = vunpack.c.h.b16 %v1188
        %v6109 = vunpack.c.l.b16 %v1189
        %v6110 = vunpack.c.h.b16 %v1189
        %v6111 = vunpack.c.l.b16 %v1190
        %v6112 = vunpack.c.h.b16 %v1190
        %v6113 = vunpack.c.l.b16 %v1191
        %v6114 = vunpack.c.h.b16 %v1191
        %v6115 = vunpack.c.l.b16 %v1192
        %v6116 = vunpack.c.h.b16 %v1192
        %v6117 = vunpack.c.l.b16 %v1193
        %v6118 = vunpack.c.h.b16 %v1193
        %v6119 = vunpack.c.l.b16 %v1194
        %v6120 = vunpack.c.h.b16 %v1194
        %v6121 = vunpack.c.l.b16 %v1195
        %v6122 = vunpack.c.h.b16 %v1195
        %v6123 = vunpack.c.l.b16 %v1196
        %v6124 = vunpack.c.h.b16 %v1196
        %v6125 = vunpack.c.l.b16 %v1197
        %v6126 = vunpack.c.h.b16 %v1197
        %v6127 = vunpack.c.l.b16 %v1198
        %v6128 = vunpack.c.h.b16 %v1198
        %v6129 = vunpack.c.l.b16 %v1199
        %v6130 = vunpack.c.h.b16 %v1199
        %v6131 = vunpack.c.l.b16 %v1200
        %v6132 = vunpack.c.h.b16 %v1200
        %v6133 = vunpack.c.l.b16 %v1201
        %v6134 = vunpack.c.h.b16 %v1201
        %v6135 = vunpack.c.l.b16 %v1202
        %v6136 = vunpack.c.h.b16 %v1202
        %v6137 = vunpack.c.l.b16 %v1203
        %v6138 = vunpack.c.h.b16 %v1203
        %v6139 = vunpack.c.l.b16 %v1204
        %v6140 = vunpack.c.h.b16 %v1204
        %v6141 = vunpack.c.l.b16 %v1205
        %v6142 = vunpack.c.h.b16 %v1205
        %v6143 = vunpack.c.l.b16 %v1206
        %v6144 = vunpack.c.h.b16 %v1206
        %v6145 = vunpack.c.l.b16 %v1207
        %v6146 = vunpack.c.h.b16 %v1207
        %v6147 = vunpack.c.l.b16 %v1208
        %v6148 = vunpack.c.h.b16 %v1208
        %v6149 = vunpack.c.l.b16 %v1209
        %v6150 = vunpack.c.h.b16 %v1209
        %v6151 = vunpack.c.l.b16 %v1210
        %v6152 = vunpack.c.h.b16 %v1210
        %v6153 = vunpack.c.l.b16 %v1211
        %v6154 = vunpack.c.h.b16 %v1211
        %v6155 = vunpack.c.l.b16 %v1212
        %v6156 = vunpack.c.h.b16 %v1212
        %v6157 = vunpack.c.l.b16 %v1213
        %v6158 = vunpack.c.h.b16 %v1213
        %v6159 = vunpack.c.l.b16 %v1214
        %v6160 = vunpack.c.h.b16 %v1214
        %v6161 = vunpack.c.l.b16 %v1215
        %v6162 = vunpack.c.h.b16 %v1215
        %v6163 = vunpack.c.l.b16 %v1216
        %v6164 = vunpack.c.h.b16 %v1216
        %v6165 = vunpack.c.l.b16 %v1217
        %v6166 = vunpack.c.h.b16 %v1217
        %v6167 = vunpack.c.l.b16 %v1218
        %v6168 = vunpack.c.h.b16 %v1218
        %v6169 = vunpack.c.l.b16 %v1219
        %v6170 = vunpack.c.h.b16 %v1219
        %v6171 = vunpack.c.l.b16 %v1220
        %v6172 = vunpack.c.h.b16 %v1220
        %v6173 = vunpack.c.l.b16 %v1221
        %v6174 = vunpack.c.h.b16 %v1221
        %v6175 = vunpack.c.l.b16 %v1222
        %v6176 = vunpack.c.h.b16 %v1222
        %v6177 = vunpack.c.l.b16 %v1223
        %v6178 = vunpack.c.h.b16 %v1223
        %v6179 = vunpack.c.l.b16 %v1224
        %v6180 = vunpack.c.h.b16 %v1224
        %v6181 = vunpack.c.l.b16 %v1225
        %v6182 = vunpack.c.h.b16 %v1225
        %v6183 = vunpack.c.l.b16 %v1226
        %v6184 = vunpack.c.h.b16 %v1226
        %v6185 = vunpack.c.l.b16 %v1227
        %v6186 = vunpack.c.h.b16 %v1227
        %v6187 = vunpack.c.l.b16 %v1228
        %v6188 = vunpack.c.h.b16 %v1228
        %v6189 = vunpack.c.l.b16 %v1229
        %v6190 = vunpack.c.h.b16 %v1229
        %v6191 = vunpack.c.l.b16 %v1230
        %v6192 = vunpack.c.h.b16 %v1230
        %v6193 = vunpack.c.l.b16 %v1231
        %v6194 = vunpack.c.h.b16 %v1231
        %v6195 = vunpack.c.l.b16 %v1232
        %v6196 = vunpack.c.h.b16 %v1232
        %v6197 = vunpack.c.l.b16 %v1233
        %v6198 = vunpack.c.h.b16 %v1233
        %v6199 = vunpack.c.l.b16 %v1234
        %v6200 = vunpack.c.h.b16 %v1234
        %v6201 = vunpack.c.l.b16 %v1235
        %v6202 = vunpack.c.h.b16 %v1235
        %v6203 = vunpack.c.l.b16 %v1236
        %v6204 = vunpack.c.h.b16 %v1236
        %v6205 = vunpack.c.l.b16 %v1237
        %v6206 = vunpack.c.h.b16 %v1237
        %v6207 = vunpack.c.l.b16 %v1238
        %v6208 = vunpack.c.h.b16 %v1238
        %v6209 = vunpack.c.l.b16 %v1239
        %v6210 = vunpack.c.h.b16 %v1239
        %v6211 = vunpack.c.l.b16 %v1240
        %v6212 = vunpack.c.h.b16 %v1240
        %v6213 = vunpack.c.l.b16 %v1241
        %v6214 = vunpack.c.h.b16 %v1241
        %v6215 = vunpack.c.l.b16 %v1242
        %v6216 = vunpack.c.h.b16 %v1242
        %v6217 = vunpack.c.l.b16 %v1243
        %v6218 = vunpack.c.h.b16 %v1243
        %v6219 = vunpack.c.l.b16 %v1244
        %v6220 = vunpack.c.h.b16 %v1244
        %v6221 = vunpack.c.l.b16 %v1245
        %v6222 = vunpack.c.h.b16 %v1245
        %v6223 = vunpack.c.l.b16 %v1246
        %v6224 = vunpack.c.h.b16 %v1246
        %v6225 = vunpack.c.l.b16 %v1247
        %v6226 = vunpack.c.h.b16 %v1247
        %v6227 = vunpack.c.l.b16 %v1248
        %v6228 = vunpack.c.h.b16 %v1248
        %v6229 = vunpack.c.l.b16 %v1249
        %v6230 = vunpack.c.h.b16 %v1249
        %v6231 = vunpack.c.l.b16 %v1250
        %v6232 = vunpack.c.h.b16 %v1250
        %v6233 = vunpack.c.l.b16 %v1251
        %v6234 = vunpack.c.h.b16 %v1251
        %v6235 = vunpack.c.l.b16 %v1252
        %v6236 = vunpack.c.h.b16 %v1252
        %v6237 = vunpack.c.l.b16 %v1253
        %v6238 = vunpack.c.h.b16 %v1253
        %v6239 = vunpack.c.l.b16 %v1254
        %v6240 = vunpack.c.h.b16 %v1254
        %v6241 = vunpack.c.l.b16 %v1255
        %v6242 = vunpack.c.h.b16 %v1255
        %v6243 = vunpack.c.l.b16 %v1256
        %v6244 = vunpack.c.h.b16 %v1256
        %v6245 = vunpack.c.l.b16 %v1257
        %v6246 = vunpack.c.h.b16 %v1257
        %v6247 = vunpack.c.l.b16 %v1258
        %v6248 = vunpack.c.h.b16 %v1258
        %v6249 = vunpack.c.l.b16 %v1259
        %v6250 = vunpack.c.h.b16 %v1259
        %v6251 = vunpack.c.l.b16 %v1260
        %v6252 = vunpack.c.h.b16 %v1260
        %v6253 = vunpack.c.l.b16 %v1261
        %v6254 = vunpack.c.h.b16 %v1261
        %v6255 = vunpack.c.l.b16 %v1262
        %v6256 = vunpack.c.h.b16 %v1262
        %v6257 = vunpack.c.l.b16 %v1263
        %v6258 = vunpack.c.h.b16 %v1263
        %v6259 = vunpack.c.l.b16 %v1264
        %v6260 = vunpack.c.h.b16 %v1264
        %v6261 = vunpack.c.l.b16 %v1265
        %v6262 = vunpack.c.h.b16 %v1265
        %v6263 = vunpack.c.l.b16 %v1266
        %v6264 = vunpack.c.h.b16 %v1266
        %v6265 = vunpack.c.l.b16 %v1267
        %v6266 = vunpack.c.h.b16 %v1267
        %v6267 = vunpack.c.l.b16 %v1268
        %v6268 = vunpack.c.h.b16 %v1268
        %v6269 = vunpack.c.l.b16 %v1269
        %v6270 = vunpack.c.h.b16 %v1269
        %v6271 = vunpack.c.l.b16 %v1270
        %v6272 = vunpack.c.h.b16 %v1270
        %v6273 = vunpack.c.l.b16 %v1271
        %v6274 = vunpack.c.h.b16 %v1271
        %v6275 = vunpack.c.l.b16 %v1272
        %v6276 = vunpack.c.h.b16 %v1272
        %v6277 = vunpack.c.l.b16 %v1273
        %v6278 = vunpack.c.h.b16 %v1273
        %v6279 = vunpack.c.l.b16 %v1274
        %v6280 = vunpack.c.h.b16 %v1274
        %v6281 = vunpack.c.l.b16 %v1275
        %v6282 = vunpack.c.h.b16 %v1275
        %v6283 = vunpack.c.l.b16 %v1276
        %v6284 = vunpack.c.h.b16 %v1276
        %v6285 = vunpack.c.l.b16 %v1277
        %v6286 = vunpack.c.h.b16 %v1277
        %v6287 = vunpack.c.l.b16 %v1278
        %v6288 = vunpack.c.h.b16 %v1278
        %v6289 = vunpack.c.l.b16 %v1279
        %v6290 = vunpack.c.h.b16 %v1279
        %v6291 = vunpack.c.l.b16 %v1280
        %v6292 = vunpack.c.h.b16 %v1280
        %v6293 = vunpack.c.l.b16 %v1281
        %v6294 = vunpack.c.h.b16 %v1281
        %v6295 = vunpack.c.l.b16 %v1282
        %v6296 = vunpack.c.h.b16 %v1282
        %v6297 = vunpack.c.l.b16 %v1283
        %v6298 = vunpack.c.h.b16 %v1283
        %v6299 = vunpack.c.l.b16 %v1284
        %v6300 = vunpack.c.h.b16 %v1284
        %v6301 = vunpack.c.l.b16 %v1285
        %v6302 = vunpack.c.h.b16 %v1285
        %v6303 = vunpack.c.l.b16 %v1286
        %v6304 = vunpack.c.h.b16 %v1286
        %v6305 = vunpack.c.l.b16 %v1287
        %v6306 = vunpack.c.h.b16 %v1287
        %v6307 = vunpack.c.l.b16 %v1288
        %v6308 = vunpack.c.h.b16 %v1288
        %v6309 = vunpack.c.l.b16 %v1289
        %v6310 = vunpack.c.h.b16 %v1289
        %v6311 = vunpack.c.l.b16 %v1290
        %v6312 = vunpack.c.h.b16 %v1290
        %v6313 = vunpack.c.l.b16 %v1291
        %v6314 = vunpack.c.h.b16 %v1291
        %v6315 = vunpack.c.l.b16 %v1292
        %v6316 = vunpack.c.h.b16 %v1292
        %v6317 = vunpack.c.l.b16 %v1293
        %v6318 = vunpack.c.h.b16 %v1293
        %v6319 = vunpack.c.l.b16 %v1294
        %v6320 = vunpack.c.h.b16 %v1294
        %v6321 = vunpack.c.l.b16 %v1295
        %v6322 = vunpack.c.h.b16 %v1295
        %v6323 = vunpack.c.l.b16 %v1296
        %v6324 = vunpack.c.h.b16 %v1296
        %v6325 = vunpack.c.l.b16 %v1297
        %v6326 = vunpack.c.h.b16 %v1297
        %v6327 = vunpack.c.l.b16 %v1298
        %v6328 = vunpack.c.h.b16 %v1298
        %v6329 = vunpack.c.l.b16 %v1299
        %v6330 = vunpack.c.h.b16 %v1299
        %v6331 = vunpack.c.l.b16 %v1300
        %v6332 = vunpack.c.h.b16 %v1300
        %v6333 = vunpack.c.l.b16 %v1301
        %v6334 = vunpack.c.h.b16 %v1301
        %v6335 = vunpack.c.l.b16 %v1302
        %v6336 = vunpack.c.h.b16 %v1302
        %v6337 = vunpack.c.l.b16 %v1303
        %v6338 = vunpack.c.h.b16 %v1303
        %v6339 = vunpack.c.l.b16 %v1304
        %v6340 = vunpack.c.h.b16 %v1304
        %v6341 = vunpack.c.l.b16 %v1305
        %v6342 = vunpack.c.h.b16 %v1305
        %v6343 = vunpack.c.l.b16 %v1306
        %v6344 = vunpack.c.h.b16 %v1306
        %v6345 = vunpack.c.l.b16 %v1307
        %v6346 = vunpack.c.h.b16 %v1307
        %v6347 = vunpack.c.l.b16 %v1308
        %v6348 = vunpack.c.h.b16 %v1308
        %v6349 = vunpack.c.l.b16 %v1309
        %v6350 = vunpack.c.h.b16 %v1309
        %v6351 = vunpack.c.l.b16 %v1310
        %v6352 = vunpack.c.h.b16 %v1310
        %v6353 = vunpack.c.l.b16 %v1311
        %v6354 = vunpack.c.h.b16 %v1311
        %v6355 = vunpack.c.l.b16 %v1312
        %v6356 = vunpack.c.h.b16 %v1312
        %v6357 = vunpack.c.l.b16 %v1313
        %v6358 = vunpack.c.h.b16 %v1313
        %v6359 = vunpack.c.l.b16 %v1314
        %v6360 = vunpack.c.h.b16 %v1314
        %v6361 = vunpack.c.l.b16 %v1315
        %v6362 = vunpack.c.h.b16 %v1315
        %v6363 = vunpack.c.l.b16 %v1316
        %v6364 = vunpack.c.h.b16 %v1316
        %v6365 = vunpack.c.l.b16 %v1317
        %v6366 = vunpack.c.h.b16 %v1317
        %v6367 = vunpack.c.l.b16 %v1318
        %v6368 = vunpack.c.h.b16 %v1318
        %v6369 = vunpack.c.l.b16 %v1319
        %v6370 = vunpack.c.h.b16 %v1319
        %v6371 = vunpack.c.l.b16 %v1320
        %v6372 = vunpack.c.h.b16 %v1320
        %v6373 = vunpack.c.l.b16 %v1321
        %v6374 = vunpack.c.h.b16 %v1321
        %v6375 = vunpack.c.l.b16 %v1322
        %v6376 = vunpack.c.h.b16 %v1322
        %v6377 = vunpack.c.l.b16 %v1323
        %v6378 = vunpack.c.h.b16 %v1323
        %v6379 = vunpack.c.l.b16 %v1324
        %v6380 = vunpack.c.h.b16 %v1324
        %v6381 = vunpack.c.l.b16 %v1325
        %v6382 = vunpack.c.h.b16 %v1325
        %v6383 = vunpack.c.l.b16 %v1326
        %v6384 = vunpack.c.h.b16 %v1326
        %v6385 = vunpack.c.l.b16 %v1327
        %v6386 = vunpack.c.h.b16 %v1327
        %v6387 = vunpack.c.l.b16 %v1328
        %v6388 = vunpack.c.h.b16 %v1328
        %v6389 = vunpack.c.l.b16 %v1329
        %v6390 = vunpack.c.h.b16 %v1329
        %v6391 = vunpack.c.l.b16 %v1330
        %v6392 = vunpack.c.h.b16 %v1330
        %v6393 = vunpack.c.l.b16 %v1331
        %v6394 = vunpack.c.h.b16 %v1331
        %v6395 = vunpack.c.l.b16 %v1332
        %v6396 = vunpack.c.h.b16 %v1332
        %v6397 = vunpack.c.l.b16 %v1333
        %v6398 = vunpack.c.h.b16 %v1333
        %v6399 = vunpack.c.l.b16 %v1334
        %v6400 = vunpack.c.h.b16 %v1334
        %v6401 = vunpack.c.l.b16 %v1335
        %v6402 = vunpack.c.h.b16 %v1335
        %v6403 = vunpack.c.l.b16 %v1336
        %v6404 = vunpack.c.h.b16 %v1336
        %v6405 = vunpack.c.l.b16 %v1337
        %v6406 = vunpack.c.h.b16 %v1337
        %v6407 = vunpack.c.l.b16 %v1338
        %v6408 = vunpack.c.h.b16 %v1338
        %v6409 = vunpack.c.l.b16 %v1339
        %v6410 = vunpack.c.h.b16 %v1339
        %v6411 = vunpack.c.l.b16 %v1340
        %v6412 = vunpack.c.h.b16 %v1340
        %v6413 = vunpack.c.l.b16 %v1341
        %v6414 = vunpack.c.h.b16 %v1341
        %v6415 = vunpack.c.l.b16 %v1342
        %v6416 = vunpack.c.h.b16 %v1342
        %v6417 = vunpack.c.l.b16 %v1343
        %v6418 = vunpack.c.h.b16 %v1343
        %v6419 = vunpack.c.l.b16 %v1344
        %v6420 = vunpack.c.h.b16 %v1344
        %v6421 = vunpack.c.l.b16 %v1345
        %v6422 = vunpack.c.h.b16 %v1345
        %v6423 = vunpack.c.l.b16 %v1346
        %v6424 = vunpack.c.h.b16 %v1346
        %v6425 = vunpack.c.l.b16 %v1347
        %v6426 = vunpack.c.h.b16 %v1347
        %v6427 = vunpack.c.l.b16 %v1348
        %v6428 = vunpack.c.h.b16 %v1348
        %v6429 = vunpack.c.l.b16 %v1349
        %v6430 = vunpack.c.h.b16 %v1349
        %v6431 = vunpack.c.l.b16 %v1350
        %v6432 = vunpack.c.h.b16 %v1350
        %v6433 = vunpack.c.l.b16 %v1351
        %v6434 = vunpack.c.h.b16 %v1351
        %v6435 = vunpack.c.l.b16 %v1352
        %v6436 = vunpack.c.h.b16 %v1352
        %v6437 = vunpack.c.l.b16 %v1353
        %v6438 = vunpack.c.h.b16 %v1353
        %v6439 = vunpack.c.l.b16 %v1354
        %v6440 = vunpack.c.h.b16 %v1354
        %v6441 = vunpack.c.l.b16 %v1355
        %v6442 = vunpack.c.h.b16 %v1355
        %v6443 = vunpack.c.l.b16 %v1356
        %v6444 = vunpack.c.h.b16 %v1356
        %v6445 = vunpack.c.l.b16 %v1357
        %v6446 = vunpack.c.h.b16 %v1357
        %v6447 = vunpack.c.l.b16 %v1358
        %v6448 = vunpack.c.h.b16 %v1358
        %v6449 = vunpack.c.l.b16 %v1359
        %v6450 = vunpack.c.h.b16 %v1359
        %v6451 = vunpack.c.l.b16 %v1360
        %v6452 = vunpack.c.h.b16 %v1360
        %v6453 = vunpack.c.l.b16 %v1361
        %v6454 = vunpack.c.h.b16 %v1361
        %v6455 = vunpack.c.l.b16 %v1362
        %v6456 = vunpack.c.h.b16 %v1362
        %v6457 = vunpack.c.l.b16 %v1363
        %v6458 = vunpack.c.h.b16 %v1363
        %v6459 = vunpack.c.l.b16 %v1364
        %v6460 = vunpack.c.h.b16 %v1364
        %v6461 = vunpack.c.l.b16 %v1365
        %v6462 = vunpack.c.h.b16 %v1365
        %v6463 = vunpack.c.l.b16 %v1366
        %v6464 = vunpack.c.h.b16 %v1366
        %v6465 = vunpack.c.l.b16 %v1367
        %v6466 = vunpack.c.h.b16 %v1367
        %v6467 = vunpack.c.l.b16 %v1368
        %v6468 = vunpack.c.h.b16 %v1368
        %v6469 = vunpack.c.l.b16 %v1369
        %v6470 = vunpack.c.h.b16 %v1369
        %v6471 = vunpack.c.l.b16 %v1370
        %v6472 = vunpack.c.h.b16 %v1370
        %v6473 = vunpack.c.l.b16 %v1371
        %v6474 = vunpack.c.h.b16 %v1371
        %v6475 = vunpack.c.l.b16 %v1372
        %v6476 = vunpack.c.h.b16 %v1372
        %v6477 = vunpack.c.l.b16 %v1373
        %v6478 = vunpack.c.h.b16 %v1373
        %v6479 = vunpack.c.l.b16 %v1374
        %v6480 = vunpack.c.h.b16 %v1374
        %v6481 = vunpack.c.l.b16 %v1375
        %v6482 = vunpack.c.h.b16 %v1375
        %v6483 = vunpack.c.l.b16 %v1376
        %v6484 = vunpack.c.h.b16 %v1376
        %v6485 = vunpack.c.l.b16 %v1377
        %v6486 = vunpack.c.h.b16 %v1377
        %v6487 = vunpack.c.l.b16 %v1378
        %v6488 = vunpack.c.h.b16 %v1378
        %v6489 = vunpack.c.l.b16 %v1379
        %v6490 = vunpack.c.h.b16 %v1379
        %v6491 = vunpack.c.l.b16 %v1380
        %v6492 = vunpack.c.h.b16 %v1380
        %v6493 = vunpack.c.l.b16 %v1381
        %v6494 = vunpack.c.h.b16 %v1381
        %v6495 = vunpack.c.l.b16 %v1382
        %v6496 = vunpack.c.h.b16 %v1382
        %v6497 = vunpack.c.l.b16 %v1383
        %v6498 = vunpack.c.h.b16 %v1383
        %v6499 = vunpack.c.l.b16 %v1384
        %v6500 = vunpack.c.h.b16 %v1384
        %v6501 = vunpack.c.l.b16 %v1385
        %v6502 = vunpack.c.h.b16 %v1385
        %v6503 = vunpack.c.l.b16 %v1386
        %v6504 = vunpack.c.h.b16 %v1386
        %v6505 = vunpack.c.l.b16 %v1387
        %v6506 = vunpack.c.h.b16 %v1387
        %v6507 = vunpack.c.l.b16 %v1388
        %v6508 = vunpack.c.h.b16 %v1388
        %v6509 = vunpack.c.l.b16 %v1389
        %v6510 = vunpack.c.h.b16 %v1389
        %v6511 = vunpack.c.l.b16 %v1390
        %v6512 = vunpack.c.h.b16 %v1390
        %v6513 = vunpack.c.l.b16 %v1391
        %v6514 = vunpack.c.h.b16 %v1391
        %v6515 = vunpack.c.l.b16 %v1392
        %v6516 = vunpack.c.h.b16 %v1392
        %v6517 = vunpack.c.l.b16 %v1393
        %v6518 = vunpack.c.h.b16 %v1393
        %v6519 = vunpack.c.l.b16 %v1394
        %v6520 = vunpack.c.h.b16 %v1394
        %v6521 = vunpack.c.l.b16 %v1395
        %v6522 = vunpack.c.h.b16 %v1395
        %v6523 = vunpack.c.l.b16 %v1396
        %v6524 = vunpack.c.h.b16 %v1396
        %v6525 = vunpack.c.l.b16 %v1397
        %v6526 = vunpack.c.h.b16 %v1397
        %v6527 = vunpack.c.l.b16 %v1398
        %v6528 = vunpack.c.h.b16 %v1398
        %v6529 = vunpack.c.l.b16 %v1399
        %v6530 = vunpack.c.h.b16 %v1399
        %v6531 = vunpack.c.l.b16 %v1400
        %v6532 = vunpack.c.h.b16 %v1400
        %v6533 = vunpack.c.l.b16 %v1401
        %v6534 = vunpack.c.h.b16 %v1401
        %v6535 = vunpack.c.l.b16 %v1402
        %v6536 = vunpack.c.h.b16 %v1402
        %v6537 = vunpack.c.l.b16 %v1403
        %v6538 = vunpack.c.h.b16 %v1403
        %v6539 = vunpack.c.l.b16 %v1404
        %v6540 = vunpack.c.h.b16 %v1404
        %v6541 = vunpack.c.l.b16 %v1405
        %v6542 = vunpack.c.h.b16 %v1405
        %v6543 = vunpack.c.l.b16 %v1406
        %v6544 = vunpack.c.h.b16 %v1406
        %v6545 = vunpack.c.l.b16 %v1407
        %v6546 = vunpack.c.h.b16 %v1407
        %v6547 = vunpack.c.l.b16 %v1408
        %v6548 = vunpack.c.h.b16 %v1408
        %v6549 = vunpack.c.l.b16 %v1409
        %v6550 = vunpack.c.h.b16 %v1409
        %v6551 = vunpack.c.l.b16 %v1410
        %v6552 = vunpack.c.h.b16 %v1410
        %v6553 = vunpack.c.l.b16 %v1411
        %v6554 = vunpack.c.h.b16 %v1411
        %v6555 = vunpack.c.l.b16 %v1412
        %v6556 = vunpack.c.h.b16 %v1412
        %v6557 = vunpack.c.l.b16 %v1413
        %v6558 = vunpack.c.h.b16 %v1413
        %v6559 = vunpack.c.l.b16 %v1414
        %v6560 = vunpack.c.h.b16 %v1414
        %v6561 = vunpack.c.l.b16 %v1415
        %v6562 = vunpack.c.h.b16 %v1415
        %v6563 = vunpack.c.l.b16 %v1416
        %v6564 = vunpack.c.h.b16 %v1416
        %v6565 = vunpack.c.l.b16 %v1417
        %v6566 = vunpack.c.h.b16 %v1417
        %v6567 = vunpack.c.l.b16 %v1418
        %v6568 = vunpack.c.h.b16 %v1418
        %v6569 = vunpack.c.l.b16 %v1419
        %v6570 = vunpack.c.h.b16 %v1419
        %v6571 = vunpack.c.l.b16 %v1420
        %v6572 = vunpack.c.h.b16 %v1420
        %v6573 = vunpack.c.l.b16 %v1421
        %v6574 = vunpack.c.h.b16 %v1421
        %v6575 = vunpack.c.l.b16 %v1422
        %v6576 = vunpack.c.h.b16 %v1422
        %v6577 = vunpack.c.l.b16 %v1423
        %v6578 = vunpack.c.h.b16 %v1423
        %v6579 = vunpack.c.l.b16 %v1424
        %v6580 = vunpack.c.h.b16 %v1424
        %v6581 = vunpack.c.l.b16 %v1425
        %v6582 = vunpack.c.h.b16 %v1425
        %v6583 = vunpack.c.l.b16 %v1426
        %v6584 = vunpack.c.h.b16 %v1426
        %v6585 = vunpack.c.l.b16 %v1427
        %v6586 = vunpack.c.h.b16 %v1427
        %v6587 = vunpack.c.l.b16 %v1428
        %v6588 = vunpack.c.h.b16 %v1428
        %v6589 = vunpack.c.l.b16 %v1429
        %v6590 = vunpack.c.h.b16 %v1429
        %v6591 = vunpack.c.l.b16 %v1430
        %v6592 = vunpack.c.h.b16 %v1430
        %v6593 = vunpack.c.l.b16 %v1431
        %v6594 = vunpack.c.h.b16 %v1431
        %v6595 = vunpack.c.l.b16 %v1432
        %v6596 = vunpack.c.h.b16 %v1432
        %v6597 = vunpack.c.l.b16 %v1433
        %v6598 = vunpack.c.h.b16 %v1433
        %v6599 = vunpack.c.l.b16 %v1434
        %v6600 = vunpack.c.h.b16 %v1434
        %v6601 = vunpack.c.l.b16 %v1435
        %v6602 = vunpack.c.h.b16 %v1435
        %v6603 = vunpack.c.l.b16 %v1436
        %v6604 = vunpack.c.h.b16 %v1436
        %v6605 = vunpack.c.l.b16 %v1437
        %v6606 = vunpack.c.h.b16 %v1437
        %v6607 = vunpack.c.l.b16 %v1438
        %v6608 = vunpack.c.h.b16 %v1438
        %v6609 = vunpack.c.l.b16 %v1439
        %v6610 = vunpack.c.h.b16 %v1439
        %v6611 = vunpack.c.l.b16 %v1440
        %v6612 = vunpack.c.h.b16 %v1440
        %v6613 = vunpack.c.l.b16 %v1441
        %v6614 = vunpack.c.h.b16 %v1441
        %v6615 = vunpack.c.l.b16 %v1442
        %v6616 = vunpack.c.h.b16 %v1442
        %v6617 = vunpack.c.l.b16 %v1443
        %v6618 = vunpack.c.h.b16 %v1443
        %v6619 = vunpack.c.l.b16 %v1444
        %v6620 = vunpack.c.h.b16 %v1444
        %v6621 = vunpack.c.l.b16 %v1445
        %v6622 = vunpack.c.h.b16 %v1445
        %v6623 = vunpack.c.l.b16 %v1446
        %v6624 = vunpack.c.h.b16 %v1446
        %v6625 = vunpack.c.l.b16 %v1447
        %v6626 = vunpack.c.h.b16 %v1447
        %v6627 = vunpack.c.l.b16 %v1448
        %v6628 = vunpack.c.h.b16 %v1448
        %v6629 = vunpack.c.l.b16 %v1449
        %v6630 = vunpack.c.h.b16 %v1449
        %v6631 = vunpack.c.l.b16 %v1450
        %v6632 = vunpack.c.h.b16 %v1450
        %v6633 = vunpack.c.l.b16 %v1451
        %v6634 = vunpack.c.h.b16 %v1451
        %v6635 = vunpack.c.l.b16 %v1452
        %v6636 = vunpack.c.h.b16 %v1452
        %v6637 = vunpack.c.l.b16 %v1453
        %v6638 = vunpack.c.h.b16 %v1453
        %v6639 = vunpack.c.l.b16 %v1454
        %v6640 = vunpack.c.h.b16 %v1454
        %v6641 = vunpack.c.l.b16 %v1455
        %v6642 = vunpack.c.h.b16 %v1455
        %v6643 = vunpack.c.l.b16 %v1456
        %v6644 = vunpack.c.h.b16 %v1456
        %v6645 = vunpack.c.l.b16 %v1457
        %v6646 = vunpack.c.h.b16 %v1457
        %v6647 = vunpack.c.l.b16 %v1458
        %v6648 = vunpack.c.h.b16 %v1458
        %v6649 = vunpack.c.l.b16 %v1459
        %v6650 = vunpack.c.h.b16 %v1459
        %v6651 = vunpack.c.l.b16 %v1460
        %v6652 = vunpack.c.h.b16 %v1460
        %v6653 = vunpack.c.l.b16 %v1461
        %v6654 = vunpack.c.h.b16 %v1461
        %v6655 = vunpack.c.l.b16 %v1462
        %v6656 = vunpack.c.h.b16 %v1462
        %v6657 = vunpack.c.l.b16 %v1463
        %v6658 = vunpack.c.h.b16 %v1463
        %v6659 = vunpack.c.l.b16 %v1464
        %v6660 = vunpack.c.h.b16 %v1464
        %v6661 = vunpack.c.l.b16 %v1465
        %v6662 = vunpack.c.h.b16 %v1465
        %v6663 = vunpack.c.l.b16 %v1466
        %v6664 = vunpack.c.h.b16 %v1466
        %v6665 = vunpack.c.l.b16 %v1467
        %v6666 = vunpack.c.h.b16 %v1467
        %v6667 = vunpack.c.l.b16 %v1468
        %v6668 = vunpack.c.h.b16 %v1468
        %v6669 = vunpack.c.l.b16 %v1469
        %v6670 = vunpack.c.h.b16 %v1469
        %v6671 = vunpack.c.l.b16 %v1470
        %v6672 = vunpack.c.h.b16 %v1470
        %v6673 = vunpack.c.l.b16 %v1471
        %v6674 = vunpack.c.h.b16 %v1471
        %v6675 = vunpack.c.l.b16 %v1472
        %v6676 = vunpack.c.h.b16 %v1472
        %v6677 = vunpack.c.l.b16 %v1473
        %v6678 = vunpack.c.h.b16 %v1473
        %v6679 = vunpack.c.l.b16 %v1474
        %v6680 = vunpack.c.h.b16 %v1474
        %v6681 = vunpack.c.l.b16 %v1475
        %v6682 = vunpack.c.h.b16 %v1475
        %v6683 = vunpack.c.l.b16 %v1476
        %v6684 = vunpack.c.h.b16 %v1476
        %v6685 = vunpack.c.l.b16 %v1477
        %v6686 = vunpack.c.h.b16 %v1477
        %v6687 = vunpack.c.l.b16 %v1478
        %v6688 = vunpack.c.h.b16 %v1478
        %v6689 = vunpack.c.l.b16 %v1479
        %v6690 = vunpack.c.h.b16 %v1479
        %v6691 = vunpack.c.l.b16 %v1480
        %v6692 = vunpack.c.h.b16 %v1480
        %v6693 = vunpack.c.l.b16 %v1481
        %v6694 = vunpack.c.h.b16 %v1481
        %v6695 = vunpack.c.l.b16 %v1482
        %v6696 = vunpack.c.h.b16 %v1482
        %v6697 = vunpack.c.l.b16 %v1483
        %v6698 = vunpack.c.h.b16 %v1483
        %v6699 = vunpack.c.l.b16 %v1484
        %v6700 = vunpack.c.h.b16 %v1484
        %v6701 = vunpack.c.l.b16 %v1485
        %v6702 = vunpack.c.h.b16 %v1485
        %v6703 = vunpack.c.l.b16 %v1486
        %v6704 = vunpack.c.h.b16 %v1486
        %v6705 = vunpack.c.l.b16 %v1487
        %v6706 = vunpack.c.h.b16 %v1487
        %v6707 = vunpack.c.l.b16 %v1488
        %v6708 = vunpack.c.h.b16 %v1488
        %v6709 = vunpack.c.l.b16 %v1489
        %v6710 = vunpack.c.h.b16 %v1489
        %v6711 = vunpack.c.l.b16 %v1490
        %v6712 = vunpack.c.h.b16 %v1490
        %v6713 = vunpack.c.l.b16 %v1491
        %v6714 = vunpack.c.h.b16 %v1491
        %v6715 = vunpack.c.l.b16 %v1492
        %v6716 = vunpack.c.h.b16 %v1492
        %v6717 = vunpack.c.l.b16 %v1493
        %v6718 = vunpack.c.h.b16 %v1493
        %v6719 = vunpack.c.l.b16 %v1494
        %v6720 = vunpack.c.h.b16 %v1494
        %v6721 = vunpack.c.l.b16 %v1495
        %v6722 = vunpack.c.h.b16 %v1495
        %v6723 = vunpack.c.l.b16 %v1496
        %v6724 = vunpack.c.h.b16 %v1496
        %v6725 = vunpack.c.l.b16 %v1497
        %v6726 = vunpack.c.h.b16 %v1497
        %v6727 = vunpack.c.l.b16 %v1498
        %v6728 = vunpack.c.h.b16 %v1498
        %v6729 = vunpack.c.l.b16 %v1499
        %v6730 = vunpack.c.h.b16 %v1499
        %v6731 = vunpack.c.l.b16 %v1500
        %v6732 = vunpack.c.h.b16 %v1500
        %v6733 = vunpack.c.l.b16 %v1501
        %v6734 = vunpack.c.h.b16 %v1501
        %v6735 = vunpack.c.l.b16 %v1502
        %v6736 = vunpack.c.h.b16 %v1502
        %v6737 = vunpack.c.l.b16 %v1503
        %v6738 = vunpack.c.h.b16 %v1503
        %v6739 = vunpack.c.l.b16 %v1504
        %v6740 = vunpack.c.h.b16 %v1504
        %v6741 = vunpack.c.l.b16 %v1505
        %v6742 = vunpack.c.h.b16 %v1505
        %v6743 = vunpack.c.l.b16 %v1506
        %v6744 = vunpack.c.h.b16 %v1506
        %v6745 = vunpack.c.l.b16 %v1507
        %v6746 = vunpack.c.h.b16 %v1507
        %v6747 = vunpack.c.l.b16 %v1508
        %v6748 = vunpack.c.h.b16 %v1508
        %v6749 = vunpack.c.l.b16 %v1509
        %v6750 = vunpack.c.h.b16 %v1509
        %v6751 = vunpack.c.l.b16 %v1510
        %v6752 = vunpack.c.h.b16 %v1510
        %v6753 = vunpack.c.l.b16 %v1511
        %v6754 = vunpack.c.h.b16 %v1511
        %v6755 = vunpack.c.l.b16 %v1512
        %v6756 = vunpack.c.h.b16 %v1512
        %v6757 = vunpack.c.l.b16 %v1513
        %v6758 = vunpack.c.h.b16 %v1513
        %v6759 = vunpack.c.l.b16 %v1514
        %v6760 = vunpack.c.h.b16 %v1514
        %v6761 = vunpack.c.l.b16 %v1515
        %v6762 = vunpack.c.h.b16 %v1515
        %v6763 = vunpack.c.l.b16 %v1516
        %v6764 = vunpack.c.h.b16 %v1516
        %v6765 = vunpack.c.l.b16 %v1517
        %v6766 = vunpack.c.h.b16 %v1517
        %v6767 = vunpack.c.l.b16 %v1518
        %v6768 = vunpack.c.h.b16 %v1518
        %v6769 = vunpack.c.l.b16 %v1519
        %v6770 = vunpack.c.h.b16 %v1519
        %v6771 = vunpack.c.l.b16 %v1520
        %v6772 = vunpack.c.h.b16 %v1520
        %v6773 = vunpack.c.l.b16 %v1521
        %v6774 = vunpack.c.h.b16 %v1521
        %v6775 = vunpack.c.l.b16 %v1522
        %v6776 = vunpack.c.h.b16 %v1522
        %v6777 = vunpack.c.l.b16 %v1523
        %v6778 = vunpack.c.h.b16 %v1523
        %v6779 = vunpack.c.l.b16 %v1524
        %v6780 = vunpack.c.h.b16 %v1524
        %v6781 = vunpack.c.l.b16 %v1525
        %v6782 = vunpack.c.h.b16 %v1525
        %v6783 = vunpack.c.l.b16 %v1526
        %v6784 = vunpack.c.h.b16 %v1526
        %v6785 = vunpack.c.l.b16 %v1527
        %v6786 = vunpack.c.h.b16 %v1527
        %v6787 = vunpack.c.l.b16 %v1528
        %v6788 = vunpack.c.h.b16 %v1528
        %v6789 = vunpack.c.l.b16 %v1529
        %v6790 = vunpack.c.h.b16 %v1529
        %v6791 = vunpack.c.l.b16 %v1530
        %v6792 = vunpack.c.h.b16 %v1530
        %v6793 = vunpack.c.l.b16 %v1531
        %v6794 = vunpack.c.h.b16 %v1531
        %v6795 = vunpack.c.l.b16 %v1532
        %v6796 = vunpack.c.h.b16 %v1532
        %v6797 = vunpack.c.l.b16 %v1533
        %v6798 = vunpack.c.h.b16 %v1533
        %v6799 = vunpack.c.l.b16 %v1534
        %v6800 = vunpack.c.h.b16 %v1534
        %v6801 = vunpack.c.l.b16 %v1535
        %v6802 = vunpack.c.h.b16 %v1535
        %v6803 = vunpack.c.l.b16 %v1536
        %v6804 = vunpack.c.h.b16 %v1536
        %v6805 = vunpack.c.l.b16 %v1537
        %v6806 = vunpack.c.h.b16 %v1537
        %v6807 = vunpack.c.l.b16 %v1538
        %v6808 = vunpack.c.h.b16 %v1538
        %v6809 = vunpack.c.l.b16 %v1539
        %v6810 = vunpack.c.h.b16 %v1539
        %v6811 = vunpack.c.l.b16 %v1540
        %v6812 = vunpack.c.h.b16 %v1540
        %v6813 = vunpack.c.l.b16 %v1541
        %v6814 = vunpack.c.h.b16 %v1541
        %v6815 = vunpack.c.l.b16 %v1542
        %v6816 = vunpack.c.h.b16 %v1542
        %v6817 = vunpack.c.l.b16 %v1543
        %v6818 = vunpack.c.h.b16 %v1543
        %v6819 = vunpack.c.l.b16 %v1544
        %v6820 = vunpack.c.h.b16 %v1544
        %v6821 = vunpack.c.l.b16 %v1545
        %v6822 = vunpack.c.h.b16 %v1545
        %v6823 = vunpack.c.l.b16 %v1546
        %v6824 = vunpack.c.h.b16 %v1546
        %v6825 = vunpack.c.l.b16 %v1547
        %v6826 = vunpack.c.h.b16 %v1547
        %v6827 = vunpack.c.l.b16 %v1548
        %v6828 = vunpack.c.h.b16 %v1548
        %v6829 = vunpack.c.l.b16 %v1549
        %v6830 = vunpack.c.h.b16 %v1549
        %v6831 = vunpack.c.l.b16 %v1550
        %v6832 = vunpack.c.h.b16 %v1550
        %v6833 = vunpack.c.l.b16 %v1551
        %v6834 = vunpack.c.h.b16 %v1551
        %v6835 = vunpack.c.l.b16 %v1552
        %v6836 = vunpack.c.h.b16 %v1552
        %v6837 = vunpack.c.l.b16 %v1553
        %v6838 = vunpack.c.h.b16 %v1553
        %v6839 = vunpack.c.l.b16 %v1554
        %v6840 = vunpack.c.h.b16 %v1554
        %v6841 = vunpack.c.l.b16 %v1555
        %v6842 = vunpack.c.h.b16 %v1555
        %v6843 = vunpack.c.l.b16 %v1556
        %v6844 = vunpack.c.h.b16 %v1556
        %v6845 = vunpack.c.l.b16 %v1557
        %v6846 = vunpack.c.h.b16 %v1557
        %v6847 = vunpack.c.l.b16 %v1558
        %v6848 = vunpack.c.h.b16 %v1558
        %v6849 = vunpack.c.l.b16 %v1559
        %v6850 = vunpack.c.h.b16 %v1559
        %v6851 = vunpack.c.l.b16 %v1560
        %v6852 = vunpack.c.h.b16 %v1560
        %v6853 = vunpack.c.l.b16 %v1561
        %v6854 = vunpack.c.h.b16 %v1561
        %v6855 = vunpack.c.l.b16 %v1562
        %v6856 = vunpack.c.h.b16 %v1562
        %v6857 = vunpack.c.l.b16 %v1563
        %v6858 = vunpack.c.h.b16 %v1563
        %v6859 = vunpack.c.l.b16 %v1564
        %v6860 = vunpack.c.h.b16 %v1564
        %v6861 = vunpack.c.l.b16 %v1565
        %v6862 = vunpack.c.h.b16 %v1565
        %v6863 = vunpack.c.l.b16 %v1566
        %v6864 = vunpack.c.h.b16 %v1566
        %v6865 = vunpack.c.l.b16 %v1567
        %v6866 = vunpack.c.h.b16 %v1567
        %v6867 = vunpack.c.l.b16 %v1568
        %v6868 = vunpack.c.h.b16 %v1568
        %v6869 = vunpack.c.l.b16 %v1569
        %v6870 = vunpack.c.h.b16 %v1569
        %v6871 = vunpack.c.l.b16 %v1570
        %v6872 = vunpack.c.h.b16 %v1570
        %v6873 = vunpack.c.l.b16 %v1571
        %v6874 = vunpack.c.h.b16 %v1571
        %v6875 = vunpack.c.l.b16 %v1572
        %v6876 = vunpack.c.h.b16 %v1572
        %v6877 = vunpack.c.l.b16 %v1573
        %v6878 = vunpack.c.h.b16 %v1573
        %v6879 = vunpack.c.l.b16 %v1574
        %v6880 = vunpack.c.h.b16 %v1574
        %v6881 = vunpack.c.l.b16 %v1575
        %v6882 = vunpack.c.h.b16 %v1575
        %v6883 = vunpack.c.l.b16 %v1576
        %v6884 = vunpack.c.h.b16 %v1576
        %v6885 = vunpack.c.l.b16 %v1577
        %v6886 = vunpack.c.h.b16 %v1577
        %v6887 = vunpack.c.l.b16 %v1578
        %v6888 = vunpack.c.h.b16 %v1578
        %v6889 = vunpack.c.l.b16 %v1579
        %v6890 = vunpack.c.h.b16 %v1579
        %v6891 = vunpack.c.l.b16 %v1580
        %v6892 = vunpack.c.h.b16 %v1580
        %v6893 = vunpack.c.l.b16 %v1581
        %v6894 = vunpack.c.h.b16 %v1581
        %v6895 = vunpack.c.l.b16 %v1582
        %v6896 = vunpack.c.h.b16 %v1582
        %v6897 = vunpack.c.l.b16 %v1583
        %v6898 = vunpack.c.h.b16 %v1583
        %v6899 = vunpack.c.l.b16 %v1584
        %v6900 = vunpack.c.h.b16 %v1584
        %v6901 = vunpack.c.l.b16 %v1585
        %v6902 = vunpack.c.h.b16 %v1585
        %v6903 = vunpack.c.l.b16 %v1586
        %v6904 = vunpack.c.h.b16 %v1586
        %v6905 = vunpack.c.l.b16 %v1587
        %v6906 = vunpack.c.h.b16 %v1587
        %v6907 = vunpack.c.l.b16 %v1588
        %v6908 = vunpack.c.h.b16 %v1588
        %v6909 = vunpack.c.l.b16 %v1589
        %v6910 = vunpack.c.h.b16 %v1589
        %v6911 = vunpack.c.l.b16 %v1590
        %v6912 = vunpack.c.h.b16 %v1590
        %v6913 = vunpack.c.l.b16 %v1591
        %v6914 = vunpack.c.h.b16 %v1591
        %v6915 = vunpack.c.l.b16 %v1592
        %v6916 = vunpack.c.h.b16 %v1592
        %v6917 = vunpack.c.l.b16 %v1593
        %v6918 = vunpack.c.h.b16 %v1593
        %v6919 = vunpack.c.l.b16 %v1594
        %v6920 = vunpack.c.h.b16 %v1594
        %v6921 = vunpack.c.l.b16 %v1595
        %v6922 = vunpack.c.h.b16 %v1595
        %v6923 = vunpack.c.l.b16 %v1596
        %v6924 = vunpack.c.h.b16 %v1596
        %v6925 = vunpack.c.l.b16 %v1597
        %v6926 = vunpack.c.h.b16 %v1597
        %v6927 = vunpack.c.l.b16 %v1598
        %v6928 = vunpack.c.h.b16 %v1598
        %v6929 = vunpack.c.l.b16 %v1599
        %v6930 = vunpack.c.h.b16 %v1599
        %v6931 = vunpack.c.l.b16 %v1600
        %v6932 = vunpack.c.h.b16 %v1600
        %v6933 = vunpack.c.l.b16 %v1601
        %v6934 = vunpack.c.h.b16 %v1601
        %v6935 = vunpack.c.l.b16 %v1602
        %v6936 = vunpack.c.h.b16 %v1602
        %v6937 = vunpack.c.l.b16 %v1603
        %v6938 = vunpack.c.h.b16 %v1603
        %v6939 = vunpack.c.l.b16 %v1604
        %v6940 = vunpack.c.h.b16 %v1604
        %v6941 = vunpack.c.l.b16 %v1605
        %v6942 = vunpack.c.h.b16 %v1605
        %v6943 = vunpack.c.l.b16 %v1606
        %v6944 = vunpack.c.h.b16 %v1606
        %v6945 = vunpack.c.l.b16 %v1607
        %v6946 = vunpack.c.h.b16 %v1607
        %v6947 = vunpack.c.l.b16 %v1608
        %v6948 = vunpack.c.h.b16 %v1608
        %v6949 = vunpack.c.l.b16 %v1609
        %v6950 = vunpack.c.h.b16 %v1609
        %v6951 = vunpack.c.l.b16 %v1610
        %v6952 = vunpack.c.h.b16 %v1610
        %v6953 = vunpack.c.l.b16 %v1611
        %v6954 = vunpack.c.h.b16 %v1611
        %v6955 = vunpack.c.l.b16 %v1612
        %v6956 = vunpack.c.h.b16 %v1612
        %v6957 = vunpack.c.l.b16 %v1613
        %v6958 = vunpack.c.h.b16 %v1613
        %v6959 = vunpack.c.l.b16 %v1614
        %v6960 = vunpack.c.h.b16 %v1614
        %v6961 = vunpack.c.l.b16 %v1615
        %v6962 = vunpack.c.h.b16 %v1615
        %v6963 = vunpack.c.l.b16 %v1616
        %v6964 = vunpack.c.h.b16 %v1616
        %v6965 = vunpack.c.l.b16 %v1617
        %v6966 = vunpack.c.h.b16 %v1617
        %v6967 = vunpack.c.l.b16 %v1618
        %v6968 = vunpack.c.h.b16 %v1618
        %v6969 = vunpack.c.l.b16 %v1619
        %v6970 = vunpack.c.h.b16 %v1619
        %v6971 = vunpack.c.l.b16 %v1620
        %v6972 = vunpack.c.h.b16 %v1620
        %v6973 = vunpack.c.l.b16 %v1621
        %v6974 = vunpack.c.h.b16 %v1621
        %v6975 = vunpack.c.l.b16 %v1622
        %v6976 = vunpack.c.h.b16 %v1622
        %v6977 = vunpack.c.l.b16 %v1623
        %v6978 = vunpack.c.h.b16 %v1623
        %v6979 = vunpack.c.l.b16 %v1624
        %v6980 = vunpack.c.h.b16 %v1624
        %v6981 = vunpack.c.l.b16 %v1625
        %v6982 = vunpack.c.h.b16 %v1625
        %v6983 = vunpack.c.l.b16 %v1626
        %v6984 = vunpack.c.h.b16 %v1626
        %v6985 = vunpack.c.l.b16 %v1627
        %v6986 = vunpack.c.h.b16 %v1627
        %v6987 = vunpack.c.l.b16 %v1628
        %v6988 = vunpack.c.h.b16 %v1628
        %v6989 = vunpack.c.l.b16 %v1629
        %v6990 = vunpack.c.h.b16 %v1629
        %v6991 = vunpack.c.l.b16 %v1630
        %v6992 = vunpack.c.h.b16 %v1630
        %v6993 = vunpack.c.l.b16 %v1631
        %v6994 = vunpack.c.h.b16 %v1631
        %v6995 = vunpack.c.l.b16 %v1632
        %v6996 = vunpack.c.h.b16 %v1632
        %v6997 = vunpack.c.l.b16 %v1633
        %v6998 = vunpack.c.h.b16 %v1633
        %v6999 = vunpack.c.l.b16 %v1634
        %v7000 = vunpack.c.h.b16 %v1634
        %v7001 = vunpack.c.l.b16 %v1635
        %v7002 = vunpack.c.h.b16 %v1635
        %v7003 = vunpack.c.l.b16 %v1636
        %v7004 = vunpack.c.h.b16 %v1636
        %v7005 = vunpack.c.l.b16 %v1637
        %v7006 = vunpack.c.h.b16 %v1637
        %v7007 = vunpack.c.l.b16 %v1638
        %v7008 = vunpack.c.h.b16 %v1638
        %v7009 = vunpack.c.l.b16 %v1639
        %v7010 = vunpack.c.h.b16 %v1639
        %v7011 = vunpack.c.l.b16 %v1640
        %v7012 = vunpack.c.h.b16 %v1640
        %v7013 = vunpack.c.l.b16 %v1641
        %v7014 = vunpack.c.h.b16 %v1641
        %v7015 = vunpack.c.l.b16 %v1642
        %v7016 = vunpack.c.h.b16 %v1642
        %v7017 = vunpack.c.l.b16 %v1643
        %v7018 = vunpack.c.h.b16 %v1643
        %v7019 = vunpack.c.l.b16 %v1644
        %v7020 = vunpack.c.h.b16 %v1644
        %v7021 = vunpack.c.l.b16 %v1645
        %v7022 = vunpack.c.h.b16 %v1645
        %v7023 = vunpack.c.l.b16 %v1646
        %v7024 = vunpack.c.h.b16 %v1646
        %v7025 = vunpack.c.l.b16 %v1647
        %v7026 = vunpack.c.h.b16 %v1647
        %v7027 = vunpack.c.l.b16 %v1648
        %v7028 = vunpack.c.h.b16 %v1648
        %v7029 = vunpack.c.l.b16 %v1649
        %v7030 = vunpack.c.h.b16 %v1649
        %v7031 = vunpack.c.l.b16 %v1650
        %v7032 = vunpack.c.h.b16 %v1650
        %v7033 = vunpack.c.l.b16 %v1651
        %v7034 = vunpack.c.h.b16 %v1651
        %v7035 = vunpack.c.l.b16 %v1652
        %v7036 = vunpack.c.h.b16 %v1652
        %v7037 = vunpack.c.l.b16 %v1653
        %v7038 = vunpack.c.h.b16 %v1653
        %v7039 = vunpack.c.l.b16 %v1654
        %v7040 = vunpack.c.h.b16 %v1654
        %v7041 = vunpack.c.l.b16 %v1655
        %v7042 = vunpack.c.h.b16 %v1655
        %v7043 = vunpack.c.l.b16 %v1656
        %v7044 = vunpack.c.h.b16 %v1656
        %v7045 = vunpack.c.l.b16 %v1657
        %v7046 = vunpack.c.h.b16 %v1657
        %v7047 = vunpack.c.l.b16 %v1658
        %v7048 = vunpack.c.h.b16 %v1658
        %v7049 = vunpack.c.l.b16 %v1659
        %v7050 = vunpack.c.h.b16 %v1659
        %v7051 = vunpack.c.l.b16 %v1660
        %v7052 = vunpack.c.h.b16 %v1660
        %v7053 = vunpack.c.l.b16 %v1661
        %v7054 = vunpack.c.h.b16 %v1661
        %v7055 = vunpack.c.l.b16 %v1662
        %v7056 = vunpack.c.h.b16 %v1662
        %v7057 = vunpack.c.l.b16 %v1663
        %v7058 = vunpack.c.h.b16 %v1663
        %v7059 = vunpack.c.l.b16 %v1664
        %v7060 = vunpack.c.h.b16 %v1664
        %v7061 = vunpack.c.l.b16 %v1665
        %v7062 = vunpack.c.h.b16 %v1665
        %v7063 = vunpack.c.l.b16 %v1666
        %v7064 = vunpack.c.h.b16 %v1666
        %v7065 = vunpack.c.l.b16 %v1667
        %v7066 = vunpack.c.h.b16 %v1667
        %v7067 = vunpack.c.l.b16 %v1668
        %v7068 = vunpack.c.h.b16 %v1668
        %v7069 = vunpack.c.l.b16 %v1669
        %v7070 = vunpack.c.h.b16 %v1669
        %v7071 = vunpack.c.l.b16 %v1670
        %v7072 = vunpack.c.h.b16 %v1670
        %v7073 = vunpack.c.l.b16 %v1671
        %v7074 = vunpack.c.h.b16 %v1671
        %v7075 = vunpack.c.l.b16 %v1672
        %v7076 = vunpack.c.h.b16 %v1672
        %v7077 = vunpack.c.l.b16 %v1673
        %v7078 = vunpack.c.h.b16 %v1673
        %v7079 = vunpack.c.l.b16 %v1674
        %v7080 = vunpack.c.h.b16 %v1674
        %v7081 = vunpack.c.l.b16 %v1675
        %v7082 = vunpack.c.h.b16 %v1675
        %v7083 = vunpack.c.l.b16 %v1676
        %v7084 = vunpack.c.h.b16 %v1676
        %v7085 = vunpack.c.l.b16 %v1677
        %v7086 = vunpack.c.h.b16 %v1677
        %v7087 = vunpack.c.l.b16 %v1678
        %v7088 = vunpack.c.h.b16 %v1678
        %v7089 = vunpack.c.l.b16 %v1679
        %v7090 = vunpack.c.h.b16 %v1679
        %v7091 = vunpack.c.l.b16 %v1680
        %v7092 = vunpack.c.h.b16 %v1680
        %v7093 = vunpack.c.l.b16 %v1681
        %v7094 = vunpack.c.h.b16 %v1681
        %v7095 = vunpack.c.l.b16 %v1682
        %v7096 = vunpack.c.h.b16 %v1682
        %v7097 = vunpack.c.l.b16 %v1683
        %v7098 = vunpack.c.h.b16 %v1683
        %v7099 = vunpack.c.l.b16 %v1684
        %v7100 = vunpack.c.h.b16 %v1684
        %v7101 = vunpack.c.l.b16 %v1685
        %v7102 = vunpack.c.h.b16 %v1685
        %v7103 = vunpack.c.l.b16 %v1686
        %v7104 = vunpack.c.h.b16 %v1686
        %v7105 = vunpack.c.l.b16 %v1687
        %v7106 = vunpack.c.h.b16 %v1687
        %v7107 = vunpack.c.l.b16 %v1688
        %v7108 = vunpack.c.h.b16 %v1688
        %v7109 = vunpack.c.l.b16 %v1689
        %v7110 = vunpack.c.h.b16 %v1689
        %v7111 = vunpack.c.l.b16 %v1690
        %v7112 = vunpack.c.h.b16 %v1690
        %v7113 = vunpack.c.l.b16 %v1691
        %v7114 = vunpack.c.h.b16 %v1691
        %v7115 = vunpack.c.l.b16 %v1692
        %v7116 = vunpack.c.h.b16 %v1692
        %v7117 = vunpack.c.l.b16 %v1693
        %v7118 = vunpack.c.h.b16 %v1693
        %v7119 = vunpack.c.l.b16 %v1694
        %v7120 = vunpack.c.h.b16 %v1694
        %v7121 = vunpack.c.l.b16 %v1695
        %v7122 = vunpack.c.h.b16 %v1695
        %v7123 = vunpack.c.l.b16 %v1696
        %v7124 = vunpack.c.h.b16 %v1696
        %v7125 = vunpack.c.l.b16 %v1697
        %v7126 = vunpack.c.h.b16 %v1697
        %v7127 = vunpack.c.l.b16 %v1698
        %v7128 = vunpack.c.h.b16 %v1698
        %v7129 = vunpack.c.l.b16 %v1699
        %v7130 = vunpack.c.h.b16 %v1699
        %v7131 = vunpack.c.l.b16 %v1700
        %v7132 = vunpack.c.h.b16 %v1700
        %v7133 = vunpack.c.l.b16 %v1701
        %v7134 = vunpack.c.h.b16 %v1701
        %v7135 = vunpack.c.l.b16 %v1702
        %v7136 = vunpack.c.h.b16 %v1702
        %v7137 = vunpack.c.l.b16 %v1703
        %v7138 = vunpack.c.h.b16 %v1703
        %v7139 = vunpack.c.l.b16 %v1704
        %v7140 = vunpack.c.h.b16 %v1704
        %v7141 = vunpack.c.l.b16 %v1705
        %v7142 = vunpack.c.h.b16 %v1705
        %v7143 = vunpack.c.l.b16 %v1706
        %v7144 = vunpack.c.h.b16 %v1706
        %v7145 = vunpack.c.l.b16 %v1707
        %v7146 = vunpack.c.h.b16 %v1707
        %v7147 = vunpack.c.l.b16 %v1708
        %v7148 = vunpack.c.h.b16 %v1708
        %v7149 = vunpack.c.l.b16 %v1709
        %v7150 = vunpack.c.h.b16 %v1709
        %v7151 = vunpack.c.l.b16 %v1710
        %v7152 = vunpack.c.h.b16 %v1710
        %v7153 = vunpack.c.l.b16 %v1711
        %v7154 = vunpack.c.h.b16 %v1711
        %v7155 = vunpack.c.l.b16 %v1712
        %v7156 = vunpack.c.h.b16 %v1712
        %v7157 = vunpack.c.l.b16 %v1713
        %v7158 = vunpack.c.h.b16 %v1713
        %v7159 = vunpack.c.l.b16 %v1714
        %v7160 = vunpack.c.h.b16 %v1714
        %v7161 = vunpack.c.l.b16 %v1715
        %v7162 = vunpack.c.h.b16 %v1715
        %v7163 = vunpack.c.l.b16 %v1716
        %v7164 = vunpack.c.h.b16 %v1716
        %v7165 = vunpack.c.l.b16 %v1717
        %v7166 = vunpack.c.h.b16 %v1717
        %v7167 = vunpack.c.l.b16 %v1718
        %v7168 = vunpack.c.h.b16 %v1718
        %v7169 = vunpack.c.l.b16 %v1719
        %v7170 = vunpack.c.h.b16 %v1719
        %v7171 = vunpack.c.l.b16 %v1720
        %v7172 = vunpack.c.h.b16 %v1720
        %v7173 = vunpack.c.l.b16 %v1721
        %v7174 = vunpack.c.h.b16 %v1721
        %v7175 = vunpack.c.l.b16 %v1722
        %v7176 = vunpack.c.h.b16 %v1722
        %v7177 = vunpack.c.l.b16 %v1723
        %v7178 = vunpack.c.h.b16 %v1723
        %v7179 = vunpack.c.l.b16 %v1724
        %v7180 = vunpack.c.h.b16 %v1724
        %v7181 = vunpack.c.l.b16 %v1725
        %v7182 = vunpack.c.h.b16 %v1725
        %v7183 = vunpack.c.l.b16 %v1726
        %v7184 = vunpack.c.h.b16 %v1726
        %v7185 = vunpack.c.l.b16 %v1727
        %v7186 = vunpack.c.h.b16 %v1727
        %v7187 = vunpack.c.l.b16 %v1728
        %v7188 = vunpack.c.h.b16 %v1728
        %v7189 = vunpack.c.l.b16 %v1729
        %v7190 = vunpack.c.h.b16 %v1729
        %v7191 = vunpack.c.l.b16 %v1730
        %v7192 = vunpack.c.h.b16 %v1730
        %v7193 = vunpack.c.l.b16 %v1731
        %v7194 = vunpack.c.h.b16 %v1731
        %v7195 = vunpack.c.l.b16 %v1732
        %v7196 = vunpack.c.h.b16 %v1732
        %v7197 = vunpack.c.l.b16 %v1733
        %v7198 = vunpack.c.h.b16 %v1733
        %v7199 = vunpack.c.l.b16 %v1734
        %v7200 = vunpack.c.h.b16 %v1734
        %v7201 = vunpack.c.l.b16 %v1735
        %v7202 = vunpack.c.h.b16 %v1735
        %v7203 = vunpack.c.l.b16 %v1736
        %v7204 = vunpack.c.h.b16 %v1736
        %v7205 = vunpack.c.l.b16 %v1737
        %v7206 = vunpack.c.h.b16 %v1737
        %v7207 = vunpack.c.l.b16 %v1738
        %v7208 = vunpack.c.h.b16 %v1738
        %v7209 = vunpack.c.l.b16 %v1739
        %v7210 = vunpack.c.h.b16 %v1739
        %v7211 = vunpack.c.l.b16 %v1740
        %v7212 = vunpack.c.h.b16 %v1740
        %v7213 = vunpack.c.l.b16 %v1741
        %v7214 = vunpack.c.h.b16 %v1741
        %v7215 = vunpack.c.l.b16 %v1742
        %v7216 = vunpack.c.h.b16 %v1742
        %v7217 = vunpack.c.l.b16 %v1743
        %v7218 = vunpack.c.h.b16 %v1743
        %v7219 = vunpack.c.l.b16 %v1744
        %v7220 = vunpack.c.h.b16 %v1744
        %v7221 = vunpack.c.l.b16 %v1745
        %v7222 = vunpack.c.h.b16 %v1745
        %v7223 = vunpack.c.l.b16 %v1746
        %v7224 = vunpack.c.h.b16 %v1746
        %v7225 = vunpack.c.l.b16 %v1747
        %v7226 = vunpack.c.h.b16 %v1747
        %v7227 = vunpack.c.l.b16 %v1748
        %v7228 = vunpack.c.h.b16 %v1748
        %v7229 = vunpack.c.l.b16 %v1749
        %v7230 = vunpack.c.h.b16 %v1749
        %v7231 = vunpack.c.l.b16 %v1750
        %v7232 = vunpack.c.h.b16 %v1750
        %v7233 = vunpack.c.l.b16 %v1751
        %v7234 = vunpack.c.h.b16 %v1751
        %v7235 = vunpack.c.l.b16 %v1752
        %v7236 = vunpack.c.h.b16 %v1752
        %v7237 = vunpack.c.l.b16 %v1753
        %v7238 = vunpack.c.h.b16 %v1753
        %v7239 = vunpack.c.l.b16 %v1754
        %v7240 = vunpack.c.h.b16 %v1754
        %v7241 = vunpack.c.l.b16 %v1755
        %v7242 = vunpack.c.h.b16 %v1755
        %v7243 = vunpack.c.l.b16 %v1756
        %v7244 = vunpack.c.h.b16 %v1756
        %v7245 = vunpack.c.l.b16 %v1757
        %v7246 = vunpack.c.h.b16 %v1757
        %v7247 = vunpack.c.l.b16 %v1758
        %v7248 = vunpack.c.h.b16 %v1758
        %v7249 = vunpack.c.l.b16 %v1759
        %v7250 = vunpack.c.h.b16 %v1759
        %v7251 = vunpack.c.l.b16 %v1760
        %v7252 = vunpack.c.h.b16 %v1760
        %v7253 = vunpack.c.l.b16 %v1761
        %v7254 = vunpack.c.h.b16 %v1761
        %v7255 = vunpack.c.l.b16 %v1762
        %v7256 = vunpack.c.h.b16 %v1762
        %v7257 = vunpack.c.l.b16 %v1763
        %v7258 = vunpack.c.h.b16 %v1763
        %v7259 = vunpack.c.l.b16 %v1764
        %v7260 = vunpack.c.h.b16 %v1764
        %v7261 = vunpack.c.l.b16 %v1765
        %v7262 = vunpack.c.h.b16 %v1765
        %v7263 = vunpack.c.l.b16 %v1766
        %v7264 = vunpack.c.h.b16 %v1766
        %v7265 = vunpack.c.l.b16 %v1767
        %v7266 = vunpack.c.h.b16 %v1767
        %v7267 = vunpack.c.l.b16 %v1768
        %v7268 = vunpack.c.h.b16 %v1768
        %v7269 = vunpack.c.l.b16 %v1769
        %v7270 = vunpack.c.h.b16 %v1769
        %v7271 = vunpack.c.l.b16 %v1770
        %v7272 = vunpack.c.h.b16 %v1770
        %v7273 = vunpack.c.l.b16 %v1771
        %v7274 = vunpack.c.h.b16 %v1771
        %v7275 = vunpack.c.l.b16 %v1772
        %v7276 = vunpack.c.h.b16 %v1772
        %v7277 = vunpack.c.l.b16 %v1773
        %v7278 = vunpack.c.h.b16 %v1773
        %v7279 = vunpack.c.l.b16 %v1774
        %v7280 = vunpack.c.h.b16 %v1774
        %v7281 = vunpack.c.l.b16 %v1775
        %v7282 = vunpack.c.h.b16 %v1775
        %v7283 = vunpack.c.l.b16 %v1776
        %v7284 = vunpack.c.h.b16 %v1776
        %v7285 = vunpack.c.l.b16 %v1777
        %v7286 = vunpack.c.h.b16 %v1777
        %v7287 = vunpack.c.l.b16 %v1778
        %v7288 = vunpack.c.h.b16 %v1778
        %v7289 = vunpack.c.l.b16 %v1779
        %v7290 = vunpack.c.h.b16 %v1779
        %v7291 = vunpack.c.l.b16 %v1780
        %v7292 = vunpack.c.h.b16 %v1780
        %v7293 = vunpack.c.l.b16 %v1781
        %v7294 = vunpack.c.h.b16 %v1781
        %v7295 = vunpack.c.l.b16 %v1782
        %v7296 = vunpack.c.h.b16 %v1782
        %v7297 = vunpack.c.l.b16 %v1783
        %v7298 = vunpack.c.h.b16 %v1783
        %v7299 = vunpack.c.l.b16 %v1784
        %v7300 = vunpack.c.h.b16 %v1784
        %v7301 = vunpack.c.l.b16 %v1785
        %v7302 = vunpack.c.h.b16 %v1785
        %v7303 = vunpack.c.l.b16 %v1786
        %v7304 = vunpack.c.h.b16 %v1786
        %v7305 = vunpack.c.l.b16 %v1787
        %v7306 = vunpack.c.h.b16 %v1787
        %v7307 = vunpack.c.l.b16 %v1788
        %v7308 = vunpack.c.h.b16 %v1788
        %v7309 = vunpack.c.l.b16 %v1789
        %v7310 = vunpack.c.h.b16 %v1789
        %v7311 = vunpack.c.l.b16 %v1790
        %v7312 = vunpack.c.h.b16 %v1790
        %v7313 = vunpack.c.l.b16 %v1791
        %v7314 = vunpack.c.h.b16 %v1791
        %v7315 = vunpack.c.l.b16 %v1792
        %v7316 = vunpack.c.h.b16 %v1792
        %v7317 = vunpack.c.l.b16 %v1793
        %v7318 = vunpack.c.h.b16 %v1793
        %v7319 = vunpack.c.l.b16 %v1794
        %v7320 = vunpack.c.h.b16 %v1794
        %v7321 = vunpack.c.l.b16 %v1795
        %v7322 = vunpack.c.h.b16 %v1795
        %v7323 = vunpack.c.l.b16 %v1796
        %v7324 = vunpack.c.h.b16 %v1796
        %v7325 = vunpack.c.l.b16 %v1797
        %v7326 = vunpack.c.h.b16 %v1797
        %v7327 = vunpack.c.l.b16 %v1798
        %v7328 = vunpack.c.h.b16 %v1798
        %v7329 = vunpack.c.l.b16 %v1799
        %v7330 = vunpack.c.h.b16 %v1799
        %v7331 = vunpack.c.l.b16 %v1800
        %v7332 = vunpack.c.h.b16 %v1800
        %v7333 = vunpack.c.l.b16 %v1801
        %v7334 = vunpack.c.h.b16 %v1801
        %v7335 = vunpack.c.l.b16 %v1802
        %v7336 = vunpack.c.h.b16 %v1802
        %v7337 = vunpack.c.l.b16 %v1803
        %v7338 = vunpack.c.h.b16 %v1803
        %v7339 = vunpack.c.l.b16 %v1804
        %v7340 = vunpack.c.h.b16 %v1804
        %v7341 = vunpack.c.l.b16 %v1805
        %v7342 = vunpack.c.h.b16 %v1805
        %v7343 = vunpack.c.l.b16 %v1806
        %v7344 = vunpack.c.h.b16 %v1806
        %v7345 = vunpack.c.l.b16 %v1807
        %v7346 = vunpack.c.h.b16 %v1807
        %v7347 = vunpack.c.l.b16 %v1808
        %v7348 = vunpack.c.h.b16 %v1808
        %v7349 = vunpack.c.l.b16 %v1809
        %v7350 = vunpack.c.h.b16 %v1809
        %v7351 = vunpack.c.l.b16 %v1810
        %v7352 = vunpack.c.h.b16 %v1810
        %v7353 = vunpack.c.l.b16 %v1811
        %v7354 = vunpack.c.h.b16 %v1811
        %v7355 = vunpack.c.l.b16 %v1812
        %v7356 = vunpack.c.h.b16 %v1812
        %v7357 = vunpack.c.l.b16 %v1813
        %v7358 = vunpack.c.h.b16 %v1813
        %v7359 = vunpack.c.l.b16 %v1814
        %v7360 = vunpack.c.h.b16 %v1814
        %v7361 = vunpack.c.l.b16 %v1815
        %v7362 = vunpack.c.h.b16 %v1815
        %v7363 = vunpack.c.l.b16 %v1816
        %v7364 = vunpack.c.h.b16 %v1816
        %v7365 = vunpack.c.l.b16 %v1817
        %v7366 = vunpack.c.h.b16 %v1817
        %v7367 = vunpack.c.l.b16 %v1818
        %v7368 = vunpack.c.h.b16 %v1818
        %v7369 = vunpack.c.l.b16 %v1819
        %v7370 = vunpack.c.h.b16 %v1819
        %v7371 = vunpack.c.l.b16 %v1820
        %v7372 = vunpack.c.h.b16 %v1820
        %v7373 = vunpack.c.l.b16 %v1821
        %v7374 = vunpack.c.h.b16 %v1821
        %v7375 = vunpack.c.l.b16 %v1822
        %v7376 = vunpack.c.h.b16 %v1822
        %v7377 = vunpack.c.l.b16 %v1823
        %v7378 = vunpack.c.h.b16 %v1823
        %v7379 = vunpack.c.l.b16 %v1824
        %v7380 = vunpack.c.h.b16 %v1824
        %v7381 = vunpack.c.l.b16 %v1825
        %v7382 = vunpack.c.h.b16 %v1825
        %v7383 = vunpack.c.l.b16 %v1826
        %v7384 = vunpack.c.h.b16 %v1826
        %v7385 = vunpack.c.l.b16 %v1827
        %v7386 = vunpack.c.h.b16 %v1827
        %v7387 = vunpack.c.l.b16 %v1828
        %v7388 = vunpack.c.h.b16 %v1828
        %v7389 = vunpack.c.l.b16 %v1829
        %v7390 = vunpack.c.h.b16 %v1829
        %v7391 = vunpack.c.l.b16 %v1830
        %v7392 = vunpack.c.h.b16 %v1830
        %v7393 = vunpack.c.l.b16 %v1831
        %v7394 = vunpack.c.h.b16 %v1831
        %v7395 = vunpack.c.l.b16 %v1832
        %v7396 = vunpack.c.h.b16 %v1832
        %v7397 = vunpack.c.l.b16 %v1833
        %v7398 = vunpack.c.h.b16 %v1833
        %v7399 = vunpack.c.l.b16 %v1834
        %v7400 = vunpack.c.h.b16 %v1834
        %v7401 = vunpack.c.l.b16 %v1835
        %v7402 = vunpack.c.h.b16 %v1835
        %v7403 = vunpack.c.l.b16 %v1836
        %v7404 = vunpack.c.h.b16 %v1836
        %v7405 = vunpack.c.l.b16 %v1837
        %v7406 = vunpack.c.h.b16 %v1837
        %v7407 = vunpack.c.l.b16 %v1838
        %v7408 = vunpack.c.h.b16 %v1838
        %v7409 = vunpack.c.l.b16 %v1839
        %v7410 = vunpack.c.h.b16 %v1839
        %v7411 = vunpack.c.l.b16 %v1840
        %v7412 = vunpack.c.h.b16 %v1840
        %v7413 = vunpack.c.l.b16 %v1841
        %v7414 = vunpack.c.h.b16 %v1841
        %v7415 = vunpack.c.l.b16 %v1842
        %v7416 = vunpack.c.h.b16 %v1842
        %v7417 = vunpack.c.l.b16 %v1843
        %v7418 = vunpack.c.h.b16 %v1843
        %v7419 = vunpack.c.l.b16 %v1844
        %v7420 = vunpack.c.h.b16 %v1844
        %v7421 = vunpack.c.l.b16 %v1845
        %v7422 = vunpack.c.h.b16 %v1845
        %v7423 = vunpack.c.l.b16 %v1846
        %v7424 = vunpack.c.h.b16 %v1846
        %v7425 = vunpack.c.l.b16 %v1847
        %v7426 = vunpack.c.h.b16 %v1847
        %v7427 = vunpack.c.l.b16 %v1848
        %v7428 = vunpack.c.h.b16 %v1848
        %v7429 = vunpack.c.l.b16 %v1849
        %v7430 = vunpack.c.h.b16 %v1849
        %v7431 = vunpack.c.l.b16 %v1850
        %v7432 = vunpack.c.h.b16 %v1850
        %v7433 = vunpack.c.l.b16 %v1851
        %v7434 = vunpack.c.h.b16 %v1851
        %v7435 = vunpack.c.l.b16 %v1852
        %v7436 = vunpack.c.h.b16 %v1852
        %v7437 = vunpack.c.l.b16 %v1853
        %v7438 = vunpack.c.h.b16 %v1853
        %v7439 = vunpack.c.l.b16 %v1854
        %v7440 = vunpack.c.h.b16 %v1854
        %v7441 = vunpack.c.l.b16 %v1855
        %v7442 = vunpack.c.h.b16 %v1855
        %v7443 = vunpack.c.l.b16 %v1856
        %v7444 = vunpack.c.h.b16 %v1856
        %v7445 = vunpack.c.l.b16 %v1857
        %v7446 = vunpack.c.h.b16 %v1857
        %v7447 = vunpack.c.l.b16 %v1858
        %v7448 = vunpack.c.h.b16 %v1858
        %v7449 = vunpack.c.l.b16 %v1859
        %v7450 = vunpack.c.h.b16 %v1859
        %v7451 = vunpack.c.l.b16 %v1860
        %v7452 = vunpack.c.h.b16 %v1860
        %v7453 = vunpack.c.l.b16 %v1861
        %v7454 = vunpack.c.h.b16 %v1861
        %v7455 = vunpack.c.l.b16 %v1862
        %v7456 = vunpack.c.h.b16 %v1862
        %v7457 = vunpack.c.l.b16 %v1863
        %v7458 = vunpack.c.h.b16 %v1863
        %v7459 = vunpack.c.l.b16 %v1864
        %v7460 = vunpack.c.h.b16 %v1864
        %v7461 = vunpack.c.l.b16 %v1865
        %v7462 = vunpack.c.h.b16 %v1865
        %v7463 = vunpack.c.l.b16 %v1866
        %v7464 = vunpack.c.h.b16 %v1866
        %v7465 = vunpack.c.l.b16 %v1867
        %v7466 = vunpack.c.h.b16 %v1867
        %v7467 = vunpack.c.l.b16 %v1868
        %v7468 = vunpack.c.h.b16 %v1868
        %v7469 = vunpack.c.l.b16 %v1869
        %v7470 = vunpack.c.h.b16 %v1869
        %v7471 = vunpack.c.l.b16 %v1870
        %v7472 = vunpack.c.h.b16 %v1870
        %v7473 = vunpack.c.l.b16 %v1871
        %v7474 = vunpack.c.h.b16 %v1871
        %v7475 = vunpack.c.l.b16 %v1872
        %v7476 = vunpack.c.h.b16 %v1872
        %v7477 = vunpack.c.l.b16 %v1873
        %v7478 = vunpack.c.h.b16 %v1873
        %v7479 = vunpack.c.l.b16 %v1874
        %v7480 = vunpack.c.h.b16 %v1874
        %v7481 = vunpack.c.l.b16 %v1875
        %v7482 = vunpack.c.h.b16 %v1875
        %v7483 = vunpack.c.l.b16 %v1876
        %v7484 = vunpack.c.h.b16 %v1876
        %v7485 = vunpack.c.l.b16 %v1877
        %v7486 = vunpack.c.h.b16 %v1877
        %v7487 = vunpack.c.l.b16 %v1878
        %v7488 = vunpack.c.h.b16 %v1878
        %v7489 = vunpack.c.l.b16 %v1879
        %v7490 = vunpack.c.h.b16 %v1879
        %v7491 = vunpack.c.l.b16 %v1880
        %v7492 = vunpack.c.h.b16 %v1880
        %v7493 = vunpack.c.l.b16 %v1881
        %v7494 = vunpack.c.h.b16 %v1881
        %v7495 = vunpack.c.l.b16 %v1882
        %v7496 = vunpack.c.h.b16 %v1882
        %v7497 = vunpack.c.l.b16 %v1883
        %v7498 = vunpack.c.h.b16 %v1883
        %v7499 = vunpack.c.l.b16 %v1884
        %v7500 = vunpack.c.h.b16 %v1884
        %v7501 = vunpack.c.l.b16 %v1885
        %v7502 = vunpack.c.h.b16 %v1885
        %v7503 = vunpack.c.l.b16 %v1886
        %v7504 = vunpack.c.h.b16 %v1886
        %v7505 = vunpack.c.l.b16 %v1887
        %v7506 = vunpack.c.h.b16 %v1887
        %v7507 = vunpack.c.l.b16 %v1888
        %v7508 = vunpack.c.h.b16 %v1888
        %v7509 = vunpack.c.l.b16 %v1889
        %v7510 = vunpack.c.h.b16 %v1889
        %v7511 = vunpack.c.l.b16 %v1890
        %v7512 = vunpack.c.h.b16 %v1890
        %v7513 = vunpack.c.l.b16 %v1891
        %v7514 = vunpack.c.h.b16 %v1891
        %v7515 = vunpack.c.l.b16 %v1892
        %v7516 = vunpack.c.h.b16 %v1892
        %v7517 = vunpack.c.l.b16 %v1893
        %v7518 = vunpack.c.h.b16 %v1893
        %v7519 = vunpack.c.l.b16 %v1894
        %v7520 = vunpack.c.h.b16 %v1894
        %v7521 = vunpack.c.l.b16 %v1895
        %v7522 = vunpack.c.h.b16 %v1895
        %v7523 = vunpack.c.l.b16 %v1896
        %v7524 = vunpack.c.h.b16 %v1896
        %v7525 = vunpack.c.l.b16 %v1897
        %v7526 = vunpack.c.h.b16 %v1897
        %v7527 = vunpack.c.l.b16 %v1898
        %v7528 = vunpack.c.h.b16 %v1898
        %v7529 = vunpack.c.l.b16 %v1899
        %v7530 = vunpack.c.h.b16 %v1899
        %v7531 = vunpack.c.l.b16 %v1900
        %v7532 = vunpack.c.h.b16 %v1900
        %v7533 = vunpack.c.l.b16 %v1901
        %v7534 = vunpack.c.h.b16 %v1901
        %v7535 = vunpack.c.l.b16 %v1902
        %v7536 = vunpack.c.h.b16 %v1902
        %v7537 = vunpack.c.l.b16 %v1903
        %v7538 = vunpack.c.h.b16 %v1903
        %v7539 = vunpack.c.l.b16 %v1904
        %v7540 = vunpack.c.h.b16 %v1904
        %v7541 = vunpack.c.l.b16 %v1905
        %v7542 = vunpack.c.h.b16 %v1905
        %v7543 = vunpack.c.l.b16 %v1906
        %v7544 = vunpack.c.h.b16 %v1906
        %v7545 = vunpack.c.l.b16 %v1907
        %v7546 = vunpack.c.h.b16 %v1907
        %v7547 = vunpack.c.l.b16 %v1908
        %v7548 = vunpack.c.h.b16 %v1908
        %v7549 = vunpack.c.l.b16 %v1909
        %v7550 = vunpack.c.h.b16 %v1909
        %v7551 = vunpack.c.l.b16 %v1910
        %v7552 = vunpack.c.h.b16 %v1910
        %v7553 = vunpack.c.l.b16 %v1911
        %v7554 = vunpack.c.h.b16 %v1911
        %v7555 = vunpack.c.l.b16 %v1912
        %v7556 = vunpack.c.h.b16 %v1912
        %v7557 = vunpack.c.l.b16 %v1913
        %v7558 = vunpack.c.h.b16 %v1913
        %v7559 = vunpack.c.l.b16 %v1914
        %v7560 = vunpack.c.h.b16 %v1914
        %v7561 = vunpack.c.l.b16 %v1915
        %v7562 = vunpack.c.h.b16 %v1915
        %v7563 = vunpack.c.l.b16 %v1916
        %v7564 = vunpack.c.h.b16 %v1916
        %v7565 = vunpack.c.l.b16 %v1917
        %v7566 = vunpack.c.h.b16 %v1917
        %v7567 = vunpack.c.l.b16 %v1918
        %v7568 = vunpack.c.h.b16 %v1918
        %v7569 = vunpack.c.l.b16 %v1919
        %v7570 = vunpack.c.h.b16 %v1919
        %v7571 = vunpack.c.l.b16 %v1920
        %v7572 = vunpack.c.h.b16 %v1920
        %v7573 = vunpack.c.l.b16 %v1921
        %v7574 = vunpack.c.h.b16 %v1921
        %v7575 = vunpack.c.l.b16 %v1922
        %v7576 = vunpack.c.h.b16 %v1922
        %v7577 = vunpack.c.l.b16 %v1923
        %v7578 = vunpack.c.h.b16 %v1923
        %v7579 = vunpack.c.l.b16 %v1924
        %v7580 = vunpack.c.h.b16 %v1924
        %v7581 = vunpack.c.l.b16 %v1925
        %v7582 = vunpack.c.h.b16 %v1925
        %v7583 = vunpack.c.l.b16 %v1926
        %v7584 = vunpack.c.h.b16 %v1926
        %v7585 = vunpack.c.l.b16 %v1927
        %v7586 = vunpack.c.h.b16 %v1927
        %v7587 = vunpack.c.l.b16 %v1928
        %v7588 = vunpack.c.h.b16 %v1928
        %v7589 = vunpack.c.l.b16 %v1929
        %v7590 = vunpack.c.h.b16 %v1929
        %v7591 = vunpack.c.l.b16 %v1930
        %v7592 = vunpack.c.h.b16 %v1930
        %v7593 = vunpack.c.l.b16 %v1931
        %v7594 = vunpack.c.h.b16 %v1931
        %v7595 = vunpack.c.l.b16 %v1932
        %v7596 = vunpack.c.h.b16 %v1932
        %v7597 = vunpack.c.l.b16 %v1933
        %v7598 = vunpack.c.h.b16 %v1933
        %v7599 = vunpack.c.l.b16 %v1934
        %v7600 = vunpack.c.h.b16 %v1934
        %v7601 = vunpack.c.l.b16 %v1935
        %v7602 = vunpack.c.h.b16 %v1935
        %v7603 = vunpack.c.l.b16 %v1936
        %v7604 = vunpack.c.h.b16 %v1936
        %v7605 = vunpack.c.l.b16 %v1937
        %v7606 = vunpack.c.h.b16 %v1937
        %v7607 = vunpack.c.l.b16 %v1938
        %v7608 = vunpack.c.h.b16 %v1938
        %v7609 = vunpack.c.l.b16 %v1939
        %v7610 = vunpack.c.h.b16 %v1939
        %v7611 = vunpack.c.l.b16 %v1940
        %v7612 = vunpack.c.h.b16 %v1940
        %v7613 = vunpack.c.l.b16 %v1941
        %v7614 = vunpack.c.h.b16 %v1941
        %v7615 = vunpack.c.l.b16 %v1942
        %v7616 = vunpack.c.h.b16 %v1942
        %v7617 = vunpack.c.l.b16 %v1943
        %v7618 = vunpack.c.h.b16 %v1943
        %v7619 = vunpack.c.l.b16 %v1944
        %v7620 = vunpack.c.h.b16 %v1944
        %v7621 = vunpack.c.l.b16 %v1945
        %v7622 = vunpack.c.h.b16 %v1945
        %v7623 = vunpack.c.l.b16 %v1946
        %v7624 = vunpack.c.h.b16 %v1946
        %v7625 = vunpack.c.l.b16 %v1947
        %v7626 = vunpack.c.h.b16 %v1947
        %v7627 = vunpack.c.l.b16 %v1948
        %v7628 = vunpack.c.h.b16 %v1948
        %v7629 = vunpack.c.l.b16 %v1949
        %v7630 = vunpack.c.h.b16 %v1949
        %v7631 = vunpack.c.l.b16 %v1950
        %v7632 = vunpack.c.h.b16 %v1950
        %v7633 = vunpack.c.l.b16 %v1951
        %v7634 = vunpack.c.h.b16 %v1951
        %v7635 = vunpack.c.l.b16 %v1952
        %v7636 = vunpack.c.h.b16 %v1952
        %v7637 = vunpack.c.l.b16 %v1953
        %v7638 = vunpack.c.h.b16 %v1953
        %v7639 = vunpack.c.l.b16 %v1954
        %v7640 = vunpack.c.h.b16 %v1954
        %v7641 = vunpack.c.l.b16 %v1955
        %v7642 = vunpack.c.h.b16 %v1955
        %v7643 = vunpack.c.l.b16 %v1956
        %v7644 = vunpack.c.h.b16 %v1956
        %v7645 = vunpack.c.l.b16 %v1957
        %v7646 = vunpack.c.h.b16 %v1957
        %v7647 = vunpack.c.l.b16 %v1958
        %v7648 = vunpack.c.h.b16 %v1958
        %v7649 = vunpack.c.l.b16 %v1959
        %v7650 = vunpack.c.h.b16 %v1959
        %v7651 = vunpack.c.l.b16 %v1960
        %v7652 = vunpack.c.h.b16 %v1960
        %v7653 = vunpack.c.l.b16 %v1961
        %v7654 = vunpack.c.h.b16 %v1961
        %v7655 = vunpack.c.l.b16 %v1962
        %v7656 = vunpack.c.h.b16 %v1962
        %v7657 = vunpack.c.l.b16 %v1963
        %v7658 = vunpack.c.h.b16 %v1963
        %v7659 = vunpack.c.l.b16 %v1964
        %v7660 = vunpack.c.h.b16 %v1964
        %v7661 = vunpack.c.l.b16 %v1965
        %v7662 = vunpack.c.h.b16 %v1965
        %v7663 = vunpack.c.l.b16 %v1966
        %v7664 = vunpack.c.h.b16 %v1966
        %v7665 = vunpack.c.l.b16 %v1967
        %v7666 = vunpack.c.h.b16 %v1967
        %v7667 = vunpack.c.l.b16 %v1968
        %v7668 = vunpack.c.h.b16 %v1968
        %v7669 = vunpack.c.l.b16 %v1969
        %v7670 = vunpack.c.h.b16 %v1969
        %v7671 = vunpack.c.l.b16 %v1970
        %v7672 = vunpack.c.h.b16 %v1970
        %v7673 = vunpack.c.l.b16 %v1971
        %v7674 = vunpack.c.h.b16 %v1971
        %v7675 = vunpack.c.l.b16 %v1972
        %v7676 = vunpack.c.h.b16 %v1972
        %v7677 = vunpack.c.l.b16 %v1973
        %v7678 = vunpack.c.h.b16 %v1973
        %v7679 = vunpack.c.l.b16 %v1974
        %v7680 = vunpack.c.h.b16 %v1974
        %v7681 = vunpack.c.l.b16 %v1975
        %v7682 = vunpack.c.h.b16 %v1975
        %v7683 = vunpack.c.l.b16 %v1976
        %v7684 = vunpack.c.h.b16 %v1976
        %v7685 = vunpack.c.l.b16 %v1977
        %v7686 = vunpack.c.h.b16 %v1977
        %v7687 = vunpack.c.l.b16 %v1978
        %v7688 = vunpack.c.h.b16 %v1978
        %v7689 = vunpack.c.l.b16 %v1979
        %v7690 = vunpack.c.h.b16 %v1979
        %v7691 = vunpack.c.l.b16 %v1980
        %v7692 = vunpack.c.h.b16 %v1980
        %v7693 = vunpack.c.l.b16 %v1981
        %v7694 = vunpack.c.h.b16 %v1981
        %v7695 = vunpack.c.l.b16 %v1982
        %v7696 = vunpack.c.h.b16 %v1982
        %v7697 = vunpack.c.l.b16 %v1983
        %v7698 = vunpack.c.h.b16 %v1983
        %v7699 = vunpack.c.l.b16 %v1984
        %v7700 = vunpack.c.h.b16 %v1984
        %v7701 = vunpack.c.l.b16 %v1985
        %v7702 = vunpack.c.h.b16 %v1985
        %v7703 = vunpack.c.l.b16 %v1986
        %v7704 = vunpack.c.h.b16 %v1986
        %v7705 = vunpack.c.l.b16 %v1987
        %v7706 = vunpack.c.h.b16 %v1987
        %v7707 = vunpack.c.l.b16 %v1988
        %v7708 = vunpack.c.h.b16 %v1988
        %v7709 = vunpack.c.l.b16 %v1989
        %v7710 = vunpack.c.h.b16 %v1989
        %v7711 = vunpack.c.l.b16 %v1990
        %v7712 = vunpack.c.h.b16 %v1990
        %v7713 = vunpack.c.l.b16 %v1991
        %v7714 = vunpack.c.h.b16 %v1991
        %v7715 = vunpack.c.l.b16 %v1992
        %v7716 = vunpack.c.h.b16 %v1992
        %v7717 = vunpack.c.l.b16 %v1993
        %v7718 = vunpack.c.h.b16 %v1993
        %v7719 = vunpack.c.l.b16 %v1994
        %v7720 = vunpack.c.h.b16 %v1994
        %v7721 = vunpack.c.l.b16 %v1995
        %v7722 = vunpack.c.h.b16 %v1995
        %v7723 = vunpack.c.l.b16 %v1996
        %v7724 = vunpack.c.h.b16 %v1996
        %v7725 = vunpack.c.l.b16 %v1997
        %v7726 = vunpack.c.h.b16 %v1997
        %v7727 = vunpack.c.l.b16 %v1998
        %v7728 = vunpack.c.h.b16 %v1998
        %v7729 = vunpack.c.l.b16 %v1999
        %v7730 = vunpack.c.h.b16 %v1999
        %v7731 = vunpack.c.l.b16 %v2000
        %v7732 = vunpack.c.h.b16 %v2000
        %v7733 = vunpack.c.l.b16 %v2001
        %v7734 = vunpack.c.h.b16 %v2001
        %v7735 = vunpack.c.l.b16 %v2002
        %v7736 = vunpack.c.h.b16 %v2002
        %v7737 = vunpack.c.l.b16 %v2003
        %v7738 = vunpack.c.h.b16 %v2003
        %v7739 = vunpack.c.l.b16 %v2004
        %v7740 = vunpack.c.h.b16 %v2004
        %v7741 = vunpack.c.l.b16 %v2005
        %v7742 = vunpack.c.h.b16 %v2005
        %v7743 = vunpack.c.l.b16 %v2006
        %v7744 = vunpack.c.h.b16 %v2006
        %v7745 = vunpack.c.l.b16 %v2007
        %v7746 = vunpack.c.h.b16 %v2007
        %v7747 = vunpack.c.l.b16 %v2008
        %v7748 = vunpack.c.h.b16 %v2008
        %v7749 = vunpack.c.l.b16 %v2009
        %v7750 = vunpack.c.h.b16 %v2009
        %v7751 = vunpack.c.l.b16 %v2010
        %v7752 = vunpack.c.h.b16 %v2010
        %v7753 = vunpack.c.l.b16 %v2011
        %v7754 = vunpack.c.h.b16 %v2011
        %v7755 = vunpack.c.l.b16 %v2012
        %v7756 = vunpack.c.h.b16 %v2012
        %v7757 = vunpack.c.l.b16 %v2013
        %v7758 = vunpack.c.h.b16 %v2013
        %v7759 = vunpack.c.l.b16 %v2014
        %v7760 = vunpack.c.h.b16 %v2014
        %v7761 = vunpack.c.l.b16 %v2015
        %v7762 = vunpack.c.h.b16 %v2015
        %v7763 = vunpack.c.l.b16 %v2016
        %v7764 = vunpack.c.h.b16 %v2016
        %v7765 = vunpack.c.l.b16 %v2017
        %v7766 = vunpack.c.h.b16 %v2017
        %v7767 = vunpack.c.l.b16 %v2018
        %v7768 = vunpack.c.h.b16 %v2018
        %v7769 = vunpack.c.l.b16 %v2019
        %v7770 = vunpack.c.h.b16 %v2019
        %v7771 = vunpack.c.l.b16 %v2020
        %v7772 = vunpack.c.h.b16 %v2020
        %v7773 = vunpack.c.l.b16 %v2021
        %v7774 = vunpack.c.h.b16 %v2021
        %v7775 = vunpack.c.l.b16 %v2022
        %v7776 = vunpack.c.h.b16 %v2022
        %v7777 = vunpack.c.l.b16 %v2023
        %v7778 = vunpack.c.h.b16 %v2023
        %v7779 = vunpack.c.l.b16 %v2024
        %v7780 = vunpack.c.h.b16 %v2024
        %v7781 = vunpack.c.l.b16 %v2025
        %v7782 = vunpack.c.h.b16 %v2025
        %v7783 = vunpack.c.l.b16 %v2026
        %v7784 = vunpack.c.h.b16 %v2026
        %v7785 = vunpack.c.l.b16 %v2027
        %v7786 = vunpack.c.h.b16 %v2027
        %v7787 = vunpack.c.l.b16 %v2028
        %v7788 = vunpack.c.h.b16 %v2028
        %v7789 = vunpack.c.l.b16 %v2029
        %v7790 = vunpack.c.h.b16 %v2029
        %v7791 = vunpack.c.l.b16 %v2030
        %v7792 = vunpack.c.h.b16 %v2030
        %v7793 = vunpack.c.l.b16 %v2031
        %v7794 = vunpack.c.h.b16 %v2031
        %v7795 = vunpack.c.l.b16 %v2032
        %v7796 = vunpack.c.h.b16 %v2032
        %v7797 = vunpack.c.l.b16 %v2033
        %v7798 = vunpack.c.h.b16 %v2033
        %v7799 = vunpack.c.l.b16 %v2034
        %v7800 = vunpack.c.h.b16 %v2034
        %v7801 = vunpack.c.l.b16 %v2035
        %v7802 = vunpack.c.h.b16 %v2035
        %v7803 = vunpack.c.l.b16 %v2036
        %v7804 = vunpack.c.h.b16 %v2036
        %v7805 = vunpack.c.l.b16 %v2037
        %v7806 = vunpack.c.h.b16 %v2037
        %v7807 = vunpack.c.l.b16 %v2038
        %v7808 = vunpack.c.h.b16 %v2038
        %v7809 = vunpack.c.l.b16 %v2039
        %v7810 = vunpack.c.h.b16 %v2039
        %v7811 = vunpack.c.l.b16 %v2040
        %v7812 = vunpack.c.h.b16 %v2040
        %v7813 = vunpack.c.l.b16 %v2041
        %v7814 = vunpack.c.h.b16 %v2041
        %v7815 = vunpack.c.l.b16 %v2042
        %v7816 = vunpack.c.h.b16 %v2042
        %v7817 = vunpack.c.l.b16 %v2043
        %v7818 = vunpack.c.h.b16 %v2043
        %v7819 = vunpack.c.l.b16 %v2044
        %v7820 = vunpack.c.h.b16 %v2044
        %v7821 = vunpack.c.l.b16 %v2045
        %v7822 = vunpack.c.h.b16 %v2045
        %v7823 = vunpack.c.l.b16 %v2046
        %v7824 = vunpack.c.h.b16 %v2046
        %v7825 = vunpack.c.l.b16 %v2047
        %v7826 = vunpack.c.h.b16 %v2047
        %v7827 = vunpack.c.l.b16 %v2048
        %v7828 = vunpack.c.h.b16 %v2048
        %v7829 = vunpack.c.l.b16 %v2049
        %v7830 = vunpack.c.h.b16 %v2049
        %v7831 = vunpack.c.l.b16 %v2050
        %v7832 = vunpack.c.h.b16 %v2050
        %v7833 = vpack.c.b16 %v4253, %v4249
        %v7834 = vpack.c.b16 %v4254, %v4250
        %v7835 = vpack.c.b16 %v4255, %v4251
        %v7836 = vpack.c.b16 %v4256, %v4252
        %v7837 = vpack.c.b16 %v4261, %v4257
        %v7838 = vpack.c.b16 %v4262, %v4258
        %v7839 = vpack.c.b16 %v4263, %v4259
        %v7840 = vpack.c.b16 %v4264, %v4260
        %v7841 = vpack.c.b16 %v4269, %v4265
        %v7842 = vpack.c.b16 %v4270, %v4266
        %v7843 = vpack.c.b16 %v4271, %v4267
        %v7844 = vpack.c.b16 %v4272, %v4268
        %v7845 = vpack.c.b16 %v4277, %v4273
        %v7846 = vpack.c.b16 %v4278, %v4274
        %v7847 = vpack.c.b16 %v4279, %v4275
        %v7848 = vpack.c.b16 %v4280, %v4276
        %v7849 = vpack.c.b16 %v4285, %v4281
        %v7850 = vpack.c.b16 %v4286, %v4282
        %v7851 = vpack.c.b16 %v4287, %v4283
        %v7852 = vpack.c.b16 %v4288, %v4284
        %v7853 = vpack.c.b16 %v4293, %v4289
        %v7854 = vpack.c.b16 %v4294, %v4290
        %v7855 = vpack.c.b16 %v4295, %v4291
        %v7856 = vpack.c.b16 %v4296, %v4292
        %v7857 = vpack.c.b16 %v4301, %v4297
        %v7858 = vpack.c.b16 %v4302, %v4298
        %v7859 = vpack.c.b16 %v4303, %v4299
        %v7860 = vpack.c.b16 %v4304, %v4300
        %v7861 = vpack.c.b16 %v4309, %v4305
        %v7862 = vpack.c.b16 %v4310, %v4306
        %v7863 = vpack.c.b16 %v4311, %v4307
        %v7864 = vpack.c.b16 %v4312, %v4308
        %v7865 = vpack.c.b16 %v4317, %v4313
        %v7866 = vpack.c.b16 %v4318, %v4314
        %v7867 = vpack.c.b16 %v4319, %v4315
        %v7868 = vpack.c.b16 %v4320, %v4316
        %v7869 = vpack.c.b16 %v4325, %v4321
        %v7870 = vpack.c.b16 %v4326, %v4322
        %v7871 = vpack.c.b16 %v4327, %v4323
        %v7872 = vpack.c.b16 %v4328, %v4324
        %v7873 = vpack.c.b16 %v4333, %v4329
        %v7874 = vpack.c.b16 %v4334, %v4330
        %v7875 = vpack.c.b16 %v4335, %v4331
        %v7876 = vpack.c.b16 %v4336, %v4332
        %v7877 = vpack.c.b16 %v4341, %v4337
        %v7878 = vpack.c.b16 %v4342, %v4338
        %v7879 = vpack.c.b16 %v4343, %v4339
        %v7880 = vpack.c.b16 %v4344, %v4340
        %v7881 = vpack.c.b16 %v4349, %v4345
        %v7882 = vpack.c.b16 %v4350, %v4346
        %v7883 = vpack.c.b16 %v4351, %v4347
        %v7884 = vpack.c.b16 %v4352, %v4348
        %v7885 = vpack.c.b16 %v4357, %v4353
        %v7886 = vpack.c.b16 %v4358, %v4354
        %v7887 = vpack.c.b16 %v4359, %v4355
        %v7888 = vpack.c.b16 %v4360, %v4356
        %v7889 = vpack.c.b16 %v4365, %v4361
        %v7890 = vpack.c.b16 %v4366, %v4362
        %v7891 = vpack.c.b16 %v4367, %v4363
        %v7892 = vpack.c.b16 %v4368, %v4364
        %v7893 = vpack.c.b16 %v4373, %v4369
        %v7894 = vpack.c.b16 %v4374, %v4370
        %v7895 = vpack.c.b16 %v4375, %v4371
        %v7896 = vpack.c.b16 %v4376, %v4372
        %v7897 = vpack.c.b16 %v4381, %v4377
        %v7898 = vpack.c.b16 %v4382, %v4378
        %v7899 = vpack.c.b16 %v4383, %v4379
        %v7900 = vpack.c.b16 %v4384, %v4380
        %v7901 = vpack.c.b16 %v4389, %v4385
        %v7902 = vpack.c.b16 %v4390, %v4386
        %v7903 = vpack.c.b16 %v4391, %v4387
        %v7904 = vpack.c.b16 %v4392, %v4388
        %v7905 = vpack.c.b16 %v4397, %v4393
        %v7906 = vpack.c.b16 %v4398, %v4394
        %v7907 = vpack.c.b16 %v4399, %v4395
        %v7908 = vpack.c.b16 %v4400, %v4396
        %v7909 = vpack.c.b16 %v4405, %v4401
        %v7910 = vpack.c.b16 %v4406, %v4402
        %v7911 = vpack.c.b16 %v4407, %v4403
        %v7912 = vpack.c.b16 %v4408, %v4404
        %v7913 = vpack.c.b16 %v4413, %v4409
        %v7914 = vpack.c.b16 %v4414, %v4410
        %v7915 = vpack.c.b16 %v4415, %v4411
        %v7916 = vpack.c.b16 %v4416, %v4412
        %v7917 = vpack.c.b16 %v4421, %v4417
        %v7918 = vpack.c.b16 %v4422, %v4418
        %v7919 = vpack.c.b16 %v4423, %v4419
        %v7920 = vpack.c.b16 %v4424, %v4420
        %v7921 = vpack.c.b16 %v4429, %v4425
        %v7922 = vpack.c.b16 %v4430, %v4426
        %v7923 = vpack.c.b16 %v4431, %v4427
        %v7924 = vpack.c.b16 %v4432, %v4428
        %v7925 = vpack.c.b16 %v4437, %v4433
        %v7926 = vpack.c.b16 %v4438, %v4434
        %v7927 = vpack.c.b16 %v4439, %v4435
        %v7928 = vpack.c.b16 %v4440, %v4436
        %v7929 = vpack.c.b16 %v4445, %v4441
        %v7930 = vpack.c.b16 %v4446, %v4442
        %v7931 = vpack.c.b16 %v4447, %v4443
        %v7932 = vpack.c.b16 %v4448, %v4444
        %v7933 = vpack.c.b16 %v4453, %v4449
        %v7934 = vpack.c.b16 %v4454, %v4450
        %v7935 = vpack.c.b16 %v4455, %v4451
        %v7936 = vpack.c.b16 %v4456, %v4452
        %v7937 = vpack.c.b16 %v4461, %v4457
        %v7938 = vpack.c.b16 %v4462, %v4458
        %v7939 = vpack.c.b16 %v4463, %v4459
        %v7940 = vpack.c.b16 %v4464, %v4460
        %v7941 = vpack.c.b16 %v4469, %v4465
        %v7942 = vpack.c.b16 %v4470, %v4466
        %v7943 = vpack.c.b16 %v4471, %v4467
        %v7944 = vpack.c.b16 %v4472, %v4468
        %v7945 = vpack.c.b16 %v4477, %v4473
        %v7946 = vpack.c.b16 %v4478, %v4474
        %v7947 = vpack.c.b16 %v4479, %v4475
        %v7948 = vpack.c.b16 %v4480, %v4476
        %v7949 = vpack.c.b16 %v4485, %v4481
        %v7950 = vpack.c.b16 %v4486, %v4482
        %v7951 = vpack.c.b16 %v4487, %v4483
        %v7952 = vpack.c.b16 %v4488, %v4484
        %v7953 = vpack.c.b16 %v4493, %v4489
        %v7954 = vpack.c.b16 %v4494, %v4490
        %v7955 = vpack.c.b16 %v4495, %v4491
        %v7956 = vpack.c.b16 %v4496, %v4492
        %v7957 = vpack.c.b16 %v4501, %v4497
        %v7958 = vpack.c.b16 %v4502, %v4498
        %v7959 = vpack.c.b16 %v4503, %v4499
        %v7960 = vpack.c.b16 %v4504, %v4500
        %v7961 = vpack.c.b16 %v4509, %v4505
        %v7962 = vpack.c.b16 %v4510, %v4506
        %v7963 = vpack.c.b16 %v4511, %v4507
        %v7964 = vpack.c.b16 %v4512, %v4508
        %v7965 = vpack.c.b16 %v4517, %v4513
        %v7966 = vpack.c.b16 %v4518, %v4514
        %v7967 = vpack.c.b16 %v4519, %v4515
        %v7968 = vpack.c.b16 %v4520, %v4516
        %v7969 = vpack.c.b16 %v4525, %v4521
        %v7970 = vpack.c.b16 %v4526, %v4522
        %v7971 = vpack.c.b16 %v4527, %v4523
        %v7972 = vpack.c.b16 %v4528, %v4524
        %v7973 = vpack.c.b16 %v4533, %v4529
        %v7974 = vpack.c.b16 %v4534, %v4530
        %v7975 = vpack.c.b16 %v4535, %v4531
        %v7976 = vpack.c.b16 %v4536, %v4532
        %v7977 = vpack.c.b16 %v4541, %v4537
        %v7978 = vpack.c.b16 %v4542, %v4538
        %v7979 = vpack.c.b16 %v4543, %v4539
        %v7980 = vpack.c.b16 %v4544, %v4540
        %v7981 = vpack.c.b16 %v4549, %v4545
        %v7982 = vpack.c.b16 %v4550, %v4546
        %v7983 = vpack.c.b16 %v4551, %v4547
        %v7984 = vpack.c.b16 %v4552, %v4548
        %v7985 = vpack.c.b16 %v4557, %v4553
        %v7986 = vpack.c.b16 %v4558, %v4554
        %v7987 = vpack.c.b16 %v4559, %v4555
        %v7988 = vpack.c.b16 %v4560, %v4556
        %v7989 = vpack.c.b16 %v4565, %v4561
        %v7990 = vpack.c.b16 %v4566, %v4562
        %v7991 = vpack.c.b16 %v4567, %v4563
        %v7992 = vpack.c.b16 %v4568, %v4564
        %v7993 = vpack.c.b16 %v4573, %v4569
        %v7994 = vpack.c.b16 %v4574, %v4570
        %v7995 = vpack.c.b16 %v4575, %v4571
        %v7996 = vpack.c.b16 %v4576, %v4572
        %v7997 = vpack.c.b16 %v4581, %v4577
        %v7998 = vpack.c.b16 %v4582, %v4578
        %v7999 = vpack.c.b16 %v4583, %v4579
        %v8000 = vpack.c.b16 %v4584, %v4580
        %v8001 = vpack.c.b16 %v4589, %v4585
        %v8002 = vpack.c.b16 %v4590, %v4586
        %v8003 = vpack.c.b16 %v4591, %v4587
        %v8004 = vpack.c.b16 %v4592, %v4588
        %v8005 = vpack.c.b16 %v4597, %v4593
        %v8006 = vpack.c.b16 %v4598, %v4594
        %v8007 = vpack.c.b16 %v4599, %v4595
        %v8008 = vpack.c.b16 %v4600, %v4596
        %v8009 = vpack.c.b16 %v4605, %v4601
        %v8010 = vpack.c.b16 %v4606, %v4602
        %v8011 = vpack.c.b16 %v4607, %v4603
        %v8012 = vpack.c.b16 %v4608, %v4604
        %v8013 = vpack.c.b16 %v4613, %v4609
        %v8014 = vpack.c.b16 %v4614, %v4610
        %v8015 = vpack.c.b16 %v4615, %v4611
        %v8016 = vpack.c.b16 %v4616, %v4612
        %v8017 = vpack.c.b16 %v4621, %v4617
        %v8018 = vpack.c.b16 %v4622, %v4618
        %v8019 = vpack.c.b16 %v4623, %v4619
        %v8020 = vpack.c.b16 %v4624, %v4620
        %v8021 = vpack.c.b16 %v4629, %v4625
        %v8022 = vpack.c.b16 %v4630, %v4626
        %v8023 = vpack.c.b16 %v4631, %v4627
        %v8024 = vpack.c.b16 %v4632, %v4628
        %v8025 = vpack.c.b16 %v4637, %v4633
        %v8026 = vpack.c.b16 %v4638, %v4634
        %v8027 = vpack.c.b16 %v4639, %v4635
        %v8028 = vpack.c.b16 %v4640, %v4636
        %v8029 = vpack.c.b16 %v4645, %v4641
        %v8030 = vpack.c.b16 %v4646, %v4642
        %v8031 = vpack.c.b16 %v4647, %v4643
        %v8032 = vpack.c.b16 %v4648, %v4644
        %v8033 = vpack.c.b16 %v4653, %v4649
        %v8034 = vpack.c.b16 %v4654, %v4650
        %v8035 = vpack.c.b16 %v4655, %v4651
        %v8036 = vpack.c.b16 %v4656, %v4652
        %v8037 = vpack.c.b16 %v4661, %v4657
        %v8038 = vpack.c.b16 %v4662, %v4658
        %v8039 = vpack.c.b16 %v4663, %v4659
        %v8040 = vpack.c.b16 %v4664, %v4660
        %v8041 = vpack.c.b16 %v4669, %v4665
        %v8042 = vpack.c.b16 %v4670, %v4666
        %v8043 = vpack.c.b16 %v4671, %v4667
        %v8044 = vpack.c.b16 %v4672, %v4668
        %v8045 = vpack.c.b16 %v4677, %v4673
        %v8046 = vpack.c.b16 %v4678, %v4674
        %v8047 = vpack.c.b16 %v4679, %v4675
        %v8048 = vpack.c.b16 %v4680, %v4676
        %v8049 = vpack.c.b16 %v4685, %v4681
        %v8050 = vpack.c.b16 %v4686, %v4682
        %v8051 = vpack.c.b16 %v4687, %v4683
        %v8052 = vpack.c.b16 %v4688, %v4684
        %v8053 = vpack.c.b16 %v4693, %v4689
        %v8054 = vpack.c.b16 %v4694, %v4690
        %v8055 = vpack.c.b16 %v4695, %v4691
        %v8056 = vpack.c.b16 %v4696, %v4692
        %v8057 = vpack.c.b16 %v4701, %v4697
        %v8058 = vpack.c.b16 %v4702, %v4698
        %v8059 = vpack.c.b16 %v4703, %v4699
        %v8060 = vpack.c.b16 %v4704, %v4700
        %v8061 = vpack.c.b16 %v4709, %v4705
        %v8062 = vpack.c.b16 %v4710, %v4706
        %v8063 = vpack.c.b16 %v4711, %v4707
        %v8064 = vpack.c.b16 %v4712, %v4708
        %v8065 = vpack.c.b16 %v4717, %v4713
        %v8066 = vpack.c.b16 %v4718, %v4714
        %v8067 = vpack.c.b16 %v4719, %v4715
        %v8068 = vpack.c.b16 %v4720, %v4716
        %v8069 = vpack.c.b16 %v4725, %v4721
        %v8070 = vpack.c.b16 %v4726, %v4722
        %v8071 = vpack.c.b16 %v4727, %v4723
        %v8072 = vpack.c.b16 %v4728, %v4724
        %v8073 = vpack.c.b16 %v4733, %v4729
        %v8074 = vpack.c.b16 %v4734, %v4730
        %v8075 = vpack.c.b16 %v4735, %v4731
        %v8076 = vpack.c.b16 %v4736, %v4732
        %v8077 = vpack.c.b16 %v4741, %v4737
        %v8078 = vpack.c.b16 %v4742, %v4738
        %v8079 = vpack.c.b16 %v4743, %v4739
        %v8080 = vpack.c.b16 %v4744, %v4740
        %v8081 = vpack.c.b16 %v4749, %v4745
        %v8082 = vpack.c.b16 %v4750, %v4746
        %v8083 = vpack.c.b16 %v4751, %v4747
        %v8084 = vpack.c.b16 %v4752, %v4748
        %v8085 = vpack.c.b16 %v4757, %v4753
        %v8086 = vpack.c.b16 %v4758, %v4754
        %v8087 = vpack.c.b16 %v4759, %v4755
        %v8088 = vpack.c.b16 %v4760, %v4756
        %v8089 = vpack.c.b16 %v4765, %v4761
        %v8090 = vpack.c.b16 %v4766, %v4762
        %v8091 = vpack.c.b16 %v4767, %v4763
        %v8092 = vpack.c.b16 %v4768, %v4764
        %v8093 = vpack.c.b16 %v4773, %v4769
        %v8094 = vpack.c.b16 %v4774, %v4770
        %v8095 = vpack.c.b16 %v4775, %v4771
        %v8096 = vpack.c.b16 %v4776, %v4772
        %v8097 = vpack.c.b16 %v4781, %v4777
        %v8098 = vpack.c.b16 %v4782, %v4778
        %v8099 = vpack.c.b16 %v4783, %v4779
        %v8100 = vpack.c.b16 %v4784, %v4780
        %v8101 = vpack.c.b16 %v4789, %v4785
        %v8102 = vpack.c.b16 %v4790, %v4786
        %v8103 = vpack.c.b16 %v4791, %v4787
        %v8104 = vpack.c.b16 %v4792, %v4788
        %v8105 = vpack.c.b16 %v4797, %v4793
        %v8106 = vpack.c.b16 %v4798, %v4794
        %v8107 = vpack.c.b16 %v4799, %v4795
        %v8108 = vpack.c.b16 %v4800, %v4796
        %v8109 = vpack.c.b16 %v4805, %v4801
        %v8110 = vpack.c.b16 %v4806, %v4802
        %v8111 = vpack.c.b16 %v4807, %v4803
        %v8112 = vpack.c.b16 %v4808, %v4804
        %v8113 = vpack.c.b16 %v4813, %v4809
        %v8114 = vpack.c.b16 %v4814, %v4810
        %v8115 = vpack.c.b16 %v4815, %v4811
        %v8116 = vpack.c.b16 %v4816, %v4812
        %v8117 = vpack.c.b16 %v4821, %v4817
        %v8118 = vpack.c.b16 %v4822, %v4818
        %v8119 = vpack.c.b16 %v4823, %v4819
        %v8120 = vpack.c.b16 %v4824, %v4820
        %v8121 = vpack.c.b16 %v4829, %v4825
        %v8122 = vpack.c.b16 %v4830, %v4826
        %v8123 = vpack.c.b16 %v4831, %v4827
        %v8124 = vpack.c.b16 %v4832, %v4828
        %v8125 = vpack.c.b16 %v4837, %v4833
        %v8126 = vpack.c.b16 %v4838, %v4834
        %v8127 = vpack.c.b16 %v4839, %v4835
        %v8128 = vpack.c.b16 %v4840, %v4836
        %v8129 = vpack.c.b16 %v4845, %v4841
        %v8130 = vpack.c.b16 %v4846, %v4842
        %v8131 = vpack.c.b16 %v4847, %v4843
        %v8132 = vpack.c.b16 %v4848, %v4844
        %v8133 = vpack.c.b16 %v4853, %v4849
        %v8134 = vpack.c.b16 %v4854, %v4850
        %v8135 = vpack.c.b16 %v4855, %v4851
        %v8136 = vpack.c.b16 %v4856, %v4852
        %v8137 = vpack.c.b16 %v4861, %v4857
        %v8138 = vpack.c.b16 %v4862, %v4858
        %v8139 = vpack.c.b16 %v4863, %v4859
        %v8140 = vpack.c.b16 %v4864, %v4860
        %v8141 = vpack.c.b16 %v4869, %v4865
        %v8142 = vpack.c.b16 %v4870, %v4866
        %v8143 = vpack.c.b16 %v4871, %v4867
        %v8144 = vpack.c.b16 %v4872, %v4868
        %v8145 = vpack.c.b16 %v4877, %v4873
        %v8146 = vpack.c.b16 %v4878, %v4874
        %v8147 = vpack.c.b16 %v4879, %v4875
        %v8148 = vpack.c.b16 %v4880, %v4876
        %v8149 = vpack.c.b16 %v4885, %v4881
        %v8150 = vpack.c.b16 %v4886, %v4882
        %v8151 = vpack.c.b16 %v4887, %v4883
        %v8152 = vpack.c.b16 %v4888, %v4884
        %v8153 = vpack.c.b16 %v4893, %v4889
        %v8154 = vpack.c.b16 %v4894, %v4890
        %v8155 = vpack.c.b16 %v4895, %v4891
        %v8156 = vpack.c.b16 %v4896, %v4892
        %v8157 = vpack.c.b16 %v4901, %v4897
        %v8158 = vpack.c.b16 %v4902, %v4898
        %v8159 = vpack.c.b16 %v4903, %v4899
        %v8160 = vpack.c.b16 %v4904, %v4900
        %v8161 = vpack.c.b16 %v4909, %v4905
        %v8162 = vpack.c.b16 %v4910, %v4906
        %v8163 = vpack.c.b16 %v4911, %v4907
        %v8164 = vpack.c.b16 %v4912, %v4908
        %v8165 = vpack.c.b16 %v4917, %v4913
        %v8166 = vpack.c.b16 %v4918, %v4914
        %v8167 = vpack.c.b16 %v4919, %v4915
        %v8168 = vpack.c.b16 %v4920, %v4916
        %v8169 = vpack.c.b16 %v4925, %v4921
        %v8170 = vpack.c.b16 %v4926, %v4922
        %v8171 = vpack.c.b16 %v4927, %v4923
        %v8172 = vpack.c.b16 %v4928, %v4924
        %v8173 = vpack.c.b16 %v4933, %v4929
        %v8174 = vpack.c.b16 %v4934, %v4930
        %v8175 = vpack.c.b16 %v4935, %v4931
        %v8176 = vpack.c.b16 %v4936, %v4932
        %v8177 = vpack.c.b16 %v4941, %v4937
        %v8178 = vpack.c.b16 %v4942, %v4938
        %v8179 = vpack.c.b16 %v4943, %v4939
        %v8180 = vpack.c.b16 %v4944, %v4940
        %v8181 = vpack.c.b16 %v4949, %v4945
        %v8182 = vpack.c.b16 %v4950, %v4946
        %v8183 = vpack.c.b16 %v4951, %v4947
        %v8184 = vpack.c.b16 %v4952, %v4948
        %v8185 = vpack.c.b16 %v4957, %v4953
        %v8186 = vpack.c.b16 %v4958, %v4954
        %v8187 = vpack.c.b16 %v4959, %v4955
        %v8188 = vpack.c.b16 %v4960, %v4956
        %v8189 = vpack.c.b16 %v4965, %v4961
        %v8190 = vpack.c.b16 %v4966, %v4962
        %v8191 = vpack.c.b16 %v4967, %v4963
        %v8192 = vpack.c.b16 %v4968, %v4964
        %v8193 = vpack.c.b16 %v4973, %v4969
        %v8194 = vpack.c.b16 %v4974, %v4970
        %v8195 = vpack.c.b16 %v4975, %v4971
        %v8196 = vpack.c.b16 %v4976, %v4972
        %v8197 = vpack.c.b16 %v4981, %v4977
        %v8198 = vpack.c.b16 %v4982, %v4978
        %v8199 = vpack.c.b16 %v4983, %v4979
        %v8200 = vpack.c.b16 %v4984, %v4980
        %v8201 = vpack.c.b16 %v4989, %v4985
        %v8202 = vpack.c.b16 %v4990, %v4986
        %v8203 = vpack.c.b16 %v4991, %v4987
        %v8204 = vpack.c.b16 %v4992, %v4988
        %v8205 = vpack.c.b16 %v4997, %v4993
        %v8206 = vpack.c.b16 %v4998, %v4994
        %v8207 = vpack.c.b16 %v4999, %v4995
        %v8208 = vpack.c.b16 %v5000, %v4996
        %v8209 = vpack.c.b16 %v5005, %v5001
        %v8210 = vpack.c.b16 %v5006, %v5002
        %v8211 = vpack.c.b16 %v5007, %v5003
        %v8212 = vpack.c.b16 %v5008, %v5004
        %v8213 = vpack.c.b16 %v5013, %v5009
        %v8214 = vpack.c.b16 %v5014, %v5010
        %v8215 = vpack.c.b16 %v5015, %v5011
        %v8216 = vpack.c.b16 %v5016, %v5012
        %v8217 = vpack.c.b16 %v5021, %v5017
        %v8218 = vpack.c.b16 %v5022, %v5018
        %v8219 = vpack.c.b16 %v5023, %v5019
        %v8220 = vpack.c.b16 %v5024, %v5020
        %v8221 = vpack.c.b16 %v5029, %v5025
        %v8222 = vpack.c.b16 %v5030, %v5026
        %v8223 = vpack.c.b16 %v5031, %v5027
        %v8224 = vpack.c.b16 %v5032, %v5028
        %v8225 = vpack.c.b16 %v5037, %v5033
        %v8226 = vpack.c.b16 %v5038, %v5034
        %v8227 = vpack.c.b16 %v5039, %v5035
        %v8228 = vpack.c.b16 %v5040, %v5036
        %v8229 = vpack.c.b16 %v5045, %v5041
        %v8230 = vpack.c.b16 %v5046, %v5042
        %v8231 = vpack.c.b16 %v5047, %v5043
        %v8232 = vpack.c.b16 %v5048, %v5044
        %v8233 = vpack.c.b16 %v5053, %v5049
        %v8234 = vpack.c.b16 %v5054, %v5050
        %v8235 = vpack.c.b16 %v5055, %v5051
        %v8236 = vpack.c.b16 %v5056, %v5052
        %v8237 = vpack.c.b16 %v5061, %v5057
        %v8238 = vpack.c.b16 %v5062, %v5058
        %v8239 = vpack.c.b16 %v5063, %v5059
        %v8240 = vpack.c.b16 %v5064, %v5060
        %v8241 = vpack.c.b16 %v5069, %v5065
        %v8242 = vpack.c.b16 %v5070, %v5066
        %v8243 = vpack.c.b16 %v5071, %v5067
        %v8244 = vpack.c.b16 %v5072, %v5068
        %v8245 = vpack.c.b16 %v5077, %v5073
        %v8246 = vpack.c.b16 %v5078, %v5074
        %v8247 = vpack.c.b16 %v5079, %v5075
        %v8248 = vpack.c.b16 %v5080, %v5076
        %v8249 = vpack.c.b16 %v5085, %v5081
        %v8250 = vpack.c.b16 %v5086, %v5082
        %v8251 = vpack.c.b16 %v5087, %v5083
        %v8252 = vpack.c.b16 %v5088, %v5084
        %v8253 = vpack.c.b16 %v5093, %v5089
        %v8254 = vpack.c.b16 %v5094, %v5090
        %v8255 = vpack.c.b16 %v5095, %v5091
        %v8256 = vpack.c.b16 %v5096, %v5092
        %v8257 = vpack.c.b16 %v5101, %v5097
        %v8258 = vpack.c.b16 %v5102, %v5098
        %v8259 = vpack.c.b16 %v5103, %v5099
        %v8260 = vpack.c.b16 %v5104, %v5100
        %v8261 = vpack.c.b16 %v5109, %v5105
        %v8262 = vpack.c.b16 %v5110, %v5106
        %v8263 = vpack.c.b16 %v5111, %v5107
        %v8264 = vpack.c.b16 %v5112, %v5108
        %v8265 = vpack.c.b16 %v5117, %v5113
        %v8266 = vpack.c.b16 %v5118, %v5114
        %v8267 = vpack.c.b16 %v5119, %v5115
        %v8268 = vpack.c.b16 %v5120, %v5116
        %v8269 = vpack.c.b16 %v5125, %v5121
        %v8270 = vpack.c.b16 %v5126, %v5122
        %v8271 = vpack.c.b16 %v5127, %v5123
        %v8272 = vpack.c.b16 %v5128, %v5124
        %v8273 = vpack.c.b16 %v5133, %v5129
        %v8274 = vpack.c.b16 %v5134, %v5130
        %v8275 = vpack.c.b16 %v5135, %v5131
        %v8276 = vpack.c.b16 %v5136, %v5132
        %v8277 = vpack.c.b16 %v5141, %v5137
        %v8278 = vpack.c.b16 %v5142, %v5138
        %v8279 = vpack.c.b16 %v5143, %v5139
        %v8280 = vpack.c.b16 %v5144, %v5140
        %v8281 = vpack.c.b16 %v5149, %v5145
        %v8282 = vpack.c.b16 %v5150, %v5146
        %v8283 = vpack.c.b16 %v5151, %v5147
        %v8284 = vpack.c.b16 %v5152, %v5148
        %v8285 = vpack.c.b16 %v5157, %v5153
        %v8286 = vpack.c.b16 %v5158, %v5154
        %v8287 = vpack.c.b16 %v5159, %v5155
        %v8288 = vpack.c.b16 %v5160, %v5156
        %v8289 = vpack.c.b16 %v5165, %v5161
        %v8290 = vpack.c.b16 %v5166, %v5162
        %v8291 = vpack.c.b16 %v5167, %v5163
        %v8292 = vpack.c.b16 %v5168, %v5164
        %v8293 = vpack.c.b16 %v5173, %v5169
        %v8294 = vpack.c.b16 %v5174, %v5170
        %v8295 = vpack.c.b16 %v5175, %v5171
        %v8296 = vpack.c.b16 %v5176, %v5172
        %v8297 = vpack.c.b16 %v5181, %v5177
        %v8298 = vpack.c.b16 %v5182, %v5178
        %v8299 = vpack.c.b16 %v5183, %v5179
        %v8300 = vpack.c.b16 %v5184, %v5180
        %v8301 = vpack.c.b16 %v5189, %v5185
        %v8302 = vpack.c.b16 %v5190, %v5186
        %v8303 = vpack.c.b16 %v5191, %v5187
        %v8304 = vpack.c.b16 %v5192, %v5188
        %v8305 = vpack.c.b16 %v5197, %v5193
        %v8306 = vpack.c.b16 %v5198, %v5194
        %v8307 = vpack.c.b16 %v5199, %v5195
        %v8308 = vpack.c.b16 %v5200, %v5196
        %v8309 = vpack.c.b16 %v5205, %v5201
        %v8310 = vpack.c.b16 %v5206, %v5202
        %v8311 = vpack.c.b16 %v5207, %v5203
        %v8312 = vpack.c.b16 %v5208, %v5204
        %v8313 = vpack.c.b16 %v5213, %v5209
        %v8314 = vpack.c.b16 %v5214, %v5210
        %v8315 = vpack.c.b16 %v5215, %v5211
        %v8316 = vpack.c.b16 %v5216, %v5212
        %v8317 = vpack.c.b16 %v5221, %v5217
        %v8318 = vpack.c.b16 %v5222, %v5218
        %v8319 = vpack.c.b16 %v5223, %v5219
        %v8320 = vpack.c.b16 %v5224, %v5220
        %v8321 = vpack.c.b16 %v5229, %v5225
        %v8322 = vpack.c.b16 %v5230, %v5226
        %v8323 = vpack.c.b16 %v5231, %v5227
        %v8324 = vpack.c.b16 %v5232, %v5228
        %v8325 = vpack.c.b16 %v5237, %v5233
        %v8326 = vpack.c.b16 %v5238, %v5234
        %v8327 = vpack.c.b16 %v5239, %v5235
        %v8328 = vpack.c.b16 %v5240, %v5236
        %v8329 = vpack.c.b16 %v5245, %v5241
        %v8330 = vpack.c.b16 %v5246, %v5242
        %v8331 = vpack.c.b16 %v5247, %v5243
        %v8332 = vpack.c.b16 %v5248, %v5244
        %v8333 = vpack.c.b16 %v5253, %v5249
        %v8334 = vpack.c.b16 %v5254, %v5250
        %v8335 = vpack.c.b16 %v5255, %v5251
        %v8336 = vpack.c.b16 %v5256, %v5252
        %v8337 = vpack.c.b16 %v5261, %v5257
        %v8338 = vpack.c.b16 %v5262, %v5258
        %v8339 = vpack.c.b16 %v5263, %v5259
        %v8340 = vpack.c.b16 %v5264, %v5260
        %v8341 = vpack.c.b16 %v5269, %v5265
        %v8342 = vpack.c.b16 %v5270, %v5266
        %v8343 = vpack.c.b16 %v5271, %v5267
        %v8344 = vpack.c.b16 %v5272, %v5268
        %v8345 = vpack.c.b16 %v5277, %v5273
        %v8346 = vpack.c.b16 %v5278, %v5274
        %v8347 = vpack.c.b16 %v5279, %v5275
        %v8348 = vpack.c.b16 %v5280, %v5276
        %v8349 = vpack.c.b16 %v5285, %v5281
        %v8350 = vpack.c.b16 %v5286, %v5282
        %v8351 = vpack.c.b16 %v5287, %v5283
        %v8352 = vpack.c.b16 %v5288, %v5284
        %v8353 = vpack.c.b16 %v5293, %v5289
        %v8354 = vpack.c.b16 %v5294, %v5290
        %v8355 = vpack.c.b16 %v5295, %v5291
        %v8356 = vpack.c.b16 %v5296, %v5292
        %v8357 = vpack.c.b16 %v5301, %v5297
        %v8358 = vpack.c.b16 %v5302, %v5298
        %v8359 = vpack.c.b16 %v5303, %v5299
        %v8360 = vpack.c.b16 %v5304, %v5300
        %v8361 = vpack.c.b16 %v5309, %v5305
        %v8362 = vpack.c.b16 %v5310, %v5306
        %v8363 = vpack.c.b16 %v5311, %v5307
        %v8364 = vpack.c.b16 %v5312, %v5308
        %v8365 = vpack.c.b16 %v5317, %v5313
        %v8366 = vpack.c.b16 %v5318, %v5314
        %v8367 = vpack.c.b16 %v5319, %v5315
        %v8368 = vpack.c.b16 %v5320, %v5316
        %v8369 = vpack.c.b16 %v5325, %v5321
        %v8370 = vpack.c.b16 %v5326, %v5322
        %v8371 = vpack.c.b16 %v5327, %v5323
        %v8372 = vpack.c.b16 %v5328, %v5324
        %v8373 = vpack.c.b16 %v5333, %v5329
        %v8374 = vpack.c.b16 %v5334, %v5330
        %v8375 = vpack.c.b16 %v5335, %v5331
        %v8376 = vpack.c.b16 %v5336, %v5332
        %v8377 = vpack.c.b16 %v5341, %v5337
        %v8378 = vpack.c.b16 %v5342, %v5338
        %v8379 = vpack.c.b16 %v5343, %v5339
        %v8380 = vpack.c.b16 %v5344, %v5340
        %v8381 = vpack.c.b16 %v5349, %v5345
        %v8382 = vpack.c.b16 %v5350, %v5346
        %v8383 = vpack.c.b16 %v5351, %v5347
        %v8384 = vpack.c.b16 %v5352, %v5348
        %v8385 = vpack.c.b16 %v5357, %v5353
        %v8386 = vpack.c.b16 %v5358, %v5354
        %v8387 = vpack.c.b16 %v5359, %v5355
        %v8388 = vpack.c.b16 %v5360, %v5356
        %v8389 = vpack.c.b16 %v5365, %v5361
        %v8390 = vpack.c.b16 %v5366, %v5362
        %v8391 = vpack.c.b16 %v5367, %v5363
        %v8392 = vpack.c.b16 %v5368, %v5364
        %v8393 = vpack.c.b16 %v5373, %v5369
        %v8394 = vpack.c.b16 %v5374, %v5370
        %v8395 = vpack.c.b16 %v5375, %v5371
        %v8396 = vpack.c.b16 %v5376, %v5372
        %v8397 = vpack.c.b16 %v5381, %v5377
        %v8398 = vpack.c.b16 %v5382, %v5378
        %v8399 = vpack.c.b16 %v5383, %v5379
        %v8400 = vpack.c.b16 %v5384, %v5380
        %v8401 = vpack.c.b16 %v5389, %v5385
        %v8402 = vpack.c.b16 %v5390, %v5386
        %v8403 = vpack.c.b16 %v5391, %v5387
        %v8404 = vpack.c.b16 %v5392, %v5388
        %v8405 = vpack.c.b16 %v5397, %v5393
        %v8406 = vpack.c.b16 %v5398, %v5394
        %v8407 = vpack.c.b16 %v5399, %v5395
        %v8408 = vpack.c.b16 %v5400, %v5396
        %v8409 = vpack.c.b16 %v5405, %v5401
        %v8410 = vpack.c.b16 %v5406, %v5402
        %v8411 = vpack.c.b16 %v5407, %v5403
        %v8412 = vpack.c.b16 %v5408, %v5404
        %v8413 = vpack.c.b16 %v5413, %v5409
        %v8414 = vpack.c.b16 %v5414, %v5410
        %v8415 = vpack.c.b16 %v5415, %v5411
        %v8416 = vpack.c.b16 %v5416, %v5412
        %v8417 = vpack.c.b16 %v5421, %v5417
        %v8418 = vpack.c.b16 %v5422, %v5418
        %v8419 = vpack.c.b16 %v5423, %v5419
        %v8420 = vpack.c.b16 %v5424, %v5420
        %v8421 = vpack.c.b16 %v5429, %v5425
        %v8422 = vpack.c.b16 %v5430, %v5426
        %v8423 = vpack.c.b16 %v5431, %v5427
        %v8424 = vpack.c.b16 %v5432, %v5428
        %v8425 = vpack.c.b16 %v5437, %v5433
        %v8426 = vpack.c.b16 %v5438, %v5434
        %v8427 = vpack.c.b16 %v5439, %v5435
        %v8428 = vpack.c.b16 %v5440, %v5436
        %v8429 = vpack.c.b16 %v5445, %v5441
        %v8430 = vpack.c.b16 %v5446, %v5442
        %v8431 = vpack.c.b16 %v5447, %v5443
        %v8432 = vpack.c.b16 %v5448, %v5444
        %v8433 = vpack.c.b16 %v5453, %v5449
        %v8434 = vpack.c.b16 %v5454, %v5450
        %v8435 = vpack.c.b16 %v5455, %v5451
        %v8436 = vpack.c.b16 %v5456, %v5452
        %v8437 = vpack.c.b16 %v5461, %v5457
        %v8438 = vpack.c.b16 %v5462, %v5458
        %v8439 = vpack.c.b16 %v5463, %v5459
        %v8440 = vpack.c.b16 %v5464, %v5460
        %v8441 = vpack.c.b16 %v5469, %v5465
        %v8442 = vpack.c.b16 %v5470, %v5466
        %v8443 = vpack.c.b16 %v5471, %v5467
        %v8444 = vpack.c.b16 %v5472, %v5468
        %v8445 = vpack.c.b16 %v5477, %v5473
        %v8446 = vpack.c.b16 %v5478, %v5474
        %v8447 = vpack.c.b16 %v5479, %v5475
        %v8448 = vpack.c.b16 %v5480, %v5476
        %v8449 = vpack.c.b16 %v5485, %v5481
        %v8450 = vpack.c.b16 %v5486, %v5482
        %v8451 = vpack.c.b16 %v5487, %v5483
        %v8452 = vpack.c.b16 %v5488, %v5484
        %v8453 = vpack.c.b16 %v5493, %v5489
        %v8454 = vpack.c.b16 %v5494, %v5490
        %v8455 = vpack.c.b16 %v5495, %v5491
        %v8456 = vpack.c.b16 %v5496, %v5492
        %v8457 = vpack.c.b16 %v5501, %v5497
        %v8458 = vpack.c.b16 %v5502, %v5498
        %v8459 = vpack.c.b16 %v5503, %v5499
        %v8460 = vpack.c.b16 %v5504, %v5500
        %v8461 = vpack.c.b16 %v5509, %v5505
        %v8462 = vpack.c.b16 %v5510, %v5506
        %v8463 = vpack.c.b16 %v5511, %v5507
        %v8464 = vpack.c.b16 %v5512, %v5508
        %v8465 = vpack.c.b16 %v5517, %v5513
        %v8466 = vpack.c.b16 %v5518, %v5514
        %v8467 = vpack.c.b16 %v5519, %v5515
        %v8468 = vpack.c.b16 %v5520, %v5516
        %v8469 = vpack.c.b16 %v5525, %v5521
        %v8470 = vpack.c.b16 %v5526, %v5522
        %v8471 = vpack.c.b16 %v5527, %v5523
        %v8472 = vpack.c.b16 %v5528, %v5524
        %v8473 = vpack.c.b16 %v5533, %v5529
        %v8474 = vpack.c.b16 %v5534, %v5530
        %v8475 = vpack.c.b16 %v5535, %v5531
        %v8476 = vpack.c.b16 %v5536, %v5532
        %v8477 = vpack.c.b16 %v5541, %v5537
        %v8478 = vpack.c.b16 %v5542, %v5538
        %v8479 = vpack.c.b16 %v5543, %v5539
        %v8480 = vpack.c.b16 %v5544, %v5540
        %v8481 = vpack.c.b16 %v5549, %v5545
        %v8482 = vpack.c.b16 %v5550, %v5546
        %v8483 = vpack.c.b16 %v5551, %v5547
        %v8484 = vpack.c.b16 %v5552, %v5548
        %v8485 = vpack.c.b16 %v5557, %v5553
        %v8486 = vpack.c.b16 %v5558, %v5554
        %v8487 = vpack.c.b16 %v5559, %v5555
        %v8488 = vpack.c.b16 %v5560, %v5556
        %v8489 = vpack.c.b16 %v5565, %v5561
        %v8490 = vpack.c.b16 %v5566, %v5562
        %v8491 = vpack.c.b16 %v5567, %v5563
        %v8492 = vpack.c.b16 %v5568, %v5564
        %v8493 = vpack.c.b16 %v5573, %v5569
        %v8494 = vpack.c.b16 %v5574, %v5570
        %v8495 = vpack.c.b16 %v5575, %v5571
        %v8496 = vpack.c.b16 %v5576, %v5572
        %v8497 = vpack.c.b16 %v5581, %v5577
        %v8498 = vpack.c.b16 %v5582, %v5578
        %v8499 = vpack.c.b16 %v5583, %v5579
        %v8500 = vpack.c.b16 %v5584, %v5580
        %v8501 = vpack.c.b16 %v5589, %v5585
        %v8502 = vpack.c.b16 %v5590, %v5586
        %v8503 = vpack.c.b16 %v5591, %v5587
        %v8504 = vpack.c.b16 %v5592, %v5588
        %v8505 = vpack.c.b16 %v5597, %v5593
        %v8506 = vpack.c.b16 %v5598, %v5594
        %v8507 = vpack.c.b16 %v5599, %v5595
        %v8508 = vpack.c.b16 %v5600, %v5596
        %v8509 = vpack.c.b16 %v5605, %v5601
        %v8510 = vpack.c.b16 %v5606, %v5602
        %v8511 = vpack.c.b16 %v5607, %v5603
        %v8512 = vpack.c.b16 %v5608, %v5604
        %v8513 = vpack.c.b16 %v5613, %v5609
        %v8514 = vpack.c.b16 %v5614, %v5610
        %v8515 = vpack.c.b16 %v5615, %v5611
        %v8516 = vpack.c.b16 %v5616, %v5612
        %v8517 = vpack.c.b16 %v5621, %v5617
        %v8518 = vpack.c.b16 %v5622, %v5618
        %v8519 = vpack.c.b16 %v5623, %v5619
        %v8520 = vpack.c.b16 %v5624, %v5620
        %v8521 = vpack.c.b16 %v5629, %v5625
        %v8522 = vpack.c.b16 %v5630, %v5626
        %v8523 = vpack.c.b16 %v5631, %v5627
        %v8524 = vpack.c.b16 %v5632, %v5628
        %v8525 = vpack.c.b16 %v5637, %v5633
        %v8526 = vpack.c.b16 %v5638, %v5634
        %v8527 = vpack.c.b16 %v5639, %v5635
        %v8528 = vpack.c.b16 %v5640, %v5636
        %v8529 = vpack.c.b16 %v5645, %v5641
        %v8530 = vpack.c.b16 %v5646, %v5642
        %v8531 = vpack.c.b16 %v5647, %v5643
        %v8532 = vpack.c.b16 %v5648, %v5644
        %v8533 = vpack.c.b16 %v5653, %v5649
        %v8534 = vpack.c.b16 %v5654, %v5650
        %v8535 = vpack.c.b16 %v5655, %v5651
        %v8536 = vpack.c.b16 %v5656, %v5652
        %v8537 = vpack.c.b16 %v5661, %v5657
        %v8538 = vpack.c.b16 %v5662, %v5658
        %v8539 = vpack.c.b16 %v5663, %v5659
        %v8540 = vpack.c.b16 %v5664, %v5660
        %v8541 = vpack.c.b16 %v5669, %v5665
        %v8542 = vpack.c.b16 %v5670, %v5666
        %v8543 = vpack.c.b16 %v5671, %v5667
        %v8544 = vpack.c.b16 %v5672, %v5668
        %v8545 = vpack.c.b16 %v5677, %v5673
        %v8546 = vpack.c.b16 %v5678, %v5674
        %v8547 = vpack.c.b16 %v5679, %v5675
        %v8548 = vpack.c.b16 %v5680, %v5676
        %v8549 = vpack.c.b16 %v5685, %v5681
        %v8550 = vpack.c.b16 %v5686, %v5682
        %v8551 = vpack.c.b16 %v5687, %v5683
        %v8552 = vpack.c.b16 %v5688, %v5684
        %v8553 = vpack.c.b16 %v5693, %v5689
        %v8554 = vpack.c.b16 %v5694, %v5690
        %v8555 = vpack.c.b16 %v5695, %v5691
        %v8556 = vpack.c.b16 %v5696, %v5692
        %v8557 = vpack.c.b16 %v5701, %v5697
        %v8558 = vpack.c.b16 %v5702, %v5698
        %v8559 = vpack.c.b16 %v5703, %v5699
        %v8560 = vpack.c.b16 %v5704, %v5700
        %v8561 = vpack.c.b16 %v5709, %v5705
        %v8562 = vpack.c.b16 %v5710, %v5706
        %v8563 = vpack.c.b16 %v5711, %v5707
        %v8564 = vpack.c.b16 %v5712, %v5708
        %v8565 = vpack.c.b16 %v5717, %v5713
        %v8566 = vpack.c.b16 %v5718, %v5714
        %v8567 = vpack.c.b16 %v5719, %v5715
        %v8568 = vpack.c.b16 %v5720, %v5716
        %v8569 = vpack.c.b16 %v5725, %v5721
        %v8570 = vpack.c.b16 %v5726, %v5722
        %v8571 = vpack.c.b16 %v5727, %v5723
        %v8572 = vpack.c.b16 %v5728, %v5724
        %v8573 = vpack.c.b16 %v5733, %v5729
        %v8574 = vpack.c.b16 %v5734, %v5730
        %v8575 = vpack.c.b16 %v5735, %v5731
        %v8576 = vpack.c.b16 %v5736, %v5732
        %v8577 = vpack.c.b16 %v5741, %v5737
        %v8578 = vpack.c.b16 %v5742, %v5738
        %v8579 = vpack.c.b16 %v5743, %v5739
        %v8580 = vpack.c.b16 %v5744, %v5740
        %v8581 = vpack.c.b16 %v5749, %v5745
        %v8582 = vpack.c.b16 %v5750, %v5746
        %v8583 = vpack.c.b16 %v5751, %v5747
        %v8584 = vpack.c.b16 %v5752, %v5748
        %v8585 = vpack.c.b16 %v5757, %v5753
        %v8586 = vpack.c.b16 %v5758, %v5754
        %v8587 = vpack.c.b16 %v5759, %v5755
        %v8588 = vpack.c.b16 %v5760, %v5756
        %v8589 = vpack.c.b16 %v5765, %v5761
        %v8590 = vpack.c.b16 %v5766, %v5762
        %v8591 = vpack.c.b16 %v5767, %v5763
        %v8592 = vpack.c.b16 %v5768, %v5764
        %v8593 = vpack.c.b16 %v5773, %v5769
        %v8594 = vpack.c.b16 %v5774, %v5770
        %v8595 = vpack.c.b16 %v5775, %v5771
        %v8596 = vpack.c.b16 %v5776, %v5772
        %v8597 = vpack.c.b16 %v5781, %v5777
        %v8598 = vpack.c.b16 %v5782, %v5778
        %v8599 = vpack.c.b16 %v5783, %v5779
        %v8600 = vpack.c.b16 %v5784, %v5780
        %v8601 = vpack.c.b16 %v5789, %v5785
        %v8602 = vpack.c.b16 %v5790, %v5786
        %v8603 = vpack.c.b16 %v5791, %v5787
        %v8604 = vpack.c.b16 %v5792, %v5788
        %v8605 = vpack.c.b16 %v5797, %v5793
        %v8606 = vpack.c.b16 %v5798, %v5794
        %v8607 = vpack.c.b16 %v5799, %v5795
        %v8608 = vpack.c.b16 %v5800, %v5796
        %v8609 = vpack.c.b16 %v5805, %v5801
        %v8610 = vpack.c.b16 %v5806, %v5802
        %v8611 = vpack.c.b16 %v5807, %v5803
        %v8612 = vpack.c.b16 %v5808, %v5804
        %v8613 = vpack.c.b16 %v5813, %v5809
        %v8614 = vpack.c.b16 %v5814, %v5810
        %v8615 = vpack.c.b16 %v5815, %v5811
        %v8616 = vpack.c.b16 %v5816, %v5812
        %v8617 = vpack.c.b16 %v5821, %v5817
        %v8618 = vpack.c.b16 %v5822, %v5818
        %v8619 = vpack.c.b16 %v5823, %v5819
        %v8620 = vpack.c.b16 %v5824, %v5820
        %v8621 = vpack.c.b16 %v5829, %v5825
        %v8622 = vpack.c.b16 %v5830, %v5826
        %v8623 = vpack.c.b16 %v5831, %v5827
        %v8624 = vpack.c.b16 %v5832, %v5828
        %v8625 = vpack.c.b16 %v5837, %v5833
        %v8626 = vpack.c.b16 %v5838, %v5834
        %v8627 = vpack.c.b16 %v5839, %v5835
        %v8628 = vpack.c.b16 %v5840, %v5836
        %v8629 = vpack.c.b16 %v5845, %v5841
        %v8630 = vpack.c.b16 %v5846, %v5842
        %v8631 = vpack.c.b16 %v5847, %v5843
        %v8632 = vpack.c.b16 %v5848, %v5844
        %v8633 = vpack.c.b16 %v5853, %v5849
        %v8634 = vpack.c.b16 %v5854, %v5850
        %v8635 = vpack.c.b16 %v5855, %v5851
        %v8636 = vpack.c.b16 %v5856, %v5852
        %v8637 = vpack.c.b16 %v5861, %v5857
        %v8638 = vpack.c.b16 %v5862, %v5858
        %v8639 = vpack.c.b16 %v5863, %v5859
        %v8640 = vpack.c.b16 %v5864, %v5860
        %v8641 = vpack.c.b16 %v5869, %v5865
        %v8642 = vpack.c.b16 %v5870, %v5866
        %v8643 = vpack.c.b16 %v5871, %v5867
        %v8644 = vpack.c.b16 %v5872, %v5868
        %v8645 = vpack.c.b16 %v5877, %v5873
        %v8646 = vpack.c.b16 %v5878, %v5874
        %v8647 = vpack.c.b16 %v5879, %v5875
        %v8648 = vpack.c.b16 %v5880, %v5876
        %v8649 = vpack.c.b16 %v5885, %v5881
        %v8650 = vpack.c.b16 %v5886, %v5882
        %v8651 = vpack.c.b16 %v5887, %v5883
        %v8652 = vpack.c.b16 %v5888, %v5884
        %v8653 = vpack.c.b16 %v5893, %v5889
        %v8654 = vpack.c.b16 %v5894, %v5890
        %v8655 = vpack.c.b16 %v5895, %v5891
        %v8656 = vpack.c.b16 %v5896, %v5892
        %v8657 = vpack.c.b16 %v5901, %v5897
        %v8658 = vpack.c.b16 %v5902, %v5898
        %v8659 = vpack.c.b16 %v5903, %v5899
        %v8660 = vpack.c.b16 %v5904, %v5900
        %v8661 = vpack.c.b16 %v5909, %v5905
        %v8662 = vpack.c.b16 %v5910, %v5906
        %v8663 = vpack.c.b16 %v5911, %v5907
        %v8664 = vpack.c.b16 %v5912, %v5908
        %v8665 = vpack.c.b16 %v5917, %v5913
        %v8666 = vpack.c.b16 %v5918, %v5914
        %v8667 = vpack.c.b16 %v5919, %v5915
        %v8668 = vpack.c.b16 %v5920, %v5916
        %v8669 = vpack.c.b16 %v5925, %v5921
        %v8670 = vpack.c.b16 %v5926, %v5922
        %v8671 = vpack.c.b16 %v5927, %v5923
        %v8672 = vpack.c.b16 %v5928, %v5924
        %v8673 = vpack.c.b16 %v5933, %v5929
        %v8674 = vpack.c.b16 %v5934, %v5930
        %v8675 = vpack.c.b16 %v5935, %v5931
        %v8676 = vpack.c.b16 %v5936, %v5932
        %v8677 = vpack.c.b16 %v5941, %v5937
        %v8678 = vpack.c.b16 %v5942, %v5938
        %v8679 = vpack.c.b16 %v5943, %v5939
        %v8680 = vpack.c.b16 %v5944, %v5940
        %v8681 = vpack.c.b16 %v5949, %v5945
        %v8682 = vpack.c.b16 %v5950, %v5946
        %v8683 = vpack.c.b16 %v5951, %v5947
        %v8684 = vpack.c.b16 %v5952, %v5948
        %v8685 = vpack.c.b16 %v5957, %v5953
        %v8686 = vpack.c.b16 %v5958, %v5954
        %v8687 = vpack.c.b16 %v5959, %v5955
        %v8688 = vpack.c.b16 %v5960, %v5956
        %v8689 = vpack.c.b16 %v5965, %v5961
        %v8690 = vpack.c.b16 %v5966, %v5962
        %v8691 = vpack.c.b16 %v5967, %v5963
        %v8692 = vpack.c.b16 %v5968, %v5964
        %v8693 = vpack.c.b16 %v5973, %v5969
        %v8694 = vpack.c.b16 %v5974, %v5970
        %v8695 = vpack.c.b16 %v5975, %v5971
        %v8696 = vpack.c.b16 %v5976, %v5972
        %v8697 = vpack.c.b16 %v5981, %v5977
        %v8698 = vpack.c.b16 %v5982, %v5978
        %v8699 = vpack.c.b16 %v5983, %v5979
        %v8700 = vpack.c.b16 %v5984, %v5980
        %v8701 = vpack.c.b16 %v5989, %v5985
        %v8702 = vpack.c.b16 %v5990, %v5986
        %v8703 = vpack.c.b16 %v5991, %v5987
        %v8704 = vpack.c.b16 %v5992, %v5988
        %v8705 = vpack.c.b16 %v5997, %v5993
        %v8706 = vpack.c.b16 %v5998, %v5994
        %v8707 = vpack.c.b16 %v5999, %v5995
        %v8708 = vpack.c.b16 %v6000, %v5996
        %v8709 = vpack.c.b16 %v6005, %v6001
        %v8710 = vpack.c.b16 %v6006, %v6002
        %v8711 = vpack.c.b16 %v6007, %v6003
        %v8712 = vpack.c.b16 %v6008, %v6004
        %v8713 = vpack.c.b16 %v6013, %v6009
        %v8714 = vpack.c.b16 %v6014, %v6010
        %v8715 = vpack.c.b16 %v6015, %v6011
        %v8716 = vpack.c.b16 %v6016, %v6012
        %v8717 = vpack.c.b16 %v6021, %v6017
        %v8718 = vpack.c.b16 %v6022, %v6018
        %v8719 = vpack.c.b16 %v6023, %v6019
        %v8720 = vpack.c.b16 %v6024, %v6020
        %v8721 = vpack.c.b16 %v6029, %v6025
        %v8722 = vpack.c.b16 %v6030, %v6026
        %v8723 = vpack.c.b16 %v6031, %v6027
        %v8724 = vpack.c.b16 %v6032, %v6028
        %v8725 = vpack.c.b16 %v6037, %v6033
        %v8726 = vpack.c.b16 %v6038, %v6034
        %v8727 = vpack.c.b16 %v6039, %v6035
        %v8728 = vpack.c.b16 %v6040, %v6036
        %v8729 = vpack.c.b16 %v6045, %v6041
        %v8730 = vpack.c.b16 %v6046, %v6042
        %v8731 = vpack.c.b16 %v6047, %v6043
        %v8732 = vpack.c.b16 %v6048, %v6044
        %v8733 = vpack.c.b16 %v6053, %v6049
        %v8734 = vpack.c.b16 %v6054, %v6050
        %v8735 = vpack.c.b16 %v6055, %v6051
        %v8736 = vpack.c.b16 %v6056, %v6052
        %v8737 = vpack.c.b16 %v6061, %v6057
        %v8738 = vpack.c.b16 %v6062, %v6058
        %v8739 = vpack.c.b16 %v6063, %v6059
        %v8740 = vpack.c.b16 %v6064, %v6060
        %v8741 = vpack.c.b16 %v6069, %v6065
        %v8742 = vpack.c.b16 %v6070, %v6066
        %v8743 = vpack.c.b16 %v6071, %v6067
        %v8744 = vpack.c.b16 %v6072, %v6068
        %v8745 = vpack.c.b16 %v6077, %v6073
        %v8746 = vpack.c.b16 %v6078, %v6074
        %v8747 = vpack.c.b16 %v6079, %v6075
        %v8748 = vpack.c.b16 %v6080, %v6076
        %v8749 = vpack.c.b16 %v6085, %v6081
        %v8750 = vpack.c.b16 %v6086, %v6082
        %v8751 = vpack.c.b16 %v6087, %v6083
        %v8752 = vpack.c.b16 %v6088, %v6084
        %v8753 = vpack.c.b16 %v6093, %v6089
        %v8754 = vpack.c.b16 %v6094, %v6090
        %v8755 = vpack.c.b16 %v6095, %v6091
        %v8756 = vpack.c.b16 %v6096, %v6092
        %v8757 = vpack.c.b16 %v6101, %v6097
        %v8758 = vpack.c.b16 %v6102, %v6098
        %v8759 = vpack.c.b16 %v6103, %v6099
        %v8760 = vpack.c.b16 %v6104, %v6100
        %v8761 = vpack.c.b16 %v6109, %v6105
        %v8762 = vpack.c.b16 %v6110, %v6106
        %v8763 = vpack.c.b16 %v6111, %v6107
        %v8764 = vpack.c.b16 %v6112, %v6108
        %v8765 = vpack.c.b16 %v6117, %v6113
        %v8766 = vpack.c.b16 %v6118, %v6114
        %v8767 = vpack.c.b16 %v6119, %v6115
        %v8768 = vpack.c.b16 %v6120, %v6116
        %v8769 = vpack.c.b16 %v6125, %v6121
        %v8770 = vpack.c.b16 %v6126, %v6122
        %v8771 = vpack.c.b16 %v6127, %v6123
        %v8772 = vpack.c.b16 %v6128, %v6124
        %v8773 = vpack.c.b16 %v6133, %v6129
        %v8774 = vpack.c.b16 %v6134, %v6130
        %v8775 = vpack.c.b16 %v6135, %v6131
        %v8776 = vpack.c.b16 %v6136, %v6132
        %v8777 = vpack.c.b16 %v6141, %v6137
        %v8778 = vpack.c.b16 %v6142, %v6138
        %v8779 = vpack.c.b16 %v6143, %v6139
        %v8780 = vpack.c.b16 %v6144, %v6140
        %v8781 = vpack.c.b16 %v6149, %v6145
        %v8782 = vpack.c.b16 %v6150, %v6146
        %v8783 = vpack.c.b16 %v6151, %v6147
        %v8784 = vpack.c.b16 %v6152, %v6148
        %v8785 = vpack.c.b16 %v6157, %v6153
        %v8786 = vpack.c.b16 %v6158, %v6154
        %v8787 = vpack.c.b16 %v6159, %v6155
        %v8788 = vpack.c.b16 %v6160, %v6156
        %v8789 = vpack.c.b16 %v6165, %v6161
        %v8790 = vpack.c.b16 %v6166, %v6162
        %v8791 = vpack.c.b16 %v6167, %v6163
        %v8792 = vpack.c.b16 %v6168, %v6164
        %v8793 = vpack.c.b16 %v6173, %v6169
        %v8794 = vpack.c.b16 %v6174, %v6170
        %v8795 = vpack.c.b16 %v6175, %v6171
        %v8796 = vpack.c.b16 %v6176, %v6172
        %v8797 = vpack.c.b16 %v6181, %v6177
        %v8798 = vpack.c.b16 %v6182, %v6178
        %v8799 = vpack.c.b16 %v6183, %v6179
        %v8800 = vpack.c.b16 %v6184, %v6180
        %v8801 = vpack.c.b16 %v6189, %v6185
        %v8802 = vpack.c.b16 %v6190, %v6186
        %v8803 = vpack.c.b16 %v6191, %v6187
        %v8804 = vpack.c.b16 %v6192, %v6188
        %v8805 = vpack.c.b16 %v6197, %v6193
        %v8806 = vpack.c.b16 %v6198, %v6194
        %v8807 = vpack.c.b16 %v6199, %v6195
        %v8808 = vpack.c.b16 %v6200, %v6196
        %v8809 = vpack.c.b16 %v6205, %v6201
        %v8810 = vpack.c.b16 %v6206, %v6202
        %v8811 = vpack.c.b16 %v6207, %v6203
        %v8812 = vpack.c.b16 %v6208, %v6204
        %v8813 = vpack.c.b16 %v6213, %v6209
        %v8814 = vpack.c.b16 %v6214, %v6210
        %v8815 = vpack.c.b16 %v6215, %v6211
        %v8816 = vpack.c.b16 %v6216, %v6212
        %v8817 = vpack.c.b16 %v6221, %v6217
        %v8818 = vpack.c.b16 %v6222, %v6218
        %v8819 = vpack.c.b16 %v6223, %v6219
        %v8820 = vpack.c.b16 %v6224, %v6220
        %v8821 = vpack.c.b16 %v6229, %v6225
        %v8822 = vpack.c.b16 %v6230, %v6226
        %v8823 = vpack.c.b16 %v6231, %v6227
        %v8824 = vpack.c.b16 %v6232, %v6228
        %v8825 = vpack.c.b16 %v6237, %v6233
        %v8826 = vpack.c.b16 %v6238, %v6234
        %v8827 = vpack.c.b16 %v6239, %v6235
        %v8828 = vpack.c.b16 %v6240, %v6236
        %v8829 = vpack.c.b16 %v6245, %v6241
        %v8830 = vpack.c.b16 %v6246, %v6242
        %v8831 = vpack.c.b16 %v6247, %v6243
        %v8832 = vpack.c.b16 %v6248, %v6244
        %v8833 = vpack.c.b16 %v6253, %v6249
        %v8834 = vpack.c.b16 %v6254, %v6250
        %v8835 = vpack.c.b16 %v6255, %v6251
        %v8836 = vpack.c.b16 %v6256, %v6252
        %v8837 = vpack.c.b16 %v6261, %v6257
        %v8838 = vpack.c.b16 %v6262, %v6258
        %v8839 = vpack.c.b16 %v6263, %v6259
        %v8840 = vpack.c.b16 %v6264, %v6260
        %v8841 = vpack.c.b16 %v6269, %v6265
        %v8842 = vpack.c.b16 %v6270, %v6266
        %v8843 = vpack.c.b16 %v6271, %v6267
        %v8844 = vpack.c.b16 %v6272, %v6268
        %v8845 = vpack.c.b16 %v6277, %v6273
        %v8846 = vpack.c.b16 %v6278, %v6274
        %v8847 = vpack.c.b16 %v6279, %v6275
        %v8848 = vpack.c.b16 %v6280, %v6276
        %v8849 = vpack.c.b16 %v6285, %v6281
        %v8850 = vpack.c.b16 %v6286, %v6282
        %v8851 = vpack.c.b16 %v6287, %v6283
        %v8852 = vpack.c.b16 %v6288, %v6284
        %v8853 = vpack.c.b16 %v6293, %v6289
        %v8854 = vpack.c.b16 %v6294, %v6290
        %v8855 = vpack.c.b16 %v6295, %v6291
        %v8856 = vpack.c.b16 %v6296, %v6292
        %v8857 = vpack.c.b16 %v6301, %v6297
        %v8858 = vpack.c.b16 %v6302, %v6298
        %v8859 = vpack.c.b16 %v6303, %v6299
        %v8860 = vpack.c.b16 %v6304, %v6300
        %v8861 = vpack.c.b16 %v6309, %v6305
        %v8862 = vpack.c.b16 %v6310, %v6306
        %v8863 = vpack.c.b16 %v6311, %v6307
        %v8864 = vpack.c.b16 %v6312, %v6308
        %v8865 = vpack.c.b16 %v6317, %v6313
        %v8866 = vpack.c.b16 %v6318, %v6314
        %v8867 = vpack.c.b16 %v6319, %v6315
        %v8868 = vpack.c.b16 %v6320, %v6316
        %v8869 = vpack.c.b16 %v6325, %v6321
        %v8870 = vpack.c.b16 %v6326, %v6322
        %v8871 = vpack.c.b16 %v6327, %v6323
        %v8872 = vpack.c.b16 %v6328, %v6324
        %v8873 = vpack.c.b16 %v6333, %v6329
        %v8874 = vpack.c.b16 %v6334, %v6330
        %v8875 = vpack.c.b16 %v6335, %v6331
        %v8876 = vpack.c.b16 %v6336, %v6332
        %v8877 = vpack.c.b16 %v6341, %v6337
        %v8878 = vpack.c.b16 %v6342, %v6338
        %v8879 = vpack.c.b16 %v6343, %v6339
        %v8880 = vpack.c.b16 %v6344, %v6340
        %v8881 = vpack.c.b16 %v6349, %v6345
        %v8882 = vpack.c.b16 %v6350, %v6346
        %v8883 = vpack.c.b16 %v6351, %v6347
        %v8884 = vpack.c.b16 %v6352, %v6348
        %v8885 = vpack.c.b16 %v6357, %v6353
        %v8886 = vpack.c.b16 %v6358, %v6354
        %v8887 = vpack.c.b16 %v6359, %v6355
        %v8888 = vpack.c.b16 %v6360, %v6356
        %v8889 = vpack.c.b16 %v6365, %v6361
        %v8890 = vpack.c.b16 %v6366, %v6362
        %v8891 = vpack.c.b16 %v6367, %v6363
        %v8892 = vpack.c.b16 %v6368, %v6364
        %v8893 = vpack.c.b16 %v6373, %v6369
        %v8894 = vpack.c.b16 %v6374, %v6370
        %v8895 = vpack.c.b16 %v6375, %v6371
        %v8896 = vpack.c.b16 %v6376, %v6372
        %v8897 = vpack.c.b16 %v6381, %v6377
        %v8898 = vpack.c.b16 %v6382, %v6378
        %v8899 = vpack.c.b16 %v6383, %v6379
        %v8900 = vpack.c.b16 %v6384, %v6380
        %v8901 = vpack.c.b16 %v6389, %v6385
        %v8902 = vpack.c.b16 %v6390, %v6386
        %v8903 = vpack.c.b16 %v6391, %v6387
        %v8904 = vpack.c.b16 %v6392, %v6388
        %v8905 = vpack.c.b16 %v6397, %v6393
        %v8906 = vpack.c.b16 %v6398, %v6394
        %v8907 = vpack.c.b16 %v6399, %v6395
        %v8908 = vpack.c.b16 %v6400, %v6396
        %v8909 = vpack.c.b16 %v6405, %v6401
        %v8910 = vpack.c.b16 %v6406, %v6402
        %v8911 = vpack.c.b16 %v6407, %v6403
        %v8912 = vpack.c.b16 %v6408, %v6404
        %v8913 = vpack.c.b16 %v6413, %v6409
        %v8914 = vpack.c.b16 %v6414, %v6410
        %v8915 = vpack.c.b16 %v6415, %v6411
        %v8916 = vpack.c.b16 %v6416, %v6412
        %v8917 = vpack.c.b16 %v6421, %v6417
        %v8918 = vpack.c.b16 %v6422, %v6418
        %v8919 = vpack.c.b16 %v6423, %v6419
        %v8920 = vpack.c.b16 %v6424, %v6420
        %v8921 = vpack.c.b16 %v6429, %v6425
        %v8922 = vpack.c.b16 %v6430, %v6426
        %v8923 = vpack.c.b16 %v6431, %v6427
        %v8924 = vpack.c.b16 %v6432, %v6428
        %v8925 = vpack.c.b16 %v6437, %v6433
        %v8926 = vpack.c.b16 %v6438, %v6434
        %v8927 = vpack.c.b16 %v6439, %v6435
        %v8928 = vpack.c.b16 %v6440, %v6436
        %v8929 = vpack.c.b16 %v6445, %v6441
        %v8930 = vpack.c.b16 %v6446, %v6442
        %v8931 = vpack.c.b16 %v6447, %v6443
        %v8932 = vpack.c.b16 %v6448, %v6444
        %v8933 = vpack.c.b16 %v6453, %v6449
        %v8934 = vpack.c.b16 %v6454, %v6450
        %v8935 = vpack.c.b16 %v6455, %v6451
        %v8936 = vpack.c.b16 %v6456, %v6452
        %v8937 = vpack.c.b16 %v6461, %v6457
        %v8938 = vpack.c.b16 %v6462, %v6458
        %v8939 = vpack.c.b16 %v6463, %v6459
        %v8940 = vpack.c.b16 %v6464, %v6460
        %v8941 = vpack.c.b16 %v6469, %v6465
        %v8942 = vpack.c.b16 %v6470, %v6466
        %v8943 = vpack.c.b16 %v6471, %v6467
        %v8944 = vpack.c.b16 %v6472, %v6468
        %v8945 = vpack.c.b16 %v6477, %v6473
        %v8946 = vpack.c.b16 %v6478, %v6474
        %v8947 = vpack.c.b16 %v6479, %v6475
        %v8948 = vpack.c.b16 %v6480, %v6476
        %v8949 = vpack.c.b16 %v6485, %v6481
        %v8950 = vpack.c.b16 %v6486, %v6482
        %v8951 = vpack.c.b16 %v6487, %v6483
        %v8952 = vpack.c.b16 %v6488, %v6484
        %v8953 = vpack.c.b16 %v6493, %v6489
        %v8954 = vpack.c.b16 %v6494, %v6490
        %v8955 = vpack.c.b16 %v6495, %v6491
        %v8956 = vpack.c.b16 %v6496, %v6492
        %v8957 = vpack.c.b16 %v6501, %v6497
        %v8958 = vpack.c.b16 %v6502, %v6498
        %v8959 = vpack.c.b16 %v6503, %v6499
        %v8960 = vpack.c.b16 %v6504, %v6500
        %v8961 = vpack.c.b16 %v6509, %v6505
        %v8962 = vpack.c.b16 %v6510, %v6506
        %v8963 = vpack.c.b16 %v6511, %v6507
        %v8964 = vpack.c.b16 %v6512, %v6508
        %v8965 = vpack.c.b16 %v6517, %v6513
        %v8966 = vpack.c.b16 %v6518, %v6514
        %v8967 = vpack.c.b16 %v6519, %v6515
        %v8968 = vpack.c.b16 %v6520, %v6516
        %v8969 = vpack.c.b16 %v6525, %v6521
        %v8970 = vpack.c.b16 %v6526, %v6522
        %v8971 = vpack.c.b16 %v6527, %v6523
        %v8972 = vpack.c.b16 %v6528, %v6524
        %v8973 = vpack.c.b16 %v6533, %v6529
        %v8974 = vpack.c.b16 %v6534, %v6530
        %v8975 = vpack.c.b16 %v6535, %v6531
        %v8976 = vpack.c.b16 %v6536, %v6532
        %v8977 = vpack.c.b16 %v6541, %v6537
        %v8978 = vpack.c.b16 %v6542, %v6538
        %v8979 = vpack.c.b16 %v6543, %v6539
        %v8980 = vpack.c.b16 %v6544, %v6540
        %v8981 = vpack.c.b16 %v6549, %v6545
        %v8982 = vpack.c.b16 %v6550, %v6546
        %v8983 = vpack.c.b16 %v6551, %v6547
        %v8984 = vpack.c.b16 %v6552, %v6548
        %v8985 = vpack.c.b16 %v6557, %v6553
        %v8986 = vpack.c.b16 %v6558, %v6554
        %v8987 = vpack.c.b16 %v6559, %v6555
        %v8988 = vpack.c.b16 %v6560, %v6556
        %v8989 = vpack.c.b16 %v6565, %v6561
        %v8990 = vpack.c.b16 %v6566, %v6562
        %v8991 = vpack.c.b16 %v6567, %v6563
        %v8992 = vpack.c.b16 %v6568, %v6564
        %v8993 = vpack.c.b16 %v6573, %v6569
        %v8994 = vpack.c.b16 %v6574, %v6570
        %v8995 = vpack.c.b16 %v6575, %v6571
        %v8996 = vpack.c.b16 %v6576, %v6572
        %v8997 = vpack.c.b16 %v6581, %v6577
        %v8998 = vpack.c.b16 %v6582, %v6578
        %v8999 = vpack.c.b16 %v6583, %v6579
        %v9000 = vpack.c.b16 %v6584, %v6580
        %v9001 = vpack.c.b16 %v6589, %v6585
        %v9002 = vpack.c.b16 %v6590, %v6586
        %v9003 = vpack.c.b16 %v6591, %v6587
        %v9004 = vpack.c.b16 %v6592, %v6588
        %v9005 = vpack.c.b16 %v6597, %v6593
        %v9006 = vpack.c.b16 %v6598, %v6594
        %v9007 = vpack.c.b16 %v6599, %v6595
        %v9008 = vpack.c.b16 %v6600, %v6596
        %v9009 = vpack.c.b16 %v6605, %v6601
        %v9010 = vpack.c.b16 %v6606, %v6602
        %v9011 = vpack.c.b16 %v6607, %v6603
        %v9012 = vpack.c.b16 %v6608, %v6604
        %v9013 = vpack.c.b16 %v6613, %v6609
        %v9014 = vpack.c.b16 %v6614, %v6610
        %v9015 = vpack.c.b16 %v6615, %v6611
        %v9016 = vpack.c.b16 %v6616, %v6612
        %v9017 = vpack.c.b16 %v6621, %v6617
        %v9018 = vpack.c.b16 %v6622, %v6618
        %v9019 = vpack.c.b16 %v6623, %v6619
        %v9020 = vpack.c.b16 %v6624, %v6620
        %v9021 = vpack.c.b16 %v6629, %v6625
        %v9022 = vpack.c.b16 %v6630, %v6626
        %v9023 = vpack.c.b16 %v6631, %v6627
        %v9024 = vpack.c.b16 %v6632, %v6628
        %v9025 = vpack.c.b16 %v6637, %v6633
        %v9026 = vpack.c.b16 %v6638, %v6634
        %v9027 = vpack.c.b16 %v6639, %v6635
        %v9028 = vpack.c.b16 %v6640, %v6636
        %v9029 = vpack.c.b16 %v6645, %v6641
        %v9030 = vpack.c.b16 %v6646, %v6642
        %v9031 = vpack.c.b16 %v6647, %v6643
        %v9032 = vpack.c.b16 %v6648, %v6644
        %v9033 = vpack.c.b16 %v6653, %v6649
        %v9034 = vpack.c.b16 %v6654, %v6650
        %v9035 = vpack.c.b16 %v6655, %v6651
        %v9036 = vpack.c.b16 %v6656, %v6652
        %v9037 = vpack.c.b16 %v6661, %v6657
        %v9038 = vpack.c.b16 %v6662, %v6658
        %v9039 = vpack.c.b16 %v6663, %v6659
        %v9040 = vpack.c.b16 %v6664, %v6660
        %v9041 = vpack.c.b16 %v6669, %v6665
        %v9042 = vpack.c.b16 %v6670, %v6666
        %v9043 = vpack.c.b16 %v6671, %v6667
        %v9044 = vpack.c.b16 %v6672, %v6668
        %v9045 = vpack.c.b16 %v6677, %v6673
        %v9046 = vpack.c.b16 %v6678, %v6674
        %v9047 = vpack.c.b16 %v6679, %v6675
        %v9048 = vpack.c.b16 %v6680, %v6676
        %v9049 = vpack.c.b16 %v6685, %v6681
        %v9050 = vpack.c.b16 %v6686, %v6682
        %v9051 = vpack.c.b16 %v6687, %v6683
        %v9052 = vpack.c.b16 %v6688, %v6684
        %v9053 = vpack.c.b16 %v6693, %v6689
        %v9054 = vpack.c.b16 %v6694, %v6690
        %v9055 = vpack.c.b16 %v6695, %v6691
        %v9056 = vpack.c.b16 %v6696, %v6692
        %v9057 = vpack.c.b16 %v6701, %v6697
        %v9058 = vpack.c.b16 %v6702, %v6698
        %v9059 = vpack.c.b16 %v6703, %v6699
        %v9060 = vpack.c.b16 %v6704, %v6700
        %v9061 = vpack.c.b16 %v6709, %v6705
        %v9062 = vpack.c.b16 %v6710, %v6706
        %v9063 = vpack.c.b16 %v6711, %v6707
        %v9064 = vpack.c.b16 %v6712, %v6708
        %v9065 = vpack.c.b16 %v6717, %v6713
        %v9066 = vpack.c.b16 %v6718, %v6714
        %v9067 = vpack.c.b16 %v6719, %v6715
        %v9068 = vpack.c.b16 %v6720, %v6716
        %v9069 = vpack.c.b16 %v6725, %v6721
        %v9070 = vpack.c.b16 %v6726, %v6722
        %v9071 = vpack.c.b16 %v6727, %v6723
        %v9072 = vpack.c.b16 %v6728, %v6724
        %v9073 = vpack.c.b16 %v6733, %v6729
        %v9074 = vpack.c.b16 %v6734, %v6730
        %v9075 = vpack.c.b16 %v6735, %v6731
        %v9076 = vpack.c.b16 %v6736, %v6732
        %v9077 = vpack.c.b16 %v6741, %v6737
        %v9078 = vpack.c.b16 %v6742, %v6738
        %v9079 = vpack.c.b16 %v6743, %v6739
        %v9080 = vpack.c.b16 %v6744, %v6740
        %v9081 = vpack.c.b16 %v6749, %v6745
        %v9082 = vpack.c.b16 %v6750, %v6746
        %v9083 = vpack.c.b16 %v6751, %v6747
        %v9084 = vpack.c.b16 %v6752, %v6748
        %v9085 = vpack.c.b16 %v6757, %v6753
        %v9086 = vpack.c.b16 %v6758, %v6754
        %v9087 = vpack.c.b16 %v6759, %v6755
        %v9088 = vpack.c.b16 %v6760, %v6756
        %v9089 = vpack.c.b16 %v6765, %v6761
        %v9090 = vpack.c.b16 %v6766, %v6762
        %v9091 = vpack.c.b16 %v6767, %v6763
        %v9092 = vpack.c.b16 %v6768, %v6764
        %v9093 = vpack.c.b16 %v6773, %v6769
        %v9094 = vpack.c.b16 %v6774, %v6770
        %v9095 = vpack.c.b16 %v6775, %v6771
        %v9096 = vpack.c.b16 %v6776, %v6772
        %v9097 = vpack.c.b16 %v6781, %v6777
        %v9098 = vpack.c.b16 %v6782, %v6778
        %v9099 = vpack.c.b16 %v6783, %v6779
        %v9100 = vpack.c.b16 %v6784, %v6780
        %v9101 = vpack.c.b16 %v6789, %v6785
        %v9102 = vpack.c.b16 %v6790, %v6786
        %v9103 = vpack.c.b16 %v6791, %v6787
        %v9104 = vpack.c.b16 %v6792, %v6788
        %v9105 = vpack.c.b16 %v6797, %v6793
        %v9106 = vpack.c.b16 %v6798, %v6794
        %v9107 = vpack.c.b16 %v6799, %v6795
        %v9108 = vpack.c.b16 %v6800, %v6796
        %v9109 = vpack.c.b16 %v6805, %v6801
        %v9110 = vpack.c.b16 %v6806, %v6802
        %v9111 = vpack.c.b16 %v6807, %v6803
        %v9112 = vpack.c.b16 %v6808, %v6804
        %v9113 = vpack.c.b16 %v6813, %v6809
        %v9114 = vpack.c.b16 %v6814, %v6810
        %v9115 = vpack.c.b16 %v6815, %v6811
        %v9116 = vpack.c.b16 %v6816, %v6812
        %v9117 = vpack.c.b16 %v6821, %v6817
        %v9118 = vpack.c.b16 %v6822, %v6818
        %v9119 = vpack.c.b16 %v6823, %v6819
        %v9120 = vpack.c.b16 %v6824, %v6820
        %v9121 = vpack.c.b16 %v6829, %v6825
        %v9122 = vpack.c.b16 %v6830, %v6826
        %v9123 = vpack.c.b16 %v6831, %v6827
        %v9124 = vpack.c.b16 %v6832, %v6828
        %v9125 = vpack.c.b16 %v6837, %v6833
        %v9126 = vpack.c.b16 %v6838, %v6834
        %v9127 = vpack.c.b16 %v6839, %v6835
        %v9128 = vpack.c.b16 %v6840, %v6836
        %v9129 = vpack.c.b16 %v6845, %v6841
        %v9130 = vpack.c.b16 %v6846, %v6842
        %v9131 = vpack.c.b16 %v6847, %v6843
        %v9132 = vpack.c.b16 %v6848, %v6844
        %v9133 = vpack.c.b16 %v6853, %v6849
        %v9134 = vpack.c.b16 %v6854, %v6850
        %v9135 = vpack.c.b16 %v6855, %v6851
        %v9136 = vpack.c.b16 %v6856, %v6852
        %v9137 = vpack.c.b16 %v6861, %v6857
        %v9138 = vpack.c.b16 %v6862, %v6858
        %v9139 = vpack.c.b16 %v6863, %v6859
        %v9140 = vpack.c.b16 %v6864, %v6860
        %v9141 = vpack.c.b16 %v6869, %v6865
        %v9142 = vpack.c.b16 %v6870, %v6866
        %v9143 = vpack.c.b16 %v6871, %v6867
        %v9144 = vpack.c.b16 %v6872, %v6868
        %v9145 = vpack.c.b16 %v6877, %v6873
        %v9146 = vpack.c.b16 %v6878, %v6874
        %v9147 = vpack.c.b16 %v6879, %v6875
        %v9148 = vpack.c.b16 %v6880, %v6876
        %v9149 = vpack.c.b16 %v6885, %v6881
        %v9150 = vpack.c.b16 %v6886, %v6882
        %v9151 = vpack.c.b16 %v6887, %v6883
        %v9152 = vpack.c.b16 %v6888, %v6884
        %v9153 = vpack.c.b16 %v6893, %v6889
        %v9154 = vpack.c.b16 %v6894, %v6890
        %v9155 = vpack.c.b16 %v6895, %v6891
        %v9156 = vpack.c.b16 %v6896, %v6892
        %v9157 = vpack.c.b16 %v6901, %v6897
        %v9158 = vpack.c.b16 %v6902, %v6898
        %v9159 = vpack.c.b16 %v6903, %v6899
        %v9160 = vpack.c.b16 %v6904, %v6900
        %v9161 = vpack.c.b16 %v6909, %v6905
        %v9162 = vpack.c.b16 %v6910, %v6906
        %v9163 = vpack.c.b16 %v6911, %v6907
        %v9164 = vpack.c.b16 %v6912, %v6908
        %v9165 = vpack.c.b16 %v6917, %v6913
        %v9166 = vpack.c.b16 %v6918, %v6914
        %v9167 = vpack.c.b16 %v6919, %v6915
        %v9168 = vpack.c.b16 %v6920, %v6916
        %v9169 = vpack.c.b16 %v6925, %v6921
        %v9170 = vpack.c.b16 %v6926, %v6922
        %v9171 = vpack.c.b16 %v6927, %v6923
        %v9172 = vpack.c.b16 %v6928, %v6924
        %v9173 = vpack.c.b16 %v6933, %v6929
        %v9174 = vpack.c.b16 %v6934, %v6930
        %v9175 = vpack.c.b16 %v6935, %v6931
        %v9176 = vpack.c.b16 %v6936, %v6932
        %v9177 = vpack.c.b16 %v6941, %v6937
        %v9178 = vpack.c.b16 %v6942, %v6938
        %v9179 = vpack.c.b16 %v6943, %v6939
        %v9180 = vpack.c.b16 %v6944, %v6940
        %v9181 = vpack.c.b16 %v6949, %v6945
        %v9182 = vpack.c.b16 %v6950, %v6946
        %v9183 = vpack.c.b16 %v6951, %v6947
        %v9184 = vpack.c.b16 %v6952, %v6948
        %v9185 = vpack.c.b16 %v6957, %v6953
        %v9186 = vpack.c.b16 %v6958, %v6954
        %v9187 = vpack.c.b16 %v6959, %v6955
        %v9188 = vpack.c.b16 %v6960, %v6956
        %v9189 = vpack.c.b16 %v6965, %v6961
        %v9190 = vpack.c.b16 %v6966, %v6962
        %v9191 = vpack.c.b16 %v6967, %v6963
        %v9192 = vpack.c.b16 %v6968, %v6964
        %v9193 = vpack.c.b16 %v6973, %v6969
        %v9194 = vpack.c.b16 %v6974, %v6970
        %v9195 = vpack.c.b16 %v6975, %v6971
        %v9196 = vpack.c.b16 %v6976, %v6972
        %v9197 = vpack.c.b16 %v6981, %v6977
        %v9198 = vpack.c.b16 %v6982, %v6978
        %v9199 = vpack.c.b16 %v6983, %v6979
        %v9200 = vpack.c.b16 %v6984, %v6980
        %v9201 = vpack.c.b16 %v6989, %v6985
        %v9202 = vpack.c.b16 %v6990, %v6986
        %v9203 = vpack.c.b16 %v6991, %v6987
        %v9204 = vpack.c.b16 %v6992, %v6988
        %v9205 = vpack.c.b16 %v6997, %v6993
        %v9206 = vpack.c.b16 %v6998, %v6994
        %v9207 = vpack.c.b16 %v6999, %v6995
        %v9208 = vpack.c.b16 %v7000, %v6996
        %v9209 = vpack.c.b16 %v7005, %v7001
        %v9210 = vpack.c.b16 %v7006, %v7002
        %v9211 = vpack.c.b16 %v7007, %v7003
        %v9212 = vpack.c.b16 %v7008, %v7004
        %v9213 = vpack.c.b16 %v7013, %v7009
        %v9214 = vpack.c.b16 %v7014, %v7010
        %v9215 = vpack.c.b16 %v7015, %v7011
        %v9216 = vpack.c.b16 %v7016, %v7012
        %v9217 = vpack.c.b16 %v7021, %v7017
        %v9218 = vpack.c.b16 %v7022, %v7018
        %v9219 = vpack.c.b16 %v7023, %v7019
        %v9220 = vpack.c.b16 %v7024, %v7020
        %v9221 = vpack.c.b16 %v7029, %v7025
        %v9222 = vpack.c.b16 %v7030, %v7026
        %v9223 = vpack.c.b16 %v7031, %v7027
        %v9224 = vpack.c.b16 %v7032, %v7028
        %v9225 = vpack.c.b16 %v7037, %v7033
        %v9226 = vpack.c.b16 %v7038, %v7034
        %v9227 = vpack.c.b16 %v7039, %v7035
        %v9228 = vpack.c.b16 %v7040, %v7036
        %v9229 = vpack.c.b16 %v7045, %v7041
        %v9230 = vpack.c.b16 %v7046, %v7042
        %v9231 = vpack.c.b16 %v7047, %v7043
        %v9232 = vpack.c.b16 %v7048, %v7044
        %v9233 = vpack.c.b16 %v7053, %v7049
        %v9234 = vpack.c.b16 %v7054, %v7050
        %v9235 = vpack.c.b16 %v7055, %v7051
        %v9236 = vpack.c.b16 %v7056, %v7052
        %v9237 = vpack.c.b16 %v7061, %v7057
        %v9238 = vpack.c.b16 %v7062, %v7058
        %v9239 = vpack.c.b16 %v7063, %v7059
        %v9240 = vpack.c.b16 %v7064, %v7060
        %v9241 = vpack.c.b16 %v7069, %v7065
        %v9242 = vpack.c.b16 %v7070, %v7066
        %v9243 = vpack.c.b16 %v7071, %v7067
        %v9244 = vpack.c.b16 %v7072, %v7068
        %v9245 = vpack.c.b16 %v7077, %v7073
        %v9246 = vpack.c.b16 %v7078, %v7074
        %v9247 = vpack.c.b16 %v7079, %v7075
        %v9248 = vpack.c.b16 %v7080, %v7076
        %v9249 = vpack.c.b16 %v7085, %v7081
        %v9250 = vpack.c.b16 %v7086, %v7082
        %v9251 = vpack.c.b16 %v7087, %v7083
        %v9252 = vpack.c.b16 %v7088, %v7084
        %v9253 = vpack.c.b16 %v7093, %v7089
        %v9254 = vpack.c.b16 %v7094, %v7090
        %v9255 = vpack.c.b16 %v7095, %v7091
        %v9256 = vpack.c.b16 %v7096, %v7092
        %v9257 = vpack.c.b16 %v7101, %v7097
        %v9258 = vpack.c.b16 %v7102, %v7098
        %v9259 = vpack.c.b16 %v7103, %v7099
        %v9260 = vpack.c.b16 %v7104, %v7100
        %v9261 = vpack.c.b16 %v7109, %v7105
        %v9262 = vpack.c.b16 %v7110, %v7106
        %v9263 = vpack.c.b16 %v7111, %v7107
        %v9264 = vpack.c.b16 %v7112, %v7108
        %v9265 = vpack.c.b16 %v7117, %v7113
        %v9266 = vpack.c.b16 %v7118, %v7114
        %v9267 = vpack.c.b16 %v7119, %v7115
        %v9268 = vpack.c.b16 %v7120, %v7116
        %v9269 = vpack.c.b16 %v7125, %v7121
        %v9270 = vpack.c.b16 %v7126, %v7122
        %v9271 = vpack.c.b16 %v7127, %v7123
        %v9272 = vpack.c.b16 %v7128, %v7124
        %v9273 = vpack.c.b16 %v7133, %v7129
        %v9274 = vpack.c.b16 %v7134, %v7130
        %v9275 = vpack.c.b16 %v7135, %v7131
        %v9276 = vpack.c.b16 %v7136, %v7132
        %v9277 = vpack.c.b16 %v7141, %v7137
        %v9278 = vpack.c.b16 %v7142, %v7138
        %v9279 = vpack.c.b16 %v7143, %v7139
        %v9280 = vpack.c.b16 %v7144, %v7140
        %v9281 = vpack.c.b16 %v7149, %v7145
        %v9282 = vpack.c.b16 %v7150, %v7146
        %v9283 = vpack.c.b16 %v7151, %v7147
        %v9284 = vpack.c.b16 %v7152, %v7148
        %v9285 = vpack.c.b16 %v7157, %v7153
        %v9286 = vpack.c.b16 %v7158, %v7154
        %v9287 = vpack.c.b16 %v7159, %v7155
        %v9288 = vpack.c.b16 %v7160, %v7156
        %v9289 = vpack.c.b16 %v7165, %v7161
        %v9290 = vpack.c.b16 %v7166, %v7162
        %v9291 = vpack.c.b16 %v7167, %v7163
        %v9292 = vpack.c.b16 %v7168, %v7164
        %v9293 = vpack.c.b16 %v7173, %v7169
        %v9294 = vpack.c.b16 %v7174, %v7170
        %v9295 = vpack.c.b16 %v7175, %v7171
        %v9296 = vpack.c.b16 %v7176, %v7172
        %v9297 = vpack.c.b16 %v7181, %v7177
        %v9298 = vpack.c.b16 %v7182, %v7178
        %v9299 = vpack.c.b16 %v7183, %v7179
        %v9300 = vpack.c.b16 %v7184, %v7180
        %v9301 = vpack.c.b16 %v7189, %v7185
        %v9302 = vpack.c.b16 %v7190, %v7186
        %v9303 = vpack.c.b16 %v7191, %v7187
        %v9304 = vpack.c.b16 %v7192, %v7188
        %v9305 = vpack.c.b16 %v7197, %v7193
        %v9306 = vpack.c.b16 %v7198, %v7194
        %v9307 = vpack.c.b16 %v7199, %v7195
        %v9308 = vpack.c.b16 %v7200, %v7196
        %v9309 = vpack.c.b16 %v7205, %v7201
        %v9310 = vpack.c.b16 %v7206, %v7202
        %v9311 = vpack.c.b16 %v7207, %v7203
        %v9312 = vpack.c.b16 %v7208, %v7204
        %v9313 = vpack.c.b16 %v7213, %v7209
        %v9314 = vpack.c.b16 %v7214, %v7210
        %v9315 = vpack.c.b16 %v7215, %v7211
        %v9316 = vpack.c.b16 %v7216, %v7212
        %v9317 = vpack.c.b16 %v7221, %v7217
        %v9318 = vpack.c.b16 %v7222, %v7218
        %v9319 = vpack.c.b16 %v7223, %v7219
        %v9320 = vpack.c.b16 %v7224, %v7220
        %v9321 = vpack.c.b16 %v7229, %v7225
        %v9322 = vpack.c.b16 %v7230, %v7226
        %v9323 = vpack.c.b16 %v7231, %v7227
        %v9324 = vpack.c.b16 %v7232, %v7228
        %v9325 = vpack.c.b16 %v7237, %v7233
        %v9326 = vpack.c.b16 %v7238, %v7234
        %v9327 = vpack.c.b16 %v7239, %v7235
        %v9328 = vpack.c.b16 %v7240, %v7236
        %v9329 = vpack.c.b16 %v7245, %v7241
        %v9330 = vpack.c.b16 %v7246, %v7242
        %v9331 = vpack.c.b16 %v7247, %v7243
        %v9332 = vpack.c.b16 %v7248, %v7244
        %v9333 = vpack.c.b16 %v7253, %v7249
        %v9334 = vpack.c.b16 %v7254, %v7250
        %v9335 = vpack.c.b16 %v7255, %v7251
        %v9336 = vpack.c.b16 %v7256, %v7252
        %v9337 = vpack.c.b16 %v7261, %v7257
        %v9338 = vpack.c.b16 %v7262, %v7258
        %v9339 = vpack.c.b16 %v7263, %v7259
        %v9340 = vpack.c.b16 %v7264, %v7260
        %v9341 = vpack.c.b16 %v7269, %v7265
        %v9342 = vpack.c.b16 %v7270, %v7266
        %v9343 = vpack.c.b16 %v7271, %v7267
        %v9344 = vpack.c.b16 %v7272, %v7268
        %v9345 = vpack.c.b16 %v7277, %v7273
        %v9346 = vpack.c.b16 %v7278, %v7274
        %v9347 = vpack.c.b16 %v7279, %v7275
        %v9348 = vpack.c.b16 %v7280, %v7276
        %v9349 = vpack.c.b16 %v7285, %v7281
        %v9350 = vpack.c.b16 %v7286, %v7282
        %v9351 = vpack.c.b16 %v7287, %v7283
        %v9352 = vpack.c.b16 %v7288, %v7284
        %v9353 = vpack.c.b16 %v7293, %v7289
        %v9354 = vpack.c.b16 %v7294, %v7290
        %v9355 = vpack.c.b16 %v7295, %v7291
        %v9356 = vpack.c.b16 %v7296, %v7292
        %v9357 = vpack.c.b16 %v7301, %v7297
        %v9358 = vpack.c.b16 %v7302, %v7298
        %v9359 = vpack.c.b16 %v7303, %v7299
        %v9360 = vpack.c.b16 %v7304, %v7300
        %v9361 = vpack.c.b16 %v7309, %v7305
        %v9362 = vpack.c.b16 %v7310, %v7306
        %v9363 = vpack.c.b16 %v7311, %v7307
        %v9364 = vpack.c.b16 %v7312, %v7308
        %v9365 = vpack.c.b16 %v7317, %v7313
        %v9366 = vpack.c.b16 %v7318, %v7314
        %v9367 = vpack.c.b16 %v7319, %v7315
        %v9368 = vpack.c.b16 %v7320, %v7316
        %v9369 = vpack.c.b16 %v7325, %v7321
        %v9370 = vpack.c.b16 %v7326, %v7322
        %v9371 = vpack.c.b16 %v7327, %v7323
        %v9372 = vpack.c.b16 %v7328, %v7324
        %v9373 = vpack.c.b16 %v7333, %v7329
        %v9374 = vpack.c.b16 %v7334, %v7330
        %v9375 = vpack.c.b16 %v7335, %v7331
        %v9376 = vpack.c.b16 %v7336, %v7332
        %v9377 = vpack.c.b16 %v7341, %v7337
        %v9378 = vpack.c.b16 %v7342, %v7338
        %v9379 = vpack.c.b16 %v7343, %v7339
        %v9380 = vpack.c.b16 %v7344, %v7340
        %v9381 = vpack.c.b16 %v7349, %v7345
        %v9382 = vpack.c.b16 %v7350, %v7346
        %v9383 = vpack.c.b16 %v7351, %v7347
        %v9384 = vpack.c.b16 %v7352, %v7348
        %v9385 = vpack.c.b16 %v7357, %v7353
        %v9386 = vpack.c.b16 %v7358, %v7354
        %v9387 = vpack.c.b16 %v7359, %v7355
        %v9388 = vpack.c.b16 %v7360, %v7356
        %v9389 = vpack.c.b16 %v7365, %v7361
        %v9390 = vpack.c.b16 %v7366, %v7362
        %v9391 = vpack.c.b16 %v7367, %v7363
        %v9392 = vpack.c.b16 %v7368, %v7364
        %v9393 = vpack.c.b16 %v7373, %v7369
        %v9394 = vpack.c.b16 %v7374, %v7370
        %v9395 = vpack.c.b16 %v7375, %v7371
        %v9396 = vpack.c.b16 %v7376, %v7372
        %v9397 = vpack.c.b16 %v7381, %v7377
        %v9398 = vpack.c.b16 %v7382, %v7378
        %v9399 = vpack.c.b16 %v7383, %v7379
        %v9400 = vpack.c.b16 %v7384, %v7380
        %v9401 = vpack.c.b16 %v7389, %v7385
        %v9402 = vpack.c.b16 %v7390, %v7386
        %v9403 = vpack.c.b16 %v7391, %v7387
        %v9404 = vpack.c.b16 %v7392, %v7388
        %v9405 = vpack.c.b16 %v7397, %v7393
        %v9406 = vpack.c.b16 %v7398, %v7394
        %v9407 = vpack.c.b16 %v7399, %v7395
        %v9408 = vpack.c.b16 %v7400, %v7396
        %v9409 = vpack.c.b16 %v7405, %v7401
        %v9410 = vpack.c.b16 %v7406, %v7402
        %v9411 = vpack.c.b16 %v7407, %v7403
        %v9412 = vpack.c.b16 %v7408, %v7404
        %v9413 = vpack.c.b16 %v7413, %v7409
        %v9414 = vpack.c.b16 %v7414, %v7410
        %v9415 = vpack.c.b16 %v7415, %v7411
        %v9416 = vpack.c.b16 %v7416, %v7412
        %v9417 = vpack.c.b16 %v7421, %v7417
        %v9418 = vpack.c.b16 %v7422, %v7418
        %v9419 = vpack.c.b16 %v7423, %v7419
        %v9420 = vpack.c.b16 %v7424, %v7420
        %v9421 = vpack.c.b16 %v7429, %v7425
        %v9422 = vpack.c.b16 %v7430, %v7426
        %v9423 = vpack.c.b16 %v7431, %v7427
        %v9424 = vpack.c.b16 %v7432, %v7428
        %v9425 = vpack.c.b16 %v7437, %v7433
        %v9426 = vpack.c.b16 %v7438, %v7434
        %v9427 = vpack.c.b16 %v7439, %v7435
        %v9428 = vpack.c.b16 %v7440, %v7436
        %v9429 = vpack.c.b16 %v7445, %v7441
        %v9430 = vpack.c.b16 %v7446, %v7442
        %v9431 = vpack.c.b16 %v7447, %v7443
        %v9432 = vpack.c.b16 %v7448, %v7444
        %v9433 = vpack.c.b16 %v7453, %v7449
        %v9434 = vpack.c.b16 %v7454, %v7450
        %v9435 = vpack.c.b16 %v7455, %v7451
        %v9436 = vpack.c.b16 %v7456, %v7452
        %v9437 = vpack.c.b16 %v7461, %v7457
        %v9438 = vpack.c.b16 %v7462, %v7458
        %v9439 = vpack.c.b16 %v7463, %v7459
        %v9440 = vpack.c.b16 %v7464, %v7460
        %v9441 = vpack.c.b16 %v7469, %v7465
        %v9442 = vpack.c.b16 %v7470, %v7466
        %v9443 = vpack.c.b16 %v7471, %v7467
        %v9444 = vpack.c.b16 %v7472, %v7468
        %v9445 = vpack.c.b16 %v7477, %v7473
        %v9446 = vpack.c.b16 %v7478, %v7474
        %v9447 = vpack.c.b16 %v7479, %v7475
        %v9448 = vpack.c.b16 %v7480, %v7476
        %v9449 = vpack.c.b16 %v7485, %v7481
        %v9450 = vpack.c.b16 %v7486, %v7482
        %v9451 = vpack.c.b16 %v7487, %v7483
        %v9452 = vpack.c.b16 %v7488, %v7484
        %v9453 = vpack.c.b16 %v7493, %v7489
        %v9454 = vpack.c.b16 %v7494, %v7490
        %v9455 = vpack.c.b16 %v7495, %v7491
        %v9456 = vpack.c.b16 %v7496, %v7492
        %v9457 = vpack.c.b16 %v7501, %v7497
        %v9458 = vpack.c.b16 %v7502, %v7498
        %v9459 = vpack.c.b16 %v7503, %v7499
        %v9460 = vpack.c.b16 %v7504, %v7500
        %v9461 = vpack.c.b16 %v7509, %v7505
        %v9462 = vpack.c.b16 %v7510, %v7506
        %v9463 = vpack.c.b16 %v7511, %v7507
        %v9464 = vpack.c.b16 %v7512, %v7508
        %v9465 = vpack.c.b16 %v7517, %v7513
        %v9466 = vpack.c.b16 %v7518, %v7514
        %v9467 = vpack.c.b16 %v7519, %v7515
        %v9468 = vpack.c.b16 %v7520, %v7516
        %v9469 = vpack.c.b16 %v7525, %v7521
        %v9470 = vpack.c.b16 %v7526, %v7522
        %v9471 = vpack.c.b16 %v7527, %v7523
        %v9472 = vpack.c.b16 %v7528, %v7524
        %v9473 = vpack.c.b16 %v7533, %v7529
        %v9474 = vpack.c.b16 %v7534, %v7530
        %v9475 = vpack.c.b16 %v7535, %v7531
        %v9476 = vpack.c.b16 %v7536, %v7532
        %v9477 = vpack.c.b16 %v7541, %v7537
        %v9478 = vpack.c.b16 %v7542, %v7538
        %v9479 = vpack.c.b16 %v7543, %v7539
        %v9480 = vpack.c.b16 %v7544, %v7540
        %v9481 = vpack.c.b16 %v7549, %v7545
        %v9482 = vpack.c.b16 %v7550, %v7546
        %v9483 = vpack.c.b16 %v7551, %v7547
        %v9484 = vpack.c.b16 %v7552, %v7548
        %v9485 = vpack.c.b16 %v7557, %v7553
        %v9486 = vpack.c.b16 %v7558, %v7554
        %v9487 = vpack.c.b16 %v7559, %v7555
        %v9488 = vpack.c.b16 %v7560, %v7556
        %v9489 = vpack.c.b16 %v7565, %v7561
        %v9490 = vpack.c.b16 %v7566, %v7562
        %v9491 = vpack.c.b16 %v7567, %v7563
        %v9492 = vpack.c.b16 %v7568, %v7564
        %v9493 = vpack.c.b16 %v7573, %v7569
        %v9494 = vpack.c.b16 %v7574, %v7570
        %v9495 = vpack.c.b16 %v7575, %v7571
        %v9496 = vpack.c.b16 %v7576, %v7572
        %v9497 = vpack.c.b16 %v7581, %v7577
        %v9498 = vpack.c.b16 %v7582, %v7578
        %v9499 = vpack.c.b16 %v7583, %v7579
        %v9500 = vpack.c.b16 %v7584, %v7580
        %v9501 = vpack.c.b16 %v7589, %v7585
        %v9502 = vpack.c.b16 %v7590, %v7586
        %v9503 = vpack.c.b16 %v7591, %v7587
        %v9504 = vpack.c.b16 %v7592, %v7588
        %v9505 = vpack.c.b16 %v7597, %v7593
        %v9506 = vpack.c.b16 %v7598, %v7594
        %v9507 = vpack.c.b16 %v7599, %v7595
        %v9508 = vpack.c.b16 %v7600, %v7596
        %v9509 = vpack.c.b16 %v7605, %v7601
        %v9510 = vpack.c.b16 %v7606, %v7602
        %v9511 = vpack.c.b16 %v7607, %v7603
        %v9512 = vpack.c.b16 %v7608, %v7604
        %v9513 = vpack.c.b16 %v7613, %v7609
        %v9514 = vpack.c.b16 %v7614, %v7610
        %v9515 = vpack.c.b16 %v7615, %v7611
        %v9516 = vpack.c.b16 %v7616, %v7612
        %v9517 = vpack.c.b16 %v7621, %v7617
        %v9518 = vpack.c.b16 %v7622, %v7618
        %v9519 = vpack.c.b16 %v7623, %v7619
        %v9520 = vpack.c.b16 %v7624, %v7620
        %v9521 = vpack.c.b16 %v7629, %v7625
        %v9522 = vpack.c.b16 %v7630, %v7626
        %v9523 = vpack.c.b16 %v7631, %v7627
        %v9524 = vpack.c.b16 %v7632, %v7628
        %v9525 = vpack.c.b16 %v7637, %v7633
        %v9526 = vpack.c.b16 %v7638, %v7634
        %v9527 = vpack.c.b16 %v7639, %v7635
        %v9528 = vpack.c.b16 %v7640, %v7636
        %v9529 = vpack.c.b16 %v7645, %v7641
        %v9530 = vpack.c.b16 %v7646, %v7642
        %v9531 = vpack.c.b16 %v7647, %v7643
        %v9532 = vpack.c.b16 %v7648, %v7644
        %v9533 = vpack.c.b16 %v7653, %v7649
        %v9534 = vpack.c.b16 %v7654, %v7650
        %v9535 = vpack.c.b16 %v7655, %v7651
        %v9536 = vpack.c.b16 %v7656, %v7652
        %v9537 = vpack.c.b16 %v7661, %v7657
        %v9538 = vpack.c.b16 %v7662, %v7658
        %v9539 = vpack.c.b16 %v7663, %v7659
        %v9540 = vpack.c.b16 %v7664, %v7660
        %v9541 = vpack.c.b16 %v7669, %v7665
        %v9542 = vpack.c.b16 %v7670, %v7666
        %v9543 = vpack.c.b16 %v7671, %v7667
        %v9544 = vpack.c.b16 %v7672, %v7668
        %v9545 = vpack.c.b16 %v7677, %v7673
        %v9546 = vpack.c.b16 %v7678, %v7674
        %v9547 = vpack.c.b16 %v7679, %v7675
        %v9548 = vpack.c.b16 %v7680, %v7676
        %v9549 = vpack.c.b16 %v7685, %v7681
        %v9550 = vpack.c.b16 %v7686, %v7682
        %v9551 = vpack.c.b16 %v7687, %v7683
        %v9552 = vpack.c.b16 %v7688, %v7684
        %v9553 = vpack.c.b16 %v7693, %v7689
        %v9554 = vpack.c.b16 %v7694, %v7690
        %v9555 = vpack.c.b16 %v7695, %v7691
        %v9556 = vpack.c.b16 %v7696, %v7692
        %v9557 = vpack.c.b16 %v7701, %v7697
        %v9558 = vpack.c.b16 %v7702, %v7698
        %v9559 = vpack.c.b16 %v7703, %v7699
        %v9560 = vpack.c.b16 %v7704, %v7700
        %v9561 = vpack.c.b16 %v7709, %v7705
        %v9562 = vpack.c.b16 %v7710, %v7706
        %v9563 = vpack.c.b16 %v7711, %v7707
        %v9564 = vpack.c.b16 %v7712, %v7708
        %v9565 = vpack.c.b16 %v7717, %v7713
        %v9566 = vpack.c.b16 %v7718, %v7714
        %v9567 = vpack.c.b16 %v7719, %v7715
        %v9568 = vpack.c.b16 %v7720, %v7716
        %v9569 = vpack.c.b16 %v7725, %v7721
        %v9570 = vpack.c.b16 %v7726, %v7722
        %v9571 = vpack.c.b16 %v7727, %v7723
        %v9572 = vpack.c.b16 %v7728, %v7724
        %v9573 = vpack.c.b16 %v7733, %v7729
        %v9574 = vpack.c.b16 %v7734, %v7730
        %v9575 = vpack.c.b16 %v7735, %v7731
        %v9576 = vpack.c.b16 %v7736, %v7732
        %v9577 = vpack.c.b16 %v7741, %v7737
        %v9578 = vpack.c.b16 %v7742, %v7738
        %v9579 = vpack.c.b16 %v7743, %v7739
        %v9580 = vpack.c.b16 %v7744, %v7740
        %v9581 = vpack.c.b16 %v7749, %v7745
        %v9582 = vpack.c.b16 %v7750, %v7746
        %v9583 = vpack.c.b16 %v7751, %v7747
        %v9584 = vpack.c.b16 %v7752, %v7748
        %v9585 = vpack.c.b16 %v7757, %v7753
        %v9586 = vpack.c.b16 %v7758, %v7754
        %v9587 = vpack.c.b16 %v7759, %v7755
        %v9588 = vpack.c.b16 %v7760, %v7756
        %v9589 = vpack.c.b16 %v7765, %v7761
        %v9590 = vpack.c.b16 %v7766, %v7762
        %v9591 = vpack.c.b16 %v7767, %v7763
        %v9592 = vpack.c.b16 %v7768, %v7764
        %v9593 = vpack.c.b16 %v7773, %v7769
        %v9594 = vpack.c.b16 %v7774, %v7770
        %v9595 = vpack.c.b16 %v7775, %v7771
        %v9596 = vpack.c.b16 %v7776, %v7772
        %v9597 = vpack.c.b16 %v7781, %v7777
        %v9598 = vpack.c.b16 %v7782, %v7778
        %v9599 = vpack.c.b16 %v7783, %v7779
        %v9600 = vpack.c.b16 %v7784, %v7780
        %v9601 = vpack.c.b16 %v7789, %v7785
        %v9602 = vpack.c.b16 %v7790, %v7786
        %v9603 = vpack.c.b16 %v7791, %v7787
        %v9604 = vpack.c.b16 %v7792, %v7788
        %v9605 = vpack.c.b16 %v7797, %v7793
        %v9606 = vpack.c.b16 %v7798, %v7794
        %v9607 = vpack.c.b16 %v7799, %v7795
        %v9608 = vpack.c.b16 %v7800, %v7796
        %v9609 = vpack.c.b16 %v7805, %v7801
        %v9610 = vpack.c.b16 %v7806, %v7802
        %v9611 = vpack.c.b16 %v7807, %v7803
        %v9612 = vpack.c.b16 %v7808, %v7804
        %v9613 = vpack.c.b16 %v7813, %v7809
        %v9614 = vpack.c.b16 %v7814, %v7810
        %v9615 = vpack.c.b16 %v7815, %v7811
        %v9616 = vpack.c.b16 %v7816, %v7812
        %v9617 = vpack.c.b16 %v7821, %v7817
        %v9618 = vpack.c.b16 %v7822, %v7818
        %v9619 = vpack.c.b16 %v7823, %v7819
        %v9620 = vpack.c.b16 %v7824, %v7820
        %v9621 = vpack.c.b16 %v7829, %v7825
        %v9622 = vpack.c.b16 %v7830, %v7826
        %v9623 = vpack.c.b16 %v7831, %v7827
        %v9624 = vpack.c.b16 %v7832, %v7828
        %11417 = vmatprep.subr.bf16.mxu0 %v7834
        %11418 = vmatpush1.bf16.msra.mxu0 %v7833
        %11419 = vmatprep.subr.bf16.mxu0 %v7838
        %11420 = vmatpush1.bf16.msra.mxu0 %v7837
        %11421 = vmatprep.subr.bf16.mxu0 %v7842
        %11422 = vmatpush1.bf16.msra.mxu0 %v7841
        %11423 = vmatprep.subr.bf16.mxu0 %v7846
        %11424 = vmatpush1.bf16.msra.mxu0 %v7845
        %11425 = vmatprep.subr.bf16.mxu0 %v7850
        %11426 = vmatpush1.bf16.msra.mxu0 %v7849
        %11427 = vmatprep.subr.bf16.mxu0 %v7854
        %11428 = vmatpush1.bf16.msra.mxu0 %v7853
        %11429 = vmatprep.subr.bf16.mxu0 %v7858
        %11430 = vmatpush1.bf16.msra.mxu0 %v7857
        %11431 = vmatprep.subr.bf16.mxu0 %v7862
        %11432 = vmatpush1.bf16.msra.mxu0 %v7861
        %11433 = vmatprep.subr.bf16.mxu0 %v7866
        %11434 = vmatpush1.bf16.msra.mxu0 %v7865
        %11435 = vmatprep.subr.bf16.mxu0 %v7870
        %11436 = vmatpush1.bf16.msra.mxu0 %v7869
        %11437 = vmatprep.subr.bf16.mxu0 %v7874
        %11438 = vmatpush1.bf16.msra.mxu0 %v7873
        %11439 = vmatprep.subr.bf16.mxu0 %v7878
        %11440 = vmatpush1.bf16.msra.mxu0 %v7877
        %11441 = vmatprep.subr.bf16.mxu0 %v7882
        %11442 = vmatpush1.bf16.msra.mxu0 %v7881
        %11443 = vmatprep.subr.bf16.mxu0 %v7886
        %11444 = vmatpush1.bf16.msra.mxu0 %v7885
        %11445 = vmatprep.subr.bf16.mxu0 %v7890
        %11446 = vmatpush1.bf16.msra.mxu0 %v7889
        %11447 = vmatprep.subr.bf16.mxu0 %v7894
        %11448 = vmatpush1.bf16.msra.mxu0 %v7893
        %11449 = vmatprep.mubr.bf16.mxu0 %v2095
        %11450 = vmatmul.mubr.bf16.gmra.mrb[0].mxu0 %v2081
        %v11451 = vpop.f32.mrb[0].mxu0
        %v11452 = vadd.f32 0.0, %v11451
        %v11453 = vpop.f32.mrb[0].mxu0
        %v11454 = vadd.f32 0.0, %v11453
        %v11455 = vpop.f32.mrb[0].mxu0
        %v11456 = vpop.f32.mrb[0].mxu0
        %11457 = vdwg.mxu0
        %11458 = vmatprep.subr.bf16.mxu0 %v7898
        %11459 = vmatpush1.bf16.msra.mxu0 %v7897
        %11460 = vmatprep.subr.bf16.mxu0 %v7902
        %11461 = vmatpush1.bf16.msra.mxu0 %v7901
        %11462 = vmatprep.subr.bf16.mxu0 %v7906
        %11463 = vmatpush1.bf16.msra.mxu0 %v7905
        %11464 = vmatprep.subr.bf16.mxu0 %v7910
        %11465 = vmatpush1.bf16.msra.mxu0 %v7909
        %11466 = vmatprep.subr.bf16.mxu0 %v7914
        %11467 = vmatpush1.bf16.msra.mxu0 %v7913
        %11468 = vmatprep.subr.bf16.mxu0 %v7918
        %11469 = vmatpush1.bf16.msra.mxu0 %v7917
        %11470 = vmatprep.subr.bf16.mxu0 %v7922
        %11471 = vmatpush1.bf16.msra.mxu0 %v7921
        %11472 = vmatprep.subr.bf16.mxu0 %v7926
        %11473 = vmatpush1.bf16.msra.mxu0 %v7925
        %11474 = vmatprep.subr.bf16.mxu0 %v7930
        %11475 = vmatpush1.bf16.msra.mxu0 %v7929
        %11476 = vmatprep.subr.bf16.mxu0 %v7934
        %11477 = vmatpush1.bf16.msra.mxu0 %v7933
        %11478 = vmatprep.subr.bf16.mxu0 %v7938
        %11479 = vmatpush1.bf16.msra.mxu0 %v7937
        %11480 = vmatprep.subr.bf16.mxu0 %v7942
        %11481 = vmatpush1.bf16.msra.mxu0 %v7941
        %11482 = vmatprep.subr.bf16.mxu0 %v7946
        %11483 = vmatpush1.bf16.msra.mxu0 %v7945
        %11484 = vmatprep.subr.bf16.mxu0 %v7950
        %11485 = vmatpush1.bf16.msra.mxu0 %v7949
        %11486 = vmatprep.subr.bf16.mxu0 %v7954
        %11487 = vmatpush1.bf16.msra.mxu0 %v7953
        %11488 = vmatprep.subr.bf16.mxu0 %v7958
        %11489 = vmatpush1.bf16.msra.mxu0 %v7957
        %11490 = vmatprep.mubr.bf16.mxu0 %v2105
        %11491 = vmatmul.mubr.bf16.gmra.mrb[0].mxu0 %v2103
        %v11492 = vpop.f32.mrb[0].mxu0
        %v11493 = vadd.f32 %v11452, %v11492
        %v11494 = vpop.f32.mrb[0].mxu0
        %v11495 = vadd.f32 %v11454, %v11494
        %v11496 = vpop.f32.mrb[0].mxu0
        %v11497 = vpop.f32.mrb[0].mxu0
        %11498 = vdwg.mxu0
        %11499 = vmatprep.subr.bf16.mxu0 %v7962
        %11500 = vmatpush1.bf16.msra.mxu0 %v7961
        %11501 = vmatprep.subr.bf16.mxu0 %v7966
        %11502 = vmatpush1.bf16.msra.mxu0 %v7965
        %11503 = vmatprep.subr.bf16.mxu0 %v7970
        %11504 = vmatpush1.bf16.msra.mxu0 %v7969
        %11505 = vmatprep.subr.bf16.mxu0 %v7974
        %11506 = vmatpush1.bf16.msra.mxu0 %v7973
        %11507 = vmatprep.subr.bf16.mxu0 %v7978
        %11508 = vmatpush1.bf16.msra.mxu0 %v7977
        %11509 = vmatprep.subr.bf16.mxu0 %v7982
        %11510 = vmatpush1.bf16.msra.mxu0 %v7981
        %11511 = vmatprep.subr.bf16.mxu0 %v7986
        %11512 = vmatpush1.bf16.msra.mxu0 %v7985
        %11513 = vmatprep.subr.bf16.mxu0 %v7990
        %11514 = vmatpush1.bf16.msra.mxu0 %v7989
        %11515 = vmatprep.subr.bf16.mxu0 %v7994
        %11516 = vmatpush1.bf16.msra.mxu0 %v7993
        %11517 = vmatprep.subr.bf16.mxu0 %v7998
        %11518 = vmatpush1.bf16.msra.mxu0 %v7997
        %11519 = vmatprep.subr.bf16.mxu0 %v8002
        %11520 = vmatpush1.bf16.msra.mxu0 %v8001
        %11521 = vmatprep.subr.bf16.mxu0 %v8006
        %11522 = vmatpush1.bf16.msra.mxu0 %v8005
        %11523 = vmatprep.subr.bf16.mxu0 %v8010
        %11524 = vmatpush1.bf16.msra.mxu0 %v8009
        %11525 = vmatprep.subr.bf16.mxu0 %v8014
        %11526 = vmatpush1.bf16.msra.mxu0 %v8013
        %11527 = vmatprep.subr.bf16.mxu0 %v8018
        %11528 = vmatpush1.bf16.msra.mxu0 %v8017
        %11529 = vmatprep.subr.bf16.mxu0 %v8022
        %11530 = vmatpush1.bf16.msra.mxu0 %v8021
        %11531 = vmatprep.mubr.bf16.mxu0 %v2102
        %11532 = vmatmul.mubr.bf16.gmra.mrb[0].mxu0 %v2088
        %v11533 = vpop.f32.mrb[0].mxu0
        %v11534 = vadd.f32 %v11493, %v11533
        %v11535 = vpop.f32.mrb[0].mxu0
        %v11536 = vadd.f32 %v11495, %v11535
        %v11537 = vpop.f32.mrb[0].mxu0
        %v11538 = vpop.f32.mrb[0].mxu0
        %11539 = vdwg.mxu0
        %11540 = vmatprep.subr.bf16.mxu0 %v8026
        %11541 = vmatpush1.bf16.msra.mxu0 %v8025
        %11542 = vmatprep.subr.bf16.mxu0 %v8030
        %11543 = vmatpush1.bf16.msra.mxu0 %v8029
        %11544 = vmatprep.subr.bf16.mxu0 %v8034
        %11545 = vmatpush1.bf16.msra.mxu0 %v8033
        %11546 = vmatprep.subr.bf16.mxu0 %v8038
        %11547 = vmatpush1.bf16.msra.mxu0 %v8037
        %11548 = vmatprep.subr.bf16.mxu0 %v8042
        %11549 = vmatpush1.bf16.msra.mxu0 %v8041
        %11550 = vmatprep.subr.bf16.mxu0 %v8046
        %11551 = vmatpush1.bf16.msra.mxu0 %v8045
        %11552 = vmatprep.subr.bf16.mxu0 %v8050
        %11553 = vmatpush1.bf16.msra.mxu0 %v8049
        %11554 = vmatprep.subr.bf16.mxu0 %v8054
        %11555 = vmatpush1.bf16.msra.mxu0 %v8053
        %11556 = vmatprep.subr.bf16.mxu0 %v8058
        %11557 = vmatpush1.bf16.msra.mxu0 %v8057
        %11558 = vmatprep.subr.bf16.mxu0 %v8062
        %11559 = vmatpush1.bf16.msra.mxu0 %v8061
        %11560 = vmatprep.subr.bf16.mxu0 %v8066
        %11561 = vmatpush1.bf16.msra.mxu0 %v8065
        %11562 = vmatprep.subr.bf16.mxu0 %v8070
        %11563 = vmatpush1.bf16.msra.mxu0 %v8069
        %11564 = vmatprep.subr.bf16.mxu0 %v8074
        %11565 = vmatpush1.bf16.msra.mxu0 %v8073
        %11566 = vmatprep.subr.bf16.mxu0 %v8078
        %11567 = vmatpush1.bf16.msra.mxu0 %v8077
        %11568 = vmatprep.subr.bf16.mxu0 %v8082
        %11569 = vmatpush1.bf16.msra.mxu0 %v8081
        %11570 = vmatprep.subr.bf16.mxu0 %v8086
        %11571 = vmatpush1.bf16.msra.mxu0 %v8085
        %11572 = vmatprep.mubr.bf16.mxu0 %v2106
        %11573 = vmatmul.mubr.bf16.gmra.mrb[0].mxu0 %v2104
        %v11574 = vpop.f32.mrb[0].mxu0
        %v11575 = vadd.f32 %v11534, %v11574
        %v11576 = vpop.f32.mrb[0].mxu0
        %v11577 = vadd.f32 %v11536, %v11576
        %v11578 = vpop.f32.mrb[0].mxu0
        %v11579 = vpop.f32.mrb[0].mxu0
        %11580 = vdwg.mxu0
        %11581 = vmatprep.subr.bf16.mxu0 %v8090
        %11582 = vmatpush1.bf16.msra.mxu0 %v8089
        %11583 = vmatprep.subr.bf16.mxu0 %v8094
        %11584 = vmatpush1.bf16.msra.mxu0 %v8093
        %11585 = vmatprep.subr.bf16.mxu0 %v8098
        %11586 = vmatpush1.bf16.msra.mxu0 %v8097
        %11587 = vmatprep.subr.bf16.mxu0 %v8102
        %11588 = vmatpush1.bf16.msra.mxu0 %v8101
        %11589 = vmatprep.subr.bf16.mxu0 %v8106
        %11590 = vmatpush1.bf16.msra.mxu0 %v8105
        %11591 = vmatprep.subr.bf16.mxu0 %v8110
        %11592 = vmatpush1.bf16.msra.mxu0 %v8109
        %11593 = vmatprep.subr.bf16.mxu0 %v8114
        %11594 = vmatpush1.bf16.msra.mxu0 %v8113
        %11595 = vmatprep.subr.bf16.mxu0 %v8118
        %11596 = vmatpush1.bf16.msra.mxu0 %v8117
        %11597 = vmatprep.subr.bf16.mxu0 %v8122
        %11598 = vmatpush1.bf16.msra.mxu0 %v8121
        %11599 = vmatprep.subr.bf16.mxu0 %v8126
        %11600 = vmatpush1.bf16.msra.mxu0 %v8125
        %11601 = vmatprep.subr.bf16.mxu0 %v8130
        %11602 = vmatpush1.bf16.msra.mxu0 %v8129
        %11603 = vmatprep.subr.bf16.mxu0 %v8134
        %11604 = vmatpush1.bf16.msra.mxu0 %v8133
        %11605 = vmatprep.subr.bf16.mxu0 %v8138
        %11606 = vmatpush1.bf16.msra.mxu0 %v8137
        %11607 = vmatprep.subr.bf16.mxu0 %v8142
        %11608 = vmatpush1.bf16.msra.mxu0 %v8141
        %11609 = vmatprep.subr.bf16.mxu0 %v8146
        %11610 = vmatpush1.bf16.msra.mxu0 %v8145
        %11611 = vmatprep.subr.bf16.mxu0 %v8150
        %11612 = vmatpush1.bf16.msra.mxu0 %v8149
        %11613 = vmatprep.mubr.bf16.mxu0 %v2144
        %11614 = vmatmul.mubr.bf16.gmra.mrb[0].mxu0 %v2130
        %v11615 = vpop.f32.mrb[0].mxu0
        %v11616 = vadd.f32 %v11575, %v11615
        %v11617 = vpop.f32.mrb[0].mxu0
        %v11618 = vadd.f32 %v11577, %v11617
        %v11619 = vpop.f32.mrb[0].mxu0
        %v11620 = vpop.f32.mrb[0].mxu0
        %11621 = vdwg.mxu0
        %11622 = vmatprep.subr.bf16.mxu0 %v8154
        %11623 = vmatpush1.bf16.msra.mxu0 %v8153
        %11624 = vmatprep.subr.bf16.mxu0 %v8158
        %11625 = vmatpush1.bf16.msra.mxu0 %v8157
        %11626 = vmatprep.subr.bf16.mxu0 %v8162
        %11627 = vmatpush1.bf16.msra.mxu0 %v8161
        %11628 = vmatprep.subr.bf16.mxu0 %v8166
        %11629 = vmatpush1.bf16.msra.mxu0 %v8165
        %11630 = vmatprep.subr.bf16.mxu0 %v8170
        %11631 = vmatpush1.bf16.msra.mxu0 %v8169
        %11632 = vmatprep.subr.bf16.mxu0 %v8174
        %11633 = vmatpush1.bf16.msra.mxu0 %v8173
        %11634 = vmatprep.subr.bf16.mxu0 %v8178
        %11635 = vmatpush1.bf16.msra.mxu0 %v8177
        %11636 = vmatprep.subr.bf16.mxu0 %v8182
        %11637 = vmatpush1.bf16.msra.mxu0 %v8181
        %11638 = vmatprep.subr.bf16.mxu0 %v8186
        %11639 = vmatpush1.bf16.msra.mxu0 %v8185
        %11640 = vmatprep.subr.bf16.mxu0 %v8190
        %11641 = vmatpush1.bf16.msra.mxu0 %v8189
        %11642 = vmatprep.subr.bf16.mxu0 %v8194
        %11643 = vmatpush1.bf16.msra.mxu0 %v8193
        %11644 = vmatprep.subr.bf16.mxu0 %v8198
        %11645 = vmatpush1.bf16.msra.mxu0 %v8197
        %11646 = vmatprep.subr.bf16.mxu0 %v8202
        %11647 = vmatpush1.bf16.msra.mxu0 %v8201
        %11648 = vmatprep.subr.bf16.mxu0 %v8206
        %11649 = vmatpush1.bf16.msra.mxu0 %v8205
        %11650 = vmatprep.subr.bf16.mxu0 %v8210
        %11651 = vmatpush1.bf16.msra.mxu0 %v8209
        %11652 = vmatprep.subr.bf16.mxu0 %v8214
        %11653 = vmatpush1.bf16.msra.mxu0 %v8213
        %11654 = vmatprep.mubr.bf16.mxu0 %v2154
        %11655 = vmatmul.mubr.bf16.gmra.mrb[0].mxu0 %v2152
        %v11656 = vpop.f32.mrb[0].mxu0
        %v11657 = vadd.f32 %v11616, %v11656
        %v11658 = vpop.f32.mrb[0].mxu0
        %v11659 = vadd.f32 %v11618, %v11658
        %v11660 = vpop.f32.mrb[0].mxu0
        %v11661 = vpop.f32.mrb[0].mxu0
        %11662 = vdwg.mxu0
        %11663 = vmatprep.subr.bf16.mxu0 %v8218
        %11664 = vmatpush1.bf16.msra.mxu0 %v8217
        %11665 = vmatprep.subr.bf16.mxu0 %v8222
        %11666 = vmatpush1.bf16.msra.mxu0 %v8221
        %11667 = vmatprep.subr.bf16.mxu0 %v8226
        %11668 = vmatpush1.bf16.msra.mxu0 %v8225
        %11669 = vmatprep.subr.bf16.mxu0 %v8230
        %11670 = vmatpush1.bf16.msra.mxu0 %v8229
        %11671 = vmatprep.subr.bf16.mxu0 %v8234
        %11672 = vmatpush1.bf16.msra.mxu0 %v8233
        %11673 = vmatprep.subr.bf16.mxu0 %v8238
        %11674 = vmatpush1.bf16.msra.mxu0 %v8237
        %11675 = vmatprep.subr.bf16.mxu0 %v8242
        %11676 = vmatpush1.bf16.msra.mxu0 %v8241
        %11677 = vmatprep.subr.bf16.mxu0 %v8246
        %11678 = vmatpush1.bf16.msra.mxu0 %v8245
        %11679 = vmatprep.subr.bf16.mxu0 %v8250
        %11680 = vmatpush1.bf16.msra.mxu0 %v8249
        %11681 = vmatprep.subr.bf16.mxu0 %v8254
        %11682 = vmatpush1.bf16.msra.mxu0 %v8253
        %11683 = vmatprep.subr.bf16.mxu0 %v8258
        %11684 = vmatpush1.bf16.msra.mxu0 %v8257
        %11685 = vmatprep.subr.bf16.mxu0 %v8262
        %11686 = vmatpush1.bf16.msra.mxu0 %v8261
        %11687 = vmatprep.subr.bf16.mxu0 %v8266
        %11688 = vmatpush1.bf16.msra.mxu0 %v8265
        %11689 = vmatprep.subr.bf16.mxu0 %v8270
        %11690 = vmatpush1.bf16.msra.mxu0 %v8269
        %11691 = vmatprep.subr.bf16.mxu0 %v8274
        %11692 = vmatpush1.bf16.msra.mxu0 %v8273
        %11693 = vmatprep.subr.bf16.mxu0 %v8278
        %11694 = vmatpush1.bf16.msra.mxu0 %v8277
        %11695 = vmatprep.mubr.bf16.mxu0 %v2151
        %11696 = vmatmul.mubr.bf16.gmra.mrb[0].mxu0 %v2137
        %v11697 = vpop.f32.mrb[0].mxu0
        %v11698 = vadd.f32 %v11657, %v11697
        %v11699 = vpop.f32.mrb[0].mxu0
        %v11700 = vadd.f32 %v11659, %v11699
        %v11701 = vpop.f32.mrb[0].mxu0
        %v11702 = vpop.f32.mrb[0].mxu0
        %11703 = vdwg.mxu0
        %11704 = vmatprep.subr.bf16.mxu0 %v8282
        %11705 = vmatpush1.bf16.msra.mxu0 %v8281
        %11706 = vmatprep.subr.bf16.mxu0 %v8286
        %11707 = vmatpush1.bf16.msra.mxu0 %v8285
        %11708 = vmatprep.subr.bf16.mxu0 %v8290
        %11709 = vmatpush1.bf16.msra.mxu0 %v8289
        %11710 = vmatprep.subr.bf16.mxu0 %v8294
        %11711 = vmatpush1.bf16.msra.mxu0 %v8293
        %11712 = vmatprep.subr.bf16.mxu0 %v8298
        %11713 = vmatpush1.bf16.msra.mxu0 %v8297
        %11714 = vmatprep.subr.bf16.mxu0 %v8302
        %11715 = vmatpush1.bf16.msra.mxu0 %v8301
        %11716 = vmatprep.subr.bf16.mxu0 %v8306
        %11717 = vmatpush1.bf16.msra.mxu0 %v8305
        %11718 = vmatprep.subr.bf16.mxu0 %v8310
        %11719 = vmatpush1.bf16.msra.mxu0 %v8309
        %11720 = vmatprep.subr.bf16.mxu0 %v8314
        %11721 = vmatpush1.bf16.msra.mxu0 %v8313
        %11722 = vmatprep.subr.bf16.mxu0 %v8318
        %11723 = vmatpush1.bf16.msra.mxu0 %v8317
        %11724 = vmatprep.subr.bf16.mxu0 %v8322
        %11725 = vmatpush1.bf16.msra.mxu0 %v8321
        %11726 = vmatprep.subr.bf16.mxu0 %v8326
        %11727 = vmatpush1.bf16.msra.mxu0 %v8325
        %11728 = vmatprep.subr.bf16.mxu0 %v8330
        %11729 = vmatpush1.bf16.msra.mxu0 %v8329
        %11730 = vmatprep.subr.bf16.mxu0 %v8334
        %11731 = vmatpush1.bf16.msra.mxu0 %v8333
        %11732 = vmatprep.subr.bf16.mxu0 %v8338
        %11733 = vmatpush1.bf16.msra.mxu0 %v8337
        %11734 = vmatprep.subr.bf16.mxu0 %v8342
        %11735 = vmatpush1.bf16.msra.mxu0 %v8341
        %11736 = vmatprep.mubr.bf16.mxu0 %v2155
        %11737 = vmatmul.mubr.bf16.gmra.mrb[0].mxu0 %v2153
        %v11738 = vpop.f32.mrb[0].mxu0
        %v11739 = vadd.f32 %v11698, %v11738
        %v11740 = vpop.f32.mrb[0].mxu0
        %v11741 = vadd.f32 %v11700, %v11740
        %v11742 = vpop.f32.mrb[0].mxu0
        %v11743 = vpop.f32.mrb[0].mxu0
        %11744 = vdwg.mxu0
        %11745 = vmatprep.subr.bf16.mxu0 %v8346
        %11746 = vmatpush1.bf16.msra.mxu0 %v8345
        %11747 = vmatprep.subr.bf16.mxu0 %v8350
        %11748 = vmatpush1.bf16.msra.mxu0 %v8349
        %11749 = vmatprep.subr.bf16.mxu0 %v8354
        %11750 = vmatpush1.bf16.msra.mxu0 %v8353
        %11751 = vmatprep.subr.bf16.mxu0 %v8358
        %11752 = vmatpush1.bf16.msra.mxu0 %v8357
        %11753 = vmatprep.subr.bf16.mxu0 %v8362
        %11754 = vmatpush1.bf16.msra.mxu0 %v8361
        %11755 = vmatprep.subr.bf16.mxu0 %v8366
        %11756 = vmatpush1.bf16.msra.mxu0 %v8365
        %11757 = vmatprep.subr.bf16.mxu0 %v8370
        %11758 = vmatpush1.bf16.msra.mxu0 %v8369
        %11759 = vmatprep.subr.bf16.mxu0 %v8374
        %11760 = vmatpush1.bf16.msra.mxu0 %v8373
        %11761 = vmatprep.subr.bf16.mxu0 %v8378
        %11762 = vmatpush1.bf16.msra.mxu0 %v8377
        %11763 = vmatprep.subr.bf16.mxu0 %v8382
        %11764 = vmatpush1.bf16.msra.mxu0 %v8381
        %11765 = vmatprep.subr.bf16.mxu0 %v8386
        %11766 = vmatpush1.bf16.msra.mxu0 %v8385
        %11767 = vmatprep.subr.bf16.mxu0 %v8390
        %11768 = vmatpush1.bf16.msra.mxu0 %v8389
        %11769 = vmatprep.subr.bf16.mxu0 %v8394
        %11770 = vmatpush1.bf16.msra.mxu0 %v8393
        %11771 = vmatprep.subr.bf16.mxu0 %v8398
        %11772 = vmatpush1.bf16.msra.mxu0 %v8397
        %11773 = vmatprep.subr.bf16.mxu0 %v8402
        %11774 = vmatpush1.bf16.msra.mxu0 %v8401
        %11775 = vmatprep.subr.bf16.mxu0 %v8406
        %11776 = vmatpush1.bf16.msra.mxu0 %v8405
        %11777 = vmatprep.mubr.bf16.mxu0 %v2193
        %11778 = vmatmul.mubr.bf16.gmra.mrb[0].mxu0 %v2179
        %v11779 = vpop.f32.mrb[0].mxu0
        %v11780 = vadd.f32 %v11739, %v11779
        %v11781 = vpop.f32.mrb[0].mxu0
        %v11782 = vadd.f32 %v11741, %v11781
        %v11783 = vpop.f32.mrb[0].mxu0
        %v11784 = vpop.f32.mrb[0].mxu0
        %11785 = vdwg.mxu0
        %11786 = vmatprep.subr.bf16.mxu0 %v8410
        %11787 = vmatpush1.bf16.msra.mxu0 %v8409
        %11788 = vmatprep.subr.bf16.mxu0 %v8414
        %11789 = vmatpush1.bf16.msra.mxu0 %v8413
        %11790 = vmatprep.subr.bf16.mxu0 %v8418
        %11791 = vmatpush1.bf16.msra.mxu0 %v8417
        %11792 = vmatprep.subr.bf16.mxu0 %v8422
        %11793 = vmatpush1.bf16.msra.mxu0 %v8421
        %11794 = vmatprep.subr.bf16.mxu0 %v8426
        %11795 = vmatpush1.bf16.msra.mxu0 %v8425
        %11796 = vmatprep.subr.bf16.mxu0 %v8430
        %11797 = vmatpush1.bf16.msra.mxu0 %v8429
        %11798 = vmatprep.subr.bf16.mxu0 %v8434
        %11799 = vmatpush1.bf16.msra.mxu0 %v8433
        %11800 = vmatprep.subr.bf16.mxu0 %v8438
        %11801 = vmatpush1.bf16.msra.mxu0 %v8437
        %11802 = vmatprep.subr.bf16.mxu0 %v8442
        %11803 = vmatpush1.bf16.msra.mxu0 %v8441
        %11804 = vmatprep.subr.bf16.mxu0 %v8446
        %11805 = vmatpush1.bf16.msra.mxu0 %v8445
        %11806 = vmatprep.subr.bf16.mxu0 %v8450
        %11807 = vmatpush1.bf16.msra.mxu0 %v8449
        %11808 = vmatprep.subr.bf16.mxu0 %v8454
        %11809 = vmatpush1.bf16.msra.mxu0 %v8453
        %11810 = vmatprep.subr.bf16.mxu0 %v8458
        %11811 = vmatpush1.bf16.msra.mxu0 %v8457
        %11812 = vmatprep.subr.bf16.mxu0 %v8462
        %11813 = vmatpush1.bf16.msra.mxu0 %v8461
        %11814 = vmatprep.subr.bf16.mxu0 %v8466
        %11815 = vmatpush1.bf16.msra.mxu0 %v8465
        %11816 = vmatprep.subr.bf16.mxu0 %v8470
        %11817 = vmatpush1.bf16.msra.mxu0 %v8469
        %11818 = vmatprep.mubr.bf16.mxu0 %v2203
        %11819 = vmatmul.mubr.bf16.gmra.mrb[0].mxu0 %v2201
        %v11820 = vpop.f32.mrb[0].mxu0
        %v11821 = vadd.f32 %v11780, %v11820
        %v11822 = vpop.f32.mrb[0].mxu0
        %v11823 = vadd.f32 %v11782, %v11822
        %v11824 = vpop.f32.mrb[0].mxu0
        %v11825 = vpop.f32.mrb[0].mxu0
        %11826 = vdwg.mxu0
        %11827 = vmatprep.subr.bf16.mxu0 %v8474
        %11828 = vmatpush1.bf16.msra.mxu0 %v8473
        %11829 = vmatprep.subr.bf16.mxu0 %v8478
        %11830 = vmatpush1.bf16.msra.mxu0 %v8477
        %11831 = vmatprep.subr.bf16.mxu0 %v8482
        %11832 = vmatpush1.bf16.msra.mxu0 %v8481
        %11833 = vmatprep.subr.bf16.mxu0 %v8486
        %11834 = vmatpush1.bf16.msra.mxu0 %v8485
        %11835 = vmatprep.subr.bf16.mxu0 %v8490
        %11836 = vmatpush1.bf16.msra.mxu0 %v8489
        %11837 = vmatprep.subr.bf16.mxu0 %v8494
        %11838 = vmatpush1.bf16.msra.mxu0 %v8493
        %11839 = vmatprep.subr.bf16.mxu0 %v8498
        %11840 = vmatpush1.bf16.msra.mxu0 %v8497
        %11841 = vmatprep.subr.bf16.mxu0 %v8502
        %11842 = vmatpush1.bf16.msra.mxu0 %v8501
        %11843 = vmatprep.subr.bf16.mxu0 %v8506
        %11844 = vmatpush1.bf16.msra.mxu0 %v8505
        %11845 = vmatprep.subr.bf16.mxu0 %v8510
        %11846 = vmatpush1.bf16.msra.mxu0 %v8509
        %11847 = vmatprep.subr.bf16.mxu0 %v8514
        %11848 = vmatpush1.bf16.msra.mxu0 %v8513
        %11849 = vmatprep.subr.bf16.mxu0 %v8518
        %11850 = vmatpush1.bf16.msra.mxu0 %v8517
        %11851 = vmatprep.subr.bf16.mxu0 %v8522
        %11852 = vmatpush1.bf16.msra.mxu0 %v8521
        %11853 = vmatprep.subr.bf16.mxu0 %v8526
        %11854 = vmatpush1.bf16.msra.mxu0 %v8525
        %11855 = vmatprep.subr.bf16.mxu0 %v8530
        %11856 = vmatpush1.bf16.msra.mxu0 %v8529
        %11857 = vmatprep.subr.bf16.mxu0 %v8534
        %11858 = vmatpush1.bf16.msra.mxu0 %v8533
        %11859 = vmatprep.mubr.bf16.mxu0 %v2200
        %11860 = vmatmul.mubr.bf16.gmra.mrb[0].mxu0 %v2186
        %v11861 = vpop.f32.mrb[0].mxu0
        %v11862 = vadd.f32 %v11821, %v11861
        %v11863 = vpop.f32.mrb[0].mxu0
        %v11864 = vadd.f32 %v11823, %v11863
        %v11865 = vpop.f32.mrb[0].mxu0
        %v11866 = vpop.f32.mrb[0].mxu0
        %11867 = vdwg.mxu0
        %11868 = vmatprep.subr.bf16.mxu0 %v8538
        %11869 = vmatpush1.bf16.msra.mxu0 %v8537
        %11870 = vmatprep.subr.bf16.mxu0 %v8542
        %11871 = vmatpush1.bf16.msra.mxu0 %v8541
        %11872 = vmatprep.subr.bf16.mxu0 %v8546
        %11873 = vmatpush1.bf16.msra.mxu0 %v8545
        %11874 = vmatprep.subr.bf16.mxu0 %v8550
        %11875 = vmatpush1.bf16.msra.mxu0 %v8549
        %11876 = vmatprep.subr.bf16.mxu0 %v8554
        %11877 = vmatpush1.bf16.msra.mxu0 %v8553
        %11878 = vmatprep.subr.bf16.mxu0 %v8558
        %11879 = vmatpush1.bf16.msra.mxu0 %v8557
        %11880 = vmatprep.subr.bf16.mxu0 %v8562
        %11881 = vmatpush1.bf16.msra.mxu0 %v8561
        %11882 = vmatprep.subr.bf16.mxu0 %v8566
        %11883 = vmatpush1.bf16.msra.mxu0 %v8565
        %11884 = vmatprep.subr.bf16.mxu0 %v8570
        %11885 = vmatpush1.bf16.msra.mxu0 %v8569
        %11886 = vmatprep.subr.bf16.mxu0 %v8574
        %11887 = vmatpush1.bf16.msra.mxu0 %v8573
        %11888 = vmatprep.subr.bf16.mxu0 %v8578
        %11889 = vmatpush1.bf16.msra.mxu0 %v8577
        %11890 = vmatprep.subr.bf16.mxu0 %v8582
        %11891 = vmatpush1.bf16.msra.mxu0 %v8581
        %11892 = vmatprep.subr.bf16.mxu0 %v8586
        %11893 = vmatpush1.bf16.msra.mxu0 %v8585
        %11894 = vmatprep.subr.bf16.mxu0 %v8590
        %11895 = vmatpush1.bf16.msra.mxu0 %v8589
        %11896 = vmatprep.subr.bf16.mxu0 %v8594
        %11897 = vmatpush1.bf16.msra.mxu0 %v8593
        %11898 = vmatprep.subr.bf16.mxu0 %v8598
        %11899 = vmatpush1.bf16.msra.mxu0 %v8597
        %11900 = vmatprep.mubr.bf16.mxu0 %v2204
        %11901 = vmatmul.mubr.bf16.gmra.mrb[0].mxu0 %v2202
        %v11902 = vpop.f32.mrb[0].mxu0
        %v11903 = vadd.f32 %v11862, %v11902
        %v11904 = vpop.f32.mrb[0].mxu0
        %v11905 = vadd.f32 %v11864, %v11904
        %v11906 = vpop.f32.mrb[0].mxu0
        %v11907 = vpop.f32.mrb[0].mxu0
        %11908 = vdwg.mxu0
        %11909 = vmatprep.subr.bf16.mxu0 %v8602
        %11910 = vmatpush1.bf16.msra.mxu0 %v8601
        %11911 = vmatprep.subr.bf16.mxu0 %v8606
        %11912 = vmatpush1.bf16.msra.mxu0 %v8605
        %11913 = vmatprep.subr.bf16.mxu0 %v8610
        %11914 = vmatpush1.bf16.msra.mxu0 %v8609
        %11915 = vmatprep.subr.bf16.mxu0 %v8614
        %11916 = vmatpush1.bf16.msra.mxu0 %v8613
        %11917 = vmatprep.subr.bf16.mxu0 %v8618
        %11918 = vmatpush1.bf16.msra.mxu0 %v8617
        %11919 = vmatprep.subr.bf16.mxu0 %v8622
        %11920 = vmatpush1.bf16.msra.mxu0 %v8621
        %11921 = vmatprep.subr.bf16.mxu0 %v8626
        %11922 = vmatpush1.bf16.msra.mxu0 %v8625
        %11923 = vmatprep.subr.bf16.mxu0 %v8630
        %11924 = vmatpush1.bf16.msra.mxu0 %v8629
        %11925 = vmatprep.subr.bf16.mxu0 %v8634
        %11926 = vmatpush1.bf16.msra.mxu0 %v8633
        %11927 = vmatprep.subr.bf16.mxu0 %v8638
        %11928 = vmatpush1.bf16.msra.mxu0 %v8637
        %11929 = vmatprep.subr.bf16.mxu0 %v8642
        %11930 = vmatpush1.bf16.msra.mxu0 %v8641
        %11931 = vmatprep.subr.bf16.mxu0 %v8646
        %11932 = vmatpush1.bf16.msra.mxu0 %v8645
        %11933 = vmatprep.subr.bf16.mxu0 %v8650
        %11934 = vmatpush1.bf16.msra.mxu0 %v8649
        %11935 = vmatprep.subr.bf16.mxu0 %v8654
        %11936 = vmatpush1.bf16.msra.mxu0 %v8653
        %11937 = vmatprep.subr.bf16.mxu0 %v8658
        %11938 = vmatpush1.bf16.msra.mxu0 %v8657
        %11939 = vmatprep.subr.bf16.mxu0 %v8662
        %11940 = vmatpush1.bf16.msra.mxu0 %v8661
        %11941 = vmatprep.mubr.bf16.mxu0 %v2242
        %11942 = vmatmul.mubr.bf16.gmra.mrb[0].mxu0 %v2228
        %v11943 = vpop.f32.mrb[0].mxu0
        %v11944 = vadd.f32 %v11903, %v11943
        %v11945 = vpop.f32.mrb[0].mxu0
        %v11946 = vadd.f32 %v11905, %v11945
        %v11947 = vpop.f32.mrb[0].mxu0
        %v11948 = vpop.f32.mrb[0].mxu0
        %11949 = vdwg.mxu0
        %11950 = vmatprep.subr.bf16.mxu0 %v8666
        %11951 = vmatpush1.bf16.msra.mxu0 %v8665
        %11952 = vmatprep.subr.bf16.mxu0 %v8670
        %11953 = vmatpush1.bf16.msra.mxu0 %v8669
        %11954 = vmatprep.subr.bf16.mxu0 %v8674
        %11955 = vmatpush1.bf16.msra.mxu0 %v8673
        %11956 = vmatprep.subr.bf16.mxu0 %v8678
        %11957 = vmatpush1.bf16.msra.mxu0 %v8677
        %11958 = vmatprep.subr.bf16.mxu0 %v8682
        %11959 = vmatpush1.bf16.msra.mxu0 %v8681
        %11960 = vmatprep.subr.bf16.mxu0 %v8686
        %11961 = vmatpush1.bf16.msra.mxu0 %v8685
        %11962 = vmatprep.subr.bf16.mxu0 %v8690
        %11963 = vmatpush1.bf16.msra.mxu0 %v8689
        %11964 = vmatprep.subr.bf16.mxu0 %v8694
        %11965 = vmatpush1.bf16.msra.mxu0 %v8693
        %11966 = vmatprep.subr.bf16.mxu0 %v8698
        %11967 = vmatpush1.bf16.msra.mxu0 %v8697
        %11968 = vmatprep.subr.bf16.mxu0 %v8702
        %11969 = vmatpush1.bf16.msra.mxu0 %v8701
        %11970 = vmatprep.subr.bf16.mxu0 %v8706
        %11971 = vmatpush1.bf16.msra.mxu0 %v8705
        %11972 = vmatprep.subr.bf16.mxu0 %v8710
        %11973 = vmatpush1.bf16.msra.mxu0 %v8709
        %11974 = vmatprep.subr.bf16.mxu0 %v8714
        %11975 = vmatpush1.bf16.msra.mxu0 %v8713
        %11976 = vmatprep.subr.bf16.mxu0 %v8718
        %11977 = vmatpush1.bf16.msra.mxu0 %v8717
        %11978 = vmatprep.subr.bf16.mxu0 %v8722
        %11979 = vmatpush1.bf16.msra.mxu0 %v8721
        %11980 = vmatprep.subr.bf16.mxu0 %v8726
        %11981 = vmatpush1.bf16.msra.mxu0 %v8725
        %11982 = vmatprep.mubr.bf16.mxu0 %v2252
        %11983 = vmatmul.mubr.bf16.gmra.mrb[0].mxu0 %v2250
        %v11984 = vpop.f32.mrb[0].mxu0
        %v11985 = vadd.f32 %v11944, %v11984
        %v11986 = vpop.f32.mrb[0].mxu0
        %v11987 = vadd.f32 %v11946, %v11986
        %v11988 = vpop.f32.mrb[0].mxu0
        %v11989 = vpop.f32.mrb[0].mxu0
        %11990 = vdwg.mxu0
        %11991 = vmatprep.subr.bf16.mxu0 %v8730
        %11992 = vmatpush1.bf16.msra.mxu0 %v8729
        %11993 = vmatprep.subr.bf16.mxu0 %v8734
        %11994 = vmatpush1.bf16.msra.mxu0 %v8733
        %11995 = vmatprep.subr.bf16.mxu0 %v8738
        %11996 = vmatpush1.bf16.msra.mxu0 %v8737
        %11997 = vmatprep.subr.bf16.mxu0 %v8742
        %11998 = vmatpush1.bf16.msra.mxu0 %v8741
        %11999 = vmatprep.subr.bf16.mxu0 %v8746
        %12000 = vmatpush1.bf16.msra.mxu0 %v8745
        %12001 = vmatprep.subr.bf16.mxu0 %v8750
        %12002 = vmatpush1.bf16.msra.mxu0 %v8749
        %12003 = vmatprep.subr.bf16.mxu0 %v8754
        %12004 = vmatpush1.bf16.msra.mxu0 %v8753
        %12005 = vmatprep.subr.bf16.mxu0 %v8758
        %12006 = vmatpush1.bf16.msra.mxu0 %v8757
        %12007 = vmatprep.subr.bf16.mxu0 %v8762
        %12008 = vmatpush1.bf16.msra.mxu0 %v8761
        %12009 = vmatprep.subr.bf16.mxu0 %v8766
        %12010 = vmatpush1.bf16.msra.mxu0 %v8765
        %12011 = vmatprep.subr.bf16.mxu0 %v8770
        %12012 = vmatpush1.bf16.msra.mxu0 %v8769
        %12013 = vmatprep.subr.bf16.mxu0 %v8774
        %12014 = vmatpush1.bf16.msra.mxu0 %v8773
        %12015 = vmatprep.subr.bf16.mxu0 %v8778
        %12016 = vmatpush1.bf16.msra.mxu0 %v8777
        %12017 = vmatprep.subr.bf16.mxu0 %v8782
        %12018 = vmatpush1.bf16.msra.mxu0 %v8781
        %12019 = vmatprep.subr.bf16.mxu0 %v8786
        %12020 = vmatpush1.bf16.msra.mxu0 %v8785
        %12021 = vmatprep.subr.bf16.mxu0 %v8790
        %12022 = vmatpush1.bf16.msra.mxu0 %v8789
        %12023 = vmatprep.mubr.bf16.mxu0 %v2249
        %12024 = vmatmul.mubr.bf16.gmra.mrb[0].mxu0 %v2235
        %v12025 = vpop.f32.mrb[0].mxu0
        %v12026 = vadd.f32 %v11985, %v12025
        %v12027 = vpop.f32.mrb[0].mxu0
        %v12028 = vadd.f32 %v11987, %v12027
        %v12029 = vpop.f32.mrb[0].mxu0
        %v12030 = vpop.f32.mrb[0].mxu0
        %12031 = vdwg.mxu0
        %12032 = vmatprep.subr.bf16.mxu0 %v8794
        %12033 = vmatpush1.bf16.msra.mxu0 %v8793
        %12034 = vmatprep.subr.bf16.mxu0 %v8798
        %12035 = vmatpush1.bf16.msra.mxu0 %v8797
        %12036 = vmatprep.subr.bf16.mxu0 %v8802
        %12037 = vmatpush1.bf16.msra.mxu0 %v8801
        %12038 = vmatprep.subr.bf16.mxu0 %v8806
        %12039 = vmatpush1.bf16.msra.mxu0 %v8805
        %12040 = vmatprep.subr.bf16.mxu0 %v8810
        %12041 = vmatpush1.bf16.msra.mxu0 %v8809
        %12042 = vmatprep.subr.bf16.mxu0 %v8814
        %12043 = vmatpush1.bf16.msra.mxu0 %v8813
        %12044 = vmatprep.subr.bf16.mxu0 %v8818
        %12045 = vmatpush1.bf16.msra.mxu0 %v8817
        %12046 = vmatprep.subr.bf16.mxu0 %v8822
        %12047 = vmatpush1.bf16.msra.mxu0 %v8821
        %12048 = vmatprep.subr.bf16.mxu0 %v8826
        %12049 = vmatpush1.bf16.msra.mxu0 %v8825
        %12050 = vmatprep.subr.bf16.mxu0 %v8830
        %12051 = vmatpush1.bf16.msra.mxu0 %v8829
        %12052 = vmatprep.subr.bf16.mxu0 %v8834
        %12053 = vmatpush1.bf16.msra.mxu0 %v8833
        %12054 = vmatprep.subr.bf16.mxu0 %v8838
        %12055 = vmatpush1.bf16.msra.mxu0 %v8837
        %12056 = vmatprep.subr.bf16.mxu0 %v8842
        %12057 = vmatpush1.bf16.msra.mxu0 %v8841
        %12058 = vmatprep.subr.bf16.mxu0 %v8846
        %12059 = vmatpush1.bf16.msra.mxu0 %v8845
        %12060 = vmatprep.subr.bf16.mxu0 %v8850
        %12061 = vmatpush1.bf16.msra.mxu0 %v8849
        %12062 = vmatprep.subr.bf16.mxu0 %v8854
        %12063 = vmatpush1.bf16.msra.mxu0 %v8853
        %12064 = vmatprep.mubr.bf16.mxu0 %v2253
        %12065 = vmatmul.mubr.bf16.gmra.mrb[0].mxu0 %v2251
        %v12066 = vpop.f32.mrb[0].mxu0
        %v12067 = vadd.f32 %v12026, %v12066
        %v12068 = vpop.f32.mrb[0].mxu0
        %v12069 = vadd.f32 %v12028, %v12068
        %v12070 = vpop.f32.mrb[0].mxu0
        %v12071 = vpop.f32.mrb[0].mxu0
        %12072 = vdwg.mxu0
        %12073 = vmatprep.subr.bf16.mxu0 %v8858
        %12074 = vmatpush1.bf16.msra.mxu0 %v8857
        %12075 = vmatprep.subr.bf16.mxu0 %v8862
        %12076 = vmatpush1.bf16.msra.mxu0 %v8861
        %12077 = vmatprep.subr.bf16.mxu0 %v8866
        %12078 = vmatpush1.bf16.msra.mxu0 %v8865
        %12079 = vmatprep.subr.bf16.mxu0 %v8870
        %12080 = vmatpush1.bf16.msra.mxu0 %v8869
        %12081 = vmatprep.subr.bf16.mxu0 %v8874
        %12082 = vmatpush1.bf16.msra.mxu0 %v8873
        %12083 = vmatprep.subr.bf16.mxu0 %v8878
        %12084 = vmatpush1.bf16.msra.mxu0 %v8877
        %12085 = vmatprep.subr.bf16.mxu0 %v8882
        %12086 = vmatpush1.bf16.msra.mxu0 %v8881
        %12087 = vmatprep.subr.bf16.mxu0 %v8886
        %12088 = vmatpush1.bf16.msra.mxu0 %v8885
        %12089 = vmatprep.subr.bf16.mxu0 %v8890
        %12090 = vmatpush1.bf16.msra.mxu0 %v8889
        %12091 = vmatprep.subr.bf16.mxu0 %v8894
        %12092 = vmatpush1.bf16.msra.mxu0 %v8893
        %12093 = vmatprep.subr.bf16.mxu0 %v8898
        %12094 = vmatpush1.bf16.msra.mxu0 %v8897
        %12095 = vmatprep.subr.bf16.mxu0 %v8902
        %12096 = vmatpush1.bf16.msra.mxu0 %v8901
        %12097 = vmatprep.subr.bf16.mxu0 %v8906
        %12098 = vmatpush1.bf16.msra.mxu0 %v8905
        %12099 = vmatprep.subr.bf16.mxu0 %v8910
        %12100 = vmatpush1.bf16.msra.mxu0 %v8909
        %12101 = vmatprep.subr.bf16.mxu0 %v8914
        %12102 = vmatpush1.bf16.msra.mxu0 %v8913
        %12103 = vmatprep.subr.bf16.mxu0 %v8918
        %12104 = vmatpush1.bf16.msra.mxu0 %v8917
        %12105 = vmatprep.mubr.bf16.mxu0 %v2291
        %12106 = vmatmul.mubr.bf16.gmra.mrb[0].mxu0 %v2277
        %v12107 = vpop.f32.mrb[0].mxu0
        %v12108 = vadd.f32 %v12067, %v12107
        %v12109 = vpop.f32.mrb[0].mxu0
        %v12110 = vadd.f32 %v12069, %v12109
        %v12111 = vpop.f32.mrb[0].mxu0
        %v12112 = vpop.f32.mrb[0].mxu0
        %12113 = vdwg.mxu0
        %12114 = vmatprep.subr.bf16.mxu0 %v8922
        %12115 = vmatpush1.bf16.msra.mxu0 %v8921
        %12116 = vmatprep.subr.bf16.mxu0 %v8926
        %12117 = vmatpush1.bf16.msra.mxu0 %v8925
        %12118 = vmatprep.subr.bf16.mxu0 %v8930
        %12119 = vmatpush1.bf16.msra.mxu0 %v8929
        %12120 = vmatprep.subr.bf16.mxu0 %v8934
        %12121 = vmatpush1.bf16.msra.mxu0 %v8933
        %12122 = vmatprep.subr.bf16.mxu0 %v8938
        %12123 = vmatpush1.bf16.msra.mxu0 %v8937
        %12124 = vmatprep.subr.bf16.mxu0 %v8942
        %12125 = vmatpush1.bf16.msra.mxu0 %v8941
        %12126 = vmatprep.subr.bf16.mxu0 %v8946
        %12127 = vmatpush1.bf16.msra.mxu0 %v8945
        %12128 = vmatprep.subr.bf16.mxu0 %v8950
        %12129 = vmatpush1.bf16.msra.mxu0 %v8949
        %12130 = vmatprep.subr.bf16.mxu0 %v8954
        %12131 = vmatpush1.bf16.msra.mxu0 %v8953
        %12132 = vmatprep.subr.bf16.mxu0 %v8958
        %12133 = vmatpush1.bf16.msra.mxu0 %v8957
        %12134 = vmatprep.subr.bf16.mxu0 %v8962
        %12135 = vmatpush1.bf16.msra.mxu0 %v8961
        %12136 = vmatprep.subr.bf16.mxu0 %v8966
        %12137 = vmatpush1.bf16.msra.mxu0 %v8965
        %12138 = vmatprep.subr.bf16.mxu0 %v8970
        %12139 = vmatpush1.bf16.msra.mxu0 %v8969
        %12140 = vmatprep.subr.bf16.mxu0 %v8974
        %12141 = vmatpush1.bf16.msra.mxu0 %v8973
        %12142 = vmatprep.subr.bf16.mxu0 %v8978
        %12143 = vmatpush1.bf16.msra.mxu0 %v8977
        %12144 = vmatprep.subr.bf16.mxu0 %v8982
        %12145 = vmatpush1.bf16.msra.mxu0 %v8981
        %12146 = vmatprep.mubr.bf16.mxu0 %v2301
        %12147 = vmatmul.mubr.bf16.gmra.mrb[0].mxu0 %v2299
        %v12148 = vpop.f32.mrb[0].mxu0
        %v12149 = vadd.f32 %v12108, %v12148
        %v12150 = vpop.f32.mrb[0].mxu0
        %v12151 = vadd.f32 %v12110, %v12150
        %v12152 = vpop.f32.mrb[0].mxu0
        %v12153 = vpop.f32.mrb[0].mxu0
        %12154 = vdwg.mxu0
        %12155 = vmatprep.subr.bf16.mxu0 %v8986
        %12156 = vmatpush1.bf16.msra.mxu0 %v8985
        %12157 = vmatprep.subr.bf16.mxu0 %v8990
        %12158 = vmatpush1.bf16.msra.mxu0 %v8989
        %12159 = vmatprep.subr.bf16.mxu0 %v8994
        %12160 = vmatpush1.bf16.msra.mxu0 %v8993
        %12161 = vmatprep.subr.bf16.mxu0 %v8998
        %12162 = vmatpush1.bf16.msra.mxu0 %v8997
        %12163 = vmatprep.subr.bf16.mxu0 %v9002
        %12164 = vmatpush1.bf16.msra.mxu0 %v9001
        %12165 = vmatprep.subr.bf16.mxu0 %v9006
        %12166 = vmatpush1.bf16.msra.mxu0 %v9005
        %12167 = vmatprep.subr.bf16.mxu0 %v9010
        %12168 = vmatpush1.bf16.msra.mxu0 %v9009
        %12169 = vmatprep.subr.bf16.mxu0 %v9014
        %12170 = vmatpush1.bf16.msra.mxu0 %v9013
        %12171 = vmatprep.subr.bf16.mxu0 %v9018
        %12172 = vmatpush1.bf16.msra.mxu0 %v9017
        %12173 = vmatprep.subr.bf16.mxu0 %v9022
        %12174 = vmatpush1.bf16.msra.mxu0 %v9021
        %12175 = vmatprep.subr.bf16.mxu0 %v9026
        %12176 = vmatpush1.bf16.msra.mxu0 %v9025
        %12177 = vmatprep.subr.bf16.mxu0 %v9030
        %12178 = vmatpush1.bf16.msra.mxu0 %v9029
        %12179 = vmatprep.subr.bf16.mxu0 %v9034
        %12180 = vmatpush1.bf16.msra.mxu0 %v9033
        %12181 = vmatprep.subr.bf16.mxu0 %v9038
        %12182 = vmatpush1.bf16.msra.mxu0 %v9037
        %12183 = vmatprep.subr.bf16.mxu0 %v9042
        %12184 = vmatpush1.bf16.msra.mxu0 %v9041
        %12185 = vmatprep.subr.bf16.mxu0 %v9046
        %12186 = vmatpush1.bf16.msra.mxu0 %v9045
        %12187 = vmatprep.mubr.bf16.mxu0 %v2298
        %12188 = vmatmul.mubr.bf16.gmra.mrb[0].mxu0 %v2284
        %v12189 = vpop.f32.mrb[0].mxu0
        %v12190 = vadd.f32 %v12149, %v12189
        %v12191 = vpop.f32.mrb[0].mxu0
        %v12192 = vadd.f32 %v12151, %v12191
        %v12193 = vpop.f32.mrb[0].mxu0
        %v12194 = vpop.f32.mrb[0].mxu0
        %12195 = vdwg.mxu0
        %12196 = vmatprep.subr.bf16.mxu0 %v9050
        %12197 = vmatpush1.bf16.msra.mxu0 %v9049
        %12198 = vmatprep.subr.bf16.mxu0 %v9054
        %12199 = vmatpush1.bf16.msra.mxu0 %v9053
        %12200 = vmatprep.subr.bf16.mxu0 %v9058
        %12201 = vmatpush1.bf16.msra.mxu0 %v9057
        %12202 = vmatprep.subr.bf16.mxu0 %v9062
        %12203 = vmatpush1.bf16.msra.mxu0 %v9061
        %12204 = vmatprep.subr.bf16.mxu0 %v9066
        %12205 = vmatpush1.bf16.msra.mxu0 %v9065
        %12206 = vmatprep.subr.bf16.mxu0 %v9070
        %12207 = vmatpush1.bf16.msra.mxu0 %v9069
        %12208 = vmatprep.subr.bf16.mxu0 %v9074
        %12209 = vmatpush1.bf16.msra.mxu0 %v9073
        %12210 = vmatprep.subr.bf16.mxu0 %v9078
        %12211 = vmatpush1.bf16.msra.mxu0 %v9077
        %12212 = vmatprep.subr.bf16.mxu0 %v9082
        %12213 = vmatpush1.bf16.msra.mxu0 %v9081
        %12214 = vmatprep.subr.bf16.mxu0 %v9086
        %12215 = vmatpush1.bf16.msra.mxu0 %v9085
        %12216 = vmatprep.subr.bf16.mxu0 %v9090
        %12217 = vmatpush1.bf16.msra.mxu0 %v9089
        %12218 = vmatprep.subr.bf16.mxu0 %v9094
        %12219 = vmatpush1.bf16.msra.mxu0 %v9093
        %12220 = vmatprep.subr.bf16.mxu0 %v9098
        %12221 = vmatpush1.bf16.msra.mxu0 %v9097
        %12222 = vmatprep.subr.bf16.mxu0 %v9102
        %12223 = vmatpush1.bf16.msra.mxu0 %v9101
        %12224 = vmatprep.subr.bf16.mxu0 %v9106
        %12225 = vmatpush1.bf16.msra.mxu0 %v9105
        %12226 = vmatprep.subr.bf16.mxu0 %v9110
        %12227 = vmatpush1.bf16.msra.mxu0 %v9109
        %12228 = vmatprep.mubr.bf16.mxu0 %v2302
        %12229 = vmatmul.mubr.bf16.gmra.mrb[0].mxu0 %v2300
        %v12230 = vpop.f32.mrb[0].mxu0
        %v12231 = vadd.f32 %v12190, %v12230
        %v12232 = vpop.f32.mrb[0].mxu0
        %v12233 = vadd.f32 %v12192, %v12232
        %v12234 = vpop.f32.mrb[0].mxu0
        %v12235 = vpop.f32.mrb[0].mxu0
        %12236 = vdwg.mxu0
        %12237 = vmatprep.subr.bf16.mxu0 %v9114
        %12238 = vmatpush1.bf16.msra.mxu0 %v9113
        %12239 = vmatprep.subr.bf16.mxu0 %v9118
        %12240 = vmatpush1.bf16.msra.mxu0 %v9117
        %12241 = vmatprep.subr.bf16.mxu0 %v9122
        %12242 = vmatpush1.bf16.msra.mxu0 %v9121
        %12243 = vmatprep.subr.bf16.mxu0 %v9126
        %12244 = vmatpush1.bf16.msra.mxu0 %v9125
        %12245 = vmatprep.subr.bf16.mxu0 %v9130
        %12246 = vmatpush1.bf16.msra.mxu0 %v9129
        %12247 = vmatprep.subr.bf16.mxu0 %v9134
        %12248 = vmatpush1.bf16.msra.mxu0 %v9133
        %12249 = vmatprep.subr.bf16.mxu0 %v9138
        %12250 = vmatpush1.bf16.msra.mxu0 %v9137
        %12251 = vmatprep.subr.bf16.mxu0 %v9142
        %12252 = vmatpush1.bf16.msra.mxu0 %v9141
        %12253 = vmatprep.subr.bf16.mxu0 %v9146
        %12254 = vmatpush1.bf16.msra.mxu0 %v9145
        %12255 = vmatprep.subr.bf16.mxu0 %v9150
        %12256 = vmatpush1.bf16.msra.mxu0 %v9149
        %12257 = vmatprep.subr.bf16.mxu0 %v9154
        %12258 = vmatpush1.bf16.msra.mxu0 %v9153
        %12259 = vmatprep.subr.bf16.mxu0 %v9158
        %12260 = vmatpush1.bf16.msra.mxu0 %v9157
        %12261 = vmatprep.subr.bf16.mxu0 %v9162
        %12262 = vmatpush1.bf16.msra.mxu0 %v9161
        %12263 = vmatprep.subr.bf16.mxu0 %v9166
        %12264 = vmatpush1.bf16.msra.mxu0 %v9165
        %12265 = vmatprep.subr.bf16.mxu0 %v9170
        %12266 = vmatpush1.bf16.msra.mxu0 %v9169
        %12267 = vmatprep.subr.bf16.mxu0 %v9174
        %12268 = vmatpush1.bf16.msra.mxu0 %v9173
        %12269 = vmatprep.mubr.bf16.mxu0 %v2340
        %12270 = vmatmul.mubr.bf16.gmra.mrb[0].mxu0 %v2326
        %v12271 = vpop.f32.mrb[0].mxu0
        %v12272 = vadd.f32 %v12231, %v12271
        %v12273 = vpop.f32.mrb[0].mxu0
        %v12274 = vadd.f32 %v12233, %v12273
        %v12275 = vpop.f32.mrb[0].mxu0
        %v12276 = vpop.f32.mrb[0].mxu0
        %12277 = vdwg.mxu0
        %12278 = vmatprep.subr.bf16.mxu0 %v9178
        %12279 = vmatpush1.bf16.msra.mxu0 %v9177
        %12280 = vmatprep.subr.bf16.mxu0 %v9182
        %12281 = vmatpush1.bf16.msra.mxu0 %v9181
        %12282 = vmatprep.subr.bf16.mxu0 %v9186
        %12283 = vmatpush1.bf16.msra.mxu0 %v9185
        %12284 = vmatprep.subr.bf16.mxu0 %v9190
        %12285 = vmatpush1.bf16.msra.mxu0 %v9189
        %12286 = vmatprep.subr.bf16.mxu0 %v9194
        %12287 = vmatpush1.bf16.msra.mxu0 %v9193
        %12288 = vmatprep.subr.bf16.mxu0 %v9198
        %12289 = vmatpush1.bf16.msra.mxu0 %v9197
        %12290 = vmatprep.subr.bf16.mxu0 %v9202
        %12291 = vmatpush1.bf16.msra.mxu0 %v9201
        %12292 = vmatprep.subr.bf16.mxu0 %v9206
        %12293 = vmatpush1.bf16.msra.mxu0 %v9205
        %12294 = vmatprep.subr.bf16.mxu0 %v9210
        %12295 = vmatpush1.bf16.msra.mxu0 %v9209
        %12296 = vmatprep.subr.bf16.mxu0 %v9214
        %12297 = vmatpush1.bf16.msra.mxu0 %v9213
        %12298 = vmatprep.subr.bf16.mxu0 %v9218
        %12299 = vmatpush1.bf16.msra.mxu0 %v9217
        %12300 = vmatprep.subr.bf16.mxu0 %v9222
        %12301 = vmatpush1.bf16.msra.mxu0 %v9221
        %12302 = vmatprep.subr.bf16.mxu0 %v9226
        %12303 = vmatpush1.bf16.msra.mxu0 %v9225
        %12304 = vmatprep.subr.bf16.mxu0 %v9230
        %12305 = vmatpush1.bf16.msra.mxu0 %v9229
        %12306 = vmatprep.subr.bf16.mxu0 %v9234
        %12307 = vmatpush1.bf16.msra.mxu0 %v9233
        %12308 = vmatprep.subr.bf16.mxu0 %v9238
        %12309 = vmatpush1.bf16.msra.mxu0 %v9237
        %12310 = vmatprep.mubr.bf16.mxu0 %v2350
        %12311 = vmatmul.mubr.bf16.gmra.mrb[0].mxu0 %v2348
        %v12312 = vpop.f32.mrb[0].mxu0
        %v12313 = vadd.f32 %v12272, %v12312
        %v12314 = vpop.f32.mrb[0].mxu0
        %v12315 = vadd.f32 %v12274, %v12314
        %v12316 = vpop.f32.mrb[0].mxu0
        %v12317 = vpop.f32.mrb[0].mxu0
        %12318 = vdwg.mxu0
        %12319 = vmatprep.subr.bf16.mxu0 %v9242
        %12320 = vmatpush1.bf16.msra.mxu0 %v9241
        %12321 = vmatprep.subr.bf16.mxu0 %v9246
        %12322 = vmatpush1.bf16.msra.mxu0 %v9245
        %12323 = vmatprep.subr.bf16.mxu0 %v9250
        %12324 = vmatpush1.bf16.msra.mxu0 %v9249
        %12325 = vmatprep.subr.bf16.mxu0 %v9254
        %12326 = vmatpush1.bf16.msra.mxu0 %v9253
        %12327 = vmatprep.subr.bf16.mxu0 %v9258
        %12328 = vmatpush1.bf16.msra.mxu0 %v9257
        %12329 = vmatprep.subr.bf16.mxu0 %v9262
        %12330 = vmatpush1.bf16.msra.mxu0 %v9261
        %12331 = vmatprep.subr.bf16.mxu0 %v9266
        %12332 = vmatpush1.bf16.msra.mxu0 %v9265
        %12333 = vmatprep.subr.bf16.mxu0 %v9270
        %12334 = vmatpush1.bf16.msra.mxu0 %v9269
        %12335 = vmatprep.subr.bf16.mxu0 %v9274
        %12336 = vmatpush1.bf16.msra.mxu0 %v9273
        %12337 = vmatprep.subr.bf16.mxu0 %v9278
        %12338 = vmatpush1.bf16.msra.mxu0 %v9277
        %12339 = vmatprep.subr.bf16.mxu0 %v9282
        %12340 = vmatpush1.bf16.msra.mxu0 %v9281
        %12341 = vmatprep.subr.bf16.mxu0 %v9286
        %12342 = vmatpush1.bf16.msra.mxu0 %v9285
        %12343 = vmatprep.subr.bf16.mxu0 %v9290
        %12344 = vmatpush1.bf16.msra.mxu0 %v9289
        %12345 = vmatprep.subr.bf16.mxu0 %v9294
        %12346 = vmatpush1.bf16.msra.mxu0 %v9293
        %12347 = vmatprep.subr.bf16.mxu0 %v9298
        %12348 = vmatpush1.bf16.msra.mxu0 %v9297
        %12349 = vmatprep.subr.bf16.mxu0 %v9302
        %12350 = vmatpush1.bf16.msra.mxu0 %v9301
        %12351 = vmatprep.mubr.bf16.mxu0 %v2347
        %12352 = vmatmul.mubr.bf16.gmra.mrb[0].mxu0 %v2333
        %v12353 = vpop.f32.mrb[0].mxu0
        %v12354 = vadd.f32 %v12313, %v12353
        %v12355 = vpop.f32.mrb[0].mxu0
        %v12356 = vadd.f32 %v12315, %v12355
        %v12357 = vpop.f32.mrb[0].mxu0
        %v12358 = vpop.f32.mrb[0].mxu0
        %12359 = vdwg.mxu0
        %12360 = vmatprep.subr.bf16.mxu0 %v9306
        %12361 = vmatpush1.bf16.msra.mxu0 %v9305
        %12362 = vmatprep.subr.bf16.mxu0 %v9310
        %12363 = vmatpush1.bf16.msra.mxu0 %v9309
        %12364 = vmatprep.subr.bf16.mxu0 %v9314
        %12365 = vmatpush1.bf16.msra.mxu0 %v9313
        %12366 = vmatprep.subr.bf16.mxu0 %v9318
        %12367 = vmatpush1.bf16.msra.mxu0 %v9317
        %12368 = vmatprep.subr.bf16.mxu0 %v9322
        %12369 = vmatpush1.bf16.msra.mxu0 %v9321
        %12370 = vmatprep.subr.bf16.mxu0 %v9326
        %12371 = vmatpush1.bf16.msra.mxu0 %v9325
        %12372 = vmatprep.subr.bf16.mxu0 %v9330
        %12373 = vmatpush1.bf16.msra.mxu0 %v9329
        %12374 = vmatprep.subr.bf16.mxu0 %v9334
        %12375 = vmatpush1.bf16.msra.mxu0 %v9333
        %12376 = vmatprep.subr.bf16.mxu0 %v9338
        %12377 = vmatpush1.bf16.msra.mxu0 %v9337
        %12378 = vmatprep.subr.bf16.mxu0 %v9342
        %12379 = vmatpush1.bf16.msra.mxu0 %v9341
        %12380 = vmatprep.subr.bf16.mxu0 %v9346
        %12381 = vmatpush1.bf16.msra.mxu0 %v9345
        %12382 = vmatprep.subr.bf16.mxu0 %v9350
        %12383 = vmatpush1.bf16.msra.mxu0 %v9349
        %12384 = vmatprep.subr.bf16.mxu0 %v9354
        %12385 = vmatpush1.bf16.msra.mxu0 %v9353
        %12386 = vmatprep.subr.bf16.mxu0 %v9358
        %12387 = vmatpush1.bf16.msra.mxu0 %v9357
        %12388 = vmatprep.subr.bf16.mxu0 %v9362
        %12389 = vmatpush1.bf16.msra.mxu0 %v9361
        %12390 = vmatprep.subr.bf16.mxu0 %v9366
        %12391 = vmatpush1.bf16.msra.mxu0 %v9365
        %12392 = vmatprep.mubr.bf16.mxu0 %v2351
        %12393 = vmatmul.mubr.bf16.gmra.mrb[0].mxu0 %v2349
        %v12394 = vpop.f32.mrb[0].mxu0
        %v12395 = vadd.f32 %v12354, %v12394
        %v12396 = vpop.f32.mrb[0].mxu0
        %v12397 = vadd.f32 %v12356, %v12396
        %v12398 = vpop.f32.mrb[0].mxu0
        %v12399 = vpop.f32.mrb[0].mxu0
        %12400 = vdwg.mxu0
        %12401 = vmatprep.subr.bf16.mxu0 %v9370
        %12402 = vmatpush1.bf16.msra.mxu0 %v9369
        %12403 = vmatprep.subr.bf16.mxu0 %v9374
        %12404 = vmatpush1.bf16.msra.mxu0 %v9373
        %12405 = vmatprep.subr.bf16.mxu0 %v9378
        %12406 = vmatpush1.bf16.msra.mxu0 %v9377
        %12407 = vmatprep.subr.bf16.mxu0 %v9382
        %12408 = vmatpush1.bf16.msra.mxu0 %v9381
        %12409 = vmatprep.subr.bf16.mxu0 %v9386
        %12410 = vmatpush1.bf16.msra.mxu0 %v9385
        %12411 = vmatprep.subr.bf16.mxu0 %v9390
        %12412 = vmatpush1.bf16.msra.mxu0 %v9389
        %12413 = vmatprep.subr.bf16.mxu0 %v9394
        %12414 = vmatpush1.bf16.msra.mxu0 %v9393
        %12415 = vmatprep.subr.bf16.mxu0 %v9398
        %12416 = vmatpush1.bf16.msra.mxu0 %v9397
        %12417 = vmatprep.subr.bf16.mxu0 %v9402
        %12418 = vmatpush1.bf16.msra.mxu0 %v9401
        %12419 = vmatprep.subr.bf16.mxu0 %v9406
        %12420 = vmatpush1.bf16.msra.mxu0 %v9405
        %12421 = vmatprep.subr.bf16.mxu0 %v9410
        %12422 = vmatpush1.bf16.msra.mxu0 %v9409
        %12423 = vmatprep.subr.bf16.mxu0 %v9414
        %12424 = vmatpush1.bf16.msra.mxu0 %v9413
        %12425 = vmatprep.subr.bf16.mxu0 %v9418
        %12426 = vmatpush1.bf16.msra.mxu0 %v9417
        %12427 = vmatprep.subr.bf16.mxu0 %v9422
        %12428 = vmatpush1.bf16.msra.mxu0 %v9421
        %12429 = vmatprep.subr.bf16.mxu0 %v9426
        %12430 = vmatpush1.bf16.msra.mxu0 %v9425
        %12431 = vmatprep.subr.bf16.mxu0 %v9430
        %12432 = vmatpush1.bf16.msra.mxu0 %v9429
        %12433 = vmatprep.mubr.bf16.mxu0 %v2389
        %12434 = vmatmul.mubr.bf16.gmra.mrb[0].mxu0 %v2375
        %v12435 = vpop.f32.mrb[0].mxu0
        %v12436 = vadd.f32 %v12395, %v12435
        %v12437 = vpop.f32.mrb[0].mxu0
        %v12438 = vadd.f32 %v12397, %v12437
        %v12439 = vpop.f32.mrb[0].mxu0
        %v12440 = vpop.f32.mrb[0].mxu0
        %12441 = vdwg.mxu0
        %12442 = vmatprep.subr.bf16.mxu0 %v9434
        %12443 = vmatpush1.bf16.msra.mxu0 %v9433
        %12444 = vmatprep.subr.bf16.mxu0 %v9438
        %12445 = vmatpush1.bf16.msra.mxu0 %v9437
        %12446 = vmatprep.subr.bf16.mxu0 %v9442
        %12447 = vmatpush1.bf16.msra.mxu0 %v9441
        %12448 = vmatprep.subr.bf16.mxu0 %v9446
        %12449 = vmatpush1.bf16.msra.mxu0 %v9445
        %12450 = vmatprep.subr.bf16.mxu0 %v9450
        %12451 = vmatpush1.bf16.msra.mxu0 %v9449
        %12452 = vmatprep.subr.bf16.mxu0 %v9454
        %12453 = vmatpush1.bf16.msra.mxu0 %v9453
        %12454 = vmatprep.subr.bf16.mxu0 %v9458
        %12455 = vmatpush1.bf16.msra.mxu0 %v9457
        %12456 = vmatprep.subr.bf16.mxu0 %v9462
        %12457 = vmatpush1.bf16.msra.mxu0 %v9461
        %12458 = vmatprep.subr.bf16.mxu0 %v9466
        %12459 = vmatpush1.bf16.msra.mxu0 %v9465
        %12460 = vmatprep.subr.bf16.mxu0 %v9470
        %12461 = vmatpush1.bf16.msra.mxu0 %v9469
        %12462 = vmatprep.subr.bf16.mxu0 %v9474
        %12463 = vmatpush1.bf16.msra.mxu0 %v9473
        %12464 = vmatprep.subr.bf16.mxu0 %v9478
        %12465 = vmatpush1.bf16.msra.mxu0 %v9477
        %12466 = vmatprep.subr.bf16.mxu0 %v9482
        %12467 = vmatpush1.bf16.msra.mxu0 %v9481
        %12468 = vmatprep.subr.bf16.mxu0 %v9486
        %12469 = vmatpush1.bf16.msra.mxu0 %v9485
        %12470 = vmatprep.subr.bf16.mxu0 %v9490
        %12471 = vmatpush1.bf16.msra.mxu0 %v9489
        %12472 = vmatprep.subr.bf16.mxu0 %v9494
        %12473 = vmatpush1.bf16.msra.mxu0 %v9493
        %12474 = vmatprep.mubr.bf16.mxu0 %v2399
        %12475 = vmatmul.mubr.bf16.gmra.mrb[0].mxu0 %v2397
        %v12476 = vpop.f32.mrb[0].mxu0
        %v12477 = vadd.f32 %v12436, %v12476
        %v12478 = vpop.f32.mrb[0].mxu0
        %v12479 = vadd.f32 %v12438, %v12478
        %v12480 = vpop.f32.mrb[0].mxu0
        %v12481 = vpop.f32.mrb[0].mxu0
        %12482 = vdwg.mxu0
        %12483 = vmatprep.subr.bf16.mxu0 %v9498
        %12484 = vmatpush1.bf16.msra.mxu0 %v9497
        %12485 = vmatprep.subr.bf16.mxu0 %v9502
        %12486 = vmatpush1.bf16.msra.mxu0 %v9501
        %12487 = vmatprep.subr.bf16.mxu0 %v9506
        %12488 = vmatpush1.bf16.msra.mxu0 %v9505
        %12489 = vmatprep.subr.bf16.mxu0 %v9510
        %12490 = vmatpush1.bf16.msra.mxu0 %v9509
        %12491 = vmatprep.subr.bf16.mxu0 %v9514
        %12492 = vmatpush1.bf16.msra.mxu0 %v9513
        %12493 = vmatprep.subr.bf16.mxu0 %v9518
        %12494 = vmatpush1.bf16.msra.mxu0 %v9517
        %12495 = vmatprep.subr.bf16.mxu0 %v9522
        %12496 = vmatpush1.bf16.msra.mxu0 %v9521
        %12497 = vmatprep.subr.bf16.mxu0 %v9526
        %12498 = vmatpush1.bf16.msra.mxu0 %v9525
        %12499 = vmatprep.subr.bf16.mxu0 %v9530
        %12500 = vmatpush1.bf16.msra.mxu0 %v9529
        %12501 = vmatprep.subr.bf16.mxu0 %v9534
        %12502 = vmatpush1.bf16.msra.mxu0 %v9533
        %12503 = vmatprep.subr.bf16.mxu0 %v9538
        %12504 = vmatpush1.bf16.msra.mxu0 %v9537
        %12505 = vmatprep.subr.bf16.mxu0 %v9542
        %12506 = vmatpush1.bf16.msra.mxu0 %v9541
        %12507 = vmatprep.subr.bf16.mxu0 %v9546
        %12508 = vmatpush1.bf16.msra.mxu0 %v9545
        %12509 = vmatprep.subr.bf16.mxu0 %v9550
        %12510 = vmatpush1.bf16.msra.mxu0 %v9549
        %12511 = vmatprep.subr.bf16.mxu0 %v9554
        %12512 = vmatpush1.bf16.msra.mxu0 %v9553
        %12513 = vmatprep.subr.bf16.mxu0 %v9558
        %12514 = vmatpush1.bf16.msra.mxu0 %v9557
        %12515 = vmatprep.mubr.bf16.mxu0 %v2396
        %12516 = vmatmul.mubr.bf16.gmra.mrb[0].mxu0 %v2382
        %v12517 = vpop.f32.mrb[0].mxu0
        %v12518 = vadd.f32 %v12477, %v12517
        %v12519 = vpop.f32.mrb[0].mxu0
        %v12520 = vadd.f32 %v12479, %v12519
        %v12521 = vpop.f32.mrb[0].mxu0
        %v12522 = vpop.f32.mrb[0].mxu0
        %12523 = vdwg.mxu0
        %12524 = vmatprep.subr.bf16.mxu0 %v9562
        %12525 = vmatpush1.bf16.msra.mxu0 %v9561
        %12526 = vmatprep.subr.bf16.mxu0 %v9566
        %12527 = vmatpush1.bf16.msra.mxu0 %v9565
        %12528 = vmatprep.subr.bf16.mxu0 %v9570
        %12529 = vmatpush1.bf16.msra.mxu0 %v9569
        %12530 = vmatprep.subr.bf16.mxu0 %v9574
        %12531 = vmatpush1.bf16.msra.mxu0 %v9573
        %12532 = vmatprep.subr.bf16.mxu0 %v9578
        %12533 = vmatpush1.bf16.msra.mxu0 %v9577
        %12534 = vmatprep.subr.bf16.mxu0 %v9582
        %12535 = vmatpush1.bf16.msra.mxu0 %v9581
        %12536 = vmatprep.subr.bf16.mxu0 %v9586
        %12537 = vmatpush1.bf16.msra.mxu0 %v9585
        %12538 = vmatprep.subr.bf16.mxu0 %v9590
        %12539 = vmatpush1.bf16.msra.mxu0 %v9589
        %12540 = vmatprep.subr.bf16.mxu0 %v9594
        %12541 = vmatpush1.bf16.msra.mxu0 %v9593
        %12542 = vmatprep.subr.bf16.mxu0 %v9598
        %12543 = vmatpush1.bf16.msra.mxu0 %v9597
        %12544 = vmatprep.subr.bf16.mxu0 %v9602
        %12545 = vmatpush1.bf16.msra.mxu0 %v9601
        %12546 = vmatprep.subr.bf16.mxu0 %v9606
        %12547 = vmatpush1.bf16.msra.mxu0 %v9605
        %12548 = vmatprep.subr.bf16.mxu0 %v9610
        %12549 = vmatpush1.bf16.msra.mxu0 %v9609
        %12550 = vmatprep.subr.bf16.mxu0 %v9614
        %12551 = vmatpush1.bf16.msra.mxu0 %v9613
        %12552 = vmatprep.subr.bf16.mxu0 %v9618
        %12553 = vmatpush1.bf16.msra.mxu0 %v9617
        %12554 = vmatprep.subr.bf16.mxu0 %v9622
        %12555 = vmatpush1.bf16.msra.mxu0 %v9621
        %12556 = vmatprep.mubr.bf16.mxu0 %v2400
        %12557 = vmatmul.mubr.bf16.gmra.mrb[0].mxu0 %v2398
        %v12558 = vpop.f32.mrb[0].mxu0
        %v12559 = vadd.f32 %v12518, %v12558
        %v12560 = vpop.f32.mrb[0].mxu0
        %v12561 = vadd.f32 %v12520, %v12560
        %v12562 = vpop.f32.mrb[0].mxu0
        %v12563 = vpop.f32.mrb[0].mxu0
        %12564 = vdwg.mxu0
        %12565 = vmatprep.subr.bf16.mxu0 %v7836
        %12566 = vmatpush1.bf16.msra.mxu0 %v7835
        %12567 = vmatprep.subr.bf16.mxu0 %v7840
        %12568 = vmatpush1.bf16.msra.mxu0 %v7839
        %12569 = vmatprep.subr.bf16.mxu0 %v7844
        %12570 = vmatpush1.bf16.msra.mxu0 %v7843
        %12571 = vmatprep.subr.bf16.mxu0 %v7848
        %12572 = vmatpush1.bf16.msra.mxu0 %v7847
        %12573 = vmatprep.subr.bf16.mxu0 %v7852
        %12574 = vmatpush1.bf16.msra.mxu0 %v7851
        %12575 = vmatprep.subr.bf16.mxu0 %v7856
        %12576 = vmatpush1.bf16.msra.mxu0 %v7855
        %12577 = vmatprep.subr.bf16.mxu0 %v7860
        %12578 = vmatpush1.bf16.msra.mxu0 %v7859
        %12579 = vmatprep.subr.bf16.mxu0 %v7864
        %12580 = vmatpush1.bf16.msra.mxu0 %v7863
        %12581 = vmatprep.subr.bf16.mxu0 %v7868
        %12582 = vmatpush1.bf16.msra.mxu0 %v7867
        %12583 = vmatprep.subr.bf16.mxu0 %v7872
        %12584 = vmatpush1.bf16.msra.mxu0 %v7871
        %12585 = vmatprep.subr.bf16.mxu0 %v7876
        %12586 = vmatpush1.bf16.msra.mxu0 %v7875
        %12587 = vmatprep.subr.bf16.mxu0 %v7880
        %12588 = vmatpush1.bf16.msra.mxu0 %v7879
        %12589 = vmatprep.subr.bf16.mxu0 %v7884
        %12590 = vmatpush1.bf16.msra.mxu0 %v7883
        %12591 = vmatprep.subr.bf16.mxu0 %v7888
        %12592 = vmatpush1.bf16.msra.mxu0 %v7887
        %12593 = vmatprep.subr.bf16.mxu0 %v7892
        %12594 = vmatpush1.bf16.msra.mxu0 %v7891
        %12595 = vmatprep.subr.bf16.mxu0 %v7896
        %12596 = vmatpush1.bf16.msra.mxu0 %v7895
        %12597 = vmatprep.mubr.bf16.mxu0 %v2095
        %12598 = vmatmul.mubr.bf16.gmra.mrb[0].mxu0 %v2081
        %v12599 = vpop.f32.mrb[0].mxu0
        %v12600 = vadd.f32 0.0, %v12599
        %v12601 = vpop.f32.mrb[0].mxu0
        %v12602 = vadd.f32 0.0, %v12601
        %v12603 = vpop.f32.mrb[0].mxu0
        %v12604 = vpop.f32.mrb[0].mxu0
        %12605 = vdwg.mxu0
        %12606 = vmatprep.subr.bf16.mxu0 %v7900
        %12607 = vmatpush1.bf16.msra.mxu0 %v7899
        %12608 = vmatprep.subr.bf16.mxu0 %v7904
        %12609 = vmatpush1.bf16.msra.mxu0 %v7903
        %12610 = vmatprep.subr.bf16.mxu0 %v7908
        %12611 = vmatpush1.bf16.msra.mxu0 %v7907
        %12612 = vmatprep.subr.bf16.mxu0 %v7912
        %12613 = vmatpush1.bf16.msra.mxu0 %v7911
        %12614 = vmatprep.subr.bf16.mxu0 %v7916
        %12615 = vmatpush1.bf16.msra.mxu0 %v7915
        %12616 = vmatprep.subr.bf16.mxu0 %v7920
        %12617 = vmatpush1.bf16.msra.mxu0 %v7919
        %12618 = vmatprep.subr.bf16.mxu0 %v7924
        %12619 = vmatpush1.bf16.msra.mxu0 %v7923
        %12620 = vmatprep.subr.bf16.mxu0 %v7928
        %12621 = vmatpush1.bf16.msra.mxu0 %v7927
        %12622 = vmatprep.subr.bf16.mxu0 %v7932
        %12623 = vmatpush1.bf16.msra.mxu0 %v7931
        %12624 = vmatprep.subr.bf16.mxu0 %v7936
        %12625 = vmatpush1.bf16.msra.mxu0 %v7935
        %12626 = vmatprep.subr.bf16.mxu0 %v7940
        %12627 = vmatpush1.bf16.msra.mxu0 %v7939
        %12628 = vmatprep.subr.bf16.mxu0 %v7944
        %12629 = vmatpush1.bf16.msra.mxu0 %v7943
        %12630 = vmatprep.subr.bf16.mxu0 %v7948
        %12631 = vmatpush1.bf16.msra.mxu0 %v7947
        %12632 = vmatprep.subr.bf16.mxu0 %v7952
        %12633 = vmatpush1.bf16.msra.mxu0 %v7951
        %12634 = vmatprep.subr.bf16.mxu0 %v7956
        %12635 = vmatpush1.bf16.msra.mxu0 %v7955
        %12636 = vmatprep.subr.bf16.mxu0 %v7960
        %12637 = vmatpush1.bf16.msra.mxu0 %v7959
        %12638 = vmatprep.mubr.bf16.mxu0 %v2105
        %12639 = vmatmul.mubr.bf16.gmra.mrb[0].mxu0 %v2103
        %v12640 = vpop.f32.mrb[0].mxu0
        %v12641 = vadd.f32 %v12600, %v12640
        %v12642 = vpop.f32.mrb[0].mxu0
        %v12643 = vadd.f32 %v12602, %v12642
        %v12644 = vpop.f32.mrb[0].mxu0
        %v12645 = vpop.f32.mrb[0].mxu0
        %12646 = vdwg.mxu0
        %12647 = vmatprep.subr.bf16.mxu0 %v7964
        %12648 = vmatpush1.bf16.msra.mxu0 %v7963
        %12649 = vmatprep.subr.bf16.mxu0 %v7968
        %12650 = vmatpush1.bf16.msra.mxu0 %v7967
        %12651 = vmatprep.subr.bf16.mxu0 %v7972
        %12652 = vmatpush1.bf16.msra.mxu0 %v7971
        %12653 = vmatprep.subr.bf16.mxu0 %v7976
        %12654 = vmatpush1.bf16.msra.mxu0 %v7975
        %12655 = vmatprep.subr.bf16.mxu0 %v7980
        %12656 = vmatpush1.bf16.msra.mxu0 %v7979
        %12657 = vmatprep.subr.bf16.mxu0 %v7984
        %12658 = vmatpush1.bf16.msra.mxu0 %v7983
        %12659 = vmatprep.subr.bf16.mxu0 %v7988
        %12660 = vmatpush1.bf16.msra.mxu0 %v7987
        %12661 = vmatprep.subr.bf16.mxu0 %v7992
        %12662 = vmatpush1.bf16.msra.mxu0 %v7991
        %12663 = vmatprep.subr.bf16.mxu0 %v7996
        %12664 = vmatpush1.bf16.msra.mxu0 %v7995
        %12665 = vmatprep.subr.bf16.mxu0 %v8000
        %12666 = vmatpush1.bf16.msra.mxu0 %v7999
        %12667 = vmatprep.subr.bf16.mxu0 %v8004
        %12668 = vmatpush1.bf16.msra.mxu0 %v8003
        %12669 = vmatprep.subr.bf16.mxu0 %v8008
        %12670 = vmatpush1.bf16.msra.mxu0 %v8007
        %12671 = vmatprep.subr.bf16.mxu0 %v8012
        %12672 = vmatpush1.bf16.msra.mxu0 %v8011
        %12673 = vmatprep.subr.bf16.mxu0 %v8016
        %12674 = vmatpush1.bf16.msra.mxu0 %v8015
        %12675 = vmatprep.subr.bf16.mxu0 %v8020
        %12676 = vmatpush1.bf16.msra.mxu0 %v8019
        %12677 = vmatprep.subr.bf16.mxu0 %v8024
        %12678 = vmatpush1.bf16.msra.mxu0 %v8023
        %12679 = vmatprep.mubr.bf16.mxu0 %v2102
        %12680 = vmatmul.mubr.bf16.gmra.mrb[0].mxu0 %v2088
        %v12681 = vpop.f32.mrb[0].mxu0
        %v12682 = vadd.f32 %v12641, %v12681
        %v12683 = vpop.f32.mrb[0].mxu0
        %v12684 = vadd.f32 %v12643, %v12683
        %v12685 = vpop.f32.mrb[0].mxu0
        %v12686 = vpop.f32.mrb[0].mxu0
        %12687 = vdwg.mxu0
        %12688 = vmatprep.subr.bf16.mxu0 %v8028
        %12689 = vmatpush1.bf16.msra.mxu0 %v8027
        %12690 = vmatprep.subr.bf16.mxu0 %v8032
        %12691 = vmatpush1.bf16.msra.mxu0 %v8031
        %12692 = vmatprep.subr.bf16.mxu0 %v8036
        %12693 = vmatpush1.bf16.msra.mxu0 %v8035
        %12694 = vmatprep.subr.bf16.mxu0 %v8040
        %12695 = vmatpush1.bf16.msra.mxu0 %v8039
        %12696 = vmatprep.subr.bf16.mxu0 %v8044
        %12697 = vmatpush1.bf16.msra.mxu0 %v8043
        %12698 = vmatprep.subr.bf16.mxu0 %v8048
        %12699 = vmatpush1.bf16.msra.mxu0 %v8047
        %12700 = vmatprep.subr.bf16.mxu0 %v8052
        %12701 = vmatpush1.bf16.msra.mxu0 %v8051
        %12702 = vmatprep.subr.bf16.mxu0 %v8056
        %12703 = vmatpush1.bf16.msra.mxu0 %v8055
        %12704 = vmatprep.subr.bf16.mxu0 %v8060
        %12705 = vmatpush1.bf16.msra.mxu0 %v8059
        %12706 = vmatprep.subr.bf16.mxu0 %v8064
        %12707 = vmatpush1.bf16.msra.mxu0 %v8063
        %12708 = vmatprep.subr.bf16.mxu0 %v8068
        %12709 = vmatpush1.bf16.msra.mxu0 %v8067
        %12710 = vmatprep.subr.bf16.mxu0 %v8072
        %12711 = vmatpush1.bf16.msra.mxu0 %v8071
        %12712 = vmatprep.subr.bf16.mxu0 %v8076
        %12713 = vmatpush1.bf16.msra.mxu0 %v8075
        %12714 = vmatprep.subr.bf16.mxu0 %v8080
        %12715 = vmatpush1.bf16.msra.mxu0 %v8079
        %12716 = vmatprep.subr.bf16.mxu0 %v8084
        %12717 = vmatpush1.bf16.msra.mxu0 %v8083
        %12718 = vmatprep.subr.bf16.mxu0 %v8088
        %12719 = vmatpush1.bf16.msra.mxu0 %v8087
        %12720 = vmatprep.mubr.bf16.mxu0 %v2106
        %12721 = vmatmul.mubr.bf16.gmra.mrb[0].mxu0 %v2104
        %v12722 = vpop.f32.mrb[0].mxu0
        %v12723 = vadd.f32 %v12682, %v12722
        %v12724 = vpop.f32.mrb[0].mxu0
        %v12725 = vadd.f32 %v12684, %v12724
        %v12726 = vpop.f32.mrb[0].mxu0
        %v12727 = vpop.f32.mrb[0].mxu0
        %12728 = vdwg.mxu0
        %12729 = vmatprep.subr.bf16.mxu0 %v8092
        %12730 = vmatpush1.bf16.msra.mxu0 %v8091
        %12731 = vmatprep.subr.bf16.mxu0 %v8096
        %12732 = vmatpush1.bf16.msra.mxu0 %v8095
        %12733 = vmatprep.subr.bf16.mxu0 %v8100
        %12734 = vmatpush1.bf16.msra.mxu0 %v8099
        %12735 = vmatprep.subr.bf16.mxu0 %v8104
        %12736 = vmatpush1.bf16.msra.mxu0 %v8103
        %12737 = vmatprep.subr.bf16.mxu0 %v8108
        %12738 = vmatpush1.bf16.msra.mxu0 %v8107
        %12739 = vmatprep.subr.bf16.mxu0 %v8112
        %12740 = vmatpush1.bf16.msra.mxu0 %v8111
        %12741 = vmatprep.subr.bf16.mxu0 %v8116
        %12742 = vmatpush1.bf16.msra.mxu0 %v8115
        %12743 = vmatprep.subr.bf16.mxu0 %v8120
        %12744 = vmatpush1.bf16.msra.mxu0 %v8119
        %12745 = vmatprep.subr.bf16.mxu0 %v8124
        %12746 = vmatpush1.bf16.msra.mxu0 %v8123
        %12747 = vmatprep.subr.bf16.mxu0 %v8128
        %12748 = vmatpush1.bf16.msra.mxu0 %v8127
        %12749 = vmatprep.subr.bf16.mxu0 %v8132
        %12750 = vmatpush1.bf16.msra.mxu0 %v8131
        %12751 = vmatprep.subr.bf16.mxu0 %v8136
        %12752 = vmatpush1.bf16.msra.mxu0 %v8135
        %12753 = vmatprep.subr.bf16.mxu0 %v8140
        %12754 = vmatpush1.bf16.msra.mxu0 %v8139
        %12755 = vmatprep.subr.bf16.mxu0 %v8144
        %12756 = vmatpush1.bf16.msra.mxu0 %v8143
        %12757 = vmatprep.subr.bf16.mxu0 %v8148
        %12758 = vmatpush1.bf16.msra.mxu0 %v8147
        %12759 = vmatprep.subr.bf16.mxu0 %v8152
        %12760 = vmatpush1.bf16.msra.mxu0 %v8151
        %12761 = vmatprep.mubr.bf16.mxu0 %v2144
        %12762 = vmatmul.mubr.bf16.gmra.mrb[0].mxu0 %v2130
        %v12763 = vpop.f32.mrb[0].mxu0
        %v12764 = vadd.f32 %v12723, %v12763
        %v12765 = vpop.f32.mrb[0].mxu0
        %v12766 = vadd.f32 %v12725, %v12765
        %v12767 = vpop.f32.mrb[0].mxu0
        %v12768 = vpop.f32.mrb[0].mxu0
        %12769 = vdwg.mxu0
        %12770 = vmatprep.subr.bf16.mxu0 %v8156
        %12771 = vmatpush1.bf16.msra.mxu0 %v8155
        %12772 = vmatprep.subr.bf16.mxu0 %v8160
        %12773 = vmatpush1.bf16.msra.mxu0 %v8159
        %12774 = vmatprep.subr.bf16.mxu0 %v8164
        %12775 = vmatpush1.bf16.msra.mxu0 %v8163
        %12776 = vmatprep.subr.bf16.mxu0 %v8168
        %12777 = vmatpush1.bf16.msra.mxu0 %v8167
        %12778 = vmatprep.subr.bf16.mxu0 %v8172
        %12779 = vmatpush1.bf16.msra.mxu0 %v8171
        %12780 = vmatprep.subr.bf16.mxu0 %v8176
        %12781 = vmatpush1.bf16.msra.mxu0 %v8175
        %12782 = vmatprep.subr.bf16.mxu0 %v8180
        %12783 = vmatpush1.bf16.msra.mxu0 %v8179
        %12784 = vmatprep.subr.bf16.mxu0 %v8184
        %12785 = vmatpush1.bf16.msra.mxu0 %v8183
        %12786 = vmatprep.subr.bf16.mxu0 %v8188
        %12787 = vmatpush1.bf16.msra.mxu0 %v8187
        %12788 = vmatprep.subr.bf16.mxu0 %v8192
        %12789 = vmatpush1.bf16.msra.mxu0 %v8191
        %12790 = vmatprep.subr.bf16.mxu0 %v8196
        %12791 = vmatpush1.bf16.msra.mxu0 %v8195
        %12792 = vmatprep.subr.bf16.mxu0 %v8200
        %12793 = vmatpush1.bf16.msra.mxu0 %v8199
        %12794 = vmatprep.subr.bf16.mxu0 %v8204
        %12795 = vmatpush1.bf16.msra.mxu0 %v8203
        %12796 = vmatprep.subr.bf16.mxu0 %v8208
        %12797 = vmatpush1.bf16.msra.mxu0 %v8207
        %12798 = vmatprep.subr.bf16.mxu0 %v8212
        %12799 = vmatpush1.bf16.msra.mxu0 %v8211
        %12800 = vmatprep.subr.bf16.mxu0 %v8216
        %12801 = vmatpush1.bf16.msra.mxu0 %v8215
        %12802 = vmatprep.mubr.bf16.mxu0 %v2154
        %12803 = vmatmul.mubr.bf16.gmra.mrb[0].mxu0 %v2152
        %v12804 = vpop.f32.mrb[0].mxu0
        %v12805 = vadd.f32 %v12764, %v12804
        %v12806 = vpop.f32.mrb[0].mxu0
        %v12807 = vadd.f32 %v12766, %v12806
        %v12808 = vpop.f32.mrb[0].mxu0
        %v12809 = vpop.f32.mrb[0].mxu0
        %12810 = vdwg.mxu0
        %12811 = vmatprep.subr.bf16.mxu0 %v8220
        %12812 = vmatpush1.bf16.msra.mxu0 %v8219
        %12813 = vmatprep.subr.bf16.mxu0 %v8224
        %12814 = vmatpush1.bf16.msra.mxu0 %v8223
        %12815 = vmatprep.subr.bf16.mxu0 %v8228
        %12816 = vmatpush1.bf16.msra.mxu0 %v8227
        %12817 = vmatprep.subr.bf16.mxu0 %v8232
        %12818 = vmatpush1.bf16.msra.mxu0 %v8231
        %12819 = vmatprep.subr.bf16.mxu0 %v8236
        %12820 = vmatpush1.bf16.msra.mxu0 %v8235
        %12821 = vmatprep.subr.bf16.mxu0 %v8240
        %12822 = vmatpush1.bf16.msra.mxu0 %v8239
        %12823 = vmatprep.subr.bf16.mxu0 %v8244
        %12824 = vmatpush1.bf16.msra.mxu0 %v8243
        %12825 = vmatprep.subr.bf16.mxu0 %v8248
        %12826 = vmatpush1.bf16.msra.mxu0 %v8247
        %12827 = vmatprep.subr.bf16.mxu0 %v8252
        %12828 = vmatpush1.bf16.msra.mxu0 %v8251
        %12829 = vmatprep.subr.bf16.mxu0 %v8256
        %12830 = vmatpush1.bf16.msra.mxu0 %v8255
        %12831 = vmatprep.subr.bf16.mxu0 %v8260
        %12832 = vmatpush1.bf16.msra.mxu0 %v8259
        %12833 = vmatprep.subr.bf16.mxu0 %v8264
        %12834 = vmatpush1.bf16.msra.mxu0 %v8263
        %12835 = vmatprep.subr.bf16.mxu0 %v8268
        %12836 = vmatpush1.bf16.msra.mxu0 %v8267
        %12837 = vmatprep.subr.bf16.mxu0 %v8272
        %12838 = vmatpush1.bf16.msra.mxu0 %v8271
        %12839 = vmatprep.subr.bf16.mxu0 %v8276
        %12840 = vmatpush1.bf16.msra.mxu0 %v8275
        %12841 = vmatprep.subr.bf16.mxu0 %v8280
        %12842 = vmatpush1.bf16.msra.mxu0 %v8279
        %12843 = vmatprep.mubr.bf16.mxu0 %v2151
        %12844 = vmatmul.mubr.bf16.gmra.mrb[0].mxu0 %v2137
        %v12845 = vpop.f32.mrb[0].mxu0
        %v12846 = vadd.f32 %v12805, %v12845
        %v12847 = vpop.f32.mrb[0].mxu0
        %v12848 = vadd.f32 %v12807, %v12847
        %v12849 = vpop.f32.mrb[0].mxu0
        %v12850 = vpop.f32.mrb[0].mxu0
        %12851 = vdwg.mxu0
        %12852 = vmatprep.subr.bf16.mxu0 %v8284
        %12853 = vmatpush1.bf16.msra.mxu0 %v8283
        %12854 = vmatprep.subr.bf16.mxu0 %v8288
        %12855 = vmatpush1.bf16.msra.mxu0 %v8287
        %12856 = vmatprep.subr.bf16.mxu0 %v8292
        %12857 = vmatpush1.bf16.msra.mxu0 %v8291
        %12858 = vmatprep.subr.bf16.mxu0 %v8296
        %12859 = vmatpush1.bf16.msra.mxu0 %v8295
        %12860 = vmatprep.subr.bf16.mxu0 %v8300
        %12861 = vmatpush1.bf16.msra.mxu0 %v8299
        %12862 = vmatprep.subr.bf16.mxu0 %v8304
        %12863 = vmatpush1.bf16.msra.mxu0 %v8303
        %12864 = vmatprep.subr.bf16.mxu0 %v8308
        %12865 = vmatpush1.bf16.msra.mxu0 %v8307
        %12866 = vmatprep.subr.bf16.mxu0 %v8312
        %12867 = vmatpush1.bf16.msra.mxu0 %v8311
        %12868 = vmatprep.subr.bf16.mxu0 %v8316
        %12869 = vmatpush1.bf16.msra.mxu0 %v8315
        %12870 = vmatprep.subr.bf16.mxu0 %v8320
        %12871 = vmatpush1.bf16.msra.mxu0 %v8319
        %12872 = vmatprep.subr.bf16.mxu0 %v8324
        %12873 = vmatpush1.bf16.msra.mxu0 %v8323
        %12874 = vmatprep.subr.bf16.mxu0 %v8328
        %12875 = vmatpush1.bf16.msra.mxu0 %v8327
        %12876 = vmatprep.subr.bf16.mxu0 %v8332
        %12877 = vmatpush1.bf16.msra.mxu0 %v8331
        %12878 = vmatprep.subr.bf16.mxu0 %v8336
        %12879 = vmatpush1.bf16.msra.mxu0 %v8335
        %12880 = vmatprep.subr.bf16.mxu0 %v8340
        %12881 = vmatpush1.bf16.msra.mxu0 %v8339
        %12882 = vmatprep.subr.bf16.mxu0 %v8344
        %12883 = vmatpush1.bf16.msra.mxu0 %v8343
        %12884 = vmatprep.mubr.bf16.mxu0 %v2155
        %12885 = vmatmul.mubr.bf16.gmra.mrb[0].mxu0 %v2153
        %v12886 = vpop.f32.mrb[0].mxu0
        %v12887 = vadd.f32 %v12846, %v12886
        %v12888 = vpop.f32.mrb[0].mxu0
        %v12889 = vadd.f32 %v12848, %v12888
        %v12890 = vpop.f32.mrb[0].mxu0
        %v12891 = vpop.f32.mrb[0].mxu0
        %12892 = vdwg.mxu0
        %12893 = vmatprep.subr.bf16.mxu0 %v8348
        %12894 = vmatpush1.bf16.msra.mxu0 %v8347
        %12895 = vmatprep.subr.bf16.mxu0 %v8352
        %12896 = vmatpush1.bf16.msra.mxu0 %v8351
        %12897 = vmatprep.subr.bf16.mxu0 %v8356
        %12898 = vmatpush1.bf16.msra.mxu0 %v8355
        %12899 = vmatprep.subr.bf16.mxu0 %v8360
        %12900 = vmatpush1.bf16.msra.mxu0 %v8359
        %12901 = vmatprep.subr.bf16.mxu0 %v8364
        %12902 = vmatpush1.bf16.msra.mxu0 %v8363
        %12903 = vmatprep.subr.bf16.mxu0 %v8368
        %12904 = vmatpush1.bf16.msra.mxu0 %v8367
        %12905 = vmatprep.subr.bf16.mxu0 %v8372
        %12906 = vmatpush1.bf16.msra.mxu0 %v8371
        %12907 = vmatprep.subr.bf16.mxu0 %v8376
        %12908 = vmatpush1.bf16.msra.mxu0 %v8375
        %12909 = vmatprep.subr.bf16.mxu0 %v8380
        %12910 = vmatpush1.bf16.msra.mxu0 %v8379
        %12911 = vmatprep.subr.bf16.mxu0 %v8384
        %12912 = vmatpush1.bf16.msra.mxu0 %v8383
        %12913 = vmatprep.subr.bf16.mxu0 %v8388
        %12914 = vmatpush1.bf16.msra.mxu0 %v8387
        %12915 = vmatprep.subr.bf16.mxu0 %v8392
        %12916 = vmatpush1.bf16.msra.mxu0 %v8391
        %12917 = vmatprep.subr.bf16.mxu0 %v8396
        %12918 = vmatpush1.bf16.msra.mxu0 %v8395
        %12919 = vmatprep.subr.bf16.mxu0 %v8400
        %12920 = vmatpush1.bf16.msra.mxu0 %v8399
        %12921 = vmatprep.subr.bf16.mxu0 %v8404
        %12922 = vmatpush1.bf16.msra.mxu0 %v8403
        %12923 = vmatprep.subr.bf16.mxu0 %v8408
        %12924 = vmatpush1.bf16.msra.mxu0 %v8407
        %12925 = vmatprep.mubr.bf16.mxu0 %v2193
        %12926 = vmatmul.mubr.bf16.gmra.mrb[0].mxu0 %v2179
        %v12927 = vpop.f32.mrb[0].mxu0
        %v12928 = vadd.f32 %v12887, %v12927
        %v12929 = vpop.f32.mrb[0].mxu0
        %v12930 = vadd.f32 %v12889, %v12929
        %v12931 = vpop.f32.mrb[0].mxu0
        %v12932 = vpop.f32.mrb[0].mxu0
        %12933 = vdwg.mxu0
        %12934 = vmatprep.subr.bf16.mxu0 %v8412
        %12935 = vmatpush1.bf16.msra.mxu0 %v8411
        %12936 = vmatprep.subr.bf16.mxu0 %v8416
        %12937 = vmatpush1.bf16.msra.mxu0 %v8415
        %12938 = vmatprep.subr.bf16.mxu0 %v8420
        %12939 = vmatpush1.bf16.msra.mxu0 %v8419
        %12940 = vmatprep.subr.bf16.mxu0 %v8424
        %12941 = vmatpush1.bf16.msra.mxu0 %v8423
        %12942 = vmatprep.subr.bf16.mxu0 %v8428
        %12943 = vmatpush1.bf16.msra.mxu0 %v8427
        %12944 = vmatprep.subr.bf16.mxu0 %v8432
        %12945 = vmatpush1.bf16.msra.mxu0 %v8431
        %12946 = vmatprep.subr.bf16.mxu0 %v8436
        %12947 = vmatpush1.bf16.msra.mxu0 %v8435
        %12948 = vmatprep.subr.bf16.mxu0 %v8440
        %12949 = vmatpush1.bf16.msra.mxu0 %v8439
        %12950 = vmatprep.subr.bf16.mxu0 %v8444
        %12951 = vmatpush1.bf16.msra.mxu0 %v8443
        %12952 = vmatprep.subr.bf16.mxu0 %v8448
        %12953 = vmatpush1.bf16.msra.mxu0 %v8447
        %12954 = vmatprep.subr.bf16.mxu0 %v8452
        %12955 = vmatpush1.bf16.msra.mxu0 %v8451
        %12956 = vmatprep.subr.bf16.mxu0 %v8456
        %12957 = vmatpush1.bf16.msra.mxu0 %v8455
        %12958 = vmatprep.subr.bf16.mxu0 %v8460
        %12959 = vmatpush1.bf16.msra.mxu0 %v8459
        %12960 = vmatprep.subr.bf16.mxu0 %v8464
        %12961 = vmatpush1.bf16.msra.mxu0 %v8463
        %12962 = vmatprep.subr.bf16.mxu0 %v8468
        %12963 = vmatpush1.bf16.msra.mxu0 %v8467
        %12964 = vmatprep.subr.bf16.mxu0 %v8472
        %12965 = vmatpush1.bf16.msra.mxu0 %v8471
        %12966 = vmatprep.mubr.bf16.mxu0 %v2203
        %12967 = vmatmul.mubr.bf16.gmra.mrb[0].mxu0 %v2201
        %v12968 = vpop.f32.mrb[0].mxu0
        %v12969 = vadd.f32 %v12928, %v12968
        %v12970 = vpop.f32.mrb[0].mxu0
        %v12971 = vadd.f32 %v12930, %v12970
        %v12972 = vpop.f32.mrb[0].mxu0
        %v12973 = vpop.f32.mrb[0].mxu0
        %12974 = vdwg.mxu0
        %12975 = vmatprep.subr.bf16.mxu0 %v8476
        %12976 = vmatpush1.bf16.msra.mxu0 %v8475
        %12977 = vmatprep.subr.bf16.mxu0 %v8480
        %12978 = vmatpush1.bf16.msra.mxu0 %v8479
        %12979 = vmatprep.subr.bf16.mxu0 %v8484
        %12980 = vmatpush1.bf16.msra.mxu0 %v8483
        %12981 = vmatprep.subr.bf16.mxu0 %v8488
        %12982 = vmatpush1.bf16.msra.mxu0 %v8487
        %12983 = vmatprep.subr.bf16.mxu0 %v8492
        %12984 = vmatpush1.bf16.msra.mxu0 %v8491
        %12985 = vmatprep.subr.bf16.mxu0 %v8496
        %12986 = vmatpush1.bf16.msra.mxu0 %v8495
        %12987 = vmatprep.subr.bf16.mxu0 %v8500
        %12988 = vmatpush1.bf16.msra.mxu0 %v8499
        %12989 = vmatprep.subr.bf16.mxu0 %v8504
        %12990 = vmatpush1.bf16.msra.mxu0 %v8503
        %12991 = vmatprep.subr.bf16.mxu0 %v8508
        %12992 = vmatpush1.bf16.msra.mxu0 %v8507
        %12993 = vmatprep.subr.bf16.mxu0 %v8512
        %12994 = vmatpush1.bf16.msra.mxu0 %v8511
        %12995 = vmatprep.subr.bf16.mxu0 %v8516
        %12996 = vmatpush1.bf16.msra.mxu0 %v8515
        %12997 = vmatprep.subr.bf16.mxu0 %v8520
        %12998 = vmatpush1.bf16.msra.mxu0 %v8519
        %12999 = vmatprep.subr.bf16.mxu0 %v8524
        %13000 = vmatpush1.bf16.msra.mxu0 %v8523
        %13001 = vmatprep.subr.bf16.mxu0 %v8528
        %13002 = vmatpush1.bf16.msra.mxu0 %v8527
        %13003 = vmatprep.subr.bf16.mxu0 %v8532
        %13004 = vmatpush1.bf16.msra.mxu0 %v8531
        %13005 = vmatprep.subr.bf16.mxu0 %v8536
        %13006 = vmatpush1.bf16.msra.mxu0 %v8535
        %13007 = vmatprep.mubr.bf16.mxu0 %v2200
        %13008 = vmatmul.mubr.bf16.gmra.mrb[0].mxu0 %v2186
        %v13009 = vpop.f32.mrb[0].mxu0
        %v13010 = vadd.f32 %v12969, %v13009
        %v13011 = vpop.f32.mrb[0].mxu0
        %v13012 = vadd.f32 %v12971, %v13011
        %v13013 = vpop.f32.mrb[0].mxu0
        %v13014 = vpop.f32.mrb[0].mxu0
        %13015 = vdwg.mxu0
        %13016 = vmatprep.subr.bf16.mxu0 %v8540
        %13017 = vmatpush1.bf16.msra.mxu0 %v8539
        %13018 = vmatprep.subr.bf16.mxu0 %v8544
        %13019 = vmatpush1.bf16.msra.mxu0 %v8543
        %13020 = vmatprep.subr.bf16.mxu0 %v8548
        %13021 = vmatpush1.bf16.msra.mxu0 %v8547
        %13022 = vmatprep.subr.bf16.mxu0 %v8552
        %13023 = vmatpush1.bf16.msra.mxu0 %v8551
        %13024 = vmatprep.subr.bf16.mxu0 %v8556
        %13025 = vmatpush1.bf16.msra.mxu0 %v8555
        %13026 = vmatprep.subr.bf16.mxu0 %v8560
        %13027 = vmatpush1.bf16.msra.mxu0 %v8559
        %13028 = vmatprep.subr.bf16.mxu0 %v8564
        %13029 = vmatpush1.bf16.msra.mxu0 %v8563
        %13030 = vmatprep.subr.bf16.mxu0 %v8568
        %13031 = vmatpush1.bf16.msra.mxu0 %v8567
        %13032 = vmatprep.subr.bf16.mxu0 %v8572
        %13033 = vmatpush1.bf16.msra.mxu0 %v8571
        %13034 = vmatprep.subr.bf16.mxu0 %v8576
        %13035 = vmatpush1.bf16.msra.mxu0 %v8575
        %13036 = vmatprep.subr.bf16.mxu0 %v8580
        %13037 = vmatpush1.bf16.msra.mxu0 %v8579
        %13038 = vmatprep.subr.bf16.mxu0 %v8584
        %13039 = vmatpush1.bf16.msra.mxu0 %v8583
        %13040 = vmatprep.subr.bf16.mxu0 %v8588
        %13041 = vmatpush1.bf16.msra.mxu0 %v8587
        %13042 = vmatprep.subr.bf16.mxu0 %v8592
        %13043 = vmatpush1.bf16.msra.mxu0 %v8591
        %13044 = vmatprep.subr.bf16.mxu0 %v8596
        %13045 = vmatpush1.bf16.msra.mxu0 %v8595
        %13046 = vmatprep.subr.bf16.mxu0 %v8600
        %13047 = vmatpush1.bf16.msra.mxu0 %v8599
        %13048 = vmatprep.mubr.bf16.mxu0 %v2204
        %13049 = vmatmul.mubr.bf16.gmra.mrb[0].mxu0 %v2202
        %v13050 = vpop.f32.mrb[0].mxu0
        %v13051 = vadd.f32 %v13010, %v13050
        %v13052 = vpop.f32.mrb[0].mxu0
        %v13053 = vadd.f32 %v13012, %v13052
        %v13054 = vpop.f32.mrb[0].mxu0
        %v13055 = vpop.f32.mrb[0].mxu0
        %13056 = vdwg.mxu0
        %13057 = vmatprep.subr.bf16.mxu0 %v8604
        %13058 = vmatpush1.bf16.msra.mxu0 %v8603
        %13059 = vmatprep.subr.bf16.mxu0 %v8608
        %13060 = vmatpush1.bf16.msra.mxu0 %v8607
        %13061 = vmatprep.subr.bf16.mxu0 %v8612
        %13062 = vmatpush1.bf16.msra.mxu0 %v8611
        %13063 = vmatprep.subr.bf16.mxu0 %v8616
        %13064 = vmatpush1.bf16.msra.mxu0 %v8615
        %13065 = vmatprep.subr.bf16.mxu0 %v8620
        %13066 = vmatpush1.bf16.msra.mxu0 %v8619
        %13067 = vmatprep.subr.bf16.mxu0 %v8624
        %13068 = vmatpush1.bf16.msra.mxu0 %v8623
        %13069 = vmatprep.subr.bf16.mxu0 %v8628
        %13070 = vmatpush1.bf16.msra.mxu0 %v8627
        %13071 = vmatprep.subr.bf16.mxu0 %v8632
        %13072 = vmatpush1.bf16.msra.mxu0 %v8631
        %13073 = vmatprep.subr.bf16.mxu0 %v8636
        %13074 = vmatpush1.bf16.msra.mxu0 %v8635
        %13075 = vmatprep.subr.bf16.mxu0 %v8640
        %13076 = vmatpush1.bf16.msra.mxu0 %v8639
        %13077 = vmatprep.subr.bf16.mxu0 %v8644
        %13078 = vmatpush1.bf16.msra.mxu0 %v8643
        %13079 = vmatprep.subr.bf16.mxu0 %v8648
        %13080 = vmatpush1.bf16.msra.mxu0 %v8647
        %13081 = vmatprep.subr.bf16.mxu0 %v8652
        %13082 = vmatpush1.bf16.msra.mxu0 %v8651
        %13083 = vmatprep.subr.bf16.mxu0 %v8656
        %13084 = vmatpush1.bf16.msra.mxu0 %v8655
        %13085 = vmatprep.subr.bf16.mxu0 %v8660
        %13086 = vmatpush1.bf16.msra.mxu0 %v8659
        %13087 = vmatprep.subr.bf16.mxu0 %v8664
        %13088 = vmatpush1.bf16.msra.mxu0 %v8663
        %13089 = vmatprep.mubr.bf16.mxu0 %v2242
        %13090 = vmatmul.mubr.bf16.gmra.mrb[0].mxu0 %v2228
        %v13091 = vpop.f32.mrb[0].mxu0
        %v13092 = vadd.f32 %v13051, %v13091
        %v13093 = vpop.f32.mrb[0].mxu0
        %v13094 = vadd.f32 %v13053, %v13093
        %v13095 = vpop.f32.mrb[0].mxu0
        %v13096 = vpop.f32.mrb[0].mxu0
        %13097 = vdwg.mxu0
        %13098 = vmatprep.subr.bf16.mxu0 %v8668
        %13099 = vmatpush1.bf16.msra.mxu0 %v8667
        %13100 = vmatprep.subr.bf16.mxu0 %v8672
        %13101 = vmatpush1.bf16.msra.mxu0 %v8671
        %13102 = vmatprep.subr.bf16.mxu0 %v8676
        %13103 = vmatpush1.bf16.msra.mxu0 %v8675
        %13104 = vmatprep.subr.bf16.mxu0 %v8680
        %13105 = vmatpush1.bf16.msra.mxu0 %v8679
        %13106 = vmatprep.subr.bf16.mxu0 %v8684
        %13107 = vmatpush1.bf16.msra.mxu0 %v8683
        %13108 = vmatprep.subr.bf16.mxu0 %v8688
        %13109 = vmatpush1.bf16.msra.mxu0 %v8687
        %13110 = vmatprep.subr.bf16.mxu0 %v8692
        %13111 = vmatpush1.bf16.msra.mxu0 %v8691
        %13112 = vmatprep.subr.bf16.mxu0 %v8696
        %13113 = vmatpush1.bf16.msra.mxu0 %v8695
        %13114 = vmatprep.subr.bf16.mxu0 %v8700
        %13115 = vmatpush1.bf16.msra.mxu0 %v8699
        %13116 = vmatprep.subr.bf16.mxu0 %v8704
        %13117 = vmatpush1.bf16.msra.mxu0 %v8703
        %13118 = vmatprep.subr.bf16.mxu0 %v8708
        %13119 = vmatpush1.bf16.msra.mxu0 %v8707
        %13120 = vmatprep.subr.bf16.mxu0 %v8712
        %13121 = vmatpush1.bf16.msra.mxu0 %v8711
        %13122 = vmatprep.subr.bf16.mxu0 %v8716
        %13123 = vmatpush1.bf16.msra.mxu0 %v8715
        %13124 = vmatprep.subr.bf16.mxu0 %v8720
        %13125 = vmatpush1.bf16.msra.mxu0 %v8719
        %13126 = vmatprep.subr.bf16.mxu0 %v8724
        %13127 = vmatpush1.bf16.msra.mxu0 %v8723
        %13128 = vmatprep.subr.bf16.mxu0 %v8728
        %13129 = vmatpush1.bf16.msra.mxu0 %v8727
        %13130 = vmatprep.mubr.bf16.mxu0 %v2252
        %13131 = vmatmul.mubr.bf16.gmra.mrb[0].mxu0 %v2250
        %v13132 = vpop.f32.mrb[0].mxu0
        %v13133 = vadd.f32 %v13092, %v13132
        %v13134 = vpop.f32.mrb[0].mxu0
        %v13135 = vadd.f32 %v13094, %v13134
        %v13136 = vpop.f32.mrb[0].mxu0
        %v13137 = vpop.f32.mrb[0].mxu0
        %13138 = vdwg.mxu0
        %13139 = vmatprep.subr.bf16.mxu0 %v8732
        %13140 = vmatpush1.bf16.msra.mxu0 %v8731
        %13141 = vmatprep.subr.bf16.mxu0 %v8736
        %13142 = vmatpush1.bf16.msra.mxu0 %v8735
        %13143 = vmatprep.subr.bf16.mxu0 %v8740
        %13144 = vmatpush1.bf16.msra.mxu0 %v8739
        %13145 = vmatprep.subr.bf16.mxu0 %v8744
        %13146 = vmatpush1.bf16.msra.mxu0 %v8743
        %13147 = vmatprep.subr.bf16.mxu0 %v8748
        %13148 = vmatpush1.bf16.msra.mxu0 %v8747
        %13149 = vmatprep.subr.bf16.mxu0 %v8752
        %13150 = vmatpush1.bf16.msra.mxu0 %v8751
        %13151 = vmatprep.subr.bf16.mxu0 %v8756
        %13152 = vmatpush1.bf16.msra.mxu0 %v8755
        %13153 = vmatprep.subr.bf16.mxu0 %v8760
        %13154 = vmatpush1.bf16.msra.mxu0 %v8759
        %13155 = vmatprep.subr.bf16.mxu0 %v8764
        %13156 = vmatpush1.bf16.msra.mxu0 %v8763
        %13157 = vmatprep.subr.bf16.mxu0 %v8768
        %13158 = vmatpush1.bf16.msra.mxu0 %v8767
        %13159 = vmatprep.subr.bf16.mxu0 %v8772
        %13160 = vmatpush1.bf16.msra.mxu0 %v8771
        %13161 = vmatprep.subr.bf16.mxu0 %v8776
        %13162 = vmatpush1.bf16.msra.mxu0 %v8775
        %13163 = vmatprep.subr.bf16.mxu0 %v8780
        %13164 = vmatpush1.bf16.msra.mxu0 %v8779
        %13165 = vmatprep.subr.bf16.mxu0 %v8784
        %13166 = vmatpush1.bf16.msra.mxu0 %v8783
        %13167 = vmatprep.subr.bf16.mxu0 %v8788
        %13168 = vmatpush1.bf16.msra.mxu0 %v8787
        %13169 = vmatprep.subr.bf16.mxu0 %v8792
        %13170 = vmatpush1.bf16.msra.mxu0 %v8791
        %13171 = vmatprep.mubr.bf16.mxu0 %v2249
        %13172 = vmatmul.mubr.bf16.gmra.mrb[0].mxu0 %v2235
        %v13173 = vpop.f32.mrb[0].mxu0
        %v13174 = vadd.f32 %v13133, %v13173
        %v13175 = vpop.f32.mrb[0].mxu0
        %v13176 = vadd.f32 %v13135, %v13175
        %v13177 = vpop.f32.mrb[0].mxu0
        %v13178 = vpop.f32.mrb[0].mxu0
        %13179 = vdwg.mxu0
        %13180 = vmatprep.subr.bf16.mxu0 %v8796
        %13181 = vmatpush1.bf16.msra.mxu0 %v8795
        %13182 = vmatprep.subr.bf16.mxu0 %v8800
        %13183 = vmatpush1.bf16.msra.mxu0 %v8799
        %13184 = vmatprep.subr.bf16.mxu0 %v8804
        %13185 = vmatpush1.bf16.msra.mxu0 %v8803
        %13186 = vmatprep.subr.bf16.mxu0 %v8808
        %13187 = vmatpush1.bf16.msra.mxu0 %v8807
        %13188 = vmatprep.subr.bf16.mxu0 %v8812
        %13189 = vmatpush1.bf16.msra.mxu0 %v8811
        %13190 = vmatprep.subr.bf16.mxu0 %v8816
        %13191 = vmatpush1.bf16.msra.mxu0 %v8815
        %13192 = vmatprep.subr.bf16.mxu0 %v8820
        %13193 = vmatpush1.bf16.msra.mxu0 %v8819
        %13194 = vmatprep.subr.bf16.mxu0 %v8824
        %13195 = vmatpush1.bf16.msra.mxu0 %v8823
        %13196 = vmatprep.subr.bf16.mxu0 %v8828
        %13197 = vmatpush1.bf16.msra.mxu0 %v8827
        %13198 = vmatprep.subr.bf16.mxu0 %v8832
        %13199 = vmatpush1.bf16.msra.mxu0 %v8831
        %13200 = vmatprep.subr.bf16.mxu0 %v8836
        %13201 = vmatpush1.bf16.msra.mxu0 %v8835
        %13202 = vmatprep.subr.bf16.mxu0 %v8840
        %13203 = vmatpush1.bf16.msra.mxu0 %v8839
        %13204 = vmatprep.subr.bf16.mxu0 %v8844
        %13205 = vmatpush1.bf16.msra.mxu0 %v8843
        %13206 = vmatprep.subr.bf16.mxu0 %v8848
        %13207 = vmatpush1.bf16.msra.mxu0 %v8847
        %13208 = vmatprep.subr.bf16.mxu0 %v8852
        %13209 = vmatpush1.bf16.msra.mxu0 %v8851
        %13210 = vmatprep.subr.bf16.mxu0 %v8856
        %13211 = vmatpush1.bf16.msra.mxu0 %v8855
        %13212 = vmatprep.mubr.bf16.mxu0 %v2253
        %13213 = vmatmul.mubr.bf16.gmra.mrb[0].mxu0 %v2251
        %v13214 = vpop.f32.mrb[0].mxu0
        %v13215 = vadd.f32 %v13174, %v13214
        %v13216 = vpop.f32.mrb[0].mxu0
        %v13217 = vadd.f32 %v13176, %v13216
        %v13218 = vpop.f32.mrb[0].mxu0
        %v13219 = vpop.f32.mrb[0].mxu0
        %13220 = vdwg.mxu0
        %13221 = vmatprep.subr.bf16.mxu0 %v8860
        %13222 = vmatpush1.bf16.msra.mxu0 %v8859
        %13223 = vmatprep.subr.bf16.mxu0 %v8864
        %13224 = vmatpush1.bf16.msra.mxu0 %v8863
        %13225 = vmatprep.subr.bf16.mxu0 %v8868
        %13226 = vmatpush1.bf16.msra.mxu0 %v8867
        %13227 = vmatprep.subr.bf16.mxu0 %v8872
        %13228 = vmatpush1.bf16.msra.mxu0 %v8871
        %13229 = vmatprep.subr.bf16.mxu0 %v8876
        %13230 = vmatpush1.bf16.msra.mxu0 %v8875
        %13231 = vmatprep.subr.bf16.mxu0 %v8880
        %13232 = vmatpush1.bf16.msra.mxu0 %v8879
        %13233 = vmatprep.subr.bf16.mxu0 %v8884
        %13234 = vmatpush1.bf16.msra.mxu0 %v8883
        %13235 = vmatprep.subr.bf16.mxu0 %v8888
        %13236 = vmatpush1.bf16.msra.mxu0 %v8887
        %13237 = vmatprep.subr.bf16.mxu0 %v8892
        %13238 = vmatpush1.bf16.msra.mxu0 %v8891
        %13239 = vmatprep.subr.bf16.mxu0 %v8896
        %13240 = vmatpush1.bf16.msra.mxu0 %v8895
        %13241 = vmatprep.subr.bf16.mxu0 %v8900
        %13242 = vmatpush1.bf16.msra.mxu0 %v8899
        %13243 = vmatprep.subr.bf16.mxu0 %v8904
        %13244 = vmatpush1.bf16.msra.mxu0 %v8903
        %13245 = vmatprep.subr.bf16.mxu0 %v8908
        %13246 = vmatpush1.bf16.msra.mxu0 %v8907
        %13247 = vmatprep.subr.bf16.mxu0 %v8912
        %13248 = vmatpush1.bf16.msra.mxu0 %v8911
        %13249 = vmatprep.subr.bf16.mxu0 %v8916
        %13250 = vmatpush1.bf16.msra.mxu0 %v8915
        %13251 = vmatprep.subr.bf16.mxu0 %v8920
        %13252 = vmatpush1.bf16.msra.mxu0 %v8919
        %13253 = vmatprep.mubr.bf16.mxu0 %v2291
        %13254 = vmatmul.mubr.bf16.gmra.mrb[0].mxu0 %v2277
        %v13255 = vpop.f32.mrb[0].mxu0
        %v13256 = vadd.f32 %v13215, %v13255
        %v13257 = vpop.f32.mrb[0].mxu0
        %v13258 = vadd.f32 %v13217, %v13257
        %v13259 = vpop.f32.mrb[0].mxu0
        %v13260 = vpop.f32.mrb[0].mxu0
        %13261 = vdwg.mxu0
        %13262 = vmatprep.subr.bf16.mxu0 %v8924
        %13263 = vmatpush1.bf16.msra.mxu0 %v8923
        %13264 = vmatprep.subr.bf16.mxu0 %v8928
        %13265 = vmatpush1.bf16.msra.mxu0 %v8927
        %13266 = vmatprep.subr.bf16.mxu0 %v8932
        %13267 = vmatpush1.bf16.msra.mxu0 %v8931
        %13268 = vmatprep.subr.bf16.mxu0 %v8936
        %13269 = vmatpush1.bf16.msra.mxu0 %v8935
        %13270 = vmatprep.subr.bf16.mxu0 %v8940
        %13271 = vmatpush1.bf16.msra.mxu0 %v8939
        %13272 = vmatprep.subr.bf16.mxu0 %v8944
        %13273 = vmatpush1.bf16.msra.mxu0 %v8943
        %13274 = vmatprep.subr.bf16.mxu0 %v8948
        %13275 = vmatpush1.bf16.msra.mxu0 %v8947
        %13276 = vmatprep.subr.bf16.mxu0 %v8952
        %13277 = vmatpush1.bf16.msra.mxu0 %v8951
        %13278 = vmatprep.subr.bf16.mxu0 %v8956
        %13279 = vmatpush1.bf16.msra.mxu0 %v8955
        %13280 = vmatprep.subr.bf16.mxu0 %v8960
        %13281 = vmatpush1.bf16.msra.mxu0 %v8959
        %13282 = vmatprep.subr.bf16.mxu0 %v8964
        %13283 = vmatpush1.bf16.msra.mxu0 %v8963
        %13284 = vmatprep.subr.bf16.mxu0 %v8968
        %13285 = vmatpush1.bf16.msra.mxu0 %v8967
        %13286 = vmatprep.subr.bf16.mxu0 %v8972
        %13287 = vmatpush1.bf16.msra.mxu0 %v8971
        %13288 = vmatprep.subr.bf16.mxu0 %v8976
        %13289 = vmatpush1.bf16.msra.mxu0 %v8975
        %13290 = vmatprep.subr.bf16.mxu0 %v8980
        %13291 = vmatpush1.bf16.msra.mxu0 %v8979
        %13292 = vmatprep.subr.bf16.mxu0 %v8984
        %13293 = vmatpush1.bf16.msra.mxu0 %v8983
        %13294 = vmatprep.mubr.bf16.mxu0 %v2301
        %13295 = vmatmul.mubr.bf16.gmra.mrb[0].mxu0 %v2299
        %v13296 = vpop.f32.mrb[0].mxu0
        %v13297 = vadd.f32 %v13256, %v13296
        %v13298 = vpop.f32.mrb[0].mxu0
        %v13299 = vadd.f32 %v13258, %v13298
        %v13300 = vpop.f32.mrb[0].mxu0
        %v13301 = vpop.f32.mrb[0].mxu0
        %13302 = vdwg.mxu0
        %13303 = vmatprep.subr.bf16.mxu0 %v8988
        %13304 = vmatpush1.bf16.msra.mxu0 %v8987
        %13305 = vmatprep.subr.bf16.mxu0 %v8992
        %13306 = vmatpush1.bf16.msra.mxu0 %v8991
        %13307 = vmatprep.subr.bf16.mxu0 %v8996
        %13308 = vmatpush1.bf16.msra.mxu0 %v8995
        %13309 = vmatprep.subr.bf16.mxu0 %v9000
        %13310 = vmatpush1.bf16.msra.mxu0 %v8999
        %13311 = vmatprep.subr.bf16.mxu0 %v9004
        %13312 = vmatpush1.bf16.msra.mxu0 %v9003
        %13313 = vmatprep.subr.bf16.mxu0 %v9008
        %13314 = vmatpush1.bf16.msra.mxu0 %v9007
        %13315 = vmatprep.subr.bf16.mxu0 %v9012
        %13316 = vmatpush1.bf16.msra.mxu0 %v9011
        %13317 = vmatprep.subr.bf16.mxu0 %v9016
        %13318 = vmatpush1.bf16.msra.mxu0 %v9015
        %13319 = vmatprep.subr.bf16.mxu0 %v9020
        %13320 = vmatpush1.bf16.msra.mxu0 %v9019
        %13321 = vmatprep.subr.bf16.mxu0 %v9024
        %13322 = vmatpush1.bf16.msra.mxu0 %v9023
        %13323 = vmatprep.subr.bf16.mxu0 %v9028
        %13324 = vmatpush1.bf16.msra.mxu0 %v9027
        %13325 = vmatprep.subr.bf16.mxu0 %v9032
        %13326 = vmatpush1.bf16.msra.mxu0 %v9031
        %13327 = vmatprep.subr.bf16.mxu0 %v9036
        %13328 = vmatpush1.bf16.msra.mxu0 %v9035
        %13329 = vmatprep.subr.bf16.mxu0 %v9040
        %13330 = vmatpush1.bf16.msra.mxu0 %v9039
        %13331 = vmatprep.subr.bf16.mxu0 %v9044
        %13332 = vmatpush1.bf16.msra.mxu0 %v9043
        %13333 = vmatprep.subr.bf16.mxu0 %v9048
        %13334 = vmatpush1.bf16.msra.mxu0 %v9047
        %13335 = vmatprep.mubr.bf16.mxu0 %v2298
        %13336 = vmatmul.mubr.bf16.gmra.mrb[0].mxu0 %v2284
        %v13337 = vpop.f32.mrb[0].mxu0
        %v13338 = vadd.f32 %v13297, %v13337
        %v13339 = vpop.f32.mrb[0].mxu0
        %v13340 = vadd.f32 %v13299, %v13339
        %v13341 = vpop.f32.mrb[0].mxu0
        %v13342 = vpop.f32.mrb[0].mxu0
        %13343 = vdwg.mxu0
        %13344 = vmatprep.subr.bf16.mxu0 %v9052
        %13345 = vmatpush1.bf16.msra.mxu0 %v9051
        %13346 = vmatprep.subr.bf16.mxu0 %v9056
        %13347 = vmatpush1.bf16.msra.mxu0 %v9055
        %13348 = vmatprep.subr.bf16.mxu0 %v9060
        %13349 = vmatpush1.bf16.msra.mxu0 %v9059
        %13350 = vmatprep.subr.bf16.mxu0 %v9064
        %13351 = vmatpush1.bf16.msra.mxu0 %v9063
        %13352 = vmatprep.subr.bf16.mxu0 %v9068
        %13353 = vmatpush1.bf16.msra.mxu0 %v9067
        %13354 = vmatprep.subr.bf16.mxu0 %v9072
        %13355 = vmatpush1.bf16.msra.mxu0 %v9071
        %13356 = vmatprep.subr.bf16.mxu0 %v9076
        %13357 = vmatpush1.bf16.msra.mxu0 %v9075
        %13358 = vmatprep.subr.bf16.mxu0 %v9080
        %13359 = vmatpush1.bf16.msra.mxu0 %v9079
        %13360 = vmatprep.subr.bf16.mxu0 %v9084
        %13361 = vmatpush1.bf16.msra.mxu0 %v9083
        %13362 = vmatprep.subr.bf16.mxu0 %v9088
        %13363 = vmatpush1.bf16.msra.mxu0 %v9087
        %13364 = vmatprep.subr.bf16.mxu0 %v9092
        %13365 = vmatpush1.bf16.msra.mxu0 %v9091
        %13366 = vmatprep.subr.bf16.mxu0 %v9096
        %13367 = vmatpush1.bf16.msra.mxu0 %v9095
        %13368 = vmatprep.subr.bf16.mxu0 %v9100
        %13369 = vmatpush1.bf16.msra.mxu0 %v9099
        %13370 = vmatprep.subr.bf16.mxu0 %v9104
        %13371 = vmatpush1.bf16.msra.mxu0 %v9103
        %13372 = vmatprep.subr.bf16.mxu0 %v9108
        %13373 = vmatpush1.bf16.msra.mxu0 %v9107
        %13374 = vmatprep.subr.bf16.mxu0 %v9112
        %13375 = vmatpush1.bf16.msra.mxu0 %v9111
        %13376 = vmatprep.mubr.bf16.mxu0 %v2302
        %13377 = vmatmul.mubr.bf16.gmra.mrb[0].mxu0 %v2300
        %v13378 = vpop.f32.mrb[0].mxu0
        %v13379 = vadd.f32 %v13338, %v13378
        %v13380 = vpop.f32.mrb[0].mxu0
        %v13381 = vadd.f32 %v13340, %v13380
        %v13382 = vpop.f32.mrb[0].mxu0
        %v13383 = vpop.f32.mrb[0].mxu0
        %13384 = vdwg.mxu0
        %13385 = vmatprep.subr.bf16.mxu0 %v9116
        %13386 = vmatpush1.bf16.msra.mxu0 %v9115
        %13387 = vmatprep.subr.bf16.mxu0 %v9120
        %13388 = vmatpush1.bf16.msra.mxu0 %v9119
        %13389 = vmatprep.subr.bf16.mxu0 %v9124
        %13390 = vmatpush1.bf16.msra.mxu0 %v9123
        %13391 = vmatprep.subr.bf16.mxu0 %v9128
        %13392 = vmatpush1.bf16.msra.mxu0 %v9127
        %13393 = vmatprep.subr.bf16.mxu0 %v9132
        %13394 = vmatpush1.bf16.msra.mxu0 %v9131
        %13395 = vmatprep.subr.bf16.mxu0 %v9136
        %13396 = vmatpush1.bf16.msra.mxu0 %v9135
        %13397 = vmatprep.subr.bf16.mxu0 %v9140
        %13398 = vmatpush1.bf16.msra.mxu0 %v9139
        %13399 = vmatprep.subr.bf16.mxu0 %v9144
        %13400 = vmatpush1.bf16.msra.mxu0 %v9143
        %13401 = vmatprep.subr.bf16.mxu0 %v9148
        %13402 = vmatpush1.bf16.msra.mxu0 %v9147
        %13403 = vmatprep.subr.bf16.mxu0 %v9152
        %13404 = vmatpush1.bf16.msra.mxu0 %v9151
        %13405 = vmatprep.subr.bf16.mxu0 %v9156
        %13406 = vmatpush1.bf16.msra.mxu0 %v9155
        %13407 = vmatprep.subr.bf16.mxu0 %v9160
        %13408 = vmatpush1.bf16.msra.mxu0 %v9159
        %13409 = vmatprep.subr.bf16.mxu0 %v9164
        %13410 = vmatpush1.bf16.msra.mxu0 %v9163
        %13411 = vmatprep.subr.bf16.mxu0 %v9168
        %13412 = vmatpush1.bf16.msra.mxu0 %v9167
        %13413 = vmatprep.subr.bf16.mxu0 %v9172
        %13414 = vmatpush1.bf16.msra.mxu0 %v9171
        %13415 = vmatprep.subr.bf16.mxu0 %v9176
        %13416 = vmatpush1.bf16.msra.mxu0 %v9175
        %13417 = vmatprep.mubr.bf16.mxu0 %v2340
        %13418 = vmatmul.mubr.bf16.gmra.mrb[0].mxu0 %v2326
        %v13419 = vpop.f32.mrb[0].mxu0
        %v13420 = vadd.f32 %v13379, %v13419
        %v13421 = vpop.f32.mrb[0].mxu0
        %v13422 = vadd.f32 %v13381, %v13421
        %v13423 = vpop.f32.mrb[0].mxu0
        %v13424 = vpop.f32.mrb[0].mxu0
        %13425 = vdwg.mxu0
        %13426 = vmatprep.subr.bf16.mxu0 %v9180
        %13427 = vmatpush1.bf16.msra.mxu0 %v9179
        %13428 = vmatprep.subr.bf16.mxu0 %v9184
        %13429 = vmatpush1.bf16.msra.mxu0 %v9183
        %13430 = vmatprep.subr.bf16.mxu0 %v9188
        %13431 = vmatpush1.bf16.msra.mxu0 %v9187
        %13432 = vmatprep.subr.bf16.mxu0 %v9192
        %13433 = vmatpush1.bf16.msra.mxu0 %v9191
        %13434 = vmatprep.subr.bf16.mxu0 %v9196
        %13435 = vmatpush1.bf16.msra.mxu0 %v9195
        %13436 = vmatprep.subr.bf16.mxu0 %v9200
        %13437 = vmatpush1.bf16.msra.mxu0 %v9199
        %13438 = vmatprep.subr.bf16.mxu0 %v9204
        %13439 = vmatpush1.bf16.msra.mxu0 %v9203
        %13440 = vmatprep.subr.bf16.mxu0 %v9208
        %13441 = vmatpush1.bf16.msra.mxu0 %v9207
        %13442 = vmatprep.subr.bf16.mxu0 %v9212
        %13443 = vmatpush1.bf16.msra.mxu0 %v9211
        %13444 = vmatprep.subr.bf16.mxu0 %v9216
        %13445 = vmatpush1.bf16.msra.mxu0 %v9215
        %13446 = vmatprep.subr.bf16.mxu0 %v9220
        %13447 = vmatpush1.bf16.msra.mxu0 %v9219
        %13448 = vmatprep.subr.bf16.mxu0 %v9224
        %13449 = vmatpush1.bf16.msra.mxu0 %v9223
        %13450 = vmatprep.subr.bf16.mxu0 %v9228
        %13451 = vmatpush1.bf16.msra.mxu0 %v9227
        %13452 = vmatprep.subr.bf16.mxu0 %v9232
        %13453 = vmatpush1.bf16.msra.mxu0 %v9231
        %13454 = vmatprep.subr.bf16.mxu0 %v9236
        %13455 = vmatpush1.bf16.msra.mxu0 %v9235
        %13456 = vmatprep.subr.bf16.mxu0 %v9240
        %13457 = vmatpush1.bf16.msra.mxu0 %v9239
        %13458 = vmatprep.mubr.bf16.mxu0 %v2350
        %13459 = vmatmul.mubr.bf16.gmra.mrb[0].mxu0 %v2348
        %v13460 = vpop.f32.mrb[0].mxu0
        %v13461 = vadd.f32 %v13420, %v13460
        %v13462 = vpop.f32.mrb[0].mxu0
        %v13463 = vadd.f32 %v13422, %v13462
        %v13464 = vpop.f32.mrb[0].mxu0
        %v13465 = vpop.f32.mrb[0].mxu0
        %13466 = vdwg.mxu0
        %13467 = vmatprep.subr.bf16.mxu0 %v9244
        %13468 = vmatpush1.bf16.msra.mxu0 %v9243
        %13469 = vmatprep.subr.bf16.mxu0 %v9248
        %13470 = vmatpush1.bf16.msra.mxu0 %v9247
        %13471 = vmatprep.subr.bf16.mxu0 %v9252
        %13472 = vmatpush1.bf16.msra.mxu0 %v9251
        %13473 = vmatprep.subr.bf16.mxu0 %v9256
        %13474 = vmatpush1.bf16.msra.mxu0 %v9255
        %13475 = vmatprep.subr.bf16.mxu0 %v9260
        %13476 = vmatpush1.bf16.msra.mxu0 %v9259
        %13477 = vmatprep.subr.bf16.mxu0 %v9264
        %13478 = vmatpush1.bf16.msra.mxu0 %v9263
        %13479 = vmatprep.subr.bf16.mxu0 %v9268
        %13480 = vmatpush1.bf16.msra.mxu0 %v9267
        %13481 = vmatprep.subr.bf16.mxu0 %v9272
        %13482 = vmatpush1.bf16.msra.mxu0 %v9271
        %13483 = vmatprep.subr.bf16.mxu0 %v9276
        %13484 = vmatpush1.bf16.msra.mxu0 %v9275
        %13485 = vmatprep.subr.bf16.mxu0 %v9280
        %13486 = vmatpush1.bf16.msra.mxu0 %v9279
        %13487 = vmatprep.subr.bf16.mxu0 %v9284
        %13488 = vmatpush1.bf16.msra.mxu0 %v9283
        %13489 = vmatprep.subr.bf16.mxu0 %v9288
        %13490 = vmatpush1.bf16.msra.mxu0 %v9287
        %13491 = vmatprep.subr.bf16.mxu0 %v9292
        %13492 = vmatpush1.bf16.msra.mxu0 %v9291
        %13493 = vmatprep.subr.bf16.mxu0 %v9296
        %13494 = vmatpush1.bf16.msra.mxu0 %v9295
        %13495 = vmatprep.subr.bf16.mxu0 %v9300
        %13496 = vmatpush1.bf16.msra.mxu0 %v9299
        %13497 = vmatprep.subr.bf16.mxu0 %v9304
        %13498 = vmatpush1.bf16.msra.mxu0 %v9303
        %13499 = vmatprep.mubr.bf16.mxu0 %v2347
        %13500 = vmatmul.mubr.bf16.gmra.mrb[0].mxu0 %v2333
        %v13501 = vpop.f32.mrb[0].mxu0
        %v13502 = vadd.f32 %v13461, %v13501
        %v13503 = vpop.f32.mrb[0].mxu0
        %v13504 = vadd.f32 %v13463, %v13503
        %v13505 = vpop.f32.mrb[0].mxu0
        %v13506 = vpop.f32.mrb[0].mxu0
        %13507 = vdwg.mxu0
        %13508 = vmatprep.subr.bf16.mxu0 %v9308
        %13509 = vmatpush1.bf16.msra.mxu0 %v9307
        %13510 = vmatprep.subr.bf16.mxu0 %v9312
        %13511 = vmatpush1.bf16.msra.mxu0 %v9311
        %13512 = vmatprep.subr.bf16.mxu0 %v9316
        %13513 = vmatpush1.bf16.msra.mxu0 %v9315
        %13514 = vmatprep.subr.bf16.mxu0 %v9320
        %13515 = vmatpush1.bf16.msra.mxu0 %v9319
        %13516 = vmatprep.subr.bf16.mxu0 %v9324
        %13517 = vmatpush1.bf16.msra.mxu0 %v9323
        %13518 = vmatprep.subr.bf16.mxu0 %v9328
        %13519 = vmatpush1.bf16.msra.mxu0 %v9327
        %13520 = vmatprep.subr.bf16.mxu0 %v9332
        %13521 = vmatpush1.bf16.msra.mxu0 %v9331
        %13522 = vmatprep.subr.bf16.mxu0 %v9336
        %13523 = vmatpush1.bf16.msra.mxu0 %v9335
        %13524 = vmatprep.subr.bf16.mxu0 %v9340
        %13525 = vmatpush1.bf16.msra.mxu0 %v9339
        %13526 = vmatprep.subr.bf16.mxu0 %v9344
        %13527 = vmatpush1.bf16.msra.mxu0 %v9343
        %13528 = vmatprep.subr.bf16.mxu0 %v9348
        %13529 = vmatpush1.bf16.msra.mxu0 %v9347
        %13530 = vmatprep.subr.bf16.mxu0 %v9352
        %13531 = vmatpush1.bf16.msra.mxu0 %v9351
        %13532 = vmatprep.subr.bf16.mxu0 %v9356
        %13533 = vmatpush1.bf16.msra.mxu0 %v9355
        %13534 = vmatprep.subr.bf16.mxu0 %v9360
        %13535 = vmatpush1.bf16.msra.mxu0 %v9359
        %13536 = vmatprep.subr.bf16.mxu0 %v9364
        %13537 = vmatpush1.bf16.msra.mxu0 %v9363
        %13538 = vmatprep.subr.bf16.mxu0 %v9368
        %13539 = vmatpush1.bf16.msra.mxu0 %v9367
        %13540 = vmatprep.mubr.bf16.mxu0 %v2351
        %13541 = vmatmul.mubr.bf16.gmra.mrb[0].mxu0 %v2349
        %v13542 = vpop.f32.mrb[0].mxu0
        %v13543 = vadd.f32 %v13502, %v13542
        %v13544 = vpop.f32.mrb[0].mxu0
        %v13545 = vadd.f32 %v13504, %v13544
        %v13546 = vpop.f32.mrb[0].mxu0
        %v13547 = vpop.f32.mrb[0].mxu0
        %13548 = vdwg.mxu0
        %13549 = vmatprep.subr.bf16.mxu0 %v9372
        %13550 = vmatpush1.bf16.msra.mxu0 %v9371
        %13551 = vmatprep.subr.bf16.mxu0 %v9376
        %13552 = vmatpush1.bf16.msra.mxu0 %v9375
        %13553 = vmatprep.subr.bf16.mxu0 %v9380
        %13554 = vmatpush1.bf16.msra.mxu0 %v9379
        %13555 = vmatprep.subr.bf16.mxu0 %v9384
        %13556 = vmatpush1.bf16.msra.mxu0 %v9383
        %13557 = vmatprep.subr.bf16.mxu0 %v9388
        %13558 = vmatpush1.bf16.msra.mxu0 %v9387
        %13559 = vmatprep.subr.bf16.mxu0 %v9392
        %13560 = vmatpush1.bf16.msra.mxu0 %v9391
        %13561 = vmatprep.subr.bf16.mxu0 %v9396
        %13562 = vmatpush1.bf16.msra.mxu0 %v9395
        %13563 = vmatprep.subr.bf16.mxu0 %v9400
        %13564 = vmatpush1.bf16.msra.mxu0 %v9399
        %13565 = vmatprep.subr.bf16.mxu0 %v9404
        %13566 = vmatpush1.bf16.msra.mxu0 %v9403
        %13567 = vmatprep.subr.bf16.mxu0 %v9408
        %13568 = vmatpush1.bf16.msra.mxu0 %v9407
        %13569 = vmatprep.subr.bf16.mxu0 %v9412
        %13570 = vmatpush1.bf16.msra.mxu0 %v9411
        %13571 = vmatprep.subr.bf16.mxu0 %v9416
        %13572 = vmatpush1.bf16.msra.mxu0 %v9415
        %13573 = vmatprep.subr.bf16.mxu0 %v9420
        %13574 = vmatpush1.bf16.msra.mxu0 %v9419
        %13575 = vmatprep.subr.bf16.mxu0 %v9424
        %13576 = vmatpush1.bf16.msra.mxu0 %v9423
        %13577 = vmatprep.subr.bf16.mxu0 %v9428
        %13578 = vmatpush1.bf16.msra.mxu0 %v9427
        %13579 = vmatprep.subr.bf16.mxu0 %v9432
        %13580 = vmatpush1.bf16.msra.mxu0 %v9431
        %13581 = vmatprep.mubr.bf16.mxu0 %v2389
        %13582 = vmatmul.mubr.bf16.gmra.mrb[0].mxu0 %v2375
        %v13583 = vpop.f32.mrb[0].mxu0
        %v13584 = vadd.f32 %v13543, %v13583
        %v13585 = vpop.f32.mrb[0].mxu0
        %v13586 = vadd.f32 %v13545, %v13585
        %v13587 = vpop.f32.mrb[0].mxu0
        %v13588 = vpop.f32.mrb[0].mxu0
        %13589 = vdwg.mxu0
        %13590 = vmatprep.subr.bf16.mxu0 %v9436
        %13591 = vmatpush1.bf16.msra.mxu0 %v9435
        %13592 = vmatprep.subr.bf16.mxu0 %v9440
        %13593 = vmatpush1.bf16.msra.mxu0 %v9439
        %13594 = vmatprep.subr.bf16.mxu0 %v9444
        %13595 = vmatpush1.bf16.msra.mxu0 %v9443
        %13596 = vmatprep.subr.bf16.mxu0 %v9448
        %13597 = vmatpush1.bf16.msra.mxu0 %v9447
        %13598 = vmatprep.subr.bf16.mxu0 %v9452
        %13599 = vmatpush1.bf16.msra.mxu0 %v9451
        %13600 = vmatprep.subr.bf16.mxu0 %v9456
        %13601 = vmatpush1.bf16.msra.mxu0 %v9455
        %13602 = vmatprep.subr.bf16.mxu0 %v9460
        %13603 = vmatpush1.bf16.msra.mxu0 %v9459
        %13604 = vmatprep.subr.bf16.mxu0 %v9464
        %13605 = vmatpush1.bf16.msra.mxu0 %v9463
        %13606 = vmatprep.subr.bf16.mxu0 %v9468
        %13607 = vmatpush1.bf16.msra.mxu0 %v9467
        %13608 = vmatprep.subr.bf16.mxu0 %v9472
        %13609 = vmatpush1.bf16.msra.mxu0 %v9471
        %13610 = vmatprep.subr.bf16.mxu0 %v9476
        %13611 = vmatpush1.bf16.msra.mxu0 %v9475
        %13612 = vmatprep.subr.bf16.mxu0 %v9480
        %13613 = vmatpush1.bf16.msra.mxu0 %v9479
        %13614 = vmatprep.subr.bf16.mxu0 %v9484
        %13615 = vmatpush1.bf16.msra.mxu0 %v9483
        %13616 = vmatprep.subr.bf16.mxu0 %v9488
        %13617 = vmatpush1.bf16.msra.mxu0 %v9487
        %13618 = vmatprep.subr.bf16.mxu0 %v9492
        %13619 = vmatpush1.bf16.msra.mxu0 %v9491
        %13620 = vmatprep.subr.bf16.mxu0 %v9496
        %13621 = vmatpush1.bf16.msra.mxu0 %v9495
        %13622 = vmatprep.mubr.bf16.mxu0 %v2399
        %13623 = vmatmul.mubr.bf16.gmra.mrb[0].mxu0 %v2397
        %v13624 = vpop.f32.mrb[0].mxu0
        %v13625 = vadd.f32 %v13584, %v13624
        %v13626 = vpop.f32.mrb[0].mxu0
        %v13627 = vadd.f32 %v13586, %v13626
        %v13628 = vpop.f32.mrb[0].mxu0
        %v13629 = vpop.f32.mrb[0].mxu0
        %13630 = vdwg.mxu0
        %13631 = vmatprep.subr.bf16.mxu0 %v9500
        %13632 = vmatpush1.bf16.msra.mxu0 %v9499
        %13633 = vmatprep.subr.bf16.mxu0 %v9504
        %13634 = vmatpush1.bf16.msra.mxu0 %v9503
        %13635 = vmatprep.subr.bf16.mxu0 %v9508
        %13636 = vmatpush1.bf16.msra.mxu0 %v9507
        %13637 = vmatprep.subr.bf16.mxu0 %v9512
        %13638 = vmatpush1.bf16.msra.mxu0 %v9511
        %13639 = vmatprep.subr.bf16.mxu0 %v9516
        %13640 = vmatpush1.bf16.msra.mxu0 %v9515
        %13641 = vmatprep.subr.bf16.mxu0 %v9520
        %13642 = vmatpush1.bf16.msra.mxu0 %v9519
        %13643 = vmatprep.subr.bf16.mxu0 %v9524
        %13644 = vmatpush1.bf16.msra.mxu0 %v9523
        %13645 = vmatprep.subr.bf16.mxu0 %v9528
        %13646 = vmatpush1.bf16.msra.mxu0 %v9527
        %13647 = vmatprep.subr.bf16.mxu0 %v9532
        %13648 = vmatpush1.bf16.msra.mxu0 %v9531
        %13649 = vmatprep.subr.bf16.mxu0 %v9536
        %13650 = vmatpush1.bf16.msra.mxu0 %v9535
        %13651 = vmatprep.subr.bf16.mxu0 %v9540
        %13652 = vmatpush1.bf16.msra.mxu0 %v9539
        %13653 = vmatprep.subr.bf16.mxu0 %v9544
        %13654 = vmatpush1.bf16.msra.mxu0 %v9543
        %13655 = vmatprep.subr.bf16.mxu0 %v9548
        %13656 = vmatpush1.bf16.msra.mxu0 %v9547
        %13657 = vmatprep.subr.bf16.mxu0 %v9552
        %13658 = vmatpush1.bf16.msra.mxu0 %v9551
        %13659 = vmatprep.subr.bf16.mxu0 %v9556
        %13660 = vmatpush1.bf16.msra.mxu0 %v9555
        %13661 = vmatprep.subr.bf16.mxu0 %v9560
        %13662 = vmatpush1.bf16.msra.mxu0 %v9559
        %13663 = vmatprep.mubr.bf16.mxu0 %v2396
        %13664 = vmatmul.mubr.bf16.gmra.mrb[0].mxu0 %v2382
        %v13665 = vpop.f32.mrb[0].mxu0
        %v13666 = vadd.f32 %v13625, %v13665
        %v13667 = vpop.f32.mrb[0].mxu0
        %v13668 = vadd.f32 %v13627, %v13667
        %v13669 = vpop.f32.mrb[0].mxu0
        %v13670 = vpop.f32.mrb[0].mxu0
        %13671 = vdwg.mxu0
        %13672 = vmatprep.subr.bf16.mxu0 %v9564
        %13673 = vmatpush1.bf16.msra.mxu0 %v9563
        %13674 = vmatprep.subr.bf16.mxu0 %v9568
        %13675 = vmatpush1.bf16.msra.mxu0 %v9567
        %13676 = vmatprep.subr.bf16.mxu0 %v9572
        %13677 = vmatpush1.bf16.msra.mxu0 %v9571
        %13678 = vmatprep.subr.bf16.mxu0 %v9576
        %13679 = vmatpush1.bf16.msra.mxu0 %v9575
        %13680 = vmatprep.subr.bf16.mxu0 %v9580
        %13681 = vmatpush1.bf16.msra.mxu0 %v9579
        %13682 = vmatprep.subr.bf16.mxu0 %v9584
        %13683 = vmatpush1.bf16.msra.mxu0 %v9583
        %13684 = vmatprep.subr.bf16.mxu0 %v9588
        %13685 = vmatpush1.bf16.msra.mxu0 %v9587
        %13686 = vmatprep.subr.bf16.mxu0 %v9592
        %13687 = vmatpush1.bf16.msra.mxu0 %v9591
        %13688 = vmatprep.subr.bf16.mxu0 %v9596
        %13689 = vmatpush1.bf16.msra.mxu0 %v9595
        %13690 = vmatprep.subr.bf16.mxu0 %v9600
        %13691 = vmatpush1.bf16.msra.mxu0 %v9599
        %13692 = vmatprep.subr.bf16.mxu0 %v9604
        %13693 = vmatpush1.bf16.msra.mxu0 %v9603
        %13694 = vmatprep.subr.bf16.mxu0 %v9608
        %13695 = vmatpush1.bf16.msra.mxu0 %v9607
        %13696 = vmatprep.subr.bf16.mxu0 %v9612
        %13697 = vmatpush1.bf16.msra.mxu0 %v9611
        %13698 = vmatprep.subr.bf16.mxu0 %v9616
        %13699 = vmatpush1.bf16.msra.mxu0 %v9615
        %13700 = vmatprep.subr.bf16.mxu0 %v9620
        %13701 = vmatpush1.bf16.msra.mxu0 %v9619
        %13702 = vmatprep.subr.bf16.mxu0 %v9624
        %13703 = vmatpush1.bf16.msra.mxu0 %v9623
        %13704 = vmatprep.mubr.bf16.mxu0 %v2400
        %13705 = vmatmul.mubr.bf16.gmra.mrb[0].mxu0 %v2398
        %v13706 = vpop.f32.mrb[0].mxu0
        %v13707 = vadd.f32 %v13666, %v13706
        %v13708 = vpop.f32.mrb[0].mxu0
        %v13709 = vadd.f32 %v13668, %v13708
        %v13710 = vpop.f32.mrb[0].mxu0
        %v13711 = vpop.f32.mrb[0].mxu0
        %13712 = vdwg.mxu0
        %v13717 = vcombine.low %v12559, %v12561
        %v13718 = vcombine.low %v13707, %v13709
        %v13720 = vunpack.c.l.s4 1983009808
        %v13721 = vunpack.c.0.s8 %v13720
        %v13722 = vlaneseq
        %v13723 = vshrl.u32 %v13722, 7
        %v13724 = vsub.s32 %v13721, %v13723
        %v13725 = vrot.slane %v13717, %v13724
        %v13727 = vunpack.c.l.s4 1983009808
        %v13728 = vunpack.c.0.s8 %v13727
        %v13729 = vlaneseq
        %v13730 = vshrl.u32 %v13729, 7
        %v13731 = vsub.s32 %v13728, %v13730
        %v13732 = vrot.slane %v13718, %v13731
        %v13733 = vcombine.low %v13725, %v13732
        %v13735 = vadd.f32 %v251, %v13733
        %13736 = vst [vmem:[#allocation2] sm:$0xff] %v13735
        %p13737 = scmp.eq.s32.totalorder %s22, 13
        // Predicated region
        $region41: #{inverse_net_forward.1} parent=31 // pred_check
          %p13738 = pneg %p13737
        $region42: #{inverse_net_forward.1} parent=31 // pred_check_branch
          %13740 = sbr.rel (%p13738) target = $region44
        $region43: #{inverse_net_forward.1} parent=31 // pred_region
          %v13741 = vld [vmem:[#allocation2] sm:$0xff]
          %v13742 = vld [vmem:[%s239] sm:$0xf]
          %v13744 = vlaneseq
          %v13745 = vshrl.u32 %v13744, 7
          %v13746 = vsub.s32 0, %v13745
          %v13747 = vrot.slane %v13742, %v13746
          %v13748 = vlaneseq
          %v13749 = vshrl.u32 %v13748, 7
          %v13750 = vsub.s32 1, %v13749
          %v13751 = vrot.slane %v13742, %v13750
          %v13752 = vlaneseq
          %v13753 = vshrl.u32 %v13752, 7
          %v13754 = vsub.s32 2, %v13753
          %v13755 = vrot.slane %v13742, %v13754
          %v13756 = vlaneseq
          %v13757 = vshrl.u32 %v13756, 7
          %v13758 = vsub.s32 3, %v13757
          %v13759 = vrot.slane %v13742, %v13758
          %v13760 = vcombine.low %v13747, %v13751
          %v13761 = vcombine.low %v13755, %v13759
          %v13763 = vunpack.c.l.s4 1983009808
          %v13764 = vunpack.c.0.s8 %v13763
          %v13765 = vlaneseq
          %v13766 = vshrl.u32 %v13765, 7
          %v13767 = vsub.s32 %v13764, %v13766
          %v13768 = vrot.slane %v13760, %v13767
          %v13770 = vunpack.c.l.s4 1983009808
          %v13771 = vunpack.c.0.s8 %v13770
          %v13772 = vlaneseq
          %v13773 = vshrl.u32 %v13772, 7
          %v13774 = vsub.s32 %v13771, %v13773
          %v13775 = vrot.slane %v13761, %v13774
          %v13776 = vcombine.low %v13768, %v13775
          %v13778 = vadd.f32 %v13741, %v13776
          %v13779 = vmax.f32 %v13778, 0.0
          %13780 = vst [vmem:[%s244] sm:$0xff] %v13779
        $region44: #{inverse_net_forward.1} parent=31 // pred_fallthru
          _
        %s13781 = smul.u32 4, %s21
        %p13782 = scmp.lt.s32.totalorder %s13781, 7
        %s13783 = scalar_select %p13782, %s13781, 7
        %s13784 = smul.addr %s13783, 2
        %s13785 = scalar_lea.vmem %s3, %s13784
        // Predicated region
        $region45: #{inverse_net_forward.1} parent=31 // pred_check
          %p13786 = pneg %p127
        $region46: #{inverse_net_forward.1} parent=31 // pred_check_branch
          %13788 = sbr.rel (%p13786) target = $region48
        $region47: #{inverse_net_forward.1} parent=31 // pred_region
          %s13789 = smul.u32 4, %s21
        $region48: #{inverse_net_forward.1} parent=31 // pred_fallthru
          _
      $region32: #{inverse_net_forward.1} parent=5 // pred_fallthru
        _
      %p13790 = scmp.le.s32.totalorder 2, %s12
      // Predicated region
      $region49: #{inverse_net_forward.1} parent=5 // pred_check
        %p13791 = pneg %p13790
      $region50: #{inverse_net_forward.1} parent=5 // pred_check_branch
        %13793 = sbr.rel (%p13791) target = $region52
      $region51: #{inverse_net_forward.1} parent=5 // pred_region
        %s13794 = ssub.s32 %s12, 2
        // Predicated region
        $region53: #{inverse_net_forward.1} parent=51 // pred_check
          %p13795 = pneg %p133
        $region54: #{inverse_net_forward.1} parent=51 // pred_check_branch
          %13797 = sbr.rel (%p13795) target = $region56
        $region55: #{inverse_net_forward.1} parent=51 // pred_region
          %s13798 = smul.u32 4, %s23
          %p13799 = scmp.lt.s32.totalorder %s13798, 7
          %s13800 = scalar_select %p13799, %s13798, 7
          %s13801 = smul.addr %s13800, 2
          %s13802 = scalar_lea.vmem %s3, %s13801
        $region56: #{inverse_net_forward.1} parent=51 // pred_fallthru
          _
      $region52: #{inverse_net_forward.1} parent=5 // pred_fallthru
        _
    $region6: #{inverse_net_forward.1} parent=1 // loop_footer
      %s16 = sadd.s32 1, %s12
    $region7: #{inverse_net_forward.1} parent=1 // loop_footer_branch
      %11 = sbr.rel target = $region3
    $region8: #{inverse_net_forward.1} parent=1 // loop_exit
      _
    %13803 = vsyncpa [#allocation4], 1
    %s13804 = scalar_lea.sflag [#allocation4], 1
    %13805 = vsyncpa %s13804, 1

</llo_original>
